<compile_context>
chip_gen: v6e
topology: v6e:2x2x1
jax: 0.10.0
libtpu: 0.0.40
codegen_flags: <defaults>
</compile_context>

<pallas_src>
import functools

import numpy as np
import jax
import jax.numpy as jnp
from jax import lax
from jax.experimental import pallas as pl
from jax.experimental.pallas import tpu as pltpu


_COMPILER_PARAMS = pltpu.CompilerParams(vmem_limit_bytes=32 * 1024 * 1024)


def _round_up(x, m):
    return (x + m - 1) // m * m


def _pad_to(a, shape):
    return jnp.pad(a, [(0, s - d) for d, s in zip(a.shape, shape)])


def _gather_cat(n, hi, wi, ho, wo, src_pad, dst_pad):
    """Concatenated 0/1 gather matrix G of shape (src_pad, 9*dst_pad) s.t. for
    tap t = i*3+j of a k=3, stride=2, pad=1 conv:
        (X @ G)[c, t*dst_pad + (b*ho*wo + oh*wo + ow)] == Xpad[b, c, 2oh+i, 2ow+j]
    where X is (C, src) with column index b*hi*wi + r*wi + cc.  Rows >= src and
    columns >= n*ho*wo inside each tap block are zero (inert padding)."""
    src = n * hi * wi
    dst = n * ho * wo
    assert src <= src_pad and dst <= dst_pad
    g = np.zeros((src_pad, 9, dst_pad), np.float32)
    for i in range(3):
        for j in range(3):
            t = i * 3 + j
            for b in range(n):
                for oh in range(ho):
                    r = 2 * oh + i - 1
                    if not 0 <= r < hi:
                        continue
                    for ow in range(wo):
                        c = 2 * ow + j - 1
                        if 0 <= c < wi:
                            g[b * hi * wi + r * wi + c, t,
                              b * ho * wo + oh * wo + ow] = 1.0
    return jnp.asarray(g.reshape(src_pad, 9 * dst_pad))


# ----------------------------------------------------------------------------
# Kernel A: fused conv encoder (3 stride-2 convs + ReLU), lane-dense layout
# ----------------------------------------------------------------------------
def _conv_stack_kernel(col1_ref, w1_ref, b1_ref,
                       g2_ref, w2_ref, b2_ref,
                       g3_ref, w3_ref, b3_ref,
                       h3_ref, h1_scr, h2_scr):
    c1, m1 = h1_scr.shape      # (64, N*256)
    c2, m2p = h2_scr.shape     # (32, pad128(N*64))
    c3, m3p = h3_ref.shape     # (32, pad128(N*16))

    # conv1: Cin=1 so the contraction depth is only 9 -> 9 VPU outer-product
    # MADDs, (64,1)*(1,M1), instead of a wasted MXU pass.
    acc1 = jnp.zeros((c1, m1), jnp.float32)
    for t in range(9):
        acc1 = acc1 + w1_ref[t] * col1_ref[t]
    h1_scr[...] = jnp.maximum(acc1 + b1_ref[...], 0.0)

    # conv2: one wide gather matmul (im2col expressed as matmul with a 0/1
    # gather matrix, tap blocks padded to 128 lanes), then 9 per-tap
    # lane-aligned (Cout, Cin) @ (Cin, M2p) weight matmuls.  All in VMEM.
    cols2 = jnp.dot(h1_scr[...], g2_ref[...],
                    preferred_element_type=jnp.float32)          # (64, 9*M2p)
    acc2 = jnp.zeros((c2, m2p), jnp.float32)
    for t in range(9):
        acc2 = acc2 + jnp.dot(w2_ref[t], cols2[:, t * m2p:(t + 1) * m2p],
                              preferred_element_type=jnp.float32)
    h2_scr[...] = jnp.maximum(acc2 + b2_ref[...], 0.0)

    # conv3: same scheme.  Padded lanes of h2 hit zero gather rows -> inert.
    cols3 = jnp.dot(h2_scr[...], g3_ref[...],
                    preferred_element_type=jnp.float32)          # (32, 9*M3p)
    acc3 = jnp.zeros((c3, m3p), jnp.float32)
    for t in range(9):
        acc3 = acc3 + jnp.dot(w3_ref[t], cols3[:, t * m3p:(t + 1) * m3p],
                              preferred_element_type=jnp.float32)
    h3_ref[...] = jnp.maximum(acc3 + b3_ref[...], 0.0)


def conv_encoder(x, cp):
    """x: (N, 1, 32, 32) f32 -> (N, 512) channel-major flattened features."""
    n = x.shape[0]
    m1, m2p, m3p = cp["m1"], cp["m2p"], cp["m3p"]
    m3 = n * 16
    assert m1 == n * 256 and cp["g2"].shape == (m1, 9 * m2p)
    assert cp["g3"].shape == (m2p, 9 * m3p)

    # im2col for the raw input only (one cheap XLA gather);
    # col1[t, 0, n*256 + oh*16 + ow] == xpad[n, 2*oh + i, 2*ow + j], t = i*3+j.
    xp = jnp.pad(x[:, 0], ((0, 0), (1, 1), (1, 1)))
    taps = [xp[:, i:i + 32:2, j:j + 32:2] for i in range(3) for j in range(3)]
    col1 = jnp.stack(taps, axis=0).reshape(9, 1, m1)

    h3 = pl.pallas_call(
        _conv_stack_kernel,
        out_shape=jax.ShapeDtypeStruct((32, m3p), jnp.float32),
        scratch_shapes=[pltpu.VMEM((64, m1), jnp.float32),
                        pltpu.VMEM((32, m2p), jnp.float32)],
        compiler_params=_COMPILER_PARAMS,
    )(col1, cp["w1"], cp["b1"], cp["g2"], cp["w2"], cp["b2"],
      cp["g3"], cp["w3"], cp["b3"])

    # Channel-major flatten, identical to torch .reshape(N, -1) on NCHW.
    # (Tiny (32, N*16) transpose kept as XLA glue between the two kernels.)
    return h3[:, :m3].reshape(32, n, 16).transpose(1, 0, 2).reshape(n, 32 * 16)


# ----------------------------------------------------------------------------
# Kernel B: fused FC chain, all weights VMEM-resident, 1000 padded to 1024
# ----------------------------------------------------------------------------
def _fc_chain_kernel(x_ref, we_ref, be_ref, wd1_ref, bd1_ref,
                     wd2_ref, bd2_ref, wd3_ref, bd3_ref,
                     hid_ref, out_ref):
    h = jnp.dot(x_ref[...], we_ref[...],
                preferred_element_type=jnp.float32) + be_ref[...]
    h = jax.nn.sigmoid(h)
    hid_ref[...] = h
    d = jnp.dot(h, wd1_ref[...],
                preferred_element_type=jnp.float32) + bd1_ref[...]
    d = jnp.maximum(d, 0.0)
    d = jnp.dot(d, wd2_ref[...],
                preferred_element_type=jnp.float32) + bd2_ref[...]
    d = jnp.maximum(d, 0.0)
    o = jnp.dot(d, wd3_ref[...],
                preferred_element_type=jnp.float32) + bd3_ref[...]
    out_ref[...] = jax.nn.sigmoid(o)


def fc_chain(flat, cp):
    n = flat.shape[0]
    hid_p, out_p = pl.pallas_call(
        _fc_chain_kernel,
        out_shape=(jax.ShapeDtypeStruct((n, cp["hidden_pad"]), jnp.float32),
                   jax.ShapeDtypeStruct((n, cp["out_pad"]), jnp.float32)),
        compiler_params=_COMPILER_PARAMS,
    )(flat, cp["we"], cp["be"], cp["wd1"], cp["bd1"],
      cp["wd2"], cp["bd2"], cp["wd3"], cp["bd3"])
    # Slice away the lane padding (padded W rows/cols are zero, so exact).
    return out_p[:, :cp["out_dim"]], hid_p[:, :cp["hidden_dim"]]


# ----------------------------------------------------------------------------
# Parameters (PyTorch layout) + one-time kernel-ready preparation
# ----------------------------------------------------------------------------
def init_params(key, input_size):
    def dense(key, fan_in, shape):
        scale = 1.0 / jnp.sqrt(float(fan_in))
        return jax.random.uniform(key, shape, jnp.float32, -scale, scale)

    keys = jax.random.split(key, 14)
    return {
        "convs": [
            (dense(keys[0], 1 * 9, (64, 1, 3, 3)), dense(keys[1], 1 * 9, (64,))),
            (dense(keys[2], 64 * 9, (32, 64, 3, 3)), dense(keys[3], 64 * 9, (32,))),
            (dense(keys[4], 32 * 9, (32, 32, 3, 3)), dense(keys[5], 32 * 9, (32,))),
        ],
        # Linear weights stored as (in, out) so kernels compute x @ W + b
        "enc_fc": (dense(keys[6], 512, (512, 1000)), dense(keys[7], 512, (1000,))),
        "dec_fc": [
            (dense(keys[8], 1000, (1000, 256)), dense(keys[9], 1000, (256,))),
            (dense(keys[10], 256, (256, 512)), dense(keys[11], 256, (512,))),
            (dense(keys[12], 512, (512, input_size)), dense(keys[13], 512, (input_size,))),
        ],
    }


def prepare_params(params, batch):
    """Reshape / pad / cast all weights once into kernel-ready form."""
    cp = {}
    (w1, b1), (w2, b2), (w3, b3) = params["convs"]
    # conv1: per-tap (9, 64, 1) column vectors for the VPU outer products.
    cp["w1"] = jnp.asarray(w1, jnp.float32).reshape(64, 9).T.reshape(9, 64, 1)
    cp["b1"] = jnp.asarray(b1, jnp.float32).reshape(64, 1)
    # conv2/conv3: per-tap (9, Cout, Cin) weight slabs (tap t = i*3 + j).
    cp["w2"] = jnp.asarray(w2, jnp.float32).transpose(2, 3, 0, 1).reshape(9, 32, 64)
    cp["b2"] = jnp.asarray(b2, jnp.float32).reshape(32, 1)
    cp["w3"] = jnp.asarray(w3, jnp.float32).transpose(2, 3, 0, 1).reshape(9, 32, 32)
    cp["b3"] = jnp.asarray(b3, jnp.float32).reshape(32, 1)
    # Concatenated gather matrices for the in-kernel stride-2/pad-1 im2col.
    m1 = batch * 256
    m2p = _round_up(batch * 64, 128)
    m3p = _round_up(batch * 16, 128)
    cp["m1"], cp["m2p"], cp["m3p"] = m1, m2p, m3p
    cp["g2"] = _gather_cat(batch, 16, 16, 8, 8, m1, m2p)   # (N*256, 9*m2p)
    cp["g3"] = _gather_cat(batch, 8, 8, 4, 4, m2p, m3p)    # (m2p,   9*m3p)

    we, be = params["enc_fc"]
    (wd1, bd1), (wd2, bd2), (wd3, bd3) = params["dec_fc"]
    hidden_dim = we.shape[1]
    out_dim = wd3.shape[1]
    hidden_pad = _round_up(hidden_dim, 128)   # 1000 -> 1024 (lane-dense)
    out_pad = _round_up(out_dim, 128)

    cp["we"] = _pad_to(jnp.asarray(we, jnp.float32), (we.shape[0], hidden_pad))
    cp["be"] = _pad_to(jnp.asarray(be, jnp.float32).reshape(1, -1), (1, hidden_pad))
    cp["wd1"] = _pad_to(jnp.asarray(wd1, jnp.float32), (hidden_pad, wd1.shape[1]))
    cp["bd1"] = jnp.asarray(bd1, jnp.float32).reshape(1, -1)
    cp["wd2"] = jnp.asarray(wd2, jnp.float32)
    cp["bd2"] = jnp.asarray(bd2, jnp.float32).reshape(1, -1)
    cp["wd3"] = _pad_to(jnp.asarray(wd3, jnp.float32), (wd3.shape[0], out_pad))
    cp["bd3"] = _pad_to(jnp.asarray(bd3, jnp.float32).reshape(1, -1), (1, out_pad))
    cp["hidden_dim"], cp["hidden_pad"] = hidden_dim, hidden_pad
    cp["out_dim"], cp["out_pad"] = out_dim, out_pad
    return cp


# ----------------------------------------------------------------------------
# Forward pass (mirrors bae_cnn.forward) + pure-JAX reference
# ----------------------------------------------------------------------------
def bae_cnn_forward(cp, x, refractory=0):
    # `refractory` is unused by the original module's forward; kept for parity.
    flat = conv_encoder(x, cp)            # encoder_seq1 + flatten
    recon, hidden = fc_chain(flat, cp)    # encoder_seq2 + decoder_seq
    return recon, hidden, hidden


def reference_forward(params, x):
    h = x
    for (w, b) in params["convs"]:
        h = lax.conv_general_dilated(
            h, w, window_strides=(2, 2), padding=((1, 1), (1, 1)),
            dimension_numbers=("NCHW", "OIHW", "NCHW"),
            precision=lax.Precision.HIGHEST)
        h = jnp.maximum(h + b.reshape(1, -1, 1, 1), 0.0)
    h = h.reshape(h.shape[0], -1)
    we, be = params["enc_fc"]
    hidden = jax.nn.sigmoid(jnp.dot(h, we, precision=lax.Precision.HIGHEST) + be)
    d = hidden
    for idx, (w, b) in enumerate(params["dec_fc"]):
        d = jnp.dot(d, w, precision=lax.Precision.HIGHEST) + b
        d = jax.nn.sigmoid(d) if idx == 2 else jnp.maximum(d, 0.0)
    return d, hidden


if __name__ == "__main__":
    # encoder_hidden_size = 32 * 4 * 4 implies a 32x32 single-channel input
    # (three stride-2 convs: 32 -> 16 -> 8 -> 4).
    batch = 2
    H = W = 32
    input_size = H * W

    key = jax.random.PRNGKey(0)
    k_param, k_x = jax.random.split(key)
    params = init_params(k_param, input_size)
    x = jax.random.uniform(k_x, (batch, 1, H, W), jnp.float32)  # NCHW

    cp = prepare_params(params, batch)
    fwd = jax.jit(functools.partial(bae_cnn_forward, cp))
    recon, hidden, hidden2 = fwd(x)
    jax.block_until_ready((recon, hidden, hidden2))

    assert recon.shape == (batch, input_size)
    assert hidden.shape == (batch, 1000)
    assert hidden2.shape == (batch, 1000)
    assert bool(jnp.all(jnp.isfinite(recon)))
    assert bool(jnp.all((recon >= 0.0) & (recon <= 1.0)))
    assert bool(jnp.all((hidden >= 0.0) & (hidden <= 1.0)))

    # Numerical parity with a plain-JAX (XLA) reference of the PyTorch module.
    ref_recon, ref_hidden = reference_forward(params, x)
    assert bool(jnp.allclose(hidden, ref_hidden, rtol=2e-3, atol=2e-3)), \
        float(jnp.max(jnp.abs(hidden - ref_hidden)))
    assert bool(jnp.allclose(recon, ref_recon, rtol=2e-3, atol=2e-3)), \
        float(jnp.max(jnp.abs(recon - ref_recon)))

    print("KERNEL_OK")
</pallas_src>

<mosaic_0001>
module attributes {stable_mosaic.version = 11 : i64} {
  func.func @_conv_stack_kernel(%arg0: memref<9x1x512xf32, #tpu.memory_space<vmem>>, %arg1: memref<9x64x1xf32, #tpu.memory_space<vmem>>, %arg2: memref<64x1xf32, #tpu.memory_space<vmem>>, %arg3: memref<512x1152xf32, #tpu.memory_space<vmem>>, %arg4: memref<9x32x64xf32, #tpu.memory_space<vmem>>, %arg5: memref<32x1xf32, #tpu.memory_space<vmem>>, %arg6: memref<128x1152xf32, #tpu.memory_space<vmem>>, %arg7: memref<9x32x32xf32, #tpu.memory_space<vmem>>, %arg8: memref<32x1xf32, #tpu.memory_space<vmem>>, %arg9: memref<32x128xf32, #tpu.memory_space<vmem>>, %arg10: memref<64x512xf32, #tpu.memory_space<vmem>>, %arg11: memref<32x128xf32, #tpu.memory_space<vmem>>) attributes {dimension_semantics = [], scalar_prefetch = 0 : i64, scratch_operands = 2 : i64, tpu.core_type = #tpu.core_type<tc>} {
    %cst = arith.constant 0.000000e+00 : f32
    %0 = vector.broadcast %cst : f32 to vector<64x512xf32>
    %c0 = arith.constant 0 : index
    %c0_0 = arith.constant 0 : index
    %c0_1 = arith.constant 0 : index
    %1 = vector.load %arg1[%c0, %c0_0, %c0_1] : memref<9x64x1xf32, #tpu.memory_space<vmem>>, vector<1x64x1xf32>
    %2 = vector.shape_cast %1 : vector<1x64x1xf32> to vector<64x1xf32>
    %c0_2 = arith.constant 0 : index
    %c0_3 = arith.constant 0 : index
    %c0_4 = arith.constant 0 : index
    %3 = vector.load %arg0[%c0_2, %c0_3, %c0_4] : memref<9x1x512xf32, #tpu.memory_space<vmem>>, vector<1x1x512xf32>
    %4 = vector.shape_cast %3 : vector<1x1x512xf32> to vector<1x512xf32>
    %5 = vector.broadcast %2 : vector<64x1xf32> to vector<64x512xf32>
    %6 = vector.broadcast %4 : vector<1x512xf32> to vector<64x512xf32>
    %7 = arith.mulf %5, %6 : vector<64x512xf32>
    %8 = arith.addf %0, %7 : vector<64x512xf32>
    %c1 = arith.constant 1 : index
    %c0_5 = arith.constant 0 : index
    %c0_6 = arith.constant 0 : index
    %9 = vector.load %arg1[%c1, %c0_5, %c0_6] : memref<9x64x1xf32, #tpu.memory_space<vmem>>, vector<1x64x1xf32>
    %10 = vector.shape_cast %9 : vector<1x64x1xf32> to vector<64x1xf32>
    %c1_7 = arith.constant 1 : index
    %c0_8 = arith.constant 0 : index
    %c0_9 = arith.constant 0 : index
    %11 = vector.load %arg0[%c1_7, %c0_8, %c0_9] : memref<9x1x512xf32, #tpu.memory_space<vmem>>, vector<1x1x512xf32>
    %12 = vector.shape_cast %11 : vector<1x1x512xf32> to vector<1x512xf32>
    %13 = vector.broadcast %10 : vector<64x1xf32> to vector<64x512xf32>
    %14 = vector.broadcast %12 : vector<1x512xf32> to vector<64x512xf32>
    %15 = arith.mulf %13, %14 : vector<64x512xf32>
    %16 = arith.addf %8, %15 : vector<64x512xf32>
    %c2 = arith.constant 2 : index
    %c0_10 = arith.constant 0 : index
    %c0_11 = arith.constant 0 : index
    %17 = vector.load %arg1[%c2, %c0_10, %c0_11] : memref<9x64x1xf32, #tpu.memory_space<vmem>>, vector<1x64x1xf32>
    %18 = vector.shape_cast %17 : vector<1x64x1xf32> to vector<64x1xf32>
    %c2_12 = arith.constant 2 : index
    %c0_13 = arith.constant 0 : index
    %c0_14 = arith.constant 0 : index
    %19 = vector.load %arg0[%c2_12, %c0_13, %c0_14] : memref<9x1x512xf32, #tpu.memory_space<vmem>>, vector<1x1x512xf32>
    %20 = vector.shape_cast %19 : vector<1x1x512xf32> to vector<1x512xf32>
    %21 = vector.broadcast %18 : vector<64x1xf32> to vector<64x512xf32>
    %22 = vector.broadcast %20 : vector<1x512xf32> to vector<64x512xf32>
    %23 = arith.mulf %21, %22 : vector<64x512xf32>
    %24 = arith.addf %16, %23 : vector<64x512xf32>
    %c3 = arith.constant 3 : index
    %c0_15 = arith.constant 0 : index
    %c0_16 = arith.constant 0 : index
    %25 = vector.load %arg1[%c3, %c0_15, %c0_16] : memref<9x64x1xf32, #tpu.memory_space<vmem>>, vector<1x64x1xf32>
    %26 = vector.shape_cast %25 : vector<1x64x1xf32> to vector<64x1xf32>
    %c3_17 = arith.constant 3 : index
    %c0_18 = arith.constant 0 : index
    %c0_19 = arith.constant 0 : index
    %27 = vector.load %arg0[%c3_17, %c0_18, %c0_19] : memref<9x1x512xf32, #tpu.memory_space<vmem>>, vector<1x1x512xf32>
    %28 = vector.shape_cast %27 : vector<1x1x512xf32> to vector<1x512xf32>
    %29 = vector.broadcast %26 : vector<64x1xf32> to vector<64x512xf32>
    %30 = vector.broadcast %28 : vector<1x512xf32> to vector<64x512xf32>
    %31 = arith.mulf %29, %30 : vector<64x512xf32>
    %32 = arith.addf %24, %31 : vector<64x512xf32>
    %c4 = arith.constant 4 : index
    %c0_20 = arith.constant 0 : index
    %c0_21 = arith.constant 0 : index
    %33 = vector.load %arg1[%c4, %c0_20, %c0_21] : memref<9x64x1xf32, #tpu.memory_space<vmem>>, vector<1x64x1xf32>
    %34 = vector.shape_cast %33 : vector<1x64x1xf32> to vector<64x1xf32>
    %c4_22 = arith.constant 4 : index
    %c0_23 = arith.constant 0 : index
    %c0_24 = arith.constant 0 : index
    %35 = vector.load %arg0[%c4_22, %c0_23, %c0_24] : memref<9x1x512xf32, #tpu.memory_space<vmem>>, vector<1x1x512xf32>
    %36 = vector.shape_cast %35 : vector<1x1x512xf32> to vector<1x512xf32>
    %37 = vector.broadcast %34 : vector<64x1xf32> to vector<64x512xf32>
    %38 = vector.broadcast %36 : vector<1x512xf32> to vector<64x512xf32>
    %39 = arith.mulf %37, %38 : vector<64x512xf32>
    %40 = arith.addf %32, %39 : vector<64x512xf32>
    %c5 = arith.constant 5 : index
    %c0_25 = arith.constant 0 : index
    %c0_26 = arith.constant 0 : index
    %41 = vector.load %arg1[%c5, %c0_25, %c0_26] : memref<9x64x1xf32, #tpu.memory_space<vmem>>, vector<1x64x1xf32>
    %42 = vector.shape_cast %41 : vector<1x64x1xf32> to vector<64x1xf32>
    %c5_27 = arith.constant 5 : index
    %c0_28 = arith.constant 0 : index
    %c0_29 = arith.constant 0 : index
    %43 = vector.load %arg0[%c5_27, %c0_28, %c0_29] : memref<9x1x512xf32, #tpu.memory_space<vmem>>, vector<1x1x512xf32>
    %44 = vector.shape_cast %43 : vector<1x1x512xf32> to vector<1x512xf32>
    %45 = vector.broadcast %42 : vector<64x1xf32> to vector<64x512xf32>
    %46 = vector.broadcast %44 : vector<1x512xf32> to vector<64x512xf32>
    %47 = arith.mulf %45, %46 : vector<64x512xf32>
    %48 = arith.addf %40, %47 : vector<64x512xf32>
    %c6 = arith.constant 6 : index
    %c0_30 = arith.constant 0 : index
    %c0_31 = arith.constant 0 : index
    %49 = vector.load %arg1[%c6, %c0_30, %c0_31] : memref<9x64x1xf32, #tpu.memory_space<vmem>>, vector<1x64x1xf32>
    %50 = vector.shape_cast %49 : vector<1x64x1xf32> to vector<64x1xf32>
    %c6_32 = arith.constant 6 : index
    %c0_33 = arith.constant 0 : index
    %c0_34 = arith.constant 0 : index
    %51 = vector.load %arg0[%c6_32, %c0_33, %c0_34] : memref<9x1x512xf32, #tpu.memory_space<vmem>>, vector<1x1x512xf32>
    %52 = vector.shape_cast %51 : vector<1x1x512xf32> to vector<1x512xf32>
    %53 = vector.broadcast %50 : vector<64x1xf32> to vector<64x512xf32>
    %54 = vector.broadcast %52 : vector<1x512xf32> to vector<64x512xf32>
    %55 = arith.mulf %53, %54 : vector<64x512xf32>
    %56 = arith.addf %48, %55 : vector<64x512xf32>
    %c7 = arith.constant 7 : index
    %c0_35 = arith.constant 0 : index
    %c0_36 = arith.constant 0 : index
    %57 = vector.load %arg1[%c7, %c0_35, %c0_36] : memref<9x64x1xf32, #tpu.memory_space<vmem>>, vector<1x64x1xf32>
    %58 = vector.shape_cast %57 : vector<1x64x1xf32> to vector<64x1xf32>
    %c7_37 = arith.constant 7 : index
    %c0_38 = arith.constant 0 : index
    %c0_39 = arith.constant 0 : index
    %59 = vector.load %arg0[%c7_37, %c0_38, %c0_39] : memref<9x1x512xf32, #tpu.memory_space<vmem>>, vector<1x1x512xf32>
    %60 = vector.shape_cast %59 : vector<1x1x512xf32> to vector<1x512xf32>
    %61 = vector.broadcast %58 : vector<64x1xf32> to vector<64x512xf32>
    %62 = vector.broadcast %60 : vector<1x512xf32> to vector<64x512xf32>
    %63 = arith.mulf %61, %62 : vector<64x512xf32>
    %64 = arith.addf %56, %63 : vector<64x512xf32>
    %c8 = arith.constant 8 : index
    %c0_40 = arith.constant 0 : index
    %c0_41 = arith.constant 0 : index
    %65 = vector.load %arg1[%c8, %c0_40, %c0_41] : memref<9x64x1xf32, #tpu.memory_space<vmem>>, vector<1x64x1xf32>
    %66 = vector.shape_cast %65 : vector<1x64x1xf32> to vector<64x1xf32>
    %c8_42 = arith.constant 8 : index
    %c0_43 = arith.constant 0 : index
    %c0_44 = arith.constant 0 : index
    %67 = vector.load %arg0[%c8_42, %c0_43, %c0_44] : memref<9x1x512xf32, #tpu.memory_space<vmem>>, vector<1x1x512xf32>
    %68 = vector.shape_cast %67 : vector<1x1x512xf32> to vector<1x512xf32>
    %69 = vector.broadcast %66 : vector<64x1xf32> to vector<64x512xf32>
    %70 = vector.broadcast %68 : vector<1x512xf32> to vector<64x512xf32>
    %71 = arith.mulf %69, %70 : vector<64x512xf32>
    %72 = arith.addf %64, %71 : vector<64x512xf32>
    %c0_45 = arith.constant 0 : index
    %c0_46 = arith.constant 0 : index
    %73 = vector.load %arg2[%c0_45, %c0_46] : memref<64x1xf32, #tpu.memory_space<vmem>>, vector<64x1xf32>
    %74 = vector.broadcast %73 : vector<64x1xf32> to vector<64x512xf32>
    %75 = arith.addf %72, %74 : vector<64x512xf32>
    %cst_47 = arith.constant 0.000000e+00 : f32
    %76 = vector.broadcast %cst_47 : f32 to vector<64x512xf32>
    %77 = arith.maximumf %75, %76 : vector<64x512xf32>
    %c0_48 = arith.constant 0 : index
    %c0_49 = arith.constant 0 : index
    %78 = vector.load %arg10[%c0_48, %c0_49] : memref<64x512xf32, #tpu.memory_space<vmem>>, vector<64x512xf32>
    tpu.vector_store %arg10[%c0_48, %c0_49], %77 {strides = array<i32>} : memref<64x512xf32, #tpu.memory_space<vmem>>, vector<64x512xf32>,
    %c0_50 = arith.constant 0 : index
    %c0_51 = arith.constant 0 : index
    %79 = vector.load %arg10[%c0_50, %c0_51] : memref<64x512xf32, #tpu.memory_space<vmem>>, vector<64x512xf32>
    %c0_52 = arith.constant 0 : index
    %c0_53 = arith.constant 0 : index
    %80 = vector.load %arg3[%c0_52, %c0_53] : memref<512x1152xf32, #tpu.memory_space<vmem>>, vector<512x1152xf32>
    %cst_54 = arith.constant dense<0.000000e+00> : vector<64x1152xf32>
    %81 = tpu.matmul %79, %80, %cst_54 {dimension_numbers = #tpu.dot_dimension_numbers<[1], [0], [0], [1], [0, 0, 1, 1], [], []>} : vector<64x512xf32>, vector<512x1152xf32>, vector<64x1152xf32> -> vector<64x1152xf32>
    %cst_55 = arith.constant 0.000000e+00 : f32
    %82 = vector.broadcast %cst_55 : f32 to vector<32x128xf32>
    %c0_56 = arith.constant 0 : index
    %c0_57 = arith.constant 0 : index
    %c0_58 = arith.constant 0 : index
    %83 = vector.load %arg4[%c0_56, %c0_57, %c0_58] : memref<9x32x64xf32, #tpu.memory_space<vmem>>, vector<1x32x64xf32>
    %84 = vector.shape_cast %83 : vector<1x32x64xf32> to vector<32x64xf32>
    %85 = vector.extract_strided_slice %81 {offsets = [0, 0], sizes = [64, 128], strides = [1, 1]} : vector<64x1152xf32> to vector<64x128xf32>
    %cst_59 = arith.constant dense<0.000000e+00> : vector<32x128xf32>
    %86 = tpu.matmul %84, %85, %cst_59 {dimension_numbers = #tpu.dot_dimension_numbers<[1], [0], [0], [1], [0, 0, 1, 1], [], []>} : vector<32x64xf32>, vector<64x128xf32>, vector<32x128xf32> -> vector<32x128xf32>
    %87 = arith.addf %82, %86 : vector<32x128xf32>
    %c1_60 = arith.constant 1 : index
    %c0_61 = arith.constant 0 : index
    %c0_62 = arith.constant 0 : index
    %88 = vector.load %arg4[%c1_60, %c0_61, %c0_62] : memref<9x32x64xf32, #tpu.memory_space<vmem>>, vector<1x32x64xf32>
    %89 = vector.shape_cast %88 : vector<1x32x64xf32> to vector<32x64xf32>
    %90 = vector.extract_strided_slice %81 {offsets = [0, 128], sizes = [64, 128], strides = [1, 1]} : vector<64x1152xf32> to vector<64x128xf32>
    %cst_63 = arith.constant dense<0.000000e+00> : vector<32x128xf32>
    %91 = tpu.matmul %89, %90, %cst_63 {dimension_numbers = #tpu.dot_dimension_numbers<[1], [0], [0], [1], [0, 0, 1, 1], [], []>} : vector<32x64xf32>, vector<64x128xf32>, vector<32x128xf32> -> vector<32x128xf32>
    %92 = arith.addf %87, %91 : vector<32x128xf32>
    %c2_64 = arith.constant 2 : index
    %c0_65 = arith.constant 0 : index
    %c0_66 = arith.constant 0 : index
    %93 = vector.load %arg4[%c2_64, %c0_65, %c0_66] : memref<9x32x64xf32, #tpu.memory_space<vmem>>, vector<1x32x64xf32>
    %94 = vector.shape_cast %93 : vector<1x32x64xf32> to vector<32x64xf32>
    %95 = vector.extract_strided_slice %81 {offsets = [0, 256], sizes = [64, 128], strides = [1, 1]} : vector<64x1152xf32> to vector<64x128xf32>
    %cst_67 = arith.constant dense<0.000000e+00> : vector<32x128xf32>
    %96 = tpu.matmul %94, %95, %cst_67 {dimension_numbers = #tpu.dot_dimension_numbers<[1], [0], [0], [1], [0, 0, 1, 1], [], []>} : vector<32x64xf32>, vector<64x128xf32>, vector<32x128xf32> -> vector<32x128xf32>
    %97 = arith.addf %92, %96 : vector<32x128xf32>
    %c3_68 = arith.constant 3 : index
    %c0_69 = arith.constant 0 : index
    %c0_70 = arith.constant 0 : index
    %98 = vector.load %arg4[%c3_68, %c0_69, %c0_70] : memref<9x32x64xf32, #tpu.memory_space<vmem>>, vector<1x32x64xf32>
    %99 = vector.shape_cast %98 : vector<1x32x64xf32> to vector<32x64xf32>
    %100 = vector.extract_strided_slice %81 {offsets = [0, 384], sizes = [64, 128], strides = [1, 1]} : vector<64x1152xf32> to vector<64x128xf32>
    %cst_71 = arith.constant dense<0.000000e+00> : vector<32x128xf32>
    %101 = tpu.matmul %99, %100, %cst_71 {dimension_numbers = #tpu.dot_dimension_numbers<[1], [0], [0], [1], [0, 0, 1, 1], [], []>} : vector<32x64xf32>, vector<64x128xf32>, vector<32x128xf32> -> vector<32x128xf32>
    %102 = arith.addf %97, %101 : vector<32x128xf32>
    %c4_72 = arith.constant 4 : index
    %c0_73 = arith.constant 0 : index
    %c0_74 = arith.constant 0 : index
    %103 = vector.load %arg4[%c4_72, %c0_73, %c0_74] : memref<9x32x64xf32, #tpu.memory_space<vmem>>, vector<1x32x64xf32>
    %104 = vector.shape_cast %103 : vector<1x32x64xf32> to vector<32x64xf32>
    %105 = vector.extract_strided_slice %81 {offsets = [0, 512], sizes = [64, 128], strides = [1, 1]} : vector<64x1152xf32> to vector<64x128xf32>
    %cst_75 = arith.constant dense<0.000000e+00> : vector<32x128xf32>
    %106 = tpu.matmul %104, %105, %cst_75 {dimension_numbers = #tpu.dot_dimension_numbers<[1], [0], [0], [1], [0, 0, 1, 1], [], []>} : vector<32x64xf32>, vector<64x128xf32>, vector<32x128xf32> -> vector<32x128xf32>
    %107 = arith.addf %102, %106 : vector<32x128xf32>
    %c5_76 = arith.constant 5 : index
    %c0_77 = arith.constant 0 : index
    %c0_78 = arith.constant 0 : index
    %108 = vector.load %arg4[%c5_76, %c0_77, %c0_78] : memref<9x32x64xf32, #tpu.memory_space<vmem>>, vector<1x32x64xf32>
    %109 = vector.shape_cast %108 : vector<1x32x64xf32> to vector<32x64xf32>
    %110 = vector.extract_strided_slice %81 {offsets = [0, 640], sizes = [64, 128], strides = [1, 1]} : vector<64x1152xf32> to vector<64x128xf32>
    %cst_79 = arith.constant dense<0.000000e+00> : vector<32x128xf32>
    %111 = tpu.matmul %109, %110, %cst_79 {dimension_numbers = #tpu.dot_dimension_numbers<[1], [0], [0], [1], [0, 0, 1, 1], [], []>} : vector<32x64xf32>, vector<64x128xf32>, vector<32x128xf32> -> vector<32x128xf32>
    %112 = arith.addf %107, %111 : vector<32x128xf32>
    %c6_80 = arith.constant 6 : index
    %c0_81 = arith.constant 0 : index
    %c0_82 = arith.constant 0 : index
    %113 = vector.load %arg4[%c6_80, %c0_81, %c0_82] : memref<9x32x64xf32, #tpu.memory_space<vmem>>, vector<1x32x64xf32>
    %114 = vector.shape_cast %113 : vector<1x32x64xf32> to vector<32x64xf32>
    %115 = vector.extract_strided_slice %81 {offsets = [0, 768], sizes = [64, 128], strides = [1, 1]} : vector<64x1152xf32> to vector<64x128xf32>
    %cst_83 = arith.constant dense<0.000000e+00> : vector<32x128xf32>
    %116 = tpu.matmul %114, %115, %cst_83 {dimension_numbers = #tpu.dot_dimension_numbers<[1], [0], [0], [1], [0, 0, 1, 1], [], []>} : vector<32x64xf32>, vector<64x128xf32>, vector<32x128xf32> -> vector<32x128xf32>
    %117 = arith.addf %112, %116 : vector<32x128xf32>
    %c7_84 = arith.constant 7 : index
    %c0_85 = arith.constant 0 : index
    %c0_86 = arith.constant 0 : index
    %118 = vector.load %arg4[%c7_84, %c0_85, %c0_86] : memref<9x32x64xf32, #tpu.memory_space<vmem>>, vector<1x32x64xf32>
    %119 = vector.shape_cast %118 : vector<1x32x64xf32> to vector<32x64xf32>
    %120 = vector.extract_strided_slice %81 {offsets = [0, 896], sizes = [64, 128], strides = [1, 1]} : vector<64x1152xf32> to vector<64x128xf32>
    %cst_87 = arith.constant dense<0.000000e+00> : vector<32x128xf32>
    %121 = tpu.matmul %119, %120, %cst_87 {dimension_numbers = #tpu.dot_dimension_numbers<[1], [0], [0], [1], [0, 0, 1, 1], [], []>} : vector<32x64xf32>, vector<64x128xf32>, vector<32x128xf32> -> vector<32x128xf32>
    %122 = arith.addf %117, %121 : vector<32x128xf32>
    %c8_88 = arith.constant 8 : index
    %c0_89 = arith.constant 0 : index
    %c0_90 = arith.constant 0 : index
    %123 = vector.load %arg4[%c8_88, %c0_89, %c0_90] : memref<9x32x64xf32, #tpu.memory_space<vmem>>, vector<1x32x64xf32>
    %124 = vector.shape_cast %123 : vector<1x32x64xf32> to vector<32x64xf32>
    %125 = vector.extract_strided_slice %81 {offsets = [0, 1024], sizes = [64, 128], strides = [1, 1]} : vector<64x1152xf32> to vector<64x128xf32>
    %cst_91 = arith.constant dense<0.000000e+00> : vector<32x128xf32>
    %126 = tpu.matmul %124, %125, %cst_91 {dimension_numbers = #tpu.dot_dimension_numbers<[1], [0], [0], [1], [0, 0, 1, 1], [], []>} : vector<32x64xf32>, vector<64x128xf32>, vector<32x128xf32> -> vector<32x128xf32>
    %127 = arith.addf %122, %126 : vector<32x128xf32>
    %c0_92 = arith.constant 0 : index
    %c0_93 = arith.constant 0 : index
    %128 = vector.load %arg5[%c0_92, %c0_93] : memref<32x1xf32, #tpu.memory_space<vmem>>, vector<32x1xf32>
    %129 = vector.broadcast %128 : vector<32x1xf32> to vector<32x128xf32>
    %130 = arith.addf %127, %129 : vector<32x128xf32>
    %cst_94 = arith.constant 0.000000e+00 : f32
    %131 = vector.broadcast %cst_94 : f32 to vector<32x128xf32>
    %132 = arith.maximumf %130, %131 : vector<32x128xf32>
    %c0_95 = arith.constant 0 : index
    %c0_96 = arith.constant 0 : index
    %133 = vector.load %arg11[%c0_95, %c0_96] : memref<32x128xf32, #tpu.memory_space<vmem>>, vector<32x128xf32>
    tpu.vector_store %arg11[%c0_95, %c0_96], %132 {strides = array<i32>} : memref<32x128xf32, #tpu.memory_space<vmem>>, vector<32x128xf32>,
    %c0_97 = arith.constant 0 : index
    %c0_98 = arith.constant 0 : index
    %134 = vector.load %arg11[%c0_97, %c0_98] : memref<32x128xf32, #tpu.memory_space<vmem>>, vector<32x128xf32>
    %c0_99 = arith.constant 0 : index
    %c0_100 = arith.constant 0 : index
    %135 = vector.load %arg6[%c0_99, %c0_100] : memref<128x1152xf32, #tpu.memory_space<vmem>>, vector<128x1152xf32>
    %cst_101 = arith.constant dense<0.000000e+00> : vector<32x1152xf32>
    %136 = tpu.matmul %134, %135, %cst_101 {dimension_numbers = #tpu.dot_dimension_numbers<[1], [0], [0], [1], [0, 0, 1, 1], [], []>} : vector<32x128xf32>, vector<128x1152xf32>, vector<32x1152xf32> -> vector<32x1152xf32>
    %cst_102 = arith.constant 0.000000e+00 : f32
    %137 = vector.broadcast %cst_102 : f32 to vector<32x128xf32>
    %c0_103 = arith.constant 0 : index
    %c0_104 = arith.constant 0 : index
    %c0_105 = arith.constant 0 : index
    %138 = vector.load %arg7[%c0_103, %c0_104, %c0_105] : memref<9x32x32xf32, #tpu.memory_space<vmem>>, vector<1x32x32xf32>
    %139 = vector.shape_cast %138 : vector<1x32x32xf32> to vector<32x32xf32>
    %140 = vector.extract_strided_slice %136 {offsets = [0, 0], sizes = [32, 128], strides = [1, 1]} : vector<32x1152xf32> to vector<32x128xf32>
    %cst_106 = arith.constant dense<0.000000e+00> : vector<32x128xf32>
    %141 = tpu.matmul %139, %140, %cst_106 {dimension_numbers = #tpu.dot_dimension_numbers<[1], [0], [0], [1], [0, 0, 1, 1], [], []>} : vector<32x32xf32>, vector<32x128xf32>, vector<32x128xf32> -> vector<32x128xf32>
    %142 = arith.addf %137, %141 : vector<32x128xf32>
    %c1_107 = arith.constant 1 : index
    %c0_108 = arith.constant 0 : index
    %c0_109 = arith.constant 0 : index
    %143 = vector.load %arg7[%c1_107, %c0_108, %c0_109] : memref<9x32x32xf32, #tpu.memory_space<vmem>>, vector<1x32x32xf32>
    %144 = vector.shape_cast %143 : vector<1x32x32xf32> to vector<32x32xf32>
    %145 = vector.extract_strided_slice %136 {offsets = [0, 128], sizes = [32, 128], strides = [1, 1]} : vector<32x1152xf32> to vector<32x128xf32>
    %cst_110 = arith.constant dense<0.000000e+00> : vector<32x128xf32>
    %146 = tpu.matmul %144, %145, %cst_110 {dimension_numbers = #tpu.dot_dimension_numbers<[1], [0], [0], [1], [0, 0, 1, 1], [], []>} : vector<32x32xf32>, vector<32x128xf32>, vector<32x128xf32> -> vector<32x128xf32>
    %147 = arith.addf %142, %146 : vector<32x128xf32>
    %c2_111 = arith.constant 2 : index
    %c0_112 = arith.constant 0 : index
    %c0_113 = arith.constant 0 : index
    %148 = vector.load %arg7[%c2_111, %c0_112, %c0_113] : memref<9x32x32xf32, #tpu.memory_space<vmem>>, vector<1x32x32xf32>
    %149 = vector.shape_cast %148 : vector<1x32x32xf32> to vector<32x32xf32>
    %150 = vector.extract_strided_slice %136 {offsets = [0, 256], sizes = [32, 128], strides = [1, 1]} : vector<32x1152xf32> to vector<32x128xf32>
    %cst_114 = arith.constant dense<0.000000e+00> : vector<32x128xf32>
    %151 = tpu.matmul %149, %150, %cst_114 {dimension_numbers = #tpu.dot_dimension_numbers<[1], [0], [0], [1], [0, 0, 1, 1], [], []>} : vector<32x32xf32>, vector<32x128xf32>, vector<32x128xf32> -> vector<32x128xf32>
    %152 = arith.addf %147, %151 : vector<32x128xf32>
    %c3_115 = arith.constant 3 : index
    %c0_116 = arith.constant 0 : index
    %c0_117 = arith.constant 0 : index
    %153 = vector.load %arg7[%c3_115, %c0_116, %c0_117] : memref<9x32x32xf32, #tpu.memory_space<vmem>>, vector<1x32x32xf32>
    %154 = vector.shape_cast %153 : vector<1x32x32xf32> to vector<32x32xf32>
    %155 = vector.extract_strided_slice %136 {offsets = [0, 384], sizes = [32, 128], strides = [1, 1]} : vector<32x1152xf32> to vector<32x128xf32>
    %cst_118 = arith.constant dense<0.000000e+00> : vector<32x128xf32>
    %156 = tpu.matmul %154, %155, %cst_118 {dimension_numbers = #tpu.dot_dimension_numbers<[1], [0], [0], [1], [0, 0, 1, 1], [], []>} : vector<32x32xf32>, vector<32x128xf32>, vector<32x128xf32> -> vector<32x128xf32>
    %157 = arith.addf %152, %156 : vector<32x128xf32>
    %c4_119 = arith.constant 4 : index
    %c0_120 = arith.constant 0 : index
    %c0_121 = arith.constant 0 : index
    %158 = vector.load %arg7[%c4_119, %c0_120, %c0_121] : memref<9x32x32xf32, #tpu.memory_space<vmem>>, vector<1x32x32xf32>
    %159 = vector.shape_cast %158 : vector<1x32x32xf32> to vector<32x32xf32>
    %160 = vector.extract_strided_slice %136 {offsets = [0, 512], sizes = [32, 128], strides = [1, 1]} : vector<32x1152xf32> to vector<32x128xf32>
    %cst_122 = arith.constant dense<0.000000e+00> : vector<32x128xf32>
    %161 = tpu.matmul %159, %160, %cst_122 {dimension_numbers = #tpu.dot_dimension_numbers<[1], [0], [0], [1], [0, 0, 1, 1], [], []>} : vector<32x32xf32>, vector<32x128xf32>, vector<32x128xf32> -> vector<32x128xf32>
    %162 = arith.addf %157, %161 : vector<32x128xf32>
    %c5_123 = arith.constant 5 : index
    %c0_124 = arith.constant 0 : index
    %c0_125 = arith.constant 0 : index
    %163 = vector.load %arg7[%c5_123, %c0_124, %c0_125] : memref<9x32x32xf32, #tpu.memory_space<vmem>>, vector<1x32x32xf32>
    %164 = vector.shape_cast %163 : vector<1x32x32xf32> to vector<32x32xf32>
    %165 = vector.extract_strided_slice %136 {offsets = [0, 640], sizes = [32, 128], strides = [1, 1]} : vector<32x1152xf32> to vector<32x128xf32>
    %cst_126 = arith.constant dense<0.000000e+00> : vector<32x128xf32>
    %166 = tpu.matmul %164, %165, %cst_126 {dimension_numbers = #tpu.dot_dimension_numbers<[1], [0], [0], [1], [0, 0, 1, 1], [], []>} : vector<32x32xf32>, vector<32x128xf32>, vector<32x128xf32> -> vector<32x128xf32>
    %167 = arith.addf %162, %166 : vector<32x128xf32>
    %c6_127 = arith.constant 6 : index
    %c0_128 = arith.constant 0 : index
    %c0_129 = arith.constant 0 : index
    %168 = vector.load %arg7[%c6_127, %c0_128, %c0_129] : memref<9x32x32xf32, #tpu.memory_space<vmem>>, vector<1x32x32xf32>
    %169 = vector.shape_cast %168 : vector<1x32x32xf32> to vector<32x32xf32>
    %170 = vector.extract_strided_slice %136 {offsets = [0, 768], sizes = [32, 128], strides = [1, 1]} : vector<32x1152xf32> to vector<32x128xf32>
    %cst_130 = arith.constant dense<0.000000e+00> : vector<32x128xf32>
    %171 = tpu.matmul %169, %170, %cst_130 {dimension_numbers = #tpu.dot_dimension_numbers<[1], [0], [0], [1], [0, 0, 1, 1], [], []>} : vector<32x32xf32>, vector<32x128xf32>, vector<32x128xf32> -> vector<32x128xf32>
    %172 = arith.addf %167, %171 : vector<32x128xf32>
    %c7_131 = arith.constant 7 : index
    %c0_132 = arith.constant 0 : index
    %c0_133 = arith.constant 0 : index
    %173 = vector.load %arg7[%c7_131, %c0_132, %c0_133] : memref<9x32x32xf32, #tpu.memory_space<vmem>>, vector<1x32x32xf32>
    %174 = vector.shape_cast %173 : vector<1x32x32xf32> to vector<32x32xf32>
    %175 = vector.extract_strided_slice %136 {offsets = [0, 896], sizes = [32, 128], strides = [1, 1]} : vector<32x1152xf32> to vector<32x128xf32>
    %cst_134 = arith.constant dense<0.000000e+00> : vector<32x128xf32>
    %176 = tpu.matmul %174, %175, %cst_134 {dimension_numbers = #tpu.dot_dimension_numbers<[1], [0], [0], [1], [0, 0, 1, 1], [], []>} : vector<32x32xf32>, vector<32x128xf32>, vector<32x128xf32> -> vector<32x128xf32>
    %177 = arith.addf %172, %176 : vector<32x128xf32>
    %c8_135 = arith.constant 8 : index
    %c0_136 = arith.constant 0 : index
    %c0_137 = arith.constant 0 : index
    %178 = vector.load %arg7[%c8_135, %c0_136, %c0_137] : memref<9x32x32xf32, #tpu.memory_space<vmem>>, vector<1x32x32xf32>
    %179 = vector.shape_cast %178 : vector<1x32x32xf32> to vector<32x32xf32>
    %180 = vector.extract_strided_slice %136 {offsets = [0, 1024], sizes = [32, 128], strides = [1, 1]} : vector<32x1152xf32> to vector<32x128xf32>
    %cst_138 = arith.constant dense<0.000000e+00> : vector<32x128xf32>
    %181 = tpu.matmul %179, %180, %cst_138 {dimension_numbers = #tpu.dot_dimension_numbers<[1], [0], [0], [1], [0, 0, 1, 1], [], []>} : vector<32x32xf32>, vector<32x128xf32>, vector<32x128xf32> -> vector<32x128xf32>
    %182 = arith.addf %177, %181 : vector<32x128xf32>
    %c0_139 = arith.constant 0 : index
    %c0_140 = arith.constant 0 : index
    %183 = vector.load %arg8[%c0_139, %c0_140] : memref<32x1xf32, #tpu.memory_space<vmem>>, vector<32x1xf32>
    %184 = vector.broadcast %183 : vector<32x1xf32> to vector<32x128xf32>
    %185 = arith.addf %182, %184 : vector<32x128xf32>
    %cst_141 = arith.constant 0.000000e+00 : f32
    %186 = vector.broadcast %cst_141 : f32 to vector<32x128xf32>
    %187 = arith.maximumf %185, %186 : vector<32x128xf32>
    %c0_142 = arith.constant 0 : index
    %c0_143 = arith.constant 0 : index
    %188 = vector.load %arg9[%c0_142, %c0_143] : memref<32x128xf32, #tpu.memory_space<vmem>>, vector<32x128xf32>
    tpu.vector_store %arg9[%c0_142, %c0_143], %187 {strides = array<i32>} : memref<32x128xf32, #tpu.memory_space<vmem>>, vector<32x128xf32>,
    return
  }
}

module attributes {stable_mosaic.version = 11 : i64} {
  func.func @_fc_chain_kernel(%arg0: memref<2x512xf32, #tpu.memory_space<vmem>>, %arg1: memref<512x1024xf32, #tpu.memory_space<vmem>>, %arg2: memref<1x1024xf32, #tpu.memory_space<vmem>>, %arg3: memref<1024x256xf32, #tpu.memory_space<vmem>>, %arg4: memref<1x256xf32, #tpu.memory_space<vmem>>, %arg5: memref<256x512xf32, #tpu.memory_space<vmem>>, %arg6: memref<1x512xf32, #tpu.memory_space<vmem>>, %arg7: memref<512x1024xf32, #tpu.memory_space<vmem>>, %arg8: memref<1x1024xf32, #tpu.memory_space<vmem>>, %arg9: memref<2x1024xf32, #tpu.memory_space<vmem>>, %arg10: memref<2x1024xf32, #tpu.memory_space<vmem>>) attributes {dimension_semantics = [], scalar_prefetch = 0 : i64, scratch_operands = 0 : i64, tpu.core_type = #tpu.core_type<tc>} {
    %c0 = arith.constant 0 : index
    %c0_0 = arith.constant 0 : index
    %0 = vector.load %arg0[%c0, %c0_0] : memref<2x512xf32, #tpu.memory_space<vmem>>, vector<2x512xf32>
    %c0_1 = arith.constant 0 : index
    %c0_2 = arith.constant 0 : index
    %1 = vector.load %arg1[%c0_1, %c0_2] : memref<512x1024xf32, #tpu.memory_space<vmem>>, vector<512x1024xf32>
    %cst = arith.constant dense<0.000000e+00> : vector<2x1024xf32>
    %2 = tpu.matmul %0, %1, %cst {dimension_numbers = #tpu.dot_dimension_numbers<[1], [0], [0], [1], [0, 0, 1, 1], [], []>} : vector<2x512xf32>, vector<512x1024xf32>, vector<2x1024xf32> -> vector<2x1024xf32>
    %c0_3 = arith.constant 0 : index
    %c0_4 = arith.constant 0 : index
    %3 = vector.load %arg2[%c0_3, %c0_4] : memref<1x1024xf32, #tpu.memory_space<vmem>>, vector<1x1024xf32>
    %4 = vector.broadcast %3 : vector<1x1024xf32> to vector<2x1024xf32>
    %5 = arith.addf %2, %4 : vector<2x1024xf32>
    %6 = arith.negf %5 : vector<2x1024xf32>
    %7 = math.exp %6 : vector<2x1024xf32>
    %cst_5 = arith.constant 1.000000e+00 : f32
    %8 = vector.broadcast %cst_5 : f32 to vector<2x1024xf32>
    %9 = arith.addf %8, %7 : vector<2x1024xf32>
    %10 = arith.divf %8, %9 : vector<2x1024xf32>
    %c0_6 = arith.constant 0 : index
    %c0_7 = arith.constant 0 : index
    %11 = vector.load %arg9[%c0_6, %c0_7] : memref<2x1024xf32, #tpu.memory_space<vmem>>, vector<2x1024xf32>
    tpu.vector_store %arg9[%c0_6, %c0_7], %10 {strides = array<i32>} : memref<2x1024xf32, #tpu.memory_space<vmem>>, vector<2x1024xf32>,
    %c0_8 = arith.constant 0 : index
    %c0_9 = arith.constant 0 : index
    %12 = vector.load %arg3[%c0_8, %c0_9] : memref<1024x256xf32, #tpu.memory_space<vmem>>, vector<1024x256xf32>
    %cst_10 = arith.constant dense<0.000000e+00> : vector<2x256xf32>
    %13 = tpu.matmul %10, %12, %cst_10 {dimension_numbers = #tpu.dot_dimension_numbers<[1], [0], [0], [1], [0, 0, 1, 1], [], []>} : vector<2x1024xf32>, vector<1024x256xf32>, vector<2x256xf32> -> vector<2x256xf32>
    %c0_11 = arith.constant 0 : index
    %c0_12 = arith.constant 0 : index
    %14 = vector.load %arg4[%c0_11, %c0_12] : memref<1x256xf32, #tpu.memory_space<vmem>>, vector<1x256xf32>
    %15 = vector.broadcast %14 : vector<1x256xf32> to vector<2x256xf32>
    %16 = arith.addf %13, %15 : vector<2x256xf32>
    %cst_13 = arith.constant 0.000000e+00 : f32
    %17 = vector.broadcast %cst_13 : f32 to vector<2x256xf32>
    %18 = arith.maximumf %16, %17 : vector<2x256xf32>
    %c0_14 = arith.constant 0 : index
    %c0_15 = arith.constant 0 : index
    %19 = vector.load %arg5[%c0_14, %c0_15] : memref<256x512xf32, #tpu.memory_space<vmem>>, vector<256x512xf32>
    %cst_16 = arith.constant dense<0.000000e+00> : vector<2x512xf32>
    %20 = tpu.matmul %18, %19, %cst_16 {dimension_numbers = #tpu.dot_dimension_numbers<[1], [0], [0], [1], [0, 0, 1, 1], [], []>} : vector<2x256xf32>, vector<256x512xf32>, vector<2x512xf32> -> vector<2x512xf32>
    %c0_17 = arith.constant 0 : index
    %c0_18 = arith.constant 0 : index
    %21 = vector.load %arg6[%c0_17, %c0_18] : memref<1x512xf32, #tpu.memory_space<vmem>>, vector<1x512xf32>
    %22 = vector.broadcast %21 : vector<1x512xf32> to vector<2x512xf32>
    %23 = arith.addf %20, %22 : vector<2x512xf32>
    %cst_19 = arith.constant 0.000000e+00 : f32
    %24 = vector.broadcast %cst_19 : f32 to vector<2x512xf32>
    %25 = arith.maximumf %23, %24 : vector<2x512xf32>
    %c0_20 = arith.constant 0 : index
    %c0_21 = arith.constant 0 : index
    %26 = vector.load %arg7[%c0_20, %c0_21] : memref<512x1024xf32, #tpu.memory_space<vmem>>, vector<512x1024xf32>
    %cst_22 = arith.constant dense<0.000000e+00> : vector<2x1024xf32>
    %27 = tpu.matmul %25, %26, %cst_22 {dimension_numbers = #tpu.dot_dimension_numbers<[1], [0], [0], [1], [0, 0, 1, 1], [], []>} : vector<2x512xf32>, vector<512x1024xf32>, vector<2x1024xf32> -> vector<2x1024xf32>
    %c0_23 = arith.constant 0 : index
    %c0_24 = arith.constant 0 : index
    %28 = vector.load %arg8[%c0_23, %c0_24] : memref<1x1024xf32, #tpu.memory_space<vmem>>, vector<1x1024xf32>
    %29 = vector.broadcast %28 : vector<1x1024xf32> to vector<2x1024xf32>
    %30 = arith.addf %27, %29 : vector<2x1024xf32>
    %31 = arith.negf %30 : vector<2x1024xf32>
    %32 = math.exp %31 : vector<2x1024xf32>
    %cst_25 = arith.constant 1.000000e+00 : f32
    %33 = vector.broadcast %cst_25 : f32 to vector<2x1024xf32>
    %34 = arith.addf %33, %32 : vector<2x1024xf32>
    %35 = arith.divf %33, %34 : vector<2x1024xf32>
    %c0_26 = arith.constant 0 : index
    %c0_27 = arith.constant 0 : index
    %36 = vector.load %arg10[%c0_26, %c0_27] : memref<2x1024xf32, #tpu.memory_space<vmem>>, vector<2x1024xf32>
    tpu.vector_store %arg10[%c0_26, %c0_27], %35 {strides = array<i32>} : memref<2x1024xf32, #tpu.memory_space<vmem>>, vector<2x1024xf32>,
    return
  }
}

</mosaic_0001>

<llo_original>
// kernel: bae_cnn_forward.3
$region0: #{bae_cnn_forward.3}
  #allocation0 [shape = 'u32[]', space=smem, size = 0x4, offset = 0x4, fixed_abs, tag = 'smem constant byte address 0x4 - core index']
  #allocation1 [shape = 'u32[144,128]{1,0:T(1,128)}', space=vmem, size = 0x12000, scoped, tag = 'internal scratch']
  %s0 = inlined_call_operand.vmem [shape: f32[2,512], index: 0, kind: input, shape index: {}]
  %s1 = inlined_call_operand.vmem [shape: f32[512,1024], index: 1, kind: input, shape index: {}]
  %s2 = inlined_call_operand.vmem [shape: f32[1,1024], index: 2, kind: input, shape index: {}]
  %s3 = inlined_call_operand.hbm [shape: f32[1024,256], index: 3, kind: input, shape index: {}]
  %s4 = inlined_call_operand.vmem [shape: f32[1,256], index: 4, kind: input, shape index: {}]
  %s5 = inlined_call_operand.hbm [shape: f32[256,512], index: 5, kind: input, shape index: {}]
  %s6 = inlined_call_operand.vmem [shape: f32[1,512], index: 6, kind: input, shape index: {}]
  %s7 = inlined_call_operand.vmem [shape: f32[512,1024], index: 7, kind: input, shape index: {}]
  %s8 = inlined_call_operand.vmem [shape: f32[1,1024], index: 8, kind: input, shape index: {}]
  %s9 = inlined_call_operand.vmem [shape: f32[2,1024], index: 9, kind: output, shape index: {0}]
  %s10 = inlined_call_operand.hbm [shape: f32[2,1024], index: 10, kind: output, shape index: {1}]
  %11 = xla_tuple %s9, %s10
  %s12 = sld [smem:[#allocation0]]
  $region62: #{bae_cnn_forward.3} parent=0
    _
  %s14 = ssub.s32 1, %s12
  %s15 = scalar_select 0, %s14, %s12
  $region1: #{bae_cnn_forward.3} parent=0
    #allocation2 [shape = 'u8[1048576]{0}', space=vmem, size = 0x100000, scoped, tag = 'input window, operand 3, single buffered']
    #allocation3 [shape = 's32[1]{0}', space=sflag, size = 0x4, scoped, tag = 'scoped memory for bae_cnn_forward.3']
    #allocation4 [shape = 's32[1]{0}', space=sflag, size = 0x4, scoped, tag = 'scoped memory for bae_cnn_forward.3']
    #allocation5 [shape = 'u8[524288]{0}', space=vmem, size = 0x80000, scoped, tag = 'input window, operand 5, single buffered']
    #allocation6 [shape = 's32[1]{0}', space=sflag, size = 0x4, scoped, tag = 'scoped memory for bae_cnn_forward.3']
    #allocation7 [shape = 'u8[8192]{0}', space=vmem, size = 0x2000, scoped, tag = 'output window, operand 1, single buffered']
    %16 = vsyncpa [#allocation3], 0
    %17 = vsyncpa [#allocation6], 0
    %18 = vsyncpa [#allocation4], 0
    // Predicated region
    $region2: #{bae_cnn_forward.3} parent=1 // pred_check
      _
    $region3: #{bae_cnn_forward.3} parent=1 // pred_check_branch
      %20 = sbr.rel (0) target = $region5
    $region4: #{bae_cnn_forward.3} parent=1 // pred_region
      _
    $region5: #{bae_cnn_forward.3} parent=1 // pred_fallthru
      _
    // Predicated region
    $region6: #{bae_cnn_forward.3} parent=1 // pred_check
      _
    $region7: #{bae_cnn_forward.3} parent=1 // pred_check_branch
      %22 = sbr.rel (0) target = $region9
    $region8: #{bae_cnn_forward.3} parent=1 // pred_region
      _
    $region9: #{bae_cnn_forward.3} parent=1 // pred_fallthru
      _
    // Predicated region
    $region10: #{bae_cnn_forward.3} parent=1 // pred_check
      _
    $region11: #{bae_cnn_forward.3} parent=1 // pred_check_branch
      %24 = sbr.rel (0) target = $region13
    $region12: #{bae_cnn_forward.3} parent=1 // pred_region
      _
    $region13: #{bae_cnn_forward.3} parent=1 // pred_fallthru
      _
    // Predicated region
    $region14: #{bae_cnn_forward.3} parent=1 // pred_check
      _
    $region15: #{bae_cnn_forward.3} parent=1 // pred_check_branch
      %26 = sbr.rel (0) target = $region17
    $region16: #{bae_cnn_forward.3} parent=1 // pred_region
      %s28 = ssub.s32 32768, 32768
      %29 = vsyncadd [#allocation3], %s28
      %s30 = sshll.u32 [#allocation2], 4
      %s31 = int_to_ptr.vmem [resolvable:$true] %s30
      %36 = dma.hbm_to_vmem [thread:$0]  %s3, 32768, %s31, [#allocation3], 256, 256, 16
    $region17: #{bae_cnn_forward.3} parent=1 // pred_fallthru
      _
    // Predicated region
    $region18: #{bae_cnn_forward.3} parent=1 // pred_check
      _
    $region19: #{bae_cnn_forward.3} parent=1 // pred_check_branch
      %38 = sbr.rel (0) target = $region21
    $region20: #{bae_cnn_forward.3} parent=1 // pred_region
      _
    $region21: #{bae_cnn_forward.3} parent=1 // pred_fallthru
      _
    // Predicated region
    $region22: #{bae_cnn_forward.3} parent=1 // pred_check
      _
    $region23: #{bae_cnn_forward.3} parent=1 // pred_check_branch
      %40 = sbr.rel (0) target = $region25
    $region24: #{bae_cnn_forward.3} parent=1 // pred_region
      %s42 = ssub.s32 16384, 16384
      %43 = vsyncadd [#allocation6], %s42
      %s44 = sshll.u32 [#allocation5], 4
      %s45 = int_to_ptr.vmem [resolvable:$true] %s44
      %50 = dma.hbm_to_vmem [thread:$0]  %s5, 16384, %s45, [#allocation6], 512, 512, 32
    $region25: #{bae_cnn_forward.3} parent=1 // pred_fallthru
      _
    // Predicated region
    $region26: #{bae_cnn_forward.3} parent=1 // pred_check
      _
    $region27: #{bae_cnn_forward.3} parent=1 // pred_check_branch
      %52 = sbr.rel (0) target = $region29
    $region28: #{bae_cnn_forward.3} parent=1 // pred_region
      _
    $region29: #{bae_cnn_forward.3} parent=1 // pred_fallthru
      _
    // Predicated region
    $region30: #{bae_cnn_forward.3} parent=1 // pred_check
      _
    $region31: #{bae_cnn_forward.3} parent=1 // pred_check_branch
      %54 = sbr.rel (0) target = $region33
    $region32: #{bae_cnn_forward.3} parent=1 // pred_region
      _
    $region33: #{bae_cnn_forward.3} parent=1 // pred_fallthru
      _
    // Predicated region
    $region34: #{bae_cnn_forward.3} parent=1 // pred_check
      _
    $region35: #{bae_cnn_forward.3} parent=1 // pred_check_branch
      %56 = sbr.rel (0) target = $region37
    $region36: #{bae_cnn_forward.3} parent=1 // pred_region
      _
    $region37: #{bae_cnn_forward.3} parent=1 // pred_fallthru
      _
    // Predicated region
    $region38: #{bae_cnn_forward.3} parent=1 // pred_check
      _
    $region39: #{bae_cnn_forward.3} parent=1 // pred_check_branch
      %58 = sbr.rel (0) target = $region41
    $region40: #{bae_cnn_forward.3} parent=1 // pred_region
      %59 = dma.done [#allocation3], 32768
    $region41: #{bae_cnn_forward.3} parent=1 // pred_fallthru
      _
    // Predicated region
    $region42: #{bae_cnn_forward.3} parent=1 // pred_check
      _
    $region43: #{bae_cnn_forward.3} parent=1 // pred_check_branch
      %61 = sbr.rel (0) target = $region45
    $region44: #{bae_cnn_forward.3} parent=1 // pred_region
      %62 = dma.done [#allocation6], 16384
    $region45: #{bae_cnn_forward.3} parent=1 // pred_fallthru
      _
    %v63 = vld [vmem:[%s0] sm:$0xff]
    %v64 = vld [vmem:[%s1] sm:$0xff]
    %v65 = vld [vmem:[%s1 + $0x8] sm:$0xff]
    %v66 = vld [vmem:[%s1 + $0x10] sm:$0xff]
    %v67 = vld [vmem:[%s1 + $0x18] sm:$0xff]
    %v68 = vld [vmem:[%s1 + $0x20] sm:$0xff]
    %v69 = vld [vmem:[%s1 + $0x28] sm:$0xff]
    %v70 = vld [vmem:[%s1 + $0x30] sm:$0xff]
    %v71 = vld [vmem:[%s1 + $0x38] sm:$0xff]
    %v72 = vld [vmem:[%s1 + $0x40] sm:$0xff]
    %v73 = vld [vmem:[%s1 + $0x48] sm:$0xff]
    %v74 = vld [vmem:[%s1 + $0x50] sm:$0xff]
    %v75 = vld [vmem:[%s1 + $0x58] sm:$0xff]
    %v76 = vld [vmem:[%s1 + $0x60] sm:$0xff]
    %v77 = vld [vmem:[%s1 + $0x68] sm:$0xff]
    %v78 = vld [vmem:[%s1 + $0x70] sm:$0xff]
    %v79 = vld [vmem:[%s1 + $0x78] sm:$0xff]
    %v80 = vld [vmem:[%s1 + $0x80] sm:$0xff]
    %v81 = vld [vmem:[%s1 + $0x88] sm:$0xff]
    %v82 = vld [vmem:[%s1 + $0x90] sm:$0xff]
    %v83 = vld [vmem:[%s1 + $0x98] sm:$0xff]
    %v84 = vld [vmem:[%s1 + $0xa0] sm:$0xff]
    %v85 = vld [vmem:[%s1 + $0xa8] sm:$0xff]
    %v86 = vld [vmem:[%s1 + $0xb0] sm:$0xff]
    %v87 = vld [vmem:[%s1 + $0xb8] sm:$0xff]
    %v88 = vld [vmem:[%s1 + $0xc0] sm:$0xff]
    %v89 = vld [vmem:[%s1 + $0xc8] sm:$0xff]
    %v90 = vld [vmem:[%s1 + $0xd0] sm:$0xff]
    %v91 = vld [vmem:[%s1 + $0xd8] sm:$0xff]
    %v92 = vld [vmem:[%s1 + $0xe0] sm:$0xff]
    %v93 = vld [vmem:[%s1 + $0xe8] sm:$0xff]
    %v94 = vld [vmem:[%s1 + $0xf0] sm:$0xff]
    %v95 = vld [vmem:[%s1 + $0xf8] sm:$0xff]
    %v96 = vld [vmem:[%s1 + $0x100] sm:$0xff]
    %v97 = vld [vmem:[%s1 + $0x108] sm:$0xff]
    %v98 = vld [vmem:[%s1 + $0x110] sm:$0xff]
    %v99 = vld [vmem:[%s1 + $0x118] sm:$0xff]
    %v100 = vld [vmem:[%s1 + $0x120] sm:$0xff]
    %v101 = vld [vmem:[%s1 + $0x128] sm:$0xff]
    %v102 = vld [vmem:[%s1 + $0x130] sm:$0xff]
    %v103 = vld [vmem:[%s1 + $0x138] sm:$0xff]
    %v104 = vld [vmem:[%s1 + $0x140] sm:$0xff]
    %v105 = vld [vmem:[%s1 + $0x148] sm:$0xff]
    %v106 = vld [vmem:[%s1 + $0x150] sm:$0xff]
    %v107 = vld [vmem:[%s1 + $0x158] sm:$0xff]
    %v108 = vld [vmem:[%s1 + $0x160] sm:$0xff]
    %v109 = vld [vmem:[%s1 + $0x168] sm:$0xff]
    %v110 = vld [vmem:[%s1 + $0x170] sm:$0xff]
    %v111 = vld [vmem:[%s1 + $0x178] sm:$0xff]
    %v112 = vld [vmem:[%s1 + $0x180] sm:$0xff]
    %v113 = vld [vmem:[%s1 + $0x188] sm:$0xff]
    %v114 = vld [vmem:[%s1 + $0x190] sm:$0xff]
    %v115 = vld [vmem:[%s1 + $0x198] sm:$0xff]
    %v116 = vld [vmem:[%s1 + $0x1a0] sm:$0xff]
    %v117 = vld [vmem:[%s1 + $0x1a8] sm:$0xff]
    %v118 = vld [vmem:[%s1 + $0x1b0] sm:$0xff]
    %v119 = vld [vmem:[%s1 + $0x1b8] sm:$0xff]
    %v120 = vld [vmem:[%s1 + $0x1c0] sm:$0xff]
    %v121 = vld [vmem:[%s1 + $0x1c8] sm:$0xff]
    %v122 = vld [vmem:[%s1 + $0x1d0] sm:$0xff]
    %v123 = vld [vmem:[%s1 + $0x1d8] sm:$0xff]
    %v124 = vld [vmem:[%s1 + $0x1e0] sm:$0xff]
    %v125 = vld [vmem:[%s1 + $0x1e8] sm:$0xff]
    %v126 = vld [vmem:[%s1 + $0x1f0] sm:$0xff]
    %v127 = vld [vmem:[%s1 + $0x1f8] sm:$0xff]
    %v128 = vld [vmem:[%s1 + $0x200] sm:$0xff]
    %v129 = vld [vmem:[%s1 + $0x208] sm:$0xff]
    %v130 = vld [vmem:[%s1 + $0x210] sm:$0xff]
    %v131 = vld [vmem:[%s1 + $0x218] sm:$0xff]
    %v132 = vld [vmem:[%s1 + $0x220] sm:$0xff]
    %v133 = vld [vmem:[%s1 + $0x228] sm:$0xff]
    %v134 = vld [vmem:[%s1 + $0x230] sm:$0xff]
    %v135 = vld [vmem:[%s1 + $0x238] sm:$0xff]
    %v136 = vld [vmem:[%s1 + $0x240] sm:$0xff]
    %v137 = vld [vmem:[%s1 + $0x248] sm:$0xff]
    %v138 = vld [vmem:[%s1 + $0x250] sm:$0xff]
    %v139 = vld [vmem:[%s1 + $0x258] sm:$0xff]
    %v140 = vld [vmem:[%s1 + $0x260] sm:$0xff]
    %v141 = vld [vmem:[%s1 + $0x268] sm:$0xff]
    %v142 = vld [vmem:[%s1 + $0x270] sm:$0xff]
    %v143 = vld [vmem:[%s1 + $0x278] sm:$0xff]
    %v144 = vld [vmem:[%s1 + $0x280] sm:$0xff]
    %v145 = vld [vmem:[%s1 + $0x288] sm:$0xff]
    %v146 = vld [vmem:[%s1 + $0x290] sm:$0xff]
    %v147 = vld [vmem:[%s1 + $0x298] sm:$0xff]
    %v148 = vld [vmem:[%s1 + $0x2a0] sm:$0xff]
    %v149 = vld [vmem:[%s1 + $0x2a8] sm:$0xff]
    %v150 = vld [vmem:[%s1 + $0x2b0] sm:$0xff]
    %v151 = vld [vmem:[%s1 + $0x2b8] sm:$0xff]
    %v152 = vld [vmem:[%s1 + $0x2c0] sm:$0xff]
    %v153 = vld [vmem:[%s1 + $0x2c8] sm:$0xff]
    %v154 = vld [vmem:[%s1 + $0x2d0] sm:$0xff]
    %v155 = vld [vmem:[%s1 + $0x2d8] sm:$0xff]
    %v156 = vld [vmem:[%s1 + $0x2e0] sm:$0xff]
    %v157 = vld [vmem:[%s1 + $0x2e8] sm:$0xff]
    %v158 = vld [vmem:[%s1 + $0x2f0] sm:$0xff]
    %v159 = vld [vmem:[%s1 + $0x2f8] sm:$0xff]
    %v160 = vld [vmem:[%s1 + $0x300] sm:$0xff]
    %v161 = vld [vmem:[%s1 + $0x308] sm:$0xff]
    %v162 = vld [vmem:[%s1 + $0x310] sm:$0xff]
    %v163 = vld [vmem:[%s1 + $0x318] sm:$0xff]
    %v164 = vld [vmem:[%s1 + $0x320] sm:$0xff]
    %v165 = vld [vmem:[%s1 + $0x328] sm:$0xff]
    %v166 = vld [vmem:[%s1 + $0x330] sm:$0xff]
    %v167 = vld [vmem:[%s1 + $0x338] sm:$0xff]
    %v168 = vld [vmem:[%s1 + $0x340] sm:$0xff]
    %v169 = vld [vmem:[%s1 + $0x348] sm:$0xff]
    %v170 = vld [vmem:[%s1 + $0x350] sm:$0xff]
    %v171 = vld [vmem:[%s1 + $0x358] sm:$0xff]
    %v172 = vld [vmem:[%s1 + $0x360] sm:$0xff]
    %v173 = vld [vmem:[%s1 + $0x368] sm:$0xff]
    %v174 = vld [vmem:[%s1 + $0x370] sm:$0xff]
    %v175 = vld [vmem:[%s1 + $0x378] sm:$0xff]
    %v176 = vld [vmem:[%s1 + $0x380] sm:$0xff]
    %v177 = vld [vmem:[%s1 + $0x388] sm:$0xff]
    %v178 = vld [vmem:[%s1 + $0x390] sm:$0xff]
    %v179 = vld [vmem:[%s1 + $0x398] sm:$0xff]
    %v180 = vld [vmem:[%s1 + $0x3a0] sm:$0xff]
    %v181 = vld [vmem:[%s1 + $0x3a8] sm:$0xff]
    %v182 = vld [vmem:[%s1 + $0x3b0] sm:$0xff]
    %v183 = vld [vmem:[%s1 + $0x3b8] sm:$0xff]
    %v184 = vld [vmem:[%s1 + $0x3c0] sm:$0xff]
    %v185 = vld [vmem:[%s1 + $0x3c8] sm:$0xff]
    %v186 = vld [vmem:[%s1 + $0x3d0] sm:$0xff]
    %v187 = vld [vmem:[%s1 + $0x3d8] sm:$0xff]
    %v188 = vld [vmem:[%s1 + $0x3e0] sm:$0xff]
    %v189 = vld [vmem:[%s1 + $0x3e8] sm:$0xff]
    %v190 = vld [vmem:[%s1 + $0x3f0] sm:$0xff]
    %v191 = vld [vmem:[%s1 + $0x3f8] sm:$0xff]
    %v192 = vld [vmem:[%s1 + $0x400] sm:$0xff]
    %v193 = vld [vmem:[%s1 + $0x408] sm:$0xff]
    %v194 = vld [vmem:[%s1 + $0x410] sm:$0xff]
    %v195 = vld [vmem:[%s1 + $0x418] sm:$0xff]
    %v196 = vld [vmem:[%s1 + $0x420] sm:$0xff]
    %v197 = vld [vmem:[%s1 + $0x428] sm:$0xff]
    %v198 = vld [vmem:[%s1 + $0x430] sm:$0xff]
    %v199 = vld [vmem:[%s1 + $0x438] sm:$0xff]
    %v200 = vld [vmem:[%s1 + $0x440] sm:$0xff]
    %v201 = vld [vmem:[%s1 + $0x448] sm:$0xff]
    %v202 = vld [vmem:[%s1 + $0x450] sm:$0xff]
    %v203 = vld [vmem:[%s1 + $0x458] sm:$0xff]
    %v204 = vld [vmem:[%s1 + $0x460] sm:$0xff]
    %v205 = vld [vmem:[%s1 + $0x468] sm:$0xff]
    %v206 = vld [vmem:[%s1 + $0x470] sm:$0xff]
    %v207 = vld [vmem:[%s1 + $0x478] sm:$0xff]
    %v208 = vld [vmem:[%s1 + $0x480] sm:$0xff]
    %v209 = vld [vmem:[%s1 + $0x488] sm:$0xff]
    %v210 = vld [vmem:[%s1 + $0x490] sm:$0xff]
    %v211 = vld [vmem:[%s1 + $0x498] sm:$0xff]
    %v212 = vld [vmem:[%s1 + $0x4a0] sm:$0xff]
    %v213 = vld [vmem:[%s1 + $0x4a8] sm:$0xff]
    %v214 = vld [vmem:[%s1 + $0x4b0] sm:$0xff]
    %v215 = vld [vmem:[%s1 + $0x4b8] sm:$0xff]
    %v216 = vld [vmem:[%s1 + $0x4c0] sm:$0xff]
    %v217 = vld [vmem:[%s1 + $0x4c8] sm:$0xff]
    %v218 = vld [vmem:[%s1 + $0x4d0] sm:$0xff]
    %v219 = vld [vmem:[%s1 + $0x4d8] sm:$0xff]
    %v220 = vld [vmem:[%s1 + $0x4e0] sm:$0xff]
    %v221 = vld [vmem:[%s1 + $0x4e8] sm:$0xff]
    %v222 = vld [vmem:[%s1 + $0x4f0] sm:$0xff]
    %v223 = vld [vmem:[%s1 + $0x4f8] sm:$0xff]
    %v224 = vld [vmem:[%s1 + $0x500] sm:$0xff]
    %v225 = vld [vmem:[%s1 + $0x508] sm:$0xff]
    %v226 = vld [vmem:[%s1 + $0x510] sm:$0xff]
    %v227 = vld [vmem:[%s1 + $0x518] sm:$0xff]
    %v228 = vld [vmem:[%s1 + $0x520] sm:$0xff]
    %v229 = vld [vmem:[%s1 + $0x528] sm:$0xff]
    %v230 = vld [vmem:[%s1 + $0x530] sm:$0xff]
    %v231 = vld [vmem:[%s1 + $0x538] sm:$0xff]
    %v232 = vld [vmem:[%s1 + $0x540] sm:$0xff]
    %v233 = vld [vmem:[%s1 + $0x548] sm:$0xff]
    %v234 = vld [vmem:[%s1 + $0x550] sm:$0xff]
    %v235 = vld [vmem:[%s1 + $0x558] sm:$0xff]
    %v236 = vld [vmem:[%s1 + $0x560] sm:$0xff]
    %v237 = vld [vmem:[%s1 + $0x568] sm:$0xff]
    %v238 = vld [vmem:[%s1 + $0x570] sm:$0xff]
    %v239 = vld [vmem:[%s1 + $0x578] sm:$0xff]
    %v240 = vld [vmem:[%s1 + $0x580] sm:$0xff]
    %v241 = vld [vmem:[%s1 + $0x588] sm:$0xff]
    %v242 = vld [vmem:[%s1 + $0x590] sm:$0xff]
    %v243 = vld [vmem:[%s1 + $0x598] sm:$0xff]
    %v244 = vld [vmem:[%s1 + $0x5a0] sm:$0xff]
    %v245 = vld [vmem:[%s1 + $0x5a8] sm:$0xff]
    %v246 = vld [vmem:[%s1 + $0x5b0] sm:$0xff]
    %v247 = vld [vmem:[%s1 + $0x5b8] sm:$0xff]
    %v248 = vld [vmem:[%s1 + $0x5c0] sm:$0xff]
    %v249 = vld [vmem:[%s1 + $0x5c8] sm:$0xff]
    %v250 = vld [vmem:[%s1 + $0x5d0] sm:$0xff]
    %v251 = vld [vmem:[%s1 + $0x5d8] sm:$0xff]
    %v252 = vld [vmem:[%s1 + $0x5e0] sm:$0xff]
    %v253 = vld [vmem:[%s1 + $0x5e8] sm:$0xff]
    %v254 = vld [vmem:[%s1 + $0x5f0] sm:$0xff]
    %v255 = vld [vmem:[%s1 + $0x5f8] sm:$0xff]
    %v256 = vld [vmem:[%s1 + $0x600] sm:$0xff]
    %v257 = vld [vmem:[%s1 + $0x608] sm:$0xff]
    %v258 = vld [vmem:[%s1 + $0x610] sm:$0xff]
    %v259 = vld [vmem:[%s1 + $0x618] sm:$0xff]
    %v260 = vld [vmem:[%s1 + $0x620] sm:$0xff]
    %v261 = vld [vmem:[%s1 + $0x628] sm:$0xff]
    %v262 = vld [vmem:[%s1 + $0x630] sm:$0xff]
    %v263 = vld [vmem:[%s1 + $0x638] sm:$0xff]
    %v264 = vld [vmem:[%s1 + $0x640] sm:$0xff]
    %v265 = vld [vmem:[%s1 + $0x648] sm:$0xff]
    %v266 = vld [vmem:[%s1 + $0x650] sm:$0xff]
    %v267 = vld [vmem:[%s1 + $0x658] sm:$0xff]
    %v268 = vld [vmem:[%s1 + $0x660] sm:$0xff]
    %v269 = vld [vmem:[%s1 + $0x668] sm:$0xff]
    %v270 = vld [vmem:[%s1 + $0x670] sm:$0xff]
    %v271 = vld [vmem:[%s1 + $0x678] sm:$0xff]
    %v272 = vld [vmem:[%s1 + $0x680] sm:$0xff]
    %v273 = vld [vmem:[%s1 + $0x688] sm:$0xff]
    %v274 = vld [vmem:[%s1 + $0x690] sm:$0xff]
    %v275 = vld [vmem:[%s1 + $0x698] sm:$0xff]
    %v276 = vld [vmem:[%s1 + $0x6a0] sm:$0xff]
    %v277 = vld [vmem:[%s1 + $0x6a8] sm:$0xff]
    %v278 = vld [vmem:[%s1 + $0x6b0] sm:$0xff]
    %v279 = vld [vmem:[%s1 + $0x6b8] sm:$0xff]
    %v280 = vld [vmem:[%s1 + $0x6c0] sm:$0xff]
    %v281 = vld [vmem:[%s1 + $0x6c8] sm:$0xff]
    %v282 = vld [vmem:[%s1 + $0x6d0] sm:$0xff]
    %v283 = vld [vmem:[%s1 + $0x6d8] sm:$0xff]
    %v284 = vld [vmem:[%s1 + $0x6e0] sm:$0xff]
    %v285 = vld [vmem:[%s1 + $0x6e8] sm:$0xff]
    %v286 = vld [vmem:[%s1 + $0x6f0] sm:$0xff]
    %v287 = vld [vmem:[%s1 + $0x6f8] sm:$0xff]
    %v288 = vld [vmem:[%s1 + $0x700] sm:$0xff]
    %v289 = vld [vmem:[%s1 + $0x708] sm:$0xff]
    %v290 = vld [vmem:[%s1 + $0x710] sm:$0xff]
    %v291 = vld [vmem:[%s1 + $0x718] sm:$0xff]
    %v292 = vld [vmem:[%s1 + $0x720] sm:$0xff]
    %v293 = vld [vmem:[%s1 + $0x728] sm:$0xff]
    %v294 = vld [vmem:[%s1 + $0x730] sm:$0xff]
    %v295 = vld [vmem:[%s1 + $0x738] sm:$0xff]
    %v296 = vld [vmem:[%s1 + $0x740] sm:$0xff]
    %v297 = vld [vmem:[%s1 + $0x748] sm:$0xff]
    %v298 = vld [vmem:[%s1 + $0x750] sm:$0xff]
    %v299 = vld [vmem:[%s1 + $0x758] sm:$0xff]
    %v300 = vld [vmem:[%s1 + $0x760] sm:$0xff]
    %v301 = vld [vmem:[%s1 + $0x768] sm:$0xff]
    %v302 = vld [vmem:[%s1 + $0x770] sm:$0xff]
    %v303 = vld [vmem:[%s1 + $0x778] sm:$0xff]
    %v304 = vld [vmem:[%s1 + $0x780] sm:$0xff]
    %v305 = vld [vmem:[%s1 + $0x788] sm:$0xff]
    %v306 = vld [vmem:[%s1 + $0x790] sm:$0xff]
    %v307 = vld [vmem:[%s1 + $0x798] sm:$0xff]
    %v308 = vld [vmem:[%s1 + $0x7a0] sm:$0xff]
    %v309 = vld [vmem:[%s1 + $0x7a8] sm:$0xff]
    %v310 = vld [vmem:[%s1 + $0x7b0] sm:$0xff]
    %v311 = vld [vmem:[%s1 + $0x7b8] sm:$0xff]
    %v312 = vld [vmem:[%s1 + $0x7c0] sm:$0xff]
    %v313 = vld [vmem:[%s1 + $0x7c8] sm:$0xff]
    %v314 = vld [vmem:[%s1 + $0x7d0] sm:$0xff]
    %v315 = vld [vmem:[%s1 + $0x7d8] sm:$0xff]
    %v316 = vld [vmem:[%s1 + $0x7e0] sm:$0xff]
    %v317 = vld [vmem:[%s1 + $0x7e8] sm:$0xff]
    %v318 = vld [vmem:[%s1 + $0x7f0] sm:$0xff]
    %v319 = vld [vmem:[%s1 + $0x7f8] sm:$0xff]
    %v320 = vld [vmem:[%s1 + $0x800] sm:$0xff]
    %v321 = vld [vmem:[%s1 + $0x808] sm:$0xff]
    %v322 = vld [vmem:[%s1 + $0x810] sm:$0xff]
    %v323 = vld [vmem:[%s1 + $0x818] sm:$0xff]
    %v324 = vld [vmem:[%s1 + $0x820] sm:$0xff]
    %v325 = vld [vmem:[%s1 + $0x828] sm:$0xff]
    %v326 = vld [vmem:[%s1 + $0x830] sm:$0xff]
    %v327 = vld [vmem:[%s1 + $0x838] sm:$0xff]
    %v328 = vld [vmem:[%s1 + $0x840] sm:$0xff]
    %v329 = vld [vmem:[%s1 + $0x848] sm:$0xff]
    %v330 = vld [vmem:[%s1 + $0x850] sm:$0xff]
    %v331 = vld [vmem:[%s1 + $0x858] sm:$0xff]
    %v332 = vld [vmem:[%s1 + $0x860] sm:$0xff]
    %v333 = vld [vmem:[%s1 + $0x868] sm:$0xff]
    %v334 = vld [vmem:[%s1 + $0x870] sm:$0xff]
    %v335 = vld [vmem:[%s1 + $0x878] sm:$0xff]
    %v336 = vld [vmem:[%s1 + $0x880] sm:$0xff]
    %v337 = vld [vmem:[%s1 + $0x888] sm:$0xff]
    %v338 = vld [vmem:[%s1 + $0x890] sm:$0xff]
    %v339 = vld [vmem:[%s1 + $0x898] sm:$0xff]
    %v340 = vld [vmem:[%s1 + $0x8a0] sm:$0xff]
    %v341 = vld [vmem:[%s1 + $0x8a8] sm:$0xff]
    %v342 = vld [vmem:[%s1 + $0x8b0] sm:$0xff]
    %v343 = vld [vmem:[%s1 + $0x8b8] sm:$0xff]
    %v344 = vld [vmem:[%s1 + $0x8c0] sm:$0xff]
    %v345 = vld [vmem:[%s1 + $0x8c8] sm:$0xff]
    %v346 = vld [vmem:[%s1 + $0x8d0] sm:$0xff]
    %v347 = vld [vmem:[%s1 + $0x8d8] sm:$0xff]
    %v348 = vld [vmem:[%s1 + $0x8e0] sm:$0xff]
    %v349 = vld [vmem:[%s1 + $0x8e8] sm:$0xff]
    %v350 = vld [vmem:[%s1 + $0x8f0] sm:$0xff]
    %v351 = vld [vmem:[%s1 + $0x8f8] sm:$0xff]
    %v352 = vld [vmem:[%s1 + $0x900] sm:$0xff]
    %v353 = vld [vmem:[%s1 + $0x908] sm:$0xff]
    %v354 = vld [vmem:[%s1 + $0x910] sm:$0xff]
    %v355 = vld [vmem:[%s1 + $0x918] sm:$0xff]
    %v356 = vld [vmem:[%s1 + $0x920] sm:$0xff]
    %v357 = vld [vmem:[%s1 + $0x928] sm:$0xff]
    %v358 = vld [vmem:[%s1 + $0x930] sm:$0xff]
    %v359 = vld [vmem:[%s1 + $0x938] sm:$0xff]
    %v360 = vld [vmem:[%s1 + $0x940] sm:$0xff]
    %v361 = vld [vmem:[%s1 + $0x948] sm:$0xff]
    %v362 = vld [vmem:[%s1 + $0x950] sm:$0xff]
    %v363 = vld [vmem:[%s1 + $0x958] sm:$0xff]
    %v364 = vld [vmem:[%s1 + $0x960] sm:$0xff]
    %v365 = vld [vmem:[%s1 + $0x968] sm:$0xff]
    %v366 = vld [vmem:[%s1 + $0x970] sm:$0xff]
    %v367 = vld [vmem:[%s1 + $0x978] sm:$0xff]
    %v368 = vld [vmem:[%s1 + $0x980] sm:$0xff]
    %v369 = vld [vmem:[%s1 + $0x988] sm:$0xff]
    %v370 = vld [vmem:[%s1 + $0x990] sm:$0xff]
    %v371 = vld [vmem:[%s1 + $0x998] sm:$0xff]
    %v372 = vld [vmem:[%s1 + $0x9a0] sm:$0xff]
    %v373 = vld [vmem:[%s1 + $0x9a8] sm:$0xff]
    %v374 = vld [vmem:[%s1 + $0x9b0] sm:$0xff]
    %v375 = vld [vmem:[%s1 + $0x9b8] sm:$0xff]
    %v376 = vld [vmem:[%s1 + $0x9c0] sm:$0xff]
    %v377 = vld [vmem:[%s1 + $0x9c8] sm:$0xff]
    %v378 = vld [vmem:[%s1 + $0x9d0] sm:$0xff]
    %v379 = vld [vmem:[%s1 + $0x9d8] sm:$0xff]
    %v380 = vld [vmem:[%s1 + $0x9e0] sm:$0xff]
    %v381 = vld [vmem:[%s1 + $0x9e8] sm:$0xff]
    %v382 = vld [vmem:[%s1 + $0x9f0] sm:$0xff]
    %v383 = vld [vmem:[%s1 + $0x9f8] sm:$0xff]
    %v384 = vld [vmem:[%s1 + $0xa00] sm:$0xff]
    %v385 = vld [vmem:[%s1 + $0xa08] sm:$0xff]
    %v386 = vld [vmem:[%s1 + $0xa10] sm:$0xff]
    %v387 = vld [vmem:[%s1 + $0xa18] sm:$0xff]
    %v388 = vld [vmem:[%s1 + $0xa20] sm:$0xff]
    %v389 = vld [vmem:[%s1 + $0xa28] sm:$0xff]
    %v390 = vld [vmem:[%s1 + $0xa30] sm:$0xff]
    %v391 = vld [vmem:[%s1 + $0xa38] sm:$0xff]
    %v392 = vld [vmem:[%s1 + $0xa40] sm:$0xff]
    %v393 = vld [vmem:[%s1 + $0xa48] sm:$0xff]
    %v394 = vld [vmem:[%s1 + $0xa50] sm:$0xff]
    %v395 = vld [vmem:[%s1 + $0xa58] sm:$0xff]
    %v396 = vld [vmem:[%s1 + $0xa60] sm:$0xff]
    %v397 = vld [vmem:[%s1 + $0xa68] sm:$0xff]
    %v398 = vld [vmem:[%s1 + $0xa70] sm:$0xff]
    %v399 = vld [vmem:[%s1 + $0xa78] sm:$0xff]
    %v400 = vld [vmem:[%s1 + $0xa80] sm:$0xff]
    %v401 = vld [vmem:[%s1 + $0xa88] sm:$0xff]
    %v402 = vld [vmem:[%s1 + $0xa90] sm:$0xff]
    %v403 = vld [vmem:[%s1 + $0xa98] sm:$0xff]
    %v404 = vld [vmem:[%s1 + $0xaa0] sm:$0xff]
    %v405 = vld [vmem:[%s1 + $0xaa8] sm:$0xff]
    %v406 = vld [vmem:[%s1 + $0xab0] sm:$0xff]
    %v407 = vld [vmem:[%s1 + $0xab8] sm:$0xff]
    %v408 = vld [vmem:[%s1 + $0xac0] sm:$0xff]
    %v409 = vld [vmem:[%s1 + $0xac8] sm:$0xff]
    %v410 = vld [vmem:[%s1 + $0xad0] sm:$0xff]
    %v411 = vld [vmem:[%s1 + $0xad8] sm:$0xff]
    %v412 = vld [vmem:[%s1 + $0xae0] sm:$0xff]
    %v413 = vld [vmem:[%s1 + $0xae8] sm:$0xff]
    %v414 = vld [vmem:[%s1 + $0xaf0] sm:$0xff]
    %v415 = vld [vmem:[%s1 + $0xaf8] sm:$0xff]
    %v416 = vld [vmem:[%s1 + $0xb00] sm:$0xff]
    %v417 = vld [vmem:[%s1 + $0xb08] sm:$0xff]
    %v418 = vld [vmem:[%s1 + $0xb10] sm:$0xff]
    %v419 = vld [vmem:[%s1 + $0xb18] sm:$0xff]
    %v420 = vld [vmem:[%s1 + $0xb20] sm:$0xff]
    %v421 = vld [vmem:[%s1 + $0xb28] sm:$0xff]
    %v422 = vld [vmem:[%s1 + $0xb30] sm:$0xff]
    %v423 = vld [vmem:[%s1 + $0xb38] sm:$0xff]
    %v424 = vld [vmem:[%s1 + $0xb40] sm:$0xff]
    %v425 = vld [vmem:[%s1 + $0xb48] sm:$0xff]
    %v426 = vld [vmem:[%s1 + $0xb50] sm:$0xff]
    %v427 = vld [vmem:[%s1 + $0xb58] sm:$0xff]
    %v428 = vld [vmem:[%s1 + $0xb60] sm:$0xff]
    %v429 = vld [vmem:[%s1 + $0xb68] sm:$0xff]
    %v430 = vld [vmem:[%s1 + $0xb70] sm:$0xff]
    %v431 = vld [vmem:[%s1 + $0xb78] sm:$0xff]
    %v432 = vld [vmem:[%s1 + $0xb80] sm:$0xff]
    %v433 = vld [vmem:[%s1 + $0xb88] sm:$0xff]
    %v434 = vld [vmem:[%s1 + $0xb90] sm:$0xff]
    %v435 = vld [vmem:[%s1 + $0xb98] sm:$0xff]
    %v436 = vld [vmem:[%s1 + $0xba0] sm:$0xff]
    %v437 = vld [vmem:[%s1 + $0xba8] sm:$0xff]
    %v438 = vld [vmem:[%s1 + $0xbb0] sm:$0xff]
    %v439 = vld [vmem:[%s1 + $0xbb8] sm:$0xff]
    %v440 = vld [vmem:[%s1 + $0xbc0] sm:$0xff]
    %v441 = vld [vmem:[%s1 + $0xbc8] sm:$0xff]
    %v442 = vld [vmem:[%s1 + $0xbd0] sm:$0xff]
    %v443 = vld [vmem:[%s1 + $0xbd8] sm:$0xff]
    %v444 = vld [vmem:[%s1 + $0xbe0] sm:$0xff]
    %v445 = vld [vmem:[%s1 + $0xbe8] sm:$0xff]
    %v446 = vld [vmem:[%s1 + $0xbf0] sm:$0xff]
    %v447 = vld [vmem:[%s1 + $0xbf8] sm:$0xff]
    %v448 = vld [vmem:[%s1 + $0xc00] sm:$0xff]
    %v449 = vld [vmem:[%s1 + $0xc08] sm:$0xff]
    %v450 = vld [vmem:[%s1 + $0xc10] sm:$0xff]
    %v451 = vld [vmem:[%s1 + $0xc18] sm:$0xff]
    %v452 = vld [vmem:[%s1 + $0xc20] sm:$0xff]
    %v453 = vld [vmem:[%s1 + $0xc28] sm:$0xff]
    %v454 = vld [vmem:[%s1 + $0xc30] sm:$0xff]
    %v455 = vld [vmem:[%s1 + $0xc38] sm:$0xff]
    %v456 = vld [vmem:[%s1 + $0xc40] sm:$0xff]
    %v457 = vld [vmem:[%s1 + $0xc48] sm:$0xff]
    %v458 = vld [vmem:[%s1 + $0xc50] sm:$0xff]
    %v459 = vld [vmem:[%s1 + $0xc58] sm:$0xff]
    %v460 = vld [vmem:[%s1 + $0xc60] sm:$0xff]
    %v461 = vld [vmem:[%s1 + $0xc68] sm:$0xff]
    %v462 = vld [vmem:[%s1 + $0xc70] sm:$0xff]
    %v463 = vld [vmem:[%s1 + $0xc78] sm:$0xff]
    %v464 = vld [vmem:[%s1 + $0xc80] sm:$0xff]
    %v465 = vld [vmem:[%s1 + $0xc88] sm:$0xff]
    %v466 = vld [vmem:[%s1 + $0xc90] sm:$0xff]
    %v467 = vld [vmem:[%s1 + $0xc98] sm:$0xff]
    %v468 = vld [vmem:[%s1 + $0xca0] sm:$0xff]
    %v469 = vld [vmem:[%s1 + $0xca8] sm:$0xff]
    %v470 = vld [vmem:[%s1 + $0xcb0] sm:$0xff]
    %v471 = vld [vmem:[%s1 + $0xcb8] sm:$0xff]
    %v472 = vld [vmem:[%s1 + $0xcc0] sm:$0xff]
    %v473 = vld [vmem:[%s1 + $0xcc8] sm:$0xff]
    %v474 = vld [vmem:[%s1 + $0xcd0] sm:$0xff]
    %v475 = vld [vmem:[%s1 + $0xcd8] sm:$0xff]
    %v476 = vld [vmem:[%s1 + $0xce0] sm:$0xff]
    %v477 = vld [vmem:[%s1 + $0xce8] sm:$0xff]
    %v478 = vld [vmem:[%s1 + $0xcf0] sm:$0xff]
    %v479 = vld [vmem:[%s1 + $0xcf8] sm:$0xff]
    %v480 = vld [vmem:[%s1 + $0xd00] sm:$0xff]
    %v481 = vld [vmem:[%s1 + $0xd08] sm:$0xff]
    %v482 = vld [vmem:[%s1 + $0xd10] sm:$0xff]
    %v483 = vld [vmem:[%s1 + $0xd18] sm:$0xff]
    %v484 = vld [vmem:[%s1 + $0xd20] sm:$0xff]
    %v485 = vld [vmem:[%s1 + $0xd28] sm:$0xff]
    %v486 = vld [vmem:[%s1 + $0xd30] sm:$0xff]
    %v487 = vld [vmem:[%s1 + $0xd38] sm:$0xff]
    %v488 = vld [vmem:[%s1 + $0xd40] sm:$0xff]
    %v489 = vld [vmem:[%s1 + $0xd48] sm:$0xff]
    %v490 = vld [vmem:[%s1 + $0xd50] sm:$0xff]
    %v491 = vld [vmem:[%s1 + $0xd58] sm:$0xff]
    %v492 = vld [vmem:[%s1 + $0xd60] sm:$0xff]
    %v493 = vld [vmem:[%s1 + $0xd68] sm:$0xff]
    %v494 = vld [vmem:[%s1 + $0xd70] sm:$0xff]
    %v495 = vld [vmem:[%s1 + $0xd78] sm:$0xff]
    %v496 = vld [vmem:[%s1 + $0xd80] sm:$0xff]
    %v497 = vld [vmem:[%s1 + $0xd88] sm:$0xff]
    %v498 = vld [vmem:[%s1 + $0xd90] sm:$0xff]
    %v499 = vld [vmem:[%s1 + $0xd98] sm:$0xff]
    %v500 = vld [vmem:[%s1 + $0xda0] sm:$0xff]
    %v501 = vld [vmem:[%s1 + $0xda8] sm:$0xff]
    %v502 = vld [vmem:[%s1 + $0xdb0] sm:$0xff]
    %v503 = vld [vmem:[%s1 + $0xdb8] sm:$0xff]
    %v504 = vld [vmem:[%s1 + $0xdc0] sm:$0xff]
    %v505 = vld [vmem:[%s1 + $0xdc8] sm:$0xff]
    %v506 = vld [vmem:[%s1 + $0xdd0] sm:$0xff]
    %v507 = vld [vmem:[%s1 + $0xdd8] sm:$0xff]
    %v508 = vld [vmem:[%s1 + $0xde0] sm:$0xff]
    %v509 = vld [vmem:[%s1 + $0xde8] sm:$0xff]
    %v510 = vld [vmem:[%s1 + $0xdf0] sm:$0xff]
    %v511 = vld [vmem:[%s1 + $0xdf8] sm:$0xff]
    %v512 = vld [vmem:[%s1 + $0xe00] sm:$0xff]
    %v513 = vld [vmem:[%s1 + $0xe08] sm:$0xff]
    %v514 = vld [vmem:[%s1 + $0xe10] sm:$0xff]
    %v515 = vld [vmem:[%s1 + $0xe18] sm:$0xff]
    %v516 = vld [vmem:[%s1 + $0xe20] sm:$0xff]
    %v517 = vld [vmem:[%s1 + $0xe28] sm:$0xff]
    %v518 = vld [vmem:[%s1 + $0xe30] sm:$0xff]
    %v519 = vld [vmem:[%s1 + $0xe38] sm:$0xff]
    %v520 = vld [vmem:[%s1 + $0xe40] sm:$0xff]
    %v521 = vld [vmem:[%s1 + $0xe48] sm:$0xff]
    %v522 = vld [vmem:[%s1 + $0xe50] sm:$0xff]
    %v523 = vld [vmem:[%s1 + $0xe58] sm:$0xff]
    %v524 = vld [vmem:[%s1 + $0xe60] sm:$0xff]
    %v525 = vld [vmem:[%s1 + $0xe68] sm:$0xff]
    %v526 = vld [vmem:[%s1 + $0xe70] sm:$0xff]
    %v527 = vld [vmem:[%s1 + $0xe78] sm:$0xff]
    %v528 = vld [vmem:[%s1 + $0xe80] sm:$0xff]
    %v529 = vld [vmem:[%s1 + $0xe88] sm:$0xff]
    %v530 = vld [vmem:[%s1 + $0xe90] sm:$0xff]
    %v531 = vld [vmem:[%s1 + $0xe98] sm:$0xff]
    %v532 = vld [vmem:[%s1 + $0xea0] sm:$0xff]
    %v533 = vld [vmem:[%s1 + $0xea8] sm:$0xff]
    %v534 = vld [vmem:[%s1 + $0xeb0] sm:$0xff]
    %v535 = vld [vmem:[%s1 + $0xeb8] sm:$0xff]
    %v536 = vld [vmem:[%s1 + $0xec0] sm:$0xff]
    %v537 = vld [vmem:[%s1 + $0xec8] sm:$0xff]
    %v538 = vld [vmem:[%s1 + $0xed0] sm:$0xff]
    %v539 = vld [vmem:[%s1 + $0xed8] sm:$0xff]
    %v540 = vld [vmem:[%s1 + $0xee0] sm:$0xff]
    %v541 = vld [vmem:[%s1 + $0xee8] sm:$0xff]
    %v542 = vld [vmem:[%s1 + $0xef0] sm:$0xff]
    %v543 = vld [vmem:[%s1 + $0xef8] sm:$0xff]
    %v544 = vld [vmem:[%s1 + $0xf00] sm:$0xff]
    %v545 = vld [vmem:[%s1 + $0xf08] sm:$0xff]
    %v546 = vld [vmem:[%s1 + $0xf10] sm:$0xff]
    %v547 = vld [vmem:[%s1 + $0xf18] sm:$0xff]
    %v548 = vld [vmem:[%s1 + $0xf20] sm:$0xff]
    %v549 = vld [vmem:[%s1 + $0xf28] sm:$0xff]
    %v550 = vld [vmem:[%s1 + $0xf30] sm:$0xff]
    %v551 = vld [vmem:[%s1 + $0xf38] sm:$0xff]
    %v552 = vld [vmem:[%s1 + $0xf40] sm:$0xff]
    %v553 = vld [vmem:[%s1 + $0xf48] sm:$0xff]
    %v554 = vld [vmem:[%s1 + $0xf50] sm:$0xff]
    %v555 = vld [vmem:[%s1 + $0xf58] sm:$0xff]
    %v556 = vld [vmem:[%s1 + $0xf60] sm:$0xff]
    %v557 = vld [vmem:[%s1 + $0xf68] sm:$0xff]
    %v558 = vld [vmem:[%s1 + $0xf70] sm:$0xff]
    %v559 = vld [vmem:[%s1 + $0xf78] sm:$0xff]
    %v560 = vld [vmem:[%s1 + $0xf80] sm:$0xff]
    %v561 = vld [vmem:[%s1 + $0xf88] sm:$0xff]
    %v562 = vld [vmem:[%s1 + $0xf90] sm:$0xff]
    %v563 = vld [vmem:[%s1 + $0xf98] sm:$0xff]
    %v564 = vld [vmem:[%s1 + $0xfa0] sm:$0xff]
    %v565 = vld [vmem:[%s1 + $0xfa8] sm:$0xff]
    %v566 = vld [vmem:[%s1 + $0xfb0] sm:$0xff]
    %v567 = vld [vmem:[%s1 + $0xfb8] sm:$0xff]
    %v568 = vld [vmem:[%s1 + $0xfc0] sm:$0xff]
    %v569 = vld [vmem:[%s1 + $0xfc8] sm:$0xff]
    %v570 = vld [vmem:[%s1 + $0xfd0] sm:$0xff]
    %v571 = vld [vmem:[%s1 + $0xfd8] sm:$0xff]
    %v572 = vld [vmem:[%s1 + $0xfe0] sm:$0xff]
    %v573 = vld [vmem:[%s1 + $0xfe8] sm:$0xff]
    %v574 = vld [vmem:[%s1 + $0xff0] sm:$0xff]
    %v575 = vld [vmem:[%s1 + $0xff8] sm:$0xff]
    %v576 = vld [vmem:[%s2] sm:$0xff]
    %v578 = vlaneseq
    %v579 = vshrl.u32 %v578, 7
    %v580 = vsub.s32 0, %v579
    %v581 = vrot.slane %v576, %v580
    %v582 = vlaneseq
    %v583 = vshrl.u32 %v582, 7
    %v584 = vsub.s32 1, %v583
    %v585 = vrot.slane %v576, %v584
    %v586 = vlaneseq
    %v587 = vshrl.u32 %v586, 7
    %v588 = vsub.s32 2, %v587
    %v589 = vrot.slane %v576, %v588
    %v590 = vlaneseq
    %v591 = vshrl.u32 %v590, 7
    %v592 = vsub.s32 3, %v591
    %v593 = vrot.slane %v576, %v592
    %v594 = vlaneseq
    %v595 = vshrl.u32 %v594, 7
    %v596 = vsub.s32 4, %v595
    %v597 = vrot.slane %v576, %v596
    %v598 = vlaneseq
    %v599 = vshrl.u32 %v598, 7
    %v600 = vsub.s32 5, %v599
    %v601 = vrot.slane %v576, %v600
    %v602 = vlaneseq
    %v603 = vshrl.u32 %v602, 7
    %v604 = vsub.s32 6, %v603
    %v605 = vrot.slane %v576, %v604
    %v606 = vlaneseq
    %v607 = vshrl.u32 %v606, 7
    %v608 = vsub.s32 7, %v607
    %v609 = vrot.slane %v576, %v608
    %v619 = vcombine.high %v63, %v63
    %v621 = vunpack.c.l.s4 1983009808
    %v622 = vunpack.c.0.s8 %v621
    %v623 = vlaneseq
    %v624 = vshrl.u32 %v623, 7
    %v625 = vsub.s32 %v622, %v624
    %v626 = vrot.slane %v63, %v625
    %v628 = vunpack.c.l.s4 1983009808
    %v629 = vunpack.c.0.s8 %v628
    %v630 = vlaneseq
    %v631 = vshrl.u32 %v630, 7
    %v632 = vsub.s32 %v629, %v631
    %v633 = vrot.slane %v619, %v632
    %v634 = vcombine.high %v626, %v626
    %v635 = vcombine.high %v633, %v633
    %640 = vmatprep.subr.mxu0 %v185
    %641 = vmatpush1.msra.mxu0 %v184
    %642 = vmatprep.subr.mxu0 %v177
    %643 = vmatpush1.msra.mxu0 %v176
    %644 = vmatprep.subr.mxu0 %v169
    %645 = vmatpush1.msra.mxu0 %v168
    %646 = vmatprep.subr.mxu0 %v161
    %647 = vmatpush1.msra.mxu0 %v160
    %648 = vmatprep.subr.mxu0 %v153
    %649 = vmatpush1.msra.mxu0 %v152
    %650 = vmatprep.subr.mxu0 %v145
    %651 = vmatpush1.msra.mxu0 %v144
    %652 = vmatprep.subr.mxu0 %v137
    %653 = vmatpush1.msra.mxu0 %v136
    %654 = vmatprep.subr.mxu0 %v129
    %655 = vmatpush1.msra.mxu0 %v128
    %656 = vmatprep.subr.mxu0 %v121
    %657 = vmatpush1.msra.mxu0 %v120
    %658 = vmatprep.subr.mxu0 %v113
    %659 = vmatpush1.msra.mxu0 %v112
    %660 = vmatprep.subr.mxu0 %v105
    %661 = vmatpush1.msra.mxu0 %v104
    %662 = vmatprep.subr.mxu0 %v97
    %663 = vmatpush1.msra.mxu0 %v96
    %664 = vmatprep.subr.mxu0 %v89
    %665 = vmatpush1.msra.mxu0 %v88
    %666 = vmatprep.subr.mxu0 %v81
    %667 = vmatpush1.msra.mxu0 %v80
    %668 = vmatprep.subr.mxu0 %v73
    %669 = vmatpush1.msra.mxu0 %v72
    %670 = vmatprep.subr.mxu0 %v65
    %671 = vmatpush1.msra.mxu0 %v64
    %672 = vmatprep.subr.mxu0 %v313
    %673 = vmatpush2.msra.mxu0 %v312
    %674 = vmatprep.subr.mxu0 %v305
    %675 = vmatpush2.msra.mxu0 %v304
    %676 = vmatprep.subr.mxu0 %v297
    %677 = vmatpush2.msra.mxu0 %v296
    %678 = vmatprep.subr.mxu0 %v289
    %679 = vmatpush2.msra.mxu0 %v288
    %680 = vmatprep.subr.mxu0 %v281
    %681 = vmatpush2.msra.mxu0 %v280
    %682 = vmatprep.subr.mxu0 %v273
    %683 = vmatpush2.msra.mxu0 %v272
    %684 = vmatprep.subr.mxu0 %v265
    %685 = vmatpush2.msra.mxu0 %v264
    %686 = vmatprep.subr.mxu0 %v257
    %687 = vmatpush2.msra.mxu0 %v256
    %688 = vmatprep.subr.mxu0 %v249
    %689 = vmatpush2.msra.mxu0 %v248
    %690 = vmatprep.subr.mxu0 %v241
    %691 = vmatpush2.msra.mxu0 %v240
    %692 = vmatprep.subr.mxu0 %v233
    %693 = vmatpush2.msra.mxu0 %v232
    %694 = vmatprep.subr.mxu0 %v225
    %695 = vmatpush2.msra.mxu0 %v224
    %696 = vmatprep.subr.mxu0 %v217
    %697 = vmatpush2.msra.mxu0 %v216
    %698 = vmatprep.subr.mxu0 %v209
    %699 = vmatpush2.msra.mxu0 %v208
    %700 = vmatprep.subr.mxu0 %v201
    %701 = vmatpush2.msra.mxu0 %v200
    %702 = vmatprep.subr.mxu0 %v193
    %703 = vmatpush2.msra.mxu0 %v192
    %704 = vmatprep.mubr.f32.mxu0 %v634
    %705 = vmatmul.mubr.f32.gmra.mxu0 %v626
    %v706 = vpop.f32.mrf.mxu0
    %v707 = vadd.f32 %v581, %v706
    %v708 = vpop.f32.mrf.mxu0
    %v709 = vadd.f32 %v585, %v708
    %710 = vdwg.mxu0
    %711 = vmatprep.subr.mxu0 %v441
    %712 = vmatpush1.msra.mxu0 %v440
    %713 = vmatprep.subr.mxu0 %v433
    %714 = vmatpush1.msra.mxu0 %v432
    %715 = vmatprep.subr.mxu0 %v425
    %716 = vmatpush1.msra.mxu0 %v424
    %717 = vmatprep.subr.mxu0 %v417
    %718 = vmatpush1.msra.mxu0 %v416
    %719 = vmatprep.subr.mxu0 %v409
    %720 = vmatpush1.msra.mxu0 %v408
    %721 = vmatprep.subr.mxu0 %v401
    %722 = vmatpush1.msra.mxu0 %v400
    %723 = vmatprep.subr.mxu0 %v393
    %724 = vmatpush1.msra.mxu0 %v392
    %725 = vmatprep.subr.mxu0 %v385
    %726 = vmatpush1.msra.mxu0 %v384
    %727 = vmatprep.subr.mxu0 %v377
    %728 = vmatpush1.msra.mxu0 %v376
    %729 = vmatprep.subr.mxu0 %v369
    %730 = vmatpush1.msra.mxu0 %v368
    %731 = vmatprep.subr.mxu0 %v361
    %732 = vmatpush1.msra.mxu0 %v360
    %733 = vmatprep.subr.mxu0 %v353
    %734 = vmatpush1.msra.mxu0 %v352
    %735 = vmatprep.subr.mxu0 %v345
    %736 = vmatpush1.msra.mxu0 %v344
    %737 = vmatprep.subr.mxu0 %v337
    %738 = vmatpush1.msra.mxu0 %v336
    %739 = vmatprep.subr.mxu0 %v329
    %740 = vmatpush1.msra.mxu0 %v328
    %741 = vmatprep.subr.mxu0 %v321
    %742 = vmatpush1.msra.mxu0 %v320
    %743 = vmatprep.subr.mxu0 %v569
    %744 = vmatpush2.msra.mxu0 %v568
    %745 = vmatprep.subr.mxu0 %v561
    %746 = vmatpush2.msra.mxu0 %v560
    %747 = vmatprep.subr.mxu0 %v553
    %748 = vmatpush2.msra.mxu0 %v552
    %749 = vmatprep.subr.mxu0 %v545
    %750 = vmatpush2.msra.mxu0 %v544
    %751 = vmatprep.subr.mxu0 %v537
    %752 = vmatpush2.msra.mxu0 %v536
    %753 = vmatprep.subr.mxu0 %v529
    %754 = vmatpush2.msra.mxu0 %v528
    %755 = vmatprep.subr.mxu0 %v521
    %756 = vmatpush2.msra.mxu0 %v520
    %757 = vmatprep.subr.mxu0 %v513
    %758 = vmatpush2.msra.mxu0 %v512
    %759 = vmatprep.subr.mxu0 %v505
    %760 = vmatpush2.msra.mxu0 %v504
    %761 = vmatprep.subr.mxu0 %v497
    %762 = vmatpush2.msra.mxu0 %v496
    %763 = vmatprep.subr.mxu0 %v489
    %764 = vmatpush2.msra.mxu0 %v488
    %765 = vmatprep.subr.mxu0 %v481
    %766 = vmatpush2.msra.mxu0 %v480
    %767 = vmatprep.subr.mxu0 %v473
    %768 = vmatpush2.msra.mxu0 %v472
    %769 = vmatprep.subr.mxu0 %v465
    %770 = vmatpush2.msra.mxu0 %v464
    %771 = vmatprep.subr.mxu0 %v457
    %772 = vmatpush2.msra.mxu0 %v456
    %773 = vmatprep.subr.mxu0 %v449
    %774 = vmatpush2.msra.mxu0 %v448
    %775 = vmatprep.mubr.f32.mxu0 %v635
    %776 = vmatmul.mubr.f32.gmra.mxu0 %v633
    %v777 = vpop.f32.mrf.mxu0
    %v778 = vadd.f32 %v707, %v777
    %v779 = vpop.f32.mrf.mxu0
    %v780 = vadd.f32 %v709, %v779
    %781 = vdwg.mxu0
    %782 = vmatprep.subr.mxu0 %v187
    %783 = vmatpush1.msra.mxu0 %v186
    %784 = vmatprep.subr.mxu0 %v179
    %785 = vmatpush1.msra.mxu0 %v178
    %786 = vmatprep.subr.mxu0 %v171
    %787 = vmatpush1.msra.mxu0 %v170
    %788 = vmatprep.subr.mxu0 %v163
    %789 = vmatpush1.msra.mxu0 %v162
    %790 = vmatprep.subr.mxu0 %v155
    %791 = vmatpush1.msra.mxu0 %v154
    %792 = vmatprep.subr.mxu0 %v147
    %793 = vmatpush1.msra.mxu0 %v146
    %794 = vmatprep.subr.mxu0 %v139
    %795 = vmatpush1.msra.mxu0 %v138
    %796 = vmatprep.subr.mxu0 %v131
    %797 = vmatpush1.msra.mxu0 %v130
    %798 = vmatprep.subr.mxu0 %v123
    %799 = vmatpush1.msra.mxu0 %v122
    %800 = vmatprep.subr.mxu0 %v115
    %801 = vmatpush1.msra.mxu0 %v114
    %802 = vmatprep.subr.mxu0 %v107
    %803 = vmatpush1.msra.mxu0 %v106
    %804 = vmatprep.subr.mxu0 %v99
    %805 = vmatpush1.msra.mxu0 %v98
    %806 = vmatprep.subr.mxu0 %v91
    %807 = vmatpush1.msra.mxu0 %v90
    %808 = vmatprep.subr.mxu0 %v83
    %809 = vmatpush1.msra.mxu0 %v82
    %810 = vmatprep.subr.mxu0 %v75
    %811 = vmatpush1.msra.mxu0 %v74
    %812 = vmatprep.subr.mxu0 %v67
    %813 = vmatpush1.msra.mxu0 %v66
    %814 = vmatprep.subr.mxu0 %v315
    %815 = vmatpush2.msra.mxu0 %v314
    %816 = vmatprep.subr.mxu0 %v307
    %817 = vmatpush2.msra.mxu0 %v306
    %818 = vmatprep.subr.mxu0 %v299
    %819 = vmatpush2.msra.mxu0 %v298
    %820 = vmatprep.subr.mxu0 %v291
    %821 = vmatpush2.msra.mxu0 %v290
    %822 = vmatprep.subr.mxu0 %v283
    %823 = vmatpush2.msra.mxu0 %v282
    %824 = vmatprep.subr.mxu0 %v275
    %825 = vmatpush2.msra.mxu0 %v274
    %826 = vmatprep.subr.mxu0 %v267
    %827 = vmatpush2.msra.mxu0 %v266
    %828 = vmatprep.subr.mxu0 %v259
    %829 = vmatpush2.msra.mxu0 %v258
    %830 = vmatprep.subr.mxu0 %v251
    %831 = vmatpush2.msra.mxu0 %v250
    %832 = vmatprep.subr.mxu0 %v243
    %833 = vmatpush2.msra.mxu0 %v242
    %834 = vmatprep.subr.mxu0 %v235
    %835 = vmatpush2.msra.mxu0 %v234
    %836 = vmatprep.subr.mxu0 %v227
    %837 = vmatpush2.msra.mxu0 %v226
    %838 = vmatprep.subr.mxu0 %v219
    %839 = vmatpush2.msra.mxu0 %v218
    %840 = vmatprep.subr.mxu0 %v211
    %841 = vmatpush2.msra.mxu0 %v210
    %842 = vmatprep.subr.mxu0 %v203
    %843 = vmatpush2.msra.mxu0 %v202
    %844 = vmatprep.subr.mxu0 %v195
    %845 = vmatpush2.msra.mxu0 %v194
    %846 = vmatprep.mubr.f32.mxu0 %v634
    %847 = vmatmul.mubr.f32.gmra.mxu0 %v626
    %v848 = vpop.f32.mrf.mxu0
    %v849 = vadd.f32 %v589, %v848
    %v850 = vpop.f32.mrf.mxu0
    %v851 = vadd.f32 %v593, %v850
    %852 = vdwg.mxu0
    %853 = vmatprep.subr.mxu0 %v443
    %854 = vmatpush1.msra.mxu0 %v442
    %855 = vmatprep.subr.mxu0 %v435
    %856 = vmatpush1.msra.mxu0 %v434
    %857 = vmatprep.subr.mxu0 %v427
    %858 = vmatpush1.msra.mxu0 %v426
    %859 = vmatprep.subr.mxu0 %v419
    %860 = vmatpush1.msra.mxu0 %v418
    %861 = vmatprep.subr.mxu0 %v411
    %862 = vmatpush1.msra.mxu0 %v410
    %863 = vmatprep.subr.mxu0 %v403
    %864 = vmatpush1.msra.mxu0 %v402
    %865 = vmatprep.subr.mxu0 %v395
    %866 = vmatpush1.msra.mxu0 %v394
    %867 = vmatprep.subr.mxu0 %v387
    %868 = vmatpush1.msra.mxu0 %v386
    %869 = vmatprep.subr.mxu0 %v379
    %870 = vmatpush1.msra.mxu0 %v378
    %871 = vmatprep.subr.mxu0 %v371
    %872 = vmatpush1.msra.mxu0 %v370
    %873 = vmatprep.subr.mxu0 %v363
    %874 = vmatpush1.msra.mxu0 %v362
    %875 = vmatprep.subr.mxu0 %v355
    %876 = vmatpush1.msra.mxu0 %v354
    %877 = vmatprep.subr.mxu0 %v347
    %878 = vmatpush1.msra.mxu0 %v346
    %879 = vmatprep.subr.mxu0 %v339
    %880 = vmatpush1.msra.mxu0 %v338
    %881 = vmatprep.subr.mxu0 %v331
    %882 = vmatpush1.msra.mxu0 %v330
    %883 = vmatprep.subr.mxu0 %v323
    %884 = vmatpush1.msra.mxu0 %v322
    %885 = vmatprep.subr.mxu0 %v571
    %886 = vmatpush2.msra.mxu0 %v570
    %887 = vmatprep.subr.mxu0 %v563
    %888 = vmatpush2.msra.mxu0 %v562
    %889 = vmatprep.subr.mxu0 %v555
    %890 = vmatpush2.msra.mxu0 %v554
    %891 = vmatprep.subr.mxu0 %v547
    %892 = vmatpush2.msra.mxu0 %v546
    %893 = vmatprep.subr.mxu0 %v539
    %894 = vmatpush2.msra.mxu0 %v538
    %895 = vmatprep.subr.mxu0 %v531
    %896 = vmatpush2.msra.mxu0 %v530
    %897 = vmatprep.subr.mxu0 %v523
    %898 = vmatpush2.msra.mxu0 %v522
    %899 = vmatprep.subr.mxu0 %v515
    %900 = vmatpush2.msra.mxu0 %v514
    %901 = vmatprep.subr.mxu0 %v507
    %902 = vmatpush2.msra.mxu0 %v506
    %903 = vmatprep.subr.mxu0 %v499
    %904 = vmatpush2.msra.mxu0 %v498
    %905 = vmatprep.subr.mxu0 %v491
    %906 = vmatpush2.msra.mxu0 %v490
    %907 = vmatprep.subr.mxu0 %v483
    %908 = vmatpush2.msra.mxu0 %v482
    %909 = vmatprep.subr.mxu0 %v475
    %910 = vmatpush2.msra.mxu0 %v474
    %911 = vmatprep.subr.mxu0 %v467
    %912 = vmatpush2.msra.mxu0 %v466
    %913 = vmatprep.subr.mxu0 %v459
    %914 = vmatpush2.msra.mxu0 %v458
    %915 = vmatprep.subr.mxu0 %v451
    %916 = vmatpush2.msra.mxu0 %v450
    %917 = vmatprep.mubr.f32.mxu0 %v635
    %918 = vmatmul.mubr.f32.gmra.mxu0 %v633
    %v919 = vpop.f32.mrf.mxu0
    %v920 = vadd.f32 %v849, %v919
    %v921 = vpop.f32.mrf.mxu0
    %v922 = vadd.f32 %v851, %v921
    %923 = vdwg.mxu0
    %924 = vmatprep.subr.mxu0 %v189
    %925 = vmatpush1.msra.mxu0 %v188
    %926 = vmatprep.subr.mxu0 %v181
    %927 = vmatpush1.msra.mxu0 %v180
    %928 = vmatprep.subr.mxu0 %v173
    %929 = vmatpush1.msra.mxu0 %v172
    %930 = vmatprep.subr.mxu0 %v165
    %931 = vmatpush1.msra.mxu0 %v164
    %932 = vmatprep.subr.mxu0 %v157
    %933 = vmatpush1.msra.mxu0 %v156
    %934 = vmatprep.subr.mxu0 %v149
    %935 = vmatpush1.msra.mxu0 %v148
    %936 = vmatprep.subr.mxu0 %v141
    %937 = vmatpush1.msra.mxu0 %v140
    %938 = vmatprep.subr.mxu0 %v133
    %939 = vmatpush1.msra.mxu0 %v132
    %940 = vmatprep.subr.mxu0 %v125
    %941 = vmatpush1.msra.mxu0 %v124
    %942 = vmatprep.subr.mxu0 %v117
    %943 = vmatpush1.msra.mxu0 %v116
    %944 = vmatprep.subr.mxu0 %v109
    %945 = vmatpush1.msra.mxu0 %v108
    %946 = vmatprep.subr.mxu0 %v101
    %947 = vmatpush1.msra.mxu0 %v100
    %948 = vmatprep.subr.mxu0 %v93
    %949 = vmatpush1.msra.mxu0 %v92
    %950 = vmatprep.subr.mxu0 %v85
    %951 = vmatpush1.msra.mxu0 %v84
    %952 = vmatprep.subr.mxu0 %v77
    %953 = vmatpush1.msra.mxu0 %v76
    %954 = vmatprep.subr.mxu0 %v69
    %955 = vmatpush1.msra.mxu0 %v68
    %956 = vmatprep.subr.mxu0 %v317
    %957 = vmatpush2.msra.mxu0 %v316
    %958 = vmatprep.subr.mxu0 %v309
    %959 = vmatpush2.msra.mxu0 %v308
    %960 = vmatprep.subr.mxu0 %v301
    %961 = vmatpush2.msra.mxu0 %v300
    %962 = vmatprep.subr.mxu0 %v293
    %963 = vmatpush2.msra.mxu0 %v292
    %964 = vmatprep.subr.mxu0 %v285
    %965 = vmatpush2.msra.mxu0 %v284
    %966 = vmatprep.subr.mxu0 %v277
    %967 = vmatpush2.msra.mxu0 %v276
    %968 = vmatprep.subr.mxu0 %v269
    %969 = vmatpush2.msra.mxu0 %v268
    %970 = vmatprep.subr.mxu0 %v261
    %971 = vmatpush2.msra.mxu0 %v260
    %972 = vmatprep.subr.mxu0 %v253
    %973 = vmatpush2.msra.mxu0 %v252
    %974 = vmatprep.subr.mxu0 %v245
    %975 = vmatpush2.msra.mxu0 %v244
    %976 = vmatprep.subr.mxu0 %v237
    %977 = vmatpush2.msra.mxu0 %v236
    %978 = vmatprep.subr.mxu0 %v229
    %979 = vmatpush2.msra.mxu0 %v228
    %980 = vmatprep.subr.mxu0 %v221
    %981 = vmatpush2.msra.mxu0 %v220
    %982 = vmatprep.subr.mxu0 %v213
    %983 = vmatpush2.msra.mxu0 %v212
    %984 = vmatprep.subr.mxu0 %v205
    %985 = vmatpush2.msra.mxu0 %v204
    %986 = vmatprep.subr.mxu0 %v197
    %987 = vmatpush2.msra.mxu0 %v196
    %988 = vmatprep.mubr.f32.mxu0 %v634
    %989 = vmatmul.mubr.f32.gmra.mxu0 %v626
    %v990 = vpop.f32.mrf.mxu0
    %v991 = vadd.f32 %v597, %v990
    %v992 = vpop.f32.mrf.mxu0
    %v993 = vadd.f32 %v601, %v992
    %994 = vdwg.mxu0
    %995 = vmatprep.subr.mxu0 %v445
    %996 = vmatpush1.msra.mxu0 %v444
    %997 = vmatprep.subr.mxu0 %v437
    %998 = vmatpush1.msra.mxu0 %v436
    %999 = vmatprep.subr.mxu0 %v429
    %1000 = vmatpush1.msra.mxu0 %v428
    %1001 = vmatprep.subr.mxu0 %v421
    %1002 = vmatpush1.msra.mxu0 %v420
    %1003 = vmatprep.subr.mxu0 %v413
    %1004 = vmatpush1.msra.mxu0 %v412
    %1005 = vmatprep.subr.mxu0 %v405
    %1006 = vmatpush1.msra.mxu0 %v404
    %1007 = vmatprep.subr.mxu0 %v397
    %1008 = vmatpush1.msra.mxu0 %v396
    %1009 = vmatprep.subr.mxu0 %v389
    %1010 = vmatpush1.msra.mxu0 %v388
    %1011 = vmatprep.subr.mxu0 %v381
    %1012 = vmatpush1.msra.mxu0 %v380
    %1013 = vmatprep.subr.mxu0 %v373
    %1014 = vmatpush1.msra.mxu0 %v372
    %1015 = vmatprep.subr.mxu0 %v365
    %1016 = vmatpush1.msra.mxu0 %v364
    %1017 = vmatprep.subr.mxu0 %v357
    %1018 = vmatpush1.msra.mxu0 %v356
    %1019 = vmatprep.subr.mxu0 %v349
    %1020 = vmatpush1.msra.mxu0 %v348
    %1021 = vmatprep.subr.mxu0 %v341
    %1022 = vmatpush1.msra.mxu0 %v340
    %1023 = vmatprep.subr.mxu0 %v333
    %1024 = vmatpush1.msra.mxu0 %v332
    %1025 = vmatprep.subr.mxu0 %v325
    %1026 = vmatpush1.msra.mxu0 %v324
    %1027 = vmatprep.subr.mxu0 %v573
    %1028 = vmatpush2.msra.mxu0 %v572
    %1029 = vmatprep.subr.mxu0 %v565
    %1030 = vmatpush2.msra.mxu0 %v564
    %1031 = vmatprep.subr.mxu0 %v557
    %1032 = vmatpush2.msra.mxu0 %v556
    %1033 = vmatprep.subr.mxu0 %v549
    %1034 = vmatpush2.msra.mxu0 %v548
    %1035 = vmatprep.subr.mxu0 %v541
    %1036 = vmatpush2.msra.mxu0 %v540
    %1037 = vmatprep.subr.mxu0 %v533
    %1038 = vmatpush2.msra.mxu0 %v532
    %1039 = vmatprep.subr.mxu0 %v525
    %1040 = vmatpush2.msra.mxu0 %v524
    %1041 = vmatprep.subr.mxu0 %v517
    %1042 = vmatpush2.msra.mxu0 %v516
    %1043 = vmatprep.subr.mxu0 %v509
    %1044 = vmatpush2.msra.mxu0 %v508
    %1045 = vmatprep.subr.mxu0 %v501
    %1046 = vmatpush2.msra.mxu0 %v500
    %1047 = vmatprep.subr.mxu0 %v493
    %1048 = vmatpush2.msra.mxu0 %v492
    %1049 = vmatprep.subr.mxu0 %v485
    %1050 = vmatpush2.msra.mxu0 %v484
    %1051 = vmatprep.subr.mxu0 %v477
    %1052 = vmatpush2.msra.mxu0 %v476
    %1053 = vmatprep.subr.mxu0 %v469
    %1054 = vmatpush2.msra.mxu0 %v468
    %1055 = vmatprep.subr.mxu0 %v461
    %1056 = vmatpush2.msra.mxu0 %v460
    %1057 = vmatprep.subr.mxu0 %v453
    %1058 = vmatpush2.msra.mxu0 %v452
    %1059 = vmatprep.mubr.f32.mxu0 %v635
    %1060 = vmatmul.mubr.f32.gmra.mxu0 %v633
    %v1061 = vpop.f32.mrf.mxu0
    %v1062 = vadd.f32 %v991, %v1061
    %v1063 = vpop.f32.mrf.mxu0
    %v1064 = vadd.f32 %v993, %v1063
    %1065 = vdwg.mxu0
    %1066 = vmatprep.subr.mxu0 %v191
    %1067 = vmatpush1.msra.mxu0 %v190
    %1068 = vmatprep.subr.mxu0 %v183
    %1069 = vmatpush1.msra.mxu0 %v182
    %1070 = vmatprep.subr.mxu0 %v175
    %1071 = vmatpush1.msra.mxu0 %v174
    %1072 = vmatprep.subr.mxu0 %v167
    %1073 = vmatpush1.msra.mxu0 %v166
    %1074 = vmatprep.subr.mxu0 %v159
    %1075 = vmatpush1.msra.mxu0 %v158
    %1076 = vmatprep.subr.mxu0 %v151
    %1077 = vmatpush1.msra.mxu0 %v150
    %1078 = vmatprep.subr.mxu0 %v143
    %1079 = vmatpush1.msra.mxu0 %v142
    %1080 = vmatprep.subr.mxu0 %v135
    %1081 = vmatpush1.msra.mxu0 %v134
    %1082 = vmatprep.subr.mxu0 %v127
    %1083 = vmatpush1.msra.mxu0 %v126
    %1084 = vmatprep.subr.mxu0 %v119
    %1085 = vmatpush1.msra.mxu0 %v118
    %1086 = vmatprep.subr.mxu0 %v111
    %1087 = vmatpush1.msra.mxu0 %v110
    %1088 = vmatprep.subr.mxu0 %v103
    %1089 = vmatpush1.msra.mxu0 %v102
    %1090 = vmatprep.subr.mxu0 %v95
    %1091 = vmatpush1.msra.mxu0 %v94
    %1092 = vmatprep.subr.mxu0 %v87
    %1093 = vmatpush1.msra.mxu0 %v86
    %1094 = vmatprep.subr.mxu0 %v79
    %1095 = vmatpush1.msra.mxu0 %v78
    %1096 = vmatprep.subr.mxu0 %v71
    %1097 = vmatpush1.msra.mxu0 %v70
    %1098 = vmatprep.subr.mxu0 %v319
    %1099 = vmatpush2.msra.mxu0 %v318
    %1100 = vmatprep.subr.mxu0 %v311
    %1101 = vmatpush2.msra.mxu0 %v310
    %1102 = vmatprep.subr.mxu0 %v303
    %1103 = vmatpush2.msra.mxu0 %v302
    %1104 = vmatprep.subr.mxu0 %v295
    %1105 = vmatpush2.msra.mxu0 %v294
    %1106 = vmatprep.subr.mxu0 %v287
    %1107 = vmatpush2.msra.mxu0 %v286
    %1108 = vmatprep.subr.mxu0 %v279
    %1109 = vmatpush2.msra.mxu0 %v278
    %1110 = vmatprep.subr.mxu0 %v271
    %1111 = vmatpush2.msra.mxu0 %v270
    %1112 = vmatprep.subr.mxu0 %v263
    %1113 = vmatpush2.msra.mxu0 %v262
    %1114 = vmatprep.subr.mxu0 %v255
    %1115 = vmatpush2.msra.mxu0 %v254
    %1116 = vmatprep.subr.mxu0 %v247
    %1117 = vmatpush2.msra.mxu0 %v246
    %1118 = vmatprep.subr.mxu0 %v239
    %1119 = vmatpush2.msra.mxu0 %v238
    %1120 = vmatprep.subr.mxu0 %v231
    %1121 = vmatpush2.msra.mxu0 %v230
    %1122 = vmatprep.subr.mxu0 %v223
    %1123 = vmatpush2.msra.mxu0 %v222
    %1124 = vmatprep.subr.mxu0 %v215
    %1125 = vmatpush2.msra.mxu0 %v214
    %1126 = vmatprep.subr.mxu0 %v207
    %1127 = vmatpush2.msra.mxu0 %v206
    %1128 = vmatprep.subr.mxu0 %v199
    %1129 = vmatpush2.msra.mxu0 %v198
    %1130 = vmatprep.mubr.f32.mxu0 %v634
    %1131 = vmatmul.mubr.f32.gmra.mxu0 %v626
    %v1132 = vpop.f32.mrf.mxu0
    %v1133 = vadd.f32 %v605, %v1132
    %v1134 = vpop.f32.mrf.mxu0
    %v1135 = vadd.f32 %v609, %v1134
    %1136 = vdwg.mxu0
    %1137 = vmatprep.subr.mxu0 %v447
    %1138 = vmatpush1.msra.mxu0 %v446
    %1139 = vmatprep.subr.mxu0 %v439
    %1140 = vmatpush1.msra.mxu0 %v438
    %1141 = vmatprep.subr.mxu0 %v431
    %1142 = vmatpush1.msra.mxu0 %v430
    %1143 = vmatprep.subr.mxu0 %v423
    %1144 = vmatpush1.msra.mxu0 %v422
    %1145 = vmatprep.subr.mxu0 %v415
    %1146 = vmatpush1.msra.mxu0 %v414
    %1147 = vmatprep.subr.mxu0 %v407
    %1148 = vmatpush1.msra.mxu0 %v406
    %1149 = vmatprep.subr.mxu0 %v399
    %1150 = vmatpush1.msra.mxu0 %v398
    %1151 = vmatprep.subr.mxu0 %v391
    %1152 = vmatpush1.msra.mxu0 %v390
    %1153 = vmatprep.subr.mxu0 %v383
    %1154 = vmatpush1.msra.mxu0 %v382
    %1155 = vmatprep.subr.mxu0 %v375
    %1156 = vmatpush1.msra.mxu0 %v374
    %1157 = vmatprep.subr.mxu0 %v367
    %1158 = vmatpush1.msra.mxu0 %v366
    %1159 = vmatprep.subr.mxu0 %v359
    %1160 = vmatpush1.msra.mxu0 %v358
    %1161 = vmatprep.subr.mxu0 %v351
    %1162 = vmatpush1.msra.mxu0 %v350
    %1163 = vmatprep.subr.mxu0 %v343
    %1164 = vmatpush1.msra.mxu0 %v342
    %1165 = vmatprep.subr.mxu0 %v335
    %1166 = vmatpush1.msra.mxu0 %v334
    %1167 = vmatprep.subr.mxu0 %v327
    %1168 = vmatpush1.msra.mxu0 %v326
    %1169 = vmatprep.subr.mxu0 %v575
    %1170 = vmatpush2.msra.mxu0 %v574
    %1171 = vmatprep.subr.mxu0 %v567
    %1172 = vmatpush2.msra.mxu0 %v566
    %1173 = vmatprep.subr.mxu0 %v559
    %1174 = vmatpush2.msra.mxu0 %v558
    %1175 = vmatprep.subr.mxu0 %v551
    %1176 = vmatpush2.msra.mxu0 %v550
    %1177 = vmatprep.subr.mxu0 %v543
    %1178 = vmatpush2.msra.mxu0 %v542
    %1179 = vmatprep.subr.mxu0 %v535
    %1180 = vmatpush2.msra.mxu0 %v534
    %1181 = vmatprep.subr.mxu0 %v527
    %1182 = vmatpush2.msra.mxu0 %v526
    %1183 = vmatprep.subr.mxu0 %v519
    %1184 = vmatpush2.msra.mxu0 %v518
    %1185 = vmatprep.subr.mxu0 %v511
    %1186 = vmatpush2.msra.mxu0 %v510
    %1187 = vmatprep.subr.mxu0 %v503
    %1188 = vmatpush2.msra.mxu0 %v502
    %1189 = vmatprep.subr.mxu0 %v495
    %1190 = vmatpush2.msra.mxu0 %v494
    %1191 = vmatprep.subr.mxu0 %v487
    %1192 = vmatpush2.msra.mxu0 %v486
    %1193 = vmatprep.subr.mxu0 %v479
    %1194 = vmatpush2.msra.mxu0 %v478
    %1195 = vmatprep.subr.mxu0 %v471
    %1196 = vmatpush2.msra.mxu0 %v470
    %1197 = vmatprep.subr.mxu0 %v463
    %1198 = vmatpush2.msra.mxu0 %v462
    %1199 = vmatprep.subr.mxu0 %v455
    %1200 = vmatpush2.msra.mxu0 %v454
    %1201 = vmatprep.mubr.f32.mxu0 %v635
    %1202 = vmatmul.mubr.f32.gmra.mxu0 %v633
    %v1203 = vpop.f32.mrf.mxu0
    %v1204 = vadd.f32 %v1133, %v1203
    %v1205 = vpop.f32.mrf.mxu0
    %v1206 = vadd.f32 %v1135, %v1205
    %1207 = vdwg.mxu0
    %v1208 = vxor.u32 %v778, 2147483648
    %v1209 = vxor.u32 %v780, 2147483648
    %v1210 = vxor.u32 %v920, 2147483648
    %v1211 = vxor.u32 %v922, 2147483648
    %v1212 = vxor.u32 %v1062, 2147483648
    %v1213 = vxor.u32 %v1064, 2147483648
    %v1214 = vxor.u32 %v1204, 2147483648
    %v1215 = vxor.u32 %v1206, 2147483648
    %v1216 = vmul.f32 %v1208, 1.442695
    %v1217 = vpow.pop %v1216
    %v1218 = vmul.f32 %v1209, 1.442695
    %v1219 = vpow.pop %v1218
    %v1220 = vmul.f32 %v1210, 1.442695
    %v1221 = vpow.pop %v1220
    %v1222 = vmul.f32 %v1211, 1.442695
    %v1223 = vpow.pop %v1222
    %v1224 = vmul.f32 %v1212, 1.442695
    %v1225 = vpow.pop %v1224
    %v1226 = vmul.f32 %v1213, 1.442695
    %v1227 = vpow.pop %v1226
    %v1228 = vmul.f32 %v1214, 1.442695
    %v1229 = vpow.pop %v1228
    %v1230 = vmul.f32 %v1215, 1.442695
    %v1231 = vpow.pop %v1230
    %v1232 = vadd.f32 %v1217, 1.0
    %v1233 = vadd.f32 %v1219, 1.0
    %v1234 = vadd.f32 %v1221, 1.0
    %v1235 = vadd.f32 %v1223, 1.0
    %v1236 = vadd.f32 %v1225, 1.0
    %v1237 = vadd.f32 %v1227, 1.0
    %v1238 = vadd.f32 %v1229, 1.0
    %v1239 = vadd.f32 %v1231, 1.0
    %v1240 = vrcp.pop %v1232
    %v1241 = vmul.f32 1.0, %v1240
    %v1242 = vrcp.pop %v1233
    %v1243 = vmul.f32 1.0, %v1242
    %v1244 = vrcp.pop %v1234
    %v1245 = vmul.f32 1.0, %v1244
    %v1246 = vrcp.pop %v1235
    %v1247 = vmul.f32 1.0, %v1246
    %v1248 = vrcp.pop %v1236
    %v1249 = vmul.f32 1.0, %v1248
    %v1250 = vrcp.pop %v1237
    %v1251 = vmul.f32 1.0, %v1250
    %v1252 = vrcp.pop %v1238
    %v1253 = vmul.f32 1.0, %v1252
    %v1254 = vrcp.pop %v1239
    %v1255 = vmul.f32 1.0, %v1254
    %v1264 = vcombine.low %v1241, %v1243
    %v1265 = vcombine.low %v1245, %v1247
    %v1267 = vunpack.c.l.s4 1983009808
    %v1268 = vunpack.c.0.s8 %v1267
    %v1269 = vlaneseq
    %v1270 = vshrl.u32 %v1269, 7
    %v1271 = vsub.s32 %v1268, %v1270
    %v1272 = vrot.slane %v1264, %v1271
    %v1274 = vunpack.c.l.s4 1983009808
    %v1275 = vunpack.c.0.s8 %v1274
    %v1276 = vlaneseq
    %v1277 = vshrl.u32 %v1276, 7
    %v1278 = vsub.s32 %v1275, %v1277
    %v1279 = vrot.slane %v1265, %v1278
    %v1280 = vcombine.low %v1272, %v1279
    %v1281 = vcombine.low %v1249, %v1251
    %v1282 = vcombine.low %v1253, %v1255
    %v1284 = vunpack.c.l.s4 1983009808
    %v1285 = vunpack.c.0.s8 %v1284
    %v1286 = vlaneseq
    %v1287 = vshrl.u32 %v1286, 7
    %v1288 = vsub.s32 %v1285, %v1287
    %v1289 = vrot.slane %v1281, %v1288
    %v1291 = vunpack.c.l.s4 1983009808
    %v1292 = vunpack.c.0.s8 %v1291
    %v1293 = vlaneseq
    %v1294 = vshrl.u32 %v1293, 7
    %v1295 = vsub.s32 %v1292, %v1294
    %v1296 = vrot.slane %v1282, %v1295
    %v1297 = vcombine.low %v1289, %v1296
    %1300 = vst [vmem:[%s9] sm:$0xff] %v1280
    %1301 = vst [vmem:[%s9 + $0x8] sm:$0xff] %v1297
    %v1302 = vld [vmem:[#allocation2] sm:$0xff]
    %v1303 = vld [vmem:[#allocation2 + $0x8] sm:$0xff]
    %v1304 = vld [vmem:[#allocation2 + $0x10] sm:$0xff]
    %v1305 = vld [vmem:[#allocation2 + $0x18] sm:$0xff]
    %v1306 = vld [vmem:[#allocation2 + $0x20] sm:$0xff]
    %v1307 = vld [vmem:[#allocation2 + $0x28] sm:$0xff]
    %v1308 = vld [vmem:[#allocation2 + $0x30] sm:$0xff]
    %v1309 = vld [vmem:[#allocation2 + $0x38] sm:$0xff]
    %v1310 = vld [vmem:[#allocation2 + $0x40] sm:$0xff]
    %v1311 = vld [vmem:[#allocation2 + $0x48] sm:$0xff]
    %v1312 = vld [vmem:[#allocation2 + $0x50] sm:$0xff]
    %v1313 = vld [vmem:[#allocation2 + $0x58] sm:$0xff]
    %v1314 = vld [vmem:[#allocation2 + $0x60] sm:$0xff]
    %v1315 = vld [vmem:[#allocation2 + $0x68] sm:$0xff]
    %v1316 = vld [vmem:[#allocation2 + $0x70] sm:$0xff]
    %v1317 = vld [vmem:[#allocation2 + $0x78] sm:$0xff]
    %v1318 = vld [vmem:[#allocation2 + $0x80] sm:$0xff]
    %v1319 = vld [vmem:[#allocation2 + $0x88] sm:$0xff]
    %v1320 = vld [vmem:[#allocation2 + $0x90] sm:$0xff]
    %v1321 = vld [vmem:[#allocation2 + $0x98] sm:$0xff]
    %v1322 = vld [vmem:[#allocation2 + $0xa0] sm:$0xff]
    %v1323 = vld [vmem:[#allocation2 + $0xa8] sm:$0xff]
    %v1324 = vld [vmem:[#allocation2 + $0xb0] sm:$0xff]
    %v1325 = vld [vmem:[#allocation2 + $0xb8] sm:$0xff]
    %v1326 = vld [vmem:[#allocation2 + $0xc0] sm:$0xff]
    %v1327 = vld [vmem:[#allocation2 + $0xc8] sm:$0xff]
    %v1328 = vld [vmem:[#allocation2 + $0xd0] sm:$0xff]
    %v1329 = vld [vmem:[#allocation2 + $0xd8] sm:$0xff]
    %v1330 = vld [vmem:[#allocation2 + $0xe0] sm:$0xff]
    %v1331 = vld [vmem:[#allocation2 + $0xe8] sm:$0xff]
    %v1332 = vld [vmem:[#allocation2 + $0xf0] sm:$0xff]
    %v1333 = vld [vmem:[#allocation2 + $0xf8] sm:$0xff]
    %v1334 = vld [vmem:[#allocation2 + $0x100] sm:$0xff]
    %v1335 = vld [vmem:[#allocation2 + $0x108] sm:$0xff]
    %v1336 = vld [vmem:[#allocation2 + $0x110] sm:$0xff]
    %v1337 = vld [vmem:[#allocation2 + $0x118] sm:$0xff]
    %v1338 = vld [vmem:[#allocation2 + $0x120] sm:$0xff]
    %v1339 = vld [vmem:[#allocation2 + $0x128] sm:$0xff]
    %v1340 = vld [vmem:[#allocation2 + $0x130] sm:$0xff]
    %v1341 = vld [vmem:[#allocation2 + $0x138] sm:$0xff]
    %v1342 = vld [vmem:[#allocation2 + $0x140] sm:$0xff]
    %v1343 = vld [vmem:[#allocation2 + $0x148] sm:$0xff]
    %v1344 = vld [vmem:[#allocation2 + $0x150] sm:$0xff]
    %v1345 = vld [vmem:[#allocation2 + $0x158] sm:$0xff]
    %v1346 = vld [vmem:[#allocation2 + $0x160] sm:$0xff]
    %v1347 = vld [vmem:[#allocation2 + $0x168] sm:$0xff]
    %v1348 = vld [vmem:[#allocation2 + $0x170] sm:$0xff]
    %v1349 = vld [vmem:[#allocation2 + $0x178] sm:$0xff]
    %v1350 = vld [vmem:[#allocation2 + $0x180] sm:$0xff]
    %v1351 = vld [vmem:[#allocation2 + $0x188] sm:$0xff]
    %v1352 = vld [vmem:[#allocation2 + $0x190] sm:$0xff]
    %v1353 = vld [vmem:[#allocation2 + $0x198] sm:$0xff]
    %v1354 = vld [vmem:[#allocation2 + $0x1a0] sm:$0xff]
    %v1355 = vld [vmem:[#allocation2 + $0x1a8] sm:$0xff]
    %v1356 = vld [vmem:[#allocation2 + $0x1b0] sm:$0xff]
    %v1357 = vld [vmem:[#allocation2 + $0x1b8] sm:$0xff]
    %v1358 = vld [vmem:[#allocation2 + $0x1c0] sm:$0xff]
    %v1359 = vld [vmem:[#allocation2 + $0x1c8] sm:$0xff]
    %v1360 = vld [vmem:[#allocation2 + $0x1d0] sm:$0xff]
    %v1361 = vld [vmem:[#allocation2 + $0x1d8] sm:$0xff]
    %v1362 = vld [vmem:[#allocation2 + $0x1e0] sm:$0xff]
    %v1363 = vld [vmem:[#allocation2 + $0x1e8] sm:$0xff]
    %v1364 = vld [vmem:[#allocation2 + $0x1f0] sm:$0xff]
    %v1365 = vld [vmem:[#allocation2 + $0x1f8] sm:$0xff]
    %v1366 = vld [vmem:[#allocation2 + $0x200] sm:$0xff]
    %v1367 = vld [vmem:[#allocation2 + $0x208] sm:$0xff]
    %v1368 = vld [vmem:[#allocation2 + $0x210] sm:$0xff]
    %v1369 = vld [vmem:[#allocation2 + $0x218] sm:$0xff]
    %v1370 = vld [vmem:[#allocation2 + $0x220] sm:$0xff]
    %v1371 = vld [vmem:[#allocation2 + $0x228] sm:$0xff]
    %v1372 = vld [vmem:[#allocation2 + $0x230] sm:$0xff]
    %v1373 = vld [vmem:[#allocation2 + $0x238] sm:$0xff]
    %v1374 = vld [vmem:[#allocation2 + $0x240] sm:$0xff]
    %v1375 = vld [vmem:[#allocation2 + $0x248] sm:$0xff]
    %v1376 = vld [vmem:[#allocation2 + $0x250] sm:$0xff]
    %v1377 = vld [vmem:[#allocation2 + $0x258] sm:$0xff]
    %v1378 = vld [vmem:[#allocation2 + $0x260] sm:$0xff]
    %v1379 = vld [vmem:[#allocation2 + $0x268] sm:$0xff]
    %v1380 = vld [vmem:[#allocation2 + $0x270] sm:$0xff]
    %v1381 = vld [vmem:[#allocation2 + $0x278] sm:$0xff]
    %v1382 = vld [vmem:[#allocation2 + $0x280] sm:$0xff]
    %v1383 = vld [vmem:[#allocation2 + $0x288] sm:$0xff]
    %v1384 = vld [vmem:[#allocation2 + $0x290] sm:$0xff]
    %v1385 = vld [vmem:[#allocation2 + $0x298] sm:$0xff]
    %v1386 = vld [vmem:[#allocation2 + $0x2a0] sm:$0xff]
    %v1387 = vld [vmem:[#allocation2 + $0x2a8] sm:$0xff]
    %v1388 = vld [vmem:[#allocation2 + $0x2b0] sm:$0xff]
    %v1389 = vld [vmem:[#allocation2 + $0x2b8] sm:$0xff]
    %v1390 = vld [vmem:[#allocation2 + $0x2c0] sm:$0xff]
    %v1391 = vld [vmem:[#allocation2 + $0x2c8] sm:$0xff]
    %v1392 = vld [vmem:[#allocation2 + $0x2d0] sm:$0xff]
    %v1393 = vld [vmem:[#allocation2 + $0x2d8] sm:$0xff]
    %v1394 = vld [vmem:[#allocation2 + $0x2e0] sm:$0xff]
    %v1395 = vld [vmem:[#allocation2 + $0x2e8] sm:$0xff]
    %v1396 = vld [vmem:[#allocation2 + $0x2f0] sm:$0xff]
    %v1397 = vld [vmem:[#allocation2 + $0x2f8] sm:$0xff]
    %v1398 = vld [vmem:[#allocation2 + $0x300] sm:$0xff]
    %v1399 = vld [vmem:[#allocation2 + $0x308] sm:$0xff]
    %v1400 = vld [vmem:[#allocation2 + $0x310] sm:$0xff]
    %v1401 = vld [vmem:[#allocation2 + $0x318] sm:$0xff]
    %v1402 = vld [vmem:[#allocation2 + $0x320] sm:$0xff]
    %v1403 = vld [vmem:[#allocation2 + $0x328] sm:$0xff]
    %v1404 = vld [vmem:[#allocation2 + $0x330] sm:$0xff]
    %v1405 = vld [vmem:[#allocation2 + $0x338] sm:$0xff]
    %v1406 = vld [vmem:[#allocation2 + $0x340] sm:$0xff]
    %v1407 = vld [vmem:[#allocation2 + $0x348] sm:$0xff]
    %v1408 = vld [vmem:[#allocation2 + $0x350] sm:$0xff]
    %v1409 = vld [vmem:[#allocation2 + $0x358] sm:$0xff]
    %v1410 = vld [vmem:[#allocation2 + $0x360] sm:$0xff]
    %v1411 = vld [vmem:[#allocation2 + $0x368] sm:$0xff]
    %v1412 = vld [vmem:[#allocation2 + $0x370] sm:$0xff]
    %v1413 = vld [vmem:[#allocation2 + $0x378] sm:$0xff]
    %v1414 = vld [vmem:[#allocation2 + $0x380] sm:$0xff]
    %v1415 = vld [vmem:[#allocation2 + $0x388] sm:$0xff]
    %v1416 = vld [vmem:[#allocation2 + $0x390] sm:$0xff]
    %v1417 = vld [vmem:[#allocation2 + $0x398] sm:$0xff]
    %v1418 = vld [vmem:[#allocation2 + $0x3a0] sm:$0xff]
    %v1419 = vld [vmem:[#allocation2 + $0x3a8] sm:$0xff]
    %v1420 = vld [vmem:[#allocation2 + $0x3b0] sm:$0xff]
    %v1421 = vld [vmem:[#allocation2 + $0x3b8] sm:$0xff]
    %v1422 = vld [vmem:[#allocation2 + $0x3c0] sm:$0xff]
    %v1423 = vld [vmem:[#allocation2 + $0x3c8] sm:$0xff]
    %v1424 = vld [vmem:[#allocation2 + $0x3d0] sm:$0xff]
    %v1425 = vld [vmem:[#allocation2 + $0x3d8] sm:$0xff]
    %v1426 = vld [vmem:[#allocation2 + $0x3e0] sm:$0xff]
    %v1427 = vld [vmem:[#allocation2 + $0x3e8] sm:$0xff]
    %v1428 = vld [vmem:[#allocation2 + $0x3f0] sm:$0xff]
    %v1429 = vld [vmem:[#allocation2 + $0x3f8] sm:$0xff]
    %v1430 = vld [vmem:[#allocation2 + $0x400] sm:$0xff]
    %v1431 = vld [vmem:[#allocation2 + $0x408] sm:$0xff]
    %v1432 = vld [vmem:[#allocation2 + $0x410] sm:$0xff]
    %v1433 = vld [vmem:[#allocation2 + $0x418] sm:$0xff]
    %v1434 = vld [vmem:[#allocation2 + $0x420] sm:$0xff]
    %v1435 = vld [vmem:[#allocation2 + $0x428] sm:$0xff]
    %v1436 = vld [vmem:[#allocation2 + $0x430] sm:$0xff]
    %v1437 = vld [vmem:[#allocation2 + $0x438] sm:$0xff]
    %v1438 = vld [vmem:[#allocation2 + $0x440] sm:$0xff]
    %v1439 = vld [vmem:[#allocation2 + $0x448] sm:$0xff]
    %v1440 = vld [vmem:[#allocation2 + $0x450] sm:$0xff]
    %v1441 = vld [vmem:[#allocation2 + $0x458] sm:$0xff]
    %v1442 = vld [vmem:[#allocation2 + $0x460] sm:$0xff]
    %v1443 = vld [vmem:[#allocation2 + $0x468] sm:$0xff]
    %v1444 = vld [vmem:[#allocation2 + $0x470] sm:$0xff]
    %v1445 = vld [vmem:[#allocation2 + $0x478] sm:$0xff]
    %v1446 = vld [vmem:[#allocation2 + $0x480] sm:$0xff]
    %v1447 = vld [vmem:[#allocation2 + $0x488] sm:$0xff]
    %v1448 = vld [vmem:[#allocation2 + $0x490] sm:$0xff]
    %v1449 = vld [vmem:[#allocation2 + $0x498] sm:$0xff]
    %v1450 = vld [vmem:[#allocation2 + $0x4a0] sm:$0xff]
    %v1451 = vld [vmem:[#allocation2 + $0x4a8] sm:$0xff]
    %v1452 = vld [vmem:[#allocation2 + $0x4b0] sm:$0xff]
    %v1453 = vld [vmem:[#allocation2 + $0x4b8] sm:$0xff]
    %v1454 = vld [vmem:[#allocation2 + $0x4c0] sm:$0xff]
    %v1455 = vld [vmem:[#allocation2 + $0x4c8] sm:$0xff]
    %v1456 = vld [vmem:[#allocation2 + $0x4d0] sm:$0xff]
    %v1457 = vld [vmem:[#allocation2 + $0x4d8] sm:$0xff]
    %v1458 = vld [vmem:[#allocation2 + $0x4e0] sm:$0xff]
    %v1459 = vld [vmem:[#allocation2 + $0x4e8] sm:$0xff]
    %v1460 = vld [vmem:[#allocation2 + $0x4f0] sm:$0xff]
    %v1461 = vld [vmem:[#allocation2 + $0x4f8] sm:$0xff]
    %v1462 = vld [vmem:[#allocation2 + $0x500] sm:$0xff]
    %v1463 = vld [vmem:[#allocation2 + $0x508] sm:$0xff]
    %v1464 = vld [vmem:[#allocation2 + $0x510] sm:$0xff]
    %v1465 = vld [vmem:[#allocation2 + $0x518] sm:$0xff]
    %v1466 = vld [vmem:[#allocation2 + $0x520] sm:$0xff]
    %v1467 = vld [vmem:[#allocation2 + $0x528] sm:$0xff]
    %v1468 = vld [vmem:[#allocation2 + $0x530] sm:$0xff]
    %v1469 = vld [vmem:[#allocation2 + $0x538] sm:$0xff]
    %v1470 = vld [vmem:[#allocation2 + $0x540] sm:$0xff]
    %v1471 = vld [vmem:[#allocation2 + $0x548] sm:$0xff]
    %v1472 = vld [vmem:[#allocation2 + $0x550] sm:$0xff]
    %v1473 = vld [vmem:[#allocation2 + $0x558] sm:$0xff]
    %v1474 = vld [vmem:[#allocation2 + $0x560] sm:$0xff]
    %v1475 = vld [vmem:[#allocation2 + $0x568] sm:$0xff]
    %v1476 = vld [vmem:[#allocation2 + $0x570] sm:$0xff]
    %v1477 = vld [vmem:[#allocation2 + $0x578] sm:$0xff]
    %v1478 = vld [vmem:[#allocation2 + $0x580] sm:$0xff]
    %v1479 = vld [vmem:[#allocation2 + $0x588] sm:$0xff]
    %v1480 = vld [vmem:[#allocation2 + $0x590] sm:$0xff]
    %v1481 = vld [vmem:[#allocation2 + $0x598] sm:$0xff]
    %v1482 = vld [vmem:[#allocation2 + $0x5a0] sm:$0xff]
    %v1483 = vld [vmem:[#allocation2 + $0x5a8] sm:$0xff]
    %v1484 = vld [vmem:[#allocation2 + $0x5b0] sm:$0xff]
    %v1485 = vld [vmem:[#allocation2 + $0x5b8] sm:$0xff]
    %v1486 = vld [vmem:[#allocation2 + $0x5c0] sm:$0xff]
    %v1487 = vld [vmem:[#allocation2 + $0x5c8] sm:$0xff]
    %v1488 = vld [vmem:[#allocation2 + $0x5d0] sm:$0xff]
    %v1489 = vld [vmem:[#allocation2 + $0x5d8] sm:$0xff]
    %v1490 = vld [vmem:[#allocation2 + $0x5e0] sm:$0xff]
    %v1491 = vld [vmem:[#allocation2 + $0x5e8] sm:$0xff]
    %v1492 = vld [vmem:[#allocation2 + $0x5f0] sm:$0xff]
    %v1493 = vld [vmem:[#allocation2 + $0x5f8] sm:$0xff]
    %v1494 = vld [vmem:[#allocation2 + $0x600] sm:$0xff]
    %v1495 = vld [vmem:[#allocation2 + $0x608] sm:$0xff]
    %v1496 = vld [vmem:[#allocation2 + $0x610] sm:$0xff]
    %v1497 = vld [vmem:[#allocation2 + $0x618] sm:$0xff]
    %v1498 = vld [vmem:[#allocation2 + $0x620] sm:$0xff]
    %v1499 = vld [vmem:[#allocation2 + $0x628] sm:$0xff]
    %v1500 = vld [vmem:[#allocation2 + $0x630] sm:$0xff]
    %v1501 = vld [vmem:[#allocation2 + $0x638] sm:$0xff]
    %v1502 = vld [vmem:[#allocation2 + $0x640] sm:$0xff]
    %v1503 = vld [vmem:[#allocation2 + $0x648] sm:$0xff]
    %v1504 = vld [vmem:[#allocation2 + $0x650] sm:$0xff]
    %v1505 = vld [vmem:[#allocation2 + $0x658] sm:$0xff]
    %v1506 = vld [vmem:[#allocation2 + $0x660] sm:$0xff]
    %v1507 = vld [vmem:[#allocation2 + $0x668] sm:$0xff]
    %v1508 = vld [vmem:[#allocation2 + $0x670] sm:$0xff]
    %v1509 = vld [vmem:[#allocation2 + $0x678] sm:$0xff]
    %v1510 = vld [vmem:[#allocation2 + $0x680] sm:$0xff]
    %v1511 = vld [vmem:[#allocation2 + $0x688] sm:$0xff]
    %v1512 = vld [vmem:[#allocation2 + $0x690] sm:$0xff]
    %v1513 = vld [vmem:[#allocation2 + $0x698] sm:$0xff]
    %v1514 = vld [vmem:[#allocation2 + $0x6a0] sm:$0xff]
    %v1515 = vld [vmem:[#allocation2 + $0x6a8] sm:$0xff]
    %v1516 = vld [vmem:[#allocation2 + $0x6b0] sm:$0xff]
    %v1517 = vld [vmem:[#allocation2 + $0x6b8] sm:$0xff]
    %v1518 = vld [vmem:[#allocation2 + $0x6c0] sm:$0xff]
    %v1519 = vld [vmem:[#allocation2 + $0x6c8] sm:$0xff]
    %v1520 = vld [vmem:[#allocation2 + $0x6d0] sm:$0xff]
    %v1521 = vld [vmem:[#allocation2 + $0x6d8] sm:$0xff]
    %v1522 = vld [vmem:[#allocation2 + $0x6e0] sm:$0xff]
    %v1523 = vld [vmem:[#allocation2 + $0x6e8] sm:$0xff]
    %v1524 = vld [vmem:[#allocation2 + $0x6f0] sm:$0xff]
    %v1525 = vld [vmem:[#allocation2 + $0x6f8] sm:$0xff]
    %v1526 = vld [vmem:[#allocation2 + $0x700] sm:$0xff]
    %v1527 = vld [vmem:[#allocation2 + $0x708] sm:$0xff]
    %v1528 = vld [vmem:[#allocation2 + $0x710] sm:$0xff]
    %v1529 = vld [vmem:[#allocation2 + $0x718] sm:$0xff]
    %v1530 = vld [vmem:[#allocation2 + $0x720] sm:$0xff]
    %v1531 = vld [vmem:[#allocation2 + $0x728] sm:$0xff]
    %v1532 = vld [vmem:[#allocation2 + $0x730] sm:$0xff]
    %v1533 = vld [vmem:[#allocation2 + $0x738] sm:$0xff]
    %v1534 = vld [vmem:[#allocation2 + $0x740] sm:$0xff]
    %v1535 = vld [vmem:[#allocation2 + $0x748] sm:$0xff]
    %v1536 = vld [vmem:[#allocation2 + $0x750] sm:$0xff]
    %v1537 = vld [vmem:[#allocation2 + $0x758] sm:$0xff]
    %v1538 = vld [vmem:[#allocation2 + $0x760] sm:$0xff]
    %v1539 = vld [vmem:[#allocation2 + $0x768] sm:$0xff]
    %v1540 = vld [vmem:[#allocation2 + $0x770] sm:$0xff]
    %v1541 = vld [vmem:[#allocation2 + $0x778] sm:$0xff]
    %v1542 = vld [vmem:[#allocation2 + $0x780] sm:$0xff]
    %v1543 = vld [vmem:[#allocation2 + $0x788] sm:$0xff]
    %v1544 = vld [vmem:[#allocation2 + $0x790] sm:$0xff]
    %v1545 = vld [vmem:[#allocation2 + $0x798] sm:$0xff]
    %v1546 = vld [vmem:[#allocation2 + $0x7a0] sm:$0xff]
    %v1547 = vld [vmem:[#allocation2 + $0x7a8] sm:$0xff]
    %v1548 = vld [vmem:[#allocation2 + $0x7b0] sm:$0xff]
    %v1549 = vld [vmem:[#allocation2 + $0x7b8] sm:$0xff]
    %v1550 = vld [vmem:[#allocation2 + $0x7c0] sm:$0xff]
    %v1551 = vld [vmem:[#allocation2 + $0x7c8] sm:$0xff]
    %v1552 = vld [vmem:[#allocation2 + $0x7d0] sm:$0xff]
    %v1553 = vld [vmem:[#allocation2 + $0x7d8] sm:$0xff]
    %v1554 = vld [vmem:[#allocation2 + $0x7e0] sm:$0xff]
    %v1555 = vld [vmem:[#allocation2 + $0x7e8] sm:$0xff]
    %v1556 = vld [vmem:[#allocation2 + $0x7f0] sm:$0xff]
    %v1557 = vld [vmem:[#allocation2 + $0x7f8] sm:$0xff]
    %v1558 = vld [vmem:[%s4] sm:$0x3]
    %v1560 = vlaneseq
    %v1561 = vshrl.u32 %v1560, 7
    %v1562 = vsub.s32 0, %v1561
    %v1563 = vrot.slane %v1558, %v1562
    %v1564 = vlaneseq
    %v1565 = vshrl.u32 %v1564, 7
    %v1566 = vsub.s32 1, %v1565
    %v1567 = vrot.slane %v1558, %v1566
    %1570 = vmatprep.subr.mxu0 %v1333
    %1571 = vmatpush1.msra.mxu0 %v1332
    %1572 = vmatprep.subr.mxu0 %v1331
    %1573 = vmatpush1.msra.mxu0 %v1330
    %1574 = vmatprep.subr.mxu0 %v1329
    %1575 = vmatpush1.msra.mxu0 %v1328
    %1576 = vmatprep.subr.mxu0 %v1327
    %1577 = vmatpush1.msra.mxu0 %v1326
    %1578 = vmatprep.subr.mxu0 %v1325
    %1579 = vmatpush1.msra.mxu0 %v1324
    %1580 = vmatprep.subr.mxu0 %v1323
    %1581 = vmatpush1.msra.mxu0 %v1322
    %1582 = vmatprep.subr.mxu0 %v1321
    %1583 = vmatpush1.msra.mxu0 %v1320
    %1584 = vmatprep.subr.mxu0 %v1319
    %1585 = vmatpush1.msra.mxu0 %v1318
    %1586 = vmatprep.subr.mxu0 %v1317
    %1587 = vmatpush1.msra.mxu0 %v1316
    %1588 = vmatprep.subr.mxu0 %v1315
    %1589 = vmatpush1.msra.mxu0 %v1314
    %1590 = vmatprep.subr.mxu0 %v1313
    %1591 = vmatpush1.msra.mxu0 %v1312
    %1592 = vmatprep.subr.mxu0 %v1311
    %1593 = vmatpush1.msra.mxu0 %v1310
    %1594 = vmatprep.subr.mxu0 %v1309
    %1595 = vmatpush1.msra.mxu0 %v1308
    %1596 = vmatprep.subr.mxu0 %v1307
    %1597 = vmatpush1.msra.mxu0 %v1306
    %1598 = vmatprep.subr.mxu0 %v1305
    %1599 = vmatpush1.msra.mxu0 %v1304
    %1600 = vmatprep.subr.mxu0 %v1303
    %1601 = vmatpush1.msra.mxu0 %v1302
    %1602 = vmatprep.subr.mxu0 %v1365
    %1603 = vmatpush2.msra.mxu0 %v1364
    %1604 = vmatprep.subr.mxu0 %v1363
    %1605 = vmatpush2.msra.mxu0 %v1362
    %1606 = vmatprep.subr.mxu0 %v1361
    %1607 = vmatpush2.msra.mxu0 %v1360
    %1608 = vmatprep.subr.mxu0 %v1359
    %1609 = vmatpush2.msra.mxu0 %v1358
    %1610 = vmatprep.subr.mxu0 %v1357
    %1611 = vmatpush2.msra.mxu0 %v1356
    %1612 = vmatprep.subr.mxu0 %v1355
    %1613 = vmatpush2.msra.mxu0 %v1354
    %1614 = vmatprep.subr.mxu0 %v1353
    %1615 = vmatpush2.msra.mxu0 %v1352
    %1616 = vmatprep.subr.mxu0 %v1351
    %1617 = vmatpush2.msra.mxu0 %v1350
    %1618 = vmatprep.subr.mxu0 %v1349
    %1619 = vmatpush2.msra.mxu0 %v1348
    %1620 = vmatprep.subr.mxu0 %v1347
    %1621 = vmatpush2.msra.mxu0 %v1346
    %1622 = vmatprep.subr.mxu0 %v1345
    %1623 = vmatpush2.msra.mxu0 %v1344
    %1624 = vmatprep.subr.mxu0 %v1343
    %1625 = vmatpush2.msra.mxu0 %v1342
    %1626 = vmatprep.subr.mxu0 %v1341
    %1627 = vmatpush2.msra.mxu0 %v1340
    %1628 = vmatprep.subr.mxu0 %v1339
    %1629 = vmatpush2.msra.mxu0 %v1338
    %1630 = vmatprep.subr.mxu0 %v1337
    %1631 = vmatpush2.msra.mxu0 %v1336
    %1632 = vmatprep.subr.mxu0 %v1335
    %1633 = vmatpush2.msra.mxu0 %v1334
    %1634 = vmatprep.mubr.f32.mxu0 %v1243
    %1635 = vmatmul.mubr.f32.gmra.mxu0 %v1241
    %v1636 = vpop.f32.mrf.mxu0
    %v1637 = vadd.f32 %v1563, %v1636
    %v1638 = vpop.f32.mrf.mxu0
    %v1639 = vadd.f32 %v1567, %v1638
    %1640 = vdwg.mxu0
    %1641 = vmatprep.subr.mxu0 %v1397
    %1642 = vmatpush1.msra.mxu0 %v1396
    %1643 = vmatprep.subr.mxu0 %v1395
    %1644 = vmatpush1.msra.mxu0 %v1394
    %1645 = vmatprep.subr.mxu0 %v1393
    %1646 = vmatpush1.msra.mxu0 %v1392
    %1647 = vmatprep.subr.mxu0 %v1391
    %1648 = vmatpush1.msra.mxu0 %v1390
    %1649 = vmatprep.subr.mxu0 %v1389
    %1650 = vmatpush1.msra.mxu0 %v1388
    %1651 = vmatprep.subr.mxu0 %v1387
    %1652 = vmatpush1.msra.mxu0 %v1386
    %1653 = vmatprep.subr.mxu0 %v1385
    %1654 = vmatpush1.msra.mxu0 %v1384
    %1655 = vmatprep.subr.mxu0 %v1383
    %1656 = vmatpush1.msra.mxu0 %v1382
    %1657 = vmatprep.subr.mxu0 %v1381
    %1658 = vmatpush1.msra.mxu0 %v1380
    %1659 = vmatprep.subr.mxu0 %v1379
    %1660 = vmatpush1.msra.mxu0 %v1378
    %1661 = vmatprep.subr.mxu0 %v1377
    %1662 = vmatpush1.msra.mxu0 %v1376
    %1663 = vmatprep.subr.mxu0 %v1375
    %1664 = vmatpush1.msra.mxu0 %v1374
    %1665 = vmatprep.subr.mxu0 %v1373
    %1666 = vmatpush1.msra.mxu0 %v1372
    %1667 = vmatprep.subr.mxu0 %v1371
    %1668 = vmatpush1.msra.mxu0 %v1370
    %1669 = vmatprep.subr.mxu0 %v1369
    %1670 = vmatpush1.msra.mxu0 %v1368
    %1671 = vmatprep.subr.mxu0 %v1367
    %1672 = vmatpush1.msra.mxu0 %v1366
    %1673 = vmatprep.subr.mxu0 %v1429
    %1674 = vmatpush2.msra.mxu0 %v1428
    %1675 = vmatprep.subr.mxu0 %v1427
    %1676 = vmatpush2.msra.mxu0 %v1426
    %1677 = vmatprep.subr.mxu0 %v1425
    %1678 = vmatpush2.msra.mxu0 %v1424
    %1679 = vmatprep.subr.mxu0 %v1423
    %1680 = vmatpush2.msra.mxu0 %v1422
    %1681 = vmatprep.subr.mxu0 %v1421
    %1682 = vmatpush2.msra.mxu0 %v1420
    %1683 = vmatprep.subr.mxu0 %v1419
    %1684 = vmatpush2.msra.mxu0 %v1418
    %1685 = vmatprep.subr.mxu0 %v1417
    %1686 = vmatpush2.msra.mxu0 %v1416
    %1687 = vmatprep.subr.mxu0 %v1415
    %1688 = vmatpush2.msra.mxu0 %v1414
    %1689 = vmatprep.subr.mxu0 %v1413
    %1690 = vmatpush2.msra.mxu0 %v1412
    %1691 = vmatprep.subr.mxu0 %v1411
    %1692 = vmatpush2.msra.mxu0 %v1410
    %1693 = vmatprep.subr.mxu0 %v1409
    %1694 = vmatpush2.msra.mxu0 %v1408
    %1695 = vmatprep.subr.mxu0 %v1407
    %1696 = vmatpush2.msra.mxu0 %v1406
    %1697 = vmatprep.subr.mxu0 %v1405
    %1698 = vmatpush2.msra.mxu0 %v1404
    %1699 = vmatprep.subr.mxu0 %v1403
    %1700 = vmatpush2.msra.mxu0 %v1402
    %1701 = vmatprep.subr.mxu0 %v1401
    %1702 = vmatpush2.msra.mxu0 %v1400
    %1703 = vmatprep.subr.mxu0 %v1399
    %1704 = vmatpush2.msra.mxu0 %v1398
    %1705 = vmatprep.mubr.f32.mxu0 %v1247
    %1706 = vmatmul.mubr.f32.gmra.mxu0 %v1245
    %v1707 = vpop.f32.mrf.mxu0
    %v1708 = vadd.f32 %v1637, %v1707
    %v1709 = vpop.f32.mrf.mxu0
    %v1710 = vadd.f32 %v1639, %v1709
    %1711 = vdwg.mxu0
    %1712 = vmatprep.subr.mxu0 %v1461
    %1713 = vmatpush1.msra.mxu0 %v1460
    %1714 = vmatprep.subr.mxu0 %v1459
    %1715 = vmatpush1.msra.mxu0 %v1458
    %1716 = vmatprep.subr.mxu0 %v1457
    %1717 = vmatpush1.msra.mxu0 %v1456
    %1718 = vmatprep.subr.mxu0 %v1455
    %1719 = vmatpush1.msra.mxu0 %v1454
    %1720 = vmatprep.subr.mxu0 %v1453
    %1721 = vmatpush1.msra.mxu0 %v1452
    %1722 = vmatprep.subr.mxu0 %v1451
    %1723 = vmatpush1.msra.mxu0 %v1450
    %1724 = vmatprep.subr.mxu0 %v1449
    %1725 = vmatpush1.msra.mxu0 %v1448
    %1726 = vmatprep.subr.mxu0 %v1447
    %1727 = vmatpush1.msra.mxu0 %v1446
    %1728 = vmatprep.subr.mxu0 %v1445
    %1729 = vmatpush1.msra.mxu0 %v1444
    %1730 = vmatprep.subr.mxu0 %v1443
    %1731 = vmatpush1.msra.mxu0 %v1442
    %1732 = vmatprep.subr.mxu0 %v1441
    %1733 = vmatpush1.msra.mxu0 %v1440
    %1734 = vmatprep.subr.mxu0 %v1439
    %1735 = vmatpush1.msra.mxu0 %v1438
    %1736 = vmatprep.subr.mxu0 %v1437
    %1737 = vmatpush1.msra.mxu0 %v1436
    %1738 = vmatprep.subr.mxu0 %v1435
    %1739 = vmatpush1.msra.mxu0 %v1434
    %1740 = vmatprep.subr.mxu0 %v1433
    %1741 = vmatpush1.msra.mxu0 %v1432
    %1742 = vmatprep.subr.mxu0 %v1431
    %1743 = vmatpush1.msra.mxu0 %v1430
    %1744 = vmatprep.subr.mxu0 %v1493
    %1745 = vmatpush2.msra.mxu0 %v1492
    %1746 = vmatprep.subr.mxu0 %v1491
    %1747 = vmatpush2.msra.mxu0 %v1490
    %1748 = vmatprep.subr.mxu0 %v1489
    %1749 = vmatpush2.msra.mxu0 %v1488
    %1750 = vmatprep.subr.mxu0 %v1487
    %1751 = vmatpush2.msra.mxu0 %v1486
    %1752 = vmatprep.subr.mxu0 %v1485
    %1753 = vmatpush2.msra.mxu0 %v1484
    %1754 = vmatprep.subr.mxu0 %v1483
    %1755 = vmatpush2.msra.mxu0 %v1482
    %1756 = vmatprep.subr.mxu0 %v1481
    %1757 = vmatpush2.msra.mxu0 %v1480
    %1758 = vmatprep.subr.mxu0 %v1479
    %1759 = vmatpush2.msra.mxu0 %v1478
    %1760 = vmatprep.subr.mxu0 %v1477
    %1761 = vmatpush2.msra.mxu0 %v1476
    %1762 = vmatprep.subr.mxu0 %v1475
    %1763 = vmatpush2.msra.mxu0 %v1474
    %1764 = vmatprep.subr.mxu0 %v1473
    %1765 = vmatpush2.msra.mxu0 %v1472
    %1766 = vmatprep.subr.mxu0 %v1471
    %1767 = vmatpush2.msra.mxu0 %v1470
    %1768 = vmatprep.subr.mxu0 %v1469
    %1769 = vmatpush2.msra.mxu0 %v1468
    %1770 = vmatprep.subr.mxu0 %v1467
    %1771 = vmatpush2.msra.mxu0 %v1466
    %1772 = vmatprep.subr.mxu0 %v1465
    %1773 = vmatpush2.msra.mxu0 %v1464
    %1774 = vmatprep.subr.mxu0 %v1463
    %1775 = vmatpush2.msra.mxu0 %v1462
    %1776 = vmatprep.mubr.f32.mxu0 %v1251
    %1777 = vmatmul.mubr.f32.gmra.mxu0 %v1249
    %v1778 = vpop.f32.mrf.mxu0
    %v1779 = vadd.f32 %v1708, %v1778
    %v1780 = vpop.f32.mrf.mxu0
    %v1781 = vadd.f32 %v1710, %v1780
    %1782 = vdwg.mxu0
    %1783 = vmatprep.subr.mxu0 %v1525
    %1784 = vmatpush1.msra.mxu0 %v1524
    %1785 = vmatprep.subr.mxu0 %v1523
    %1786 = vmatpush1.msra.mxu0 %v1522
    %1787 = vmatprep.subr.mxu0 %v1521
    %1788 = vmatpush1.msra.mxu0 %v1520
    %1789 = vmatprep.subr.mxu0 %v1519
    %1790 = vmatpush1.msra.mxu0 %v1518
    %1791 = vmatprep.subr.mxu0 %v1517
    %1792 = vmatpush1.msra.mxu0 %v1516
    %1793 = vmatprep.subr.mxu0 %v1515
    %1794 = vmatpush1.msra.mxu0 %v1514
    %1795 = vmatprep.subr.mxu0 %v1513
    %1796 = vmatpush1.msra.mxu0 %v1512
    %1797 = vmatprep.subr.mxu0 %v1511
    %1798 = vmatpush1.msra.mxu0 %v1510
    %1799 = vmatprep.subr.mxu0 %v1509
    %1800 = vmatpush1.msra.mxu0 %v1508
    %1801 = vmatprep.subr.mxu0 %v1507
    %1802 = vmatpush1.msra.mxu0 %v1506
    %1803 = vmatprep.subr.mxu0 %v1505
    %1804 = vmatpush1.msra.mxu0 %v1504
    %1805 = vmatprep.subr.mxu0 %v1503
    %1806 = vmatpush1.msra.mxu0 %v1502
    %1807 = vmatprep.subr.mxu0 %v1501
    %1808 = vmatpush1.msra.mxu0 %v1500
    %1809 = vmatprep.subr.mxu0 %v1499
    %1810 = vmatpush1.msra.mxu0 %v1498
    %1811 = vmatprep.subr.mxu0 %v1497
    %1812 = vmatpush1.msra.mxu0 %v1496
    %1813 = vmatprep.subr.mxu0 %v1495
    %1814 = vmatpush1.msra.mxu0 %v1494
    %1815 = vmatprep.subr.mxu0 %v1557
    %1816 = vmatpush2.msra.mxu0 %v1556
    %1817 = vmatprep.subr.mxu0 %v1555
    %1818 = vmatpush2.msra.mxu0 %v1554
    %1819 = vmatprep.subr.mxu0 %v1553
    %1820 = vmatpush2.msra.mxu0 %v1552
    %1821 = vmatprep.subr.mxu0 %v1551
    %1822 = vmatpush2.msra.mxu0 %v1550
    %1823 = vmatprep.subr.mxu0 %v1549
    %1824 = vmatpush2.msra.mxu0 %v1548
    %1825 = vmatprep.subr.mxu0 %v1547
    %1826 = vmatpush2.msra.mxu0 %v1546
    %1827 = vmatprep.subr.mxu0 %v1545
    %1828 = vmatpush2.msra.mxu0 %v1544
    %1829 = vmatprep.subr.mxu0 %v1543
    %1830 = vmatpush2.msra.mxu0 %v1542
    %1831 = vmatprep.subr.mxu0 %v1541
    %1832 = vmatpush2.msra.mxu0 %v1540
    %1833 = vmatprep.subr.mxu0 %v1539
    %1834 = vmatpush2.msra.mxu0 %v1538
    %1835 = vmatprep.subr.mxu0 %v1537
    %1836 = vmatpush2.msra.mxu0 %v1536
    %1837 = vmatprep.subr.mxu0 %v1535
    %1838 = vmatpush2.msra.mxu0 %v1534
    %1839 = vmatprep.subr.mxu0 %v1533
    %1840 = vmatpush2.msra.mxu0 %v1532
    %1841 = vmatprep.subr.mxu0 %v1531
    %1842 = vmatpush2.msra.mxu0 %v1530
    %1843 = vmatprep.subr.mxu0 %v1529
    %1844 = vmatpush2.msra.mxu0 %v1528
    %1845 = vmatprep.subr.mxu0 %v1527
    %1846 = vmatpush2.msra.mxu0 %v1526
    %1847 = vmatprep.mubr.f32.mxu0 %v1255
    %1848 = vmatmul.mubr.f32.gmra.mxu0 %v1253
    %v1849 = vpop.f32.mrf.mxu0
    %v1850 = vadd.f32 %v1779, %v1849
    %v1851 = vpop.f32.mrf.mxu0
    %v1852 = vadd.f32 %v1781, %v1851
    %1853 = vdwg.mxu0
    %v1854 = vmax.f32 %v1850, 0.0
    %v1855 = vmax.f32 %v1852, 0.0
    %v1856 = vld [vmem:[#allocation5] sm:$0xff]
    %v1857 = vld [vmem:[#allocation5 + $0x8] sm:$0xff]
    %v1858 = vld [vmem:[#allocation5 + $0x10] sm:$0xff]
    %v1859 = vld [vmem:[#allocation5 + $0x18] sm:$0xff]
    %v1860 = vld [vmem:[#allocation5 + $0x20] sm:$0xff]
    %v1861 = vld [vmem:[#allocation5 + $0x28] sm:$0xff]
    %v1862 = vld [vmem:[#allocation5 + $0x30] sm:$0xff]
    %v1863 = vld [vmem:[#allocation5 + $0x38] sm:$0xff]
    %v1864 = vld [vmem:[#allocation5 + $0x40] sm:$0xff]
    %v1865 = vld [vmem:[#allocation5 + $0x48] sm:$0xff]
    %v1866 = vld [vmem:[#allocation5 + $0x50] sm:$0xff]
    %v1867 = vld [vmem:[#allocation5 + $0x58] sm:$0xff]
    %v1868 = vld [vmem:[#allocation5 + $0x60] sm:$0xff]
    %v1869 = vld [vmem:[#allocation5 + $0x68] sm:$0xff]
    %v1870 = vld [vmem:[#allocation5 + $0x70] sm:$0xff]
    %v1871 = vld [vmem:[#allocation5 + $0x78] sm:$0xff]
    %v1872 = vld [vmem:[#allocation5 + $0x80] sm:$0xff]
    %v1873 = vld [vmem:[#allocation5 + $0x88] sm:$0xff]
    %v1874 = vld [vmem:[#allocation5 + $0x90] sm:$0xff]
    %v1875 = vld [vmem:[#allocation5 + $0x98] sm:$0xff]
    %v1876 = vld [vmem:[#allocation5 + $0xa0] sm:$0xff]
    %v1877 = vld [vmem:[#allocation5 + $0xa8] sm:$0xff]
    %v1878 = vld [vmem:[#allocation5 + $0xb0] sm:$0xff]
    %v1879 = vld [vmem:[#allocation5 + $0xb8] sm:$0xff]
    %v1880 = vld [vmem:[#allocation5 + $0xc0] sm:$0xff]
    %v1881 = vld [vmem:[#allocation5 + $0xc8] sm:$0xff]
    %v1882 = vld [vmem:[#allocation5 + $0xd0] sm:$0xff]
    %v1883 = vld [vmem:[#allocation5 + $0xd8] sm:$0xff]
    %v1884 = vld [vmem:[#allocation5 + $0xe0] sm:$0xff]
    %v1885 = vld [vmem:[#allocation5 + $0xe8] sm:$0xff]
    %v1886 = vld [vmem:[#allocation5 + $0xf0] sm:$0xff]
    %v1887 = vld [vmem:[#allocation5 + $0xf8] sm:$0xff]
    %v1888 = vld [vmem:[#allocation5 + $0x100] sm:$0xff]
    %v1889 = vld [vmem:[#allocation5 + $0x108] sm:$0xff]
    %v1890 = vld [vmem:[#allocation5 + $0x110] sm:$0xff]
    %v1891 = vld [vmem:[#allocation5 + $0x118] sm:$0xff]
    %v1892 = vld [vmem:[#allocation5 + $0x120] sm:$0xff]
    %v1893 = vld [vmem:[#allocation5 + $0x128] sm:$0xff]
    %v1894 = vld [vmem:[#allocation5 + $0x130] sm:$0xff]
    %v1895 = vld [vmem:[#allocation5 + $0x138] sm:$0xff]
    %v1896 = vld [vmem:[#allocation5 + $0x140] sm:$0xff]
    %v1897 = vld [vmem:[#allocation5 + $0x148] sm:$0xff]
    %v1898 = vld [vmem:[#allocation5 + $0x150] sm:$0xff]
    %v1899 = vld [vmem:[#allocation5 + $0x158] sm:$0xff]
    %v1900 = vld [vmem:[#allocation5 + $0x160] sm:$0xff]
    %v1901 = vld [vmem:[#allocation5 + $0x168] sm:$0xff]
    %v1902 = vld [vmem:[#allocation5 + $0x170] sm:$0xff]
    %v1903 = vld [vmem:[#allocation5 + $0x178] sm:$0xff]
    %v1904 = vld [vmem:[#allocation5 + $0x180] sm:$0xff]
    %v1905 = vld [vmem:[#allocation5 + $0x188] sm:$0xff]
    %v1906 = vld [vmem:[#allocation5 + $0x190] sm:$0xff]
    %v1907 = vld [vmem:[#allocation5 + $0x198] sm:$0xff]
    %v1908 = vld [vmem:[#allocation5 + $0x1a0] sm:$0xff]
    %v1909 = vld [vmem:[#allocation5 + $0x1a8] sm:$0xff]
    %v1910 = vld [vmem:[#allocation5 + $0x1b0] sm:$0xff]
    %v1911 = vld [vmem:[#allocation5 + $0x1b8] sm:$0xff]
    %v1912 = vld [vmem:[#allocation5 + $0x1c0] sm:$0xff]
    %v1913 = vld [vmem:[#allocation5 + $0x1c8] sm:$0xff]
    %v1914 = vld [vmem:[#allocation5 + $0x1d0] sm:$0xff]
    %v1915 = vld [vmem:[#allocation5 + $0x1d8] sm:$0xff]
    %v1916 = vld [vmem:[#allocation5 + $0x1e0] sm:$0xff]
    %v1917 = vld [vmem:[#allocation5 + $0x1e8] sm:$0xff]
    %v1918 = vld [vmem:[#allocation5 + $0x1f0] sm:$0xff]
    %v1919 = vld [vmem:[#allocation5 + $0x1f8] sm:$0xff]
    %v1920 = vld [vmem:[#allocation5 + $0x200] sm:$0xff]
    %v1921 = vld [vmem:[#allocation5 + $0x208] sm:$0xff]
    %v1922 = vld [vmem:[#allocation5 + $0x210] sm:$0xff]
    %v1923 = vld [vmem:[#allocation5 + $0x218] sm:$0xff]
    %v1924 = vld [vmem:[#allocation5 + $0x220] sm:$0xff]
    %v1925 = vld [vmem:[#allocation5 + $0x228] sm:$0xff]
    %v1926 = vld [vmem:[#allocation5 + $0x230] sm:$0xff]
    %v1927 = vld [vmem:[#allocation5 + $0x238] sm:$0xff]
    %v1928 = vld [vmem:[#allocation5 + $0x240] sm:$0xff]
    %v1929 = vld [vmem:[#allocation5 + $0x248] sm:$0xff]
    %v1930 = vld [vmem:[#allocation5 + $0x250] sm:$0xff]
    %v1931 = vld [vmem:[#allocation5 + $0x258] sm:$0xff]
    %v1932 = vld [vmem:[#allocation5 + $0x260] sm:$0xff]
    %v1933 = vld [vmem:[#allocation5 + $0x268] sm:$0xff]
    %v1934 = vld [vmem:[#allocation5 + $0x270] sm:$0xff]
    %v1935 = vld [vmem:[#allocation5 + $0x278] sm:$0xff]
    %v1936 = vld [vmem:[#allocation5 + $0x280] sm:$0xff]
    %v1937 = vld [vmem:[#allocation5 + $0x288] sm:$0xff]
    %v1938 = vld [vmem:[#allocation5 + $0x290] sm:$0xff]
    %v1939 = vld [vmem:[#allocation5 + $0x298] sm:$0xff]
    %v1940 = vld [vmem:[#allocation5 + $0x2a0] sm:$0xff]
    %v1941 = vld [vmem:[#allocation5 + $0x2a8] sm:$0xff]
    %v1942 = vld [vmem:[#allocation5 + $0x2b0] sm:$0xff]
    %v1943 = vld [vmem:[#allocation5 + $0x2b8] sm:$0xff]
    %v1944 = vld [vmem:[#allocation5 + $0x2c0] sm:$0xff]
    %v1945 = vld [vmem:[#allocation5 + $0x2c8] sm:$0xff]
    %v1946 = vld [vmem:[#allocation5 + $0x2d0] sm:$0xff]
    %v1947 = vld [vmem:[#allocation5 + $0x2d8] sm:$0xff]
    %v1948 = vld [vmem:[#allocation5 + $0x2e0] sm:$0xff]
    %v1949 = vld [vmem:[#allocation5 + $0x2e8] sm:$0xff]
    %v1950 = vld [vmem:[#allocation5 + $0x2f0] sm:$0xff]
    %v1951 = vld [vmem:[#allocation5 + $0x2f8] sm:$0xff]
    %v1952 = vld [vmem:[#allocation5 + $0x300] sm:$0xff]
    %v1953 = vld [vmem:[#allocation5 + $0x308] sm:$0xff]
    %v1954 = vld [vmem:[#allocation5 + $0x310] sm:$0xff]
    %v1955 = vld [vmem:[#allocation5 + $0x318] sm:$0xff]
    %v1956 = vld [vmem:[#allocation5 + $0x320] sm:$0xff]
    %v1957 = vld [vmem:[#allocation5 + $0x328] sm:$0xff]
    %v1958 = vld [vmem:[#allocation5 + $0x330] sm:$0xff]
    %v1959 = vld [vmem:[#allocation5 + $0x338] sm:$0xff]
    %v1960 = vld [vmem:[#allocation5 + $0x340] sm:$0xff]
    %v1961 = vld [vmem:[#allocation5 + $0x348] sm:$0xff]
    %v1962 = vld [vmem:[#allocation5 + $0x350] sm:$0xff]
    %v1963 = vld [vmem:[#allocation5 + $0x358] sm:$0xff]
    %v1964 = vld [vmem:[#allocation5 + $0x360] sm:$0xff]
    %v1965 = vld [vmem:[#allocation5 + $0x368] sm:$0xff]
    %v1966 = vld [vmem:[#allocation5 + $0x370] sm:$0xff]
    %v1967 = vld [vmem:[#allocation5 + $0x378] sm:$0xff]
    %v1968 = vld [vmem:[#allocation5 + $0x380] sm:$0xff]
    %v1969 = vld [vmem:[#allocation5 + $0x388] sm:$0xff]
    %v1970 = vld [vmem:[#allocation5 + $0x390] sm:$0xff]
    %v1971 = vld [vmem:[#allocation5 + $0x398] sm:$0xff]
    %v1972 = vld [vmem:[#allocation5 + $0x3a0] sm:$0xff]
    %v1973 = vld [vmem:[#allocation5 + $0x3a8] sm:$0xff]
    %v1974 = vld [vmem:[#allocation5 + $0x3b0] sm:$0xff]
    %v1975 = vld [vmem:[#allocation5 + $0x3b8] sm:$0xff]
    %v1976 = vld [vmem:[#allocation5 + $0x3c0] sm:$0xff]
    %v1977 = vld [vmem:[#allocation5 + $0x3c8] sm:$0xff]
    %v1978 = vld [vmem:[#allocation5 + $0x3d0] sm:$0xff]
    %v1979 = vld [vmem:[#allocation5 + $0x3d8] sm:$0xff]
    %v1980 = vld [vmem:[#allocation5 + $0x3e0] sm:$0xff]
    %v1981 = vld [vmem:[#allocation5 + $0x3e8] sm:$0xff]
    %v1982 = vld [vmem:[#allocation5 + $0x3f0] sm:$0xff]
    %v1983 = vld [vmem:[#allocation5 + $0x3f8] sm:$0xff]
    %v1984 = vld [vmem:[%s6] sm:$0xf]
    %v1986 = vlaneseq
    %v1987 = vshrl.u32 %v1986, 7
    %v1988 = vsub.s32 0, %v1987
    %v1989 = vrot.slane %v1984, %v1988
    %v1990 = vlaneseq
    %v1991 = vshrl.u32 %v1990, 7
    %v1992 = vsub.s32 1, %v1991
    %v1993 = vrot.slane %v1984, %v1992
    %v1994 = vlaneseq
    %v1995 = vshrl.u32 %v1994, 7
    %v1996 = vsub.s32 2, %v1995
    %v1997 = vrot.slane %v1984, %v1996
    %v1998 = vlaneseq
    %v1999 = vshrl.u32 %v1998, 7
    %v2000 = vsub.s32 3, %v1999
    %v2001 = vrot.slane %v1984, %v2000
    %2006 = vmatprep.subr.mxu0 %v1917
    %2007 = vmatpush1.msra.mxu0 %v1916
    %2008 = vmatprep.subr.mxu0 %v1913
    %2009 = vmatpush1.msra.mxu0 %v1912
    %2010 = vmatprep.subr.mxu0 %v1909
    %2011 = vmatpush1.msra.mxu0 %v1908
    %2012 = vmatprep.subr.mxu0 %v1905
    %2013 = vmatpush1.msra.mxu0 %v1904
    %2014 = vmatprep.subr.mxu0 %v1901
    %2015 = vmatpush1.msra.mxu0 %v1900
    %2016 = vmatprep.subr.mxu0 %v1897
    %2017 = vmatpush1.msra.mxu0 %v1896
    %2018 = vmatprep.subr.mxu0 %v1893
    %2019 = vmatpush1.msra.mxu0 %v1892
    %2020 = vmatprep.subr.mxu0 %v1889
    %2021 = vmatpush1.msra.mxu0 %v1888
    %2022 = vmatprep.subr.mxu0 %v1885
    %2023 = vmatpush1.msra.mxu0 %v1884
    %2024 = vmatprep.subr.mxu0 %v1881
    %2025 = vmatpush1.msra.mxu0 %v1880
    %2026 = vmatprep.subr.mxu0 %v1877
    %2027 = vmatpush1.msra.mxu0 %v1876
    %2028 = vmatprep.subr.mxu0 %v1873
    %2029 = vmatpush1.msra.mxu0 %v1872
    %2030 = vmatprep.subr.mxu0 %v1869
    %2031 = vmatpush1.msra.mxu0 %v1868
    %2032 = vmatprep.subr.mxu0 %v1865
    %2033 = vmatpush1.msra.mxu0 %v1864
    %2034 = vmatprep.subr.mxu0 %v1861
    %2035 = vmatpush1.msra.mxu0 %v1860
    %2036 = vmatprep.subr.mxu0 %v1857
    %2037 = vmatpush1.msra.mxu0 %v1856
    %2038 = vmatprep.subr.mxu0 %v1981
    %2039 = vmatpush2.msra.mxu0 %v1980
    %2040 = vmatprep.subr.mxu0 %v1977
    %2041 = vmatpush2.msra.mxu0 %v1976
    %2042 = vmatprep.subr.mxu0 %v1973
    %2043 = vmatpush2.msra.mxu0 %v1972
    %2044 = vmatprep.subr.mxu0 %v1969
    %2045 = vmatpush2.msra.mxu0 %v1968
    %2046 = vmatprep.subr.mxu0 %v1965
    %2047 = vmatpush2.msra.mxu0 %v1964
    %2048 = vmatprep.subr.mxu0 %v1961
    %2049 = vmatpush2.msra.mxu0 %v1960
    %2050 = vmatprep.subr.mxu0 %v1957
    %2051 = vmatpush2.msra.mxu0 %v1956
    %2052 = vmatprep.subr.mxu0 %v1953
    %2053 = vmatpush2.msra.mxu0 %v1952
    %2054 = vmatprep.subr.mxu0 %v1949
    %2055 = vmatpush2.msra.mxu0 %v1948
    %2056 = vmatprep.subr.mxu0 %v1945
    %2057 = vmatpush2.msra.mxu0 %v1944
    %2058 = vmatprep.subr.mxu0 %v1941
    %2059 = vmatpush2.msra.mxu0 %v1940
    %2060 = vmatprep.subr.mxu0 %v1937
    %2061 = vmatpush2.msra.mxu0 %v1936
    %2062 = vmatprep.subr.mxu0 %v1933
    %2063 = vmatpush2.msra.mxu0 %v1932
    %2064 = vmatprep.subr.mxu0 %v1929
    %2065 = vmatpush2.msra.mxu0 %v1928
    %2066 = vmatprep.subr.mxu0 %v1925
    %2067 = vmatpush2.msra.mxu0 %v1924
    %2068 = vmatprep.subr.mxu0 %v1921
    %2069 = vmatpush2.msra.mxu0 %v1920
    %2070 = vmatprep.mubr.f32.mxu0 %v1855
    %2071 = vmatmul.mubr.f32.gmra.mxu0 %v1854
    %v2072 = vpop.f32.mrf.mxu0
    %v2073 = vadd.f32 %v1989, %v2072
    %v2074 = vpop.f32.mrf.mxu0
    %v2075 = vadd.f32 %v1993, %v2074
    %2076 = vdwg.mxu0
    %2077 = vmatprep.subr.mxu0 %v1919
    %2078 = vmatpush1.msra.mxu0 %v1918
    %2079 = vmatprep.subr.mxu0 %v1915
    %2080 = vmatpush1.msra.mxu0 %v1914
    %2081 = vmatprep.subr.mxu0 %v1911
    %2082 = vmatpush1.msra.mxu0 %v1910
    %2083 = vmatprep.subr.mxu0 %v1907
    %2084 = vmatpush1.msra.mxu0 %v1906
    %2085 = vmatprep.subr.mxu0 %v1903
    %2086 = vmatpush1.msra.mxu0 %v1902
    %2087 = vmatprep.subr.mxu0 %v1899
    %2088 = vmatpush1.msra.mxu0 %v1898
    %2089 = vmatprep.subr.mxu0 %v1895
    %2090 = vmatpush1.msra.mxu0 %v1894
    %2091 = vmatprep.subr.mxu0 %v1891
    %2092 = vmatpush1.msra.mxu0 %v1890
    %2093 = vmatprep.subr.mxu0 %v1887
    %2094 = vmatpush1.msra.mxu0 %v1886
    %2095 = vmatprep.subr.mxu0 %v1883
    %2096 = vmatpush1.msra.mxu0 %v1882
    %2097 = vmatprep.subr.mxu0 %v1879
    %2098 = vmatpush1.msra.mxu0 %v1878
    %2099 = vmatprep.subr.mxu0 %v1875
    %2100 = vmatpush1.msra.mxu0 %v1874
    %2101 = vmatprep.subr.mxu0 %v1871
    %2102 = vmatpush1.msra.mxu0 %v1870
    %2103 = vmatprep.subr.mxu0 %v1867
    %2104 = vmatpush1.msra.mxu0 %v1866
    %2105 = vmatprep.subr.mxu0 %v1863
    %2106 = vmatpush1.msra.mxu0 %v1862
    %2107 = vmatprep.subr.mxu0 %v1859
    %2108 = vmatpush1.msra.mxu0 %v1858
    %2109 = vmatprep.subr.mxu0 %v1983
    %2110 = vmatpush2.msra.mxu0 %v1982
    %2111 = vmatprep.subr.mxu0 %v1979
    %2112 = vmatpush2.msra.mxu0 %v1978
    %2113 = vmatprep.subr.mxu0 %v1975
    %2114 = vmatpush2.msra.mxu0 %v1974
    %2115 = vmatprep.subr.mxu0 %v1971
    %2116 = vmatpush2.msra.mxu0 %v1970
    %2117 = vmatprep.subr.mxu0 %v1967
    %2118 = vmatpush2.msra.mxu0 %v1966
    %2119 = vmatprep.subr.mxu0 %v1963
    %2120 = vmatpush2.msra.mxu0 %v1962
    %2121 = vmatprep.subr.mxu0 %v1959
    %2122 = vmatpush2.msra.mxu0 %v1958
    %2123 = vmatprep.subr.mxu0 %v1955
    %2124 = vmatpush2.msra.mxu0 %v1954
    %2125 = vmatprep.subr.mxu0 %v1951
    %2126 = vmatpush2.msra.mxu0 %v1950
    %2127 = vmatprep.subr.mxu0 %v1947
    %2128 = vmatpush2.msra.mxu0 %v1946
    %2129 = vmatprep.subr.mxu0 %v1943
    %2130 = vmatpush2.msra.mxu0 %v1942
    %2131 = vmatprep.subr.mxu0 %v1939
    %2132 = vmatpush2.msra.mxu0 %v1938
    %2133 = vmatprep.subr.mxu0 %v1935
    %2134 = vmatpush2.msra.mxu0 %v1934
    %2135 = vmatprep.subr.mxu0 %v1931
    %2136 = vmatpush2.msra.mxu0 %v1930
    %2137 = vmatprep.subr.mxu0 %v1927
    %2138 = vmatpush2.msra.mxu0 %v1926
    %2139 = vmatprep.subr.mxu0 %v1923
    %2140 = vmatpush2.msra.mxu0 %v1922
    %2141 = vmatprep.mubr.f32.mxu0 %v1855
    %2142 = vmatmul.mubr.f32.gmra.mxu0 %v1854
    %v2143 = vpop.f32.mrf.mxu0
    %v2144 = vadd.f32 %v1997, %v2143
    %v2145 = vpop.f32.mrf.mxu0
    %v2146 = vadd.f32 %v2001, %v2145
    %2147 = vdwg.mxu0
    %v2148 = vmax.f32 %v2073, 0.0
    %v2149 = vmax.f32 %v2075, 0.0
    %v2150 = vmax.f32 %v2144, 0.0
    %v2151 = vmax.f32 %v2146, 0.0
    %v2152 = vld [vmem:[%s7] sm:$0xff]
    %v2153 = vld [vmem:[%s7 + $0x8] sm:$0xff]
    %v2154 = vld [vmem:[%s7 + $0x10] sm:$0xff]
    %v2155 = vld [vmem:[%s7 + $0x18] sm:$0xff]
    %v2156 = vld [vmem:[%s7 + $0x20] sm:$0xff]
    %v2157 = vld [vmem:[%s7 + $0x28] sm:$0xff]
    %v2158 = vld [vmem:[%s7 + $0x30] sm:$0xff]
    %v2159 = vld [vmem:[%s7 + $0x38] sm:$0xff]
    %v2160 = vld [vmem:[%s7 + $0x40] sm:$0xff]
    %v2161 = vld [vmem:[%s7 + $0x48] sm:$0xff]
    %v2162 = vld [vmem:[%s7 + $0x50] sm:$0xff]
    %v2163 = vld [vmem:[%s7 + $0x58] sm:$0xff]
    %v2164 = vld [vmem:[%s7 + $0x60] sm:$0xff]
    %v2165 = vld [vmem:[%s7 + $0x68] sm:$0xff]
    %v2166 = vld [vmem:[%s7 + $0x70] sm:$0xff]
    %v2167 = vld [vmem:[%s7 + $0x78] sm:$0xff]
    %v2168 = vld [vmem:[%s7 + $0x80] sm:$0xff]
    %v2169 = vld [vmem:[%s7 + $0x88] sm:$0xff]
    %v2170 = vld [vmem:[%s7 + $0x90] sm:$0xff]
    %v2171 = vld [vmem:[%s7 + $0x98] sm:$0xff]
    %v2172 = vld [vmem:[%s7 + $0xa0] sm:$0xff]
    %v2173 = vld [vmem:[%s7 + $0xa8] sm:$0xff]
    %v2174 = vld [vmem:[%s7 + $0xb0] sm:$0xff]
    %v2175 = vld [vmem:[%s7 + $0xb8] sm:$0xff]
    %v2176 = vld [vmem:[%s7 + $0xc0] sm:$0xff]
    %v2177 = vld [vmem:[%s7 + $0xc8] sm:$0xff]
    %v2178 = vld [vmem:[%s7 + $0xd0] sm:$0xff]
    %v2179 = vld [vmem:[%s7 + $0xd8] sm:$0xff]
    %v2180 = vld [vmem:[%s7 + $0xe0] sm:$0xff]
    %v2181 = vld [vmem:[%s7 + $0xe8] sm:$0xff]
    %v2182 = vld [vmem:[%s7 + $0xf0] sm:$0xff]
    %v2183 = vld [vmem:[%s7 + $0xf8] sm:$0xff]
    %v2184 = vld [vmem:[%s7 + $0x100] sm:$0xff]
    %v2185 = vld [vmem:[%s7 + $0x108] sm:$0xff]
    %v2186 = vld [vmem:[%s7 + $0x110] sm:$0xff]
    %v2187 = vld [vmem:[%s7 + $0x118] sm:$0xff]
    %v2188 = vld [vmem:[%s7 + $0x120] sm:$0xff]
    %v2189 = vld [vmem:[%s7 + $0x128] sm:$0xff]
    %v2190 = vld [vmem:[%s7 + $0x130] sm:$0xff]
    %v2191 = vld [vmem:[%s7 + $0x138] sm:$0xff]
    %v2192 = vld [vmem:[%s7 + $0x140] sm:$0xff]
    %v2193 = vld [vmem:[%s7 + $0x148] sm:$0xff]
    %v2194 = vld [vmem:[%s7 + $0x150] sm:$0xff]
    %v2195 = vld [vmem:[%s7 + $0x158] sm:$0xff]
    %v2196 = vld [vmem:[%s7 + $0x160] sm:$0xff]
    %v2197 = vld [vmem:[%s7 + $0x168] sm:$0xff]
    %v2198 = vld [vmem:[%s7 + $0x170] sm:$0xff]
    %v2199 = vld [vmem:[%s7 + $0x178] sm:$0xff]
    %v2200 = vld [vmem:[%s7 + $0x180] sm:$0xff]
    %v2201 = vld [vmem:[%s7 + $0x188] sm:$0xff]
    %v2202 = vld [vmem:[%s7 + $0x190] sm:$0xff]
    %v2203 = vld [vmem:[%s7 + $0x198] sm:$0xff]
    %v2204 = vld [vmem:[%s7 + $0x1a0] sm:$0xff]
    %v2205 = vld [vmem:[%s7 + $0x1a8] sm:$0xff]
    %v2206 = vld [vmem:[%s7 + $0x1b0] sm:$0xff]
    %v2207 = vld [vmem:[%s7 + $0x1b8] sm:$0xff]
    %v2208 = vld [vmem:[%s7 + $0x1c0] sm:$0xff]
    %v2209 = vld [vmem:[%s7 + $0x1c8] sm:$0xff]
    %v2210 = vld [vmem:[%s7 + $0x1d0] sm:$0xff]
    %v2211 = vld [vmem:[%s7 + $0x1d8] sm:$0xff]
    %v2212 = vld [vmem:[%s7 + $0x1e0] sm:$0xff]
    %v2213 = vld [vmem:[%s7 + $0x1e8] sm:$0xff]
    %v2214 = vld [vmem:[%s7 + $0x1f0] sm:$0xff]
    %v2215 = vld [vmem:[%s7 + $0x1f8] sm:$0xff]
    %v2216 = vld [vmem:[%s7 + $0x200] sm:$0xff]
    %v2217 = vld [vmem:[%s7 + $0x208] sm:$0xff]
    %v2218 = vld [vmem:[%s7 + $0x210] sm:$0xff]
    %v2219 = vld [vmem:[%s7 + $0x218] sm:$0xff]
    %v2220 = vld [vmem:[%s7 + $0x220] sm:$0xff]
    %v2221 = vld [vmem:[%s7 + $0x228] sm:$0xff]
    %v2222 = vld [vmem:[%s7 + $0x230] sm:$0xff]
    %v2223 = vld [vmem:[%s7 + $0x238] sm:$0xff]
    %v2224 = vld [vmem:[%s7 + $0x240] sm:$0xff]
    %v2225 = vld [vmem:[%s7 + $0x248] sm:$0xff]
    %v2226 = vld [vmem:[%s7 + $0x250] sm:$0xff]
    %v2227 = vld [vmem:[%s7 + $0x258] sm:$0xff]
    %v2228 = vld [vmem:[%s7 + $0x260] sm:$0xff]
    %v2229 = vld [vmem:[%s7 + $0x268] sm:$0xff]
    %v2230 = vld [vmem:[%s7 + $0x270] sm:$0xff]
    %v2231 = vld [vmem:[%s7 + $0x278] sm:$0xff]
    %v2232 = vld [vmem:[%s7 + $0x280] sm:$0xff]
    %v2233 = vld [vmem:[%s7 + $0x288] sm:$0xff]
    %v2234 = vld [vmem:[%s7 + $0x290] sm:$0xff]
    %v2235 = vld [vmem:[%s7 + $0x298] sm:$0xff]
    %v2236 = vld [vmem:[%s7 + $0x2a0] sm:$0xff]
    %v2237 = vld [vmem:[%s7 + $0x2a8] sm:$0xff]
    %v2238 = vld [vmem:[%s7 + $0x2b0] sm:$0xff]
    %v2239 = vld [vmem:[%s7 + $0x2b8] sm:$0xff]
    %v2240 = vld [vmem:[%s7 + $0x2c0] sm:$0xff]
    %v2241 = vld [vmem:[%s7 + $0x2c8] sm:$0xff]
    %v2242 = vld [vmem:[%s7 + $0x2d0] sm:$0xff]
    %v2243 = vld [vmem:[%s7 + $0x2d8] sm:$0xff]
    %v2244 = vld [vmem:[%s7 + $0x2e0] sm:$0xff]
    %v2245 = vld [vmem:[%s7 + $0x2e8] sm:$0xff]
    %v2246 = vld [vmem:[%s7 + $0x2f0] sm:$0xff]
    %v2247 = vld [vmem:[%s7 + $0x2f8] sm:$0xff]
    %v2248 = vld [vmem:[%s7 + $0x300] sm:$0xff]
    %v2249 = vld [vmem:[%s7 + $0x308] sm:$0xff]
    %v2250 = vld [vmem:[%s7 + $0x310] sm:$0xff]
    %v2251 = vld [vmem:[%s7 + $0x318] sm:$0xff]
    %v2252 = vld [vmem:[%s7 + $0x320] sm:$0xff]
    %v2253 = vld [vmem:[%s7 + $0x328] sm:$0xff]
    %v2254 = vld [vmem:[%s7 + $0x330] sm:$0xff]
    %v2255 = vld [vmem:[%s7 + $0x338] sm:$0xff]
    %v2256 = vld [vmem:[%s7 + $0x340] sm:$0xff]
    %v2257 = vld [vmem:[%s7 + $0x348] sm:$0xff]
    %v2258 = vld [vmem:[%s7 + $0x350] sm:$0xff]
    %v2259 = vld [vmem:[%s7 + $0x358] sm:$0xff]
    %v2260 = vld [vmem:[%s7 + $0x360] sm:$0xff]
    %v2261 = vld [vmem:[%s7 + $0x368] sm:$0xff]
    %v2262 = vld [vmem:[%s7 + $0x370] sm:$0xff]
    %v2263 = vld [vmem:[%s7 + $0x378] sm:$0xff]
    %v2264 = vld [vmem:[%s7 + $0x380] sm:$0xff]
    %v2265 = vld [vmem:[%s7 + $0x388] sm:$0xff]
    %v2266 = vld [vmem:[%s7 + $0x390] sm:$0xff]
    %v2267 = vld [vmem:[%s7 + $0x398] sm:$0xff]
    %v2268 = vld [vmem:[%s7 + $0x3a0] sm:$0xff]
    %v2269 = vld [vmem:[%s7 + $0x3a8] sm:$0xff]
    %v2270 = vld [vmem:[%s7 + $0x3b0] sm:$0xff]
    %v2271 = vld [vmem:[%s7 + $0x3b8] sm:$0xff]
    %v2272 = vld [vmem:[%s7 + $0x3c0] sm:$0xff]
    %v2273 = vld [vmem:[%s7 + $0x3c8] sm:$0xff]
    %v2274 = vld [vmem:[%s7 + $0x3d0] sm:$0xff]
    %v2275 = vld [vmem:[%s7 + $0x3d8] sm:$0xff]
    %v2276 = vld [vmem:[%s7 + $0x3e0] sm:$0xff]
    %v2277 = vld [vmem:[%s7 + $0x3e8] sm:$0xff]
    %v2278 = vld [vmem:[%s7 + $0x3f0] sm:$0xff]
    %v2279 = vld [vmem:[%s7 + $0x3f8] sm:$0xff]
    %v2280 = vld [vmem:[%s7 + $0x400] sm:$0xff]
    %v2281 = vld [vmem:[%s7 + $0x408] sm:$0xff]
    %v2282 = vld [vmem:[%s7 + $0x410] sm:$0xff]
    %v2283 = vld [vmem:[%s7 + $0x418] sm:$0xff]
    %v2284 = vld [vmem:[%s7 + $0x420] sm:$0xff]
    %v2285 = vld [vmem:[%s7 + $0x428] sm:$0xff]
    %v2286 = vld [vmem:[%s7 + $0x430] sm:$0xff]
    %v2287 = vld [vmem:[%s7 + $0x438] sm:$0xff]
    %v2288 = vld [vmem:[%s7 + $0x440] sm:$0xff]
    %v2289 = vld [vmem:[%s7 + $0x448] sm:$0xff]
    %v2290 = vld [vmem:[%s7 + $0x450] sm:$0xff]
    %v2291 = vld [vmem:[%s7 + $0x458] sm:$0xff]
    %v2292 = vld [vmem:[%s7 + $0x460] sm:$0xff]
    %v2293 = vld [vmem:[%s7 + $0x468] sm:$0xff]
    %v2294 = vld [vmem:[%s7 + $0x470] sm:$0xff]
    %v2295 = vld [vmem:[%s7 + $0x478] sm:$0xff]
    %v2296 = vld [vmem:[%s7 + $0x480] sm:$0xff]
    %v2297 = vld [vmem:[%s7 + $0x488] sm:$0xff]
    %v2298 = vld [vmem:[%s7 + $0x490] sm:$0xff]
    %v2299 = vld [vmem:[%s7 + $0x498] sm:$0xff]
    %v2300 = vld [vmem:[%s7 + $0x4a0] sm:$0xff]
    %v2301 = vld [vmem:[%s7 + $0x4a8] sm:$0xff]
    %v2302 = vld [vmem:[%s7 + $0x4b0] sm:$0xff]
    %v2303 = vld [vmem:[%s7 + $0x4b8] sm:$0xff]
    %v2304 = vld [vmem:[%s7 + $0x4c0] sm:$0xff]
    %v2305 = vld [vmem:[%s7 + $0x4c8] sm:$0xff]
    %v2306 = vld [vmem:[%s7 + $0x4d0] sm:$0xff]
    %v2307 = vld [vmem:[%s7 + $0x4d8] sm:$0xff]
    %v2308 = vld [vmem:[%s7 + $0x4e0] sm:$0xff]
    %v2309 = vld [vmem:[%s7 + $0x4e8] sm:$0xff]
    %v2310 = vld [vmem:[%s7 + $0x4f0] sm:$0xff]
    %v2311 = vld [vmem:[%s7 + $0x4f8] sm:$0xff]
    %v2312 = vld [vmem:[%s7 + $0x500] sm:$0xff]
    %v2313 = vld [vmem:[%s7 + $0x508] sm:$0xff]
    %v2314 = vld [vmem:[%s7 + $0x510] sm:$0xff]
    %v2315 = vld [vmem:[%s7 + $0x518] sm:$0xff]
    %v2316 = vld [vmem:[%s7 + $0x520] sm:$0xff]
    %v2317 = vld [vmem:[%s7 + $0x528] sm:$0xff]
    %v2318 = vld [vmem:[%s7 + $0x530] sm:$0xff]
    %v2319 = vld [vmem:[%s7 + $0x538] sm:$0xff]
    %v2320 = vld [vmem:[%s7 + $0x540] sm:$0xff]
    %v2321 = vld [vmem:[%s7 + $0x548] sm:$0xff]
    %v2322 = vld [vmem:[%s7 + $0x550] sm:$0xff]
    %v2323 = vld [vmem:[%s7 + $0x558] sm:$0xff]
    %v2324 = vld [vmem:[%s7 + $0x560] sm:$0xff]
    %v2325 = vld [vmem:[%s7 + $0x568] sm:$0xff]
    %v2326 = vld [vmem:[%s7 + $0x570] sm:$0xff]
    %v2327 = vld [vmem:[%s7 + $0x578] sm:$0xff]
    %v2328 = vld [vmem:[%s7 + $0x580] sm:$0xff]
    %v2329 = vld [vmem:[%s7 + $0x588] sm:$0xff]
    %v2330 = vld [vmem:[%s7 + $0x590] sm:$0xff]
    %v2331 = vld [vmem:[%s7 + $0x598] sm:$0xff]
    %v2332 = vld [vmem:[%s7 + $0x5a0] sm:$0xff]
    %v2333 = vld [vmem:[%s7 + $0x5a8] sm:$0xff]
    %v2334 = vld [vmem:[%s7 + $0x5b0] sm:$0xff]
    %v2335 = vld [vmem:[%s7 + $0x5b8] sm:$0xff]
    %v2336 = vld [vmem:[%s7 + $0x5c0] sm:$0xff]
    %v2337 = vld [vmem:[%s7 + $0x5c8] sm:$0xff]
    %v2338 = vld [vmem:[%s7 + $0x5d0] sm:$0xff]
    %v2339 = vld [vmem:[%s7 + $0x5d8] sm:$0xff]
    %v2340 = vld [vmem:[%s7 + $0x5e0] sm:$0xff]
    %v2341 = vld [vmem:[%s7 + $0x5e8] sm:$0xff]
    %v2342 = vld [vmem:[%s7 + $0x5f0] sm:$0xff]
    %v2343 = vld [vmem:[%s7 + $0x5f8] sm:$0xff]
    %v2344 = vld [vmem:[%s7 + $0x600] sm:$0xff]
    %v2345 = vld [vmem:[%s7 + $0x608] sm:$0xff]
    %v2346 = vld [vmem:[%s7 + $0x610] sm:$0xff]
    %v2347 = vld [vmem:[%s7 + $0x618] sm:$0xff]
    %v2348 = vld [vmem:[%s7 + $0x620] sm:$0xff]
    %v2349 = vld [vmem:[%s7 + $0x628] sm:$0xff]
    %v2350 = vld [vmem:[%s7 + $0x630] sm:$0xff]
    %v2351 = vld [vmem:[%s7 + $0x638] sm:$0xff]
    %v2352 = vld [vmem:[%s7 + $0x640] sm:$0xff]
    %v2353 = vld [vmem:[%s7 + $0x648] sm:$0xff]
    %v2354 = vld [vmem:[%s7 + $0x650] sm:$0xff]
    %v2355 = vld [vmem:[%s7 + $0x658] sm:$0xff]
    %v2356 = vld [vmem:[%s7 + $0x660] sm:$0xff]
    %v2357 = vld [vmem:[%s7 + $0x668] sm:$0xff]
    %v2358 = vld [vmem:[%s7 + $0x670] sm:$0xff]
    %v2359 = vld [vmem:[%s7 + $0x678] sm:$0xff]
    %v2360 = vld [vmem:[%s7 + $0x680] sm:$0xff]
    %v2361 = vld [vmem:[%s7 + $0x688] sm:$0xff]
    %v2362 = vld [vmem:[%s7 + $0x690] sm:$0xff]
    %v2363 = vld [vmem:[%s7 + $0x698] sm:$0xff]
    %v2364 = vld [vmem:[%s7 + $0x6a0] sm:$0xff]
    %v2365 = vld [vmem:[%s7 + $0x6a8] sm:$0xff]
    %v2366 = vld [vmem:[%s7 + $0x6b0] sm:$0xff]
    %v2367 = vld [vmem:[%s7 + $0x6b8] sm:$0xff]
    %v2368 = vld [vmem:[%s7 + $0x6c0] sm:$0xff]
    %v2369 = vld [vmem:[%s7 + $0x6c8] sm:$0xff]
    %v2370 = vld [vmem:[%s7 + $0x6d0] sm:$0xff]
    %v2371 = vld [vmem:[%s7 + $0x6d8] sm:$0xff]
    %v2372 = vld [vmem:[%s7 + $0x6e0] sm:$0xff]
    %v2373 = vld [vmem:[%s7 + $0x6e8] sm:$0xff]
    %v2374 = vld [vmem:[%s7 + $0x6f0] sm:$0xff]
    %v2375 = vld [vmem:[%s7 + $0x6f8] sm:$0xff]
    %v2376 = vld [vmem:[%s7 + $0x700] sm:$0xff]
    %v2377 = vld [vmem:[%s7 + $0x708] sm:$0xff]
    %v2378 = vld [vmem:[%s7 + $0x710] sm:$0xff]
    %v2379 = vld [vmem:[%s7 + $0x718] sm:$0xff]
    %v2380 = vld [vmem:[%s7 + $0x720] sm:$0xff]
    %v2381 = vld [vmem:[%s7 + $0x728] sm:$0xff]
    %v2382 = vld [vmem:[%s7 + $0x730] sm:$0xff]
    %v2383 = vld [vmem:[%s7 + $0x738] sm:$0xff]
    %v2384 = vld [vmem:[%s7 + $0x740] sm:$0xff]
    %v2385 = vld [vmem:[%s7 + $0x748] sm:$0xff]
    %v2386 = vld [vmem:[%s7 + $0x750] sm:$0xff]
    %v2387 = vld [vmem:[%s7 + $0x758] sm:$0xff]
    %v2388 = vld [vmem:[%s7 + $0x760] sm:$0xff]
    %v2389 = vld [vmem:[%s7 + $0x768] sm:$0xff]
    %v2390 = vld [vmem:[%s7 + $0x770] sm:$0xff]
    %v2391 = vld [vmem:[%s7 + $0x778] sm:$0xff]
    %v2392 = vld [vmem:[%s7 + $0x780] sm:$0xff]
    %v2393 = vld [vmem:[%s7 + $0x788] sm:$0xff]
    %v2394 = vld [vmem:[%s7 + $0x790] sm:$0xff]
    %v2395 = vld [vmem:[%s7 + $0x798] sm:$0xff]
    %v2396 = vld [vmem:[%s7 + $0x7a0] sm:$0xff]
    %v2397 = vld [vmem:[%s7 + $0x7a8] sm:$0xff]
    %v2398 = vld [vmem:[%s7 + $0x7b0] sm:$0xff]
    %v2399 = vld [vmem:[%s7 + $0x7b8] sm:$0xff]
    %v2400 = vld [vmem:[%s7 + $0x7c0] sm:$0xff]
    %v2401 = vld [vmem:[%s7 + $0x7c8] sm:$0xff]
    %v2402 = vld [vmem:[%s7 + $0x7d0] sm:$0xff]
    %v2403 = vld [vmem:[%s7 + $0x7d8] sm:$0xff]
    %v2404 = vld [vmem:[%s7 + $0x7e0] sm:$0xff]
    %v2405 = vld [vmem:[%s7 + $0x7e8] sm:$0xff]
    %v2406 = vld [vmem:[%s7 + $0x7f0] sm:$0xff]
    %v2407 = vld [vmem:[%s7 + $0x7f8] sm:$0xff]
    %v2408 = vld [vmem:[%s7 + $0x800] sm:$0xff]
    %v2409 = vld [vmem:[%s7 + $0x808] sm:$0xff]
    %v2410 = vld [vmem:[%s7 + $0x810] sm:$0xff]
    %v2411 = vld [vmem:[%s7 + $0x818] sm:$0xff]
    %v2412 = vld [vmem:[%s7 + $0x820] sm:$0xff]
    %v2413 = vld [vmem:[%s7 + $0x828] sm:$0xff]
    %v2414 = vld [vmem:[%s7 + $0x830] sm:$0xff]
    %v2415 = vld [vmem:[%s7 + $0x838] sm:$0xff]
    %v2416 = vld [vmem:[%s7 + $0x840] sm:$0xff]
    %v2417 = vld [vmem:[%s7 + $0x848] sm:$0xff]
    %v2418 = vld [vmem:[%s7 + $0x850] sm:$0xff]
    %v2419 = vld [vmem:[%s7 + $0x858] sm:$0xff]
    %v2420 = vld [vmem:[%s7 + $0x860] sm:$0xff]
    %v2421 = vld [vmem:[%s7 + $0x868] sm:$0xff]
    %v2422 = vld [vmem:[%s7 + $0x870] sm:$0xff]
    %v2423 = vld [vmem:[%s7 + $0x878] sm:$0xff]
    %v2424 = vld [vmem:[%s7 + $0x880] sm:$0xff]
    %v2425 = vld [vmem:[%s7 + $0x888] sm:$0xff]
    %v2426 = vld [vmem:[%s7 + $0x890] sm:$0xff]
    %v2427 = vld [vmem:[%s7 + $0x898] sm:$0xff]
    %v2428 = vld [vmem:[%s7 + $0x8a0] sm:$0xff]
    %v2429 = vld [vmem:[%s7 + $0x8a8] sm:$0xff]
    %v2430 = vld [vmem:[%s7 + $0x8b0] sm:$0xff]
    %v2431 = vld [vmem:[%s7 + $0x8b8] sm:$0xff]
    %v2432 = vld [vmem:[%s7 + $0x8c0] sm:$0xff]
    %v2433 = vld [vmem:[%s7 + $0x8c8] sm:$0xff]
    %v2434 = vld [vmem:[%s7 + $0x8d0] sm:$0xff]
    %v2435 = vld [vmem:[%s7 + $0x8d8] sm:$0xff]
    %v2436 = vld [vmem:[%s7 + $0x8e0] sm:$0xff]
    %v2437 = vld [vmem:[%s7 + $0x8e8] sm:$0xff]
    %v2438 = vld [vmem:[%s7 + $0x8f0] sm:$0xff]
    %v2439 = vld [vmem:[%s7 + $0x8f8] sm:$0xff]
    %v2440 = vld [vmem:[%s7 + $0x900] sm:$0xff]
    %v2441 = vld [vmem:[%s7 + $0x908] sm:$0xff]
    %v2442 = vld [vmem:[%s7 + $0x910] sm:$0xff]
    %v2443 = vld [vmem:[%s7 + $0x918] sm:$0xff]
    %v2444 = vld [vmem:[%s7 + $0x920] sm:$0xff]
    %v2445 = vld [vmem:[%s7 + $0x928] sm:$0xff]
    %v2446 = vld [vmem:[%s7 + $0x930] sm:$0xff]
    %v2447 = vld [vmem:[%s7 + $0x938] sm:$0xff]
    %v2448 = vld [vmem:[%s7 + $0x940] sm:$0xff]
    %v2449 = vld [vmem:[%s7 + $0x948] sm:$0xff]
    %v2450 = vld [vmem:[%s7 + $0x950] sm:$0xff]
    %v2451 = vld [vmem:[%s7 + $0x958] sm:$0xff]
    %v2452 = vld [vmem:[%s7 + $0x960] sm:$0xff]
    %v2453 = vld [vmem:[%s7 + $0x968] sm:$0xff]
    %v2454 = vld [vmem:[%s7 + $0x970] sm:$0xff]
    %v2455 = vld [vmem:[%s7 + $0x978] sm:$0xff]
    %v2456 = vld [vmem:[%s7 + $0x980] sm:$0xff]
    %v2457 = vld [vmem:[%s7 + $0x988] sm:$0xff]
    %v2458 = vld [vmem:[%s7 + $0x990] sm:$0xff]
    %v2459 = vld [vmem:[%s7 + $0x998] sm:$0xff]
    %v2460 = vld [vmem:[%s7 + $0x9a0] sm:$0xff]
    %v2461 = vld [vmem:[%s7 + $0x9a8] sm:$0xff]
    %v2462 = vld [vmem:[%s7 + $0x9b0] sm:$0xff]
    %v2463 = vld [vmem:[%s7 + $0x9b8] sm:$0xff]
    %v2464 = vld [vmem:[%s7 + $0x9c0] sm:$0xff]
    %v2465 = vld [vmem:[%s7 + $0x9c8] sm:$0xff]
    %v2466 = vld [vmem:[%s7 + $0x9d0] sm:$0xff]
    %v2467 = vld [vmem:[%s7 + $0x9d8] sm:$0xff]
    %v2468 = vld [vmem:[%s7 + $0x9e0] sm:$0xff]
    %v2469 = vld [vmem:[%s7 + $0x9e8] sm:$0xff]
    %v2470 = vld [vmem:[%s7 + $0x9f0] sm:$0xff]
    %v2471 = vld [vmem:[%s7 + $0x9f8] sm:$0xff]
    %v2472 = vld [vmem:[%s7 + $0xa00] sm:$0xff]
    %v2473 = vld [vmem:[%s7 + $0xa08] sm:$0xff]
    %v2474 = vld [vmem:[%s7 + $0xa10] sm:$0xff]
    %v2475 = vld [vmem:[%s7 + $0xa18] sm:$0xff]
    %v2476 = vld [vmem:[%s7 + $0xa20] sm:$0xff]
    %v2477 = vld [vmem:[%s7 + $0xa28] sm:$0xff]
    %v2478 = vld [vmem:[%s7 + $0xa30] sm:$0xff]
    %v2479 = vld [vmem:[%s7 + $0xa38] sm:$0xff]
    %v2480 = vld [vmem:[%s7 + $0xa40] sm:$0xff]
    %v2481 = vld [vmem:[%s7 + $0xa48] sm:$0xff]
    %v2482 = vld [vmem:[%s7 + $0xa50] sm:$0xff]
    %v2483 = vld [vmem:[%s7 + $0xa58] sm:$0xff]
    %v2484 = vld [vmem:[%s7 + $0xa60] sm:$0xff]
    %v2485 = vld [vmem:[%s7 + $0xa68] sm:$0xff]
    %v2486 = vld [vmem:[%s7 + $0xa70] sm:$0xff]
    %v2487 = vld [vmem:[%s7 + $0xa78] sm:$0xff]
    %v2488 = vld [vmem:[%s7 + $0xa80] sm:$0xff]
    %v2489 = vld [vmem:[%s7 + $0xa88] sm:$0xff]
    %v2490 = vld [vmem:[%s7 + $0xa90] sm:$0xff]
    %v2491 = vld [vmem:[%s7 + $0xa98] sm:$0xff]
    %v2492 = vld [vmem:[%s7 + $0xaa0] sm:$0xff]
    %v2493 = vld [vmem:[%s7 + $0xaa8] sm:$0xff]
    %v2494 = vld [vmem:[%s7 + $0xab0] sm:$0xff]
    %v2495 = vld [vmem:[%s7 + $0xab8] sm:$0xff]
    %v2496 = vld [vmem:[%s7 + $0xac0] sm:$0xff]
    %v2497 = vld [vmem:[%s7 + $0xac8] sm:$0xff]
    %v2498 = vld [vmem:[%s7 + $0xad0] sm:$0xff]
    %v2499 = vld [vmem:[%s7 + $0xad8] sm:$0xff]
    %v2500 = vld [vmem:[%s7 + $0xae0] sm:$0xff]
    %v2501 = vld [vmem:[%s7 + $0xae8] sm:$0xff]
    %v2502 = vld [vmem:[%s7 + $0xaf0] sm:$0xff]
    %v2503 = vld [vmem:[%s7 + $0xaf8] sm:$0xff]
    %v2504 = vld [vmem:[%s7 + $0xb00] sm:$0xff]
    %v2505 = vld [vmem:[%s7 + $0xb08] sm:$0xff]
    %v2506 = vld [vmem:[%s7 + $0xb10] sm:$0xff]
    %v2507 = vld [vmem:[%s7 + $0xb18] sm:$0xff]
    %v2508 = vld [vmem:[%s7 + $0xb20] sm:$0xff]
    %v2509 = vld [vmem:[%s7 + $0xb28] sm:$0xff]
    %v2510 = vld [vmem:[%s7 + $0xb30] sm:$0xff]
    %v2511 = vld [vmem:[%s7 + $0xb38] sm:$0xff]
    %v2512 = vld [vmem:[%s7 + $0xb40] sm:$0xff]
    %v2513 = vld [vmem:[%s7 + $0xb48] sm:$0xff]
    %v2514 = vld [vmem:[%s7 + $0xb50] sm:$0xff]
    %v2515 = vld [vmem:[%s7 + $0xb58] sm:$0xff]
    %v2516 = vld [vmem:[%s7 + $0xb60] sm:$0xff]
    %v2517 = vld [vmem:[%s7 + $0xb68] sm:$0xff]
    %v2518 = vld [vmem:[%s7 + $0xb70] sm:$0xff]
    %v2519 = vld [vmem:[%s7 + $0xb78] sm:$0xff]
    %v2520 = vld [vmem:[%s7 + $0xb80] sm:$0xff]
    %v2521 = vld [vmem:[%s7 + $0xb88] sm:$0xff]
    %v2522 = vld [vmem:[%s7 + $0xb90] sm:$0xff]
    %v2523 = vld [vmem:[%s7 + $0xb98] sm:$0xff]
    %v2524 = vld [vmem:[%s7 + $0xba0] sm:$0xff]
    %v2525 = vld [vmem:[%s7 + $0xba8] sm:$0xff]
    %v2526 = vld [vmem:[%s7 + $0xbb0] sm:$0xff]
    %v2527 = vld [vmem:[%s7 + $0xbb8] sm:$0xff]
    %v2528 = vld [vmem:[%s7 + $0xbc0] sm:$0xff]
    %v2529 = vld [vmem:[%s7 + $0xbc8] sm:$0xff]
    %v2530 = vld [vmem:[%s7 + $0xbd0] sm:$0xff]
    %v2531 = vld [vmem:[%s7 + $0xbd8] sm:$0xff]
    %v2532 = vld [vmem:[%s7 + $0xbe0] sm:$0xff]
    %v2533 = vld [vmem:[%s7 + $0xbe8] sm:$0xff]
    %v2534 = vld [vmem:[%s7 + $0xbf0] sm:$0xff]
    %v2535 = vld [vmem:[%s7 + $0xbf8] sm:$0xff]
    %v2536 = vld [vmem:[%s7 + $0xc00] sm:$0xff]
    %v2537 = vld [vmem:[%s7 + $0xc08] sm:$0xff]
    %v2538 = vld [vmem:[%s7 + $0xc10] sm:$0xff]
    %v2539 = vld [vmem:[%s7 + $0xc18] sm:$0xff]
    %v2540 = vld [vmem:[%s7 + $0xc20] sm:$0xff]
    %v2541 = vld [vmem:[%s7 + $0xc28] sm:$0xff]
    %v2542 = vld [vmem:[%s7 + $0xc30] sm:$0xff]
    %v2543 = vld [vmem:[%s7 + $0xc38] sm:$0xff]
    %v2544 = vld [vmem:[%s7 + $0xc40] sm:$0xff]
    %v2545 = vld [vmem:[%s7 + $0xc48] sm:$0xff]
    %v2546 = vld [vmem:[%s7 + $0xc50] sm:$0xff]
    %v2547 = vld [vmem:[%s7 + $0xc58] sm:$0xff]
    %v2548 = vld [vmem:[%s7 + $0xc60] sm:$0xff]
    %v2549 = vld [vmem:[%s7 + $0xc68] sm:$0xff]
    %v2550 = vld [vmem:[%s7 + $0xc70] sm:$0xff]
    %v2551 = vld [vmem:[%s7 + $0xc78] sm:$0xff]
    %v2552 = vld [vmem:[%s7 + $0xc80] sm:$0xff]
    %v2553 = vld [vmem:[%s7 + $0xc88] sm:$0xff]
    %v2554 = vld [vmem:[%s7 + $0xc90] sm:$0xff]
    %v2555 = vld [vmem:[%s7 + $0xc98] sm:$0xff]
    %v2556 = vld [vmem:[%s7 + $0xca0] sm:$0xff]
    %v2557 = vld [vmem:[%s7 + $0xca8] sm:$0xff]
    %v2558 = vld [vmem:[%s7 + $0xcb0] sm:$0xff]
    %v2559 = vld [vmem:[%s7 + $0xcb8] sm:$0xff]
    %v2560 = vld [vmem:[%s7 + $0xcc0] sm:$0xff]
    %v2561 = vld [vmem:[%s7 + $0xcc8] sm:$0xff]
    %v2562 = vld [vmem:[%s7 + $0xcd0] sm:$0xff]
    %v2563 = vld [vmem:[%s7 + $0xcd8] sm:$0xff]
    %v2564 = vld [vmem:[%s7 + $0xce0] sm:$0xff]
    %v2565 = vld [vmem:[%s7 + $0xce8] sm:$0xff]
    %v2566 = vld [vmem:[%s7 + $0xcf0] sm:$0xff]
    %v2567 = vld [vmem:[%s7 + $0xcf8] sm:$0xff]
    %v2568 = vld [vmem:[%s7 + $0xd00] sm:$0xff]
    %v2569 = vld [vmem:[%s7 + $0xd08] sm:$0xff]
    %v2570 = vld [vmem:[%s7 + $0xd10] sm:$0xff]
    %v2571 = vld [vmem:[%s7 + $0xd18] sm:$0xff]
    %v2572 = vld [vmem:[%s7 + $0xd20] sm:$0xff]
    %v2573 = vld [vmem:[%s7 + $0xd28] sm:$0xff]
    %v2574 = vld [vmem:[%s7 + $0xd30] sm:$0xff]
    %v2575 = vld [vmem:[%s7 + $0xd38] sm:$0xff]
    %v2576 = vld [vmem:[%s7 + $0xd40] sm:$0xff]
    %v2577 = vld [vmem:[%s7 + $0xd48] sm:$0xff]
    %v2578 = vld [vmem:[%s7 + $0xd50] sm:$0xff]
    %v2579 = vld [vmem:[%s7 + $0xd58] sm:$0xff]
    %v2580 = vld [vmem:[%s7 + $0xd60] sm:$0xff]
    %v2581 = vld [vmem:[%s7 + $0xd68] sm:$0xff]
    %v2582 = vld [vmem:[%s7 + $0xd70] sm:$0xff]
    %v2583 = vld [vmem:[%s7 + $0xd78] sm:$0xff]
    %v2584 = vld [vmem:[%s7 + $0xd80] sm:$0xff]
    %v2585 = vld [vmem:[%s7 + $0xd88] sm:$0xff]
    %v2586 = vld [vmem:[%s7 + $0xd90] sm:$0xff]
    %v2587 = vld [vmem:[%s7 + $0xd98] sm:$0xff]
    %v2588 = vld [vmem:[%s7 + $0xda0] sm:$0xff]
    %v2589 = vld [vmem:[%s7 + $0xda8] sm:$0xff]
    %v2590 = vld [vmem:[%s7 + $0xdb0] sm:$0xff]
    %v2591 = vld [vmem:[%s7 + $0xdb8] sm:$0xff]
    %v2592 = vld [vmem:[%s7 + $0xdc0] sm:$0xff]
    %v2593 = vld [vmem:[%s7 + $0xdc8] sm:$0xff]
    %v2594 = vld [vmem:[%s7 + $0xdd0] sm:$0xff]
    %v2595 = vld [vmem:[%s7 + $0xdd8] sm:$0xff]
    %v2596 = vld [vmem:[%s7 + $0xde0] sm:$0xff]
    %v2597 = vld [vmem:[%s7 + $0xde8] sm:$0xff]
    %v2598 = vld [vmem:[%s7 + $0xdf0] sm:$0xff]
    %v2599 = vld [vmem:[%s7 + $0xdf8] sm:$0xff]
    %v2600 = vld [vmem:[%s7 + $0xe00] sm:$0xff]
    %v2601 = vld [vmem:[%s7 + $0xe08] sm:$0xff]
    %v2602 = vld [vmem:[%s7 + $0xe10] sm:$0xff]
    %v2603 = vld [vmem:[%s7 + $0xe18] sm:$0xff]
    %v2604 = vld [vmem:[%s7 + $0xe20] sm:$0xff]
    %v2605 = vld [vmem:[%s7 + $0xe28] sm:$0xff]
    %v2606 = vld [vmem:[%s7 + $0xe30] sm:$0xff]
    %v2607 = vld [vmem:[%s7 + $0xe38] sm:$0xff]
    %v2608 = vld [vmem:[%s7 + $0xe40] sm:$0xff]
    %v2609 = vld [vmem:[%s7 + $0xe48] sm:$0xff]
    %v2610 = vld [vmem:[%s7 + $0xe50] sm:$0xff]
    %v2611 = vld [vmem:[%s7 + $0xe58] sm:$0xff]
    %v2612 = vld [vmem:[%s7 + $0xe60] sm:$0xff]
    %v2613 = vld [vmem:[%s7 + $0xe68] sm:$0xff]
    %v2614 = vld [vmem:[%s7 + $0xe70] sm:$0xff]
    %v2615 = vld [vmem:[%s7 + $0xe78] sm:$0xff]
    %v2616 = vld [vmem:[%s7 + $0xe80] sm:$0xff]
    %v2617 = vld [vmem:[%s7 + $0xe88] sm:$0xff]
    %v2618 = vld [vmem:[%s7 + $0xe90] sm:$0xff]
    %v2619 = vld [vmem:[%s7 + $0xe98] sm:$0xff]
    %v2620 = vld [vmem:[%s7 + $0xea0] sm:$0xff]
    %v2621 = vld [vmem:[%s7 + $0xea8] sm:$0xff]
    %v2622 = vld [vmem:[%s7 + $0xeb0] sm:$0xff]
    %v2623 = vld [vmem:[%s7 + $0xeb8] sm:$0xff]
    %v2624 = vld [vmem:[%s7 + $0xec0] sm:$0xff]
    %v2625 = vld [vmem:[%s7 + $0xec8] sm:$0xff]
    %v2626 = vld [vmem:[%s7 + $0xed0] sm:$0xff]
    %v2627 = vld [vmem:[%s7 + $0xed8] sm:$0xff]
    %v2628 = vld [vmem:[%s7 + $0xee0] sm:$0xff]
    %v2629 = vld [vmem:[%s7 + $0xee8] sm:$0xff]
    %v2630 = vld [vmem:[%s7 + $0xef0] sm:$0xff]
    %v2631 = vld [vmem:[%s7 + $0xef8] sm:$0xff]
    %v2632 = vld [vmem:[%s7 + $0xf00] sm:$0xff]
    %v2633 = vld [vmem:[%s7 + $0xf08] sm:$0xff]
    %v2634 = vld [vmem:[%s7 + $0xf10] sm:$0xff]
    %v2635 = vld [vmem:[%s7 + $0xf18] sm:$0xff]
    %v2636 = vld [vmem:[%s7 + $0xf20] sm:$0xff]
    %v2637 = vld [vmem:[%s7 + $0xf28] sm:$0xff]
    %v2638 = vld [vmem:[%s7 + $0xf30] sm:$0xff]
    %v2639 = vld [vmem:[%s7 + $0xf38] sm:$0xff]
    %v2640 = vld [vmem:[%s7 + $0xf40] sm:$0xff]
    %v2641 = vld [vmem:[%s7 + $0xf48] sm:$0xff]
    %v2642 = vld [vmem:[%s7 + $0xf50] sm:$0xff]
    %v2643 = vld [vmem:[%s7 + $0xf58] sm:$0xff]
    %v2644 = vld [vmem:[%s7 + $0xf60] sm:$0xff]
    %v2645 = vld [vmem:[%s7 + $0xf68] sm:$0xff]
    %v2646 = vld [vmem:[%s7 + $0xf70] sm:$0xff]
    %v2647 = vld [vmem:[%s7 + $0xf78] sm:$0xff]
    %v2648 = vld [vmem:[%s7 + $0xf80] sm:$0xff]
    %v2649 = vld [vmem:[%s7 + $0xf88] sm:$0xff]
    %v2650 = vld [vmem:[%s7 + $0xf90] sm:$0xff]
    %v2651 = vld [vmem:[%s7 + $0xf98] sm:$0xff]
    %v2652 = vld [vmem:[%s7 + $0xfa0] sm:$0xff]
    %v2653 = vld [vmem:[%s7 + $0xfa8] sm:$0xff]
    %v2654 = vld [vmem:[%s7 + $0xfb0] sm:$0xff]
    %v2655 = vld [vmem:[%s7 + $0xfb8] sm:$0xff]
    %v2656 = vld [vmem:[%s7 + $0xfc0] sm:$0xff]
    %v2657 = vld [vmem:[%s7 + $0xfc8] sm:$0xff]
    %v2658 = vld [vmem:[%s7 + $0xfd0] sm:$0xff]
    %v2659 = vld [vmem:[%s7 + $0xfd8] sm:$0xff]
    %v2660 = vld [vmem:[%s7 + $0xfe0] sm:$0xff]
    %v2661 = vld [vmem:[%s7 + $0xfe8] sm:$0xff]
    %v2662 = vld [vmem:[%s7 + $0xff0] sm:$0xff]
    %v2663 = vld [vmem:[%s7 + $0xff8] sm:$0xff]
    %v2664 = vld [vmem:[%s8] sm:$0xff]
    %v2666 = vlaneseq
    %v2667 = vshrl.u32 %v2666, 7
    %v2668 = vsub.s32 0, %v2667
    %v2669 = vrot.slane %v2664, %v2668
    %v2670 = vlaneseq
    %v2671 = vshrl.u32 %v2670, 7
    %v2672 = vsub.s32 1, %v2671
    %v2673 = vrot.slane %v2664, %v2672
    %v2674 = vlaneseq
    %v2675 = vshrl.u32 %v2674, 7
    %v2676 = vsub.s32 2, %v2675
    %v2677 = vrot.slane %v2664, %v2676
    %v2678 = vlaneseq
    %v2679 = vshrl.u32 %v2678, 7
    %v2680 = vsub.s32 3, %v2679
    %v2681 = vrot.slane %v2664, %v2680
    %v2682 = vlaneseq
    %v2683 = vshrl.u32 %v2682, 7
    %v2684 = vsub.s32 4, %v2683
    %v2685 = vrot.slane %v2664, %v2684
    %v2686 = vlaneseq
    %v2687 = vshrl.u32 %v2686, 7
    %v2688 = vsub.s32 5, %v2687
    %v2689 = vrot.slane %v2664, %v2688
    %v2690 = vlaneseq
    %v2691 = vshrl.u32 %v2690, 7
    %v2692 = vsub.s32 6, %v2691
    %v2693 = vrot.slane %v2664, %v2692
    %v2694 = vlaneseq
    %v2695 = vshrl.u32 %v2694, 7
    %v2696 = vsub.s32 7, %v2695
    %v2697 = vrot.slane %v2664, %v2696
    %2706 = vmatprep.subr.mxu0 %v2273
    %2707 = vmatpush1.msra.mxu0 %v2272
    %2708 = vmatprep.subr.mxu0 %v2265
    %2709 = vmatpush1.msra.mxu0 %v2264
    %2710 = vmatprep.subr.mxu0 %v2257
    %2711 = vmatpush1.msra.mxu0 %v2256
    %2712 = vmatprep.subr.mxu0 %v2249
    %2713 = vmatpush1.msra.mxu0 %v2248
    %2714 = vmatprep.subr.mxu0 %v2241
    %2715 = vmatpush1.msra.mxu0 %v2240
    %2716 = vmatprep.subr.mxu0 %v2233
    %2717 = vmatpush1.msra.mxu0 %v2232
    %2718 = vmatprep.subr.mxu0 %v2225
    %2719 = vmatpush1.msra.mxu0 %v2224
    %2720 = vmatprep.subr.mxu0 %v2217
    %2721 = vmatpush1.msra.mxu0 %v2216
    %2722 = vmatprep.subr.mxu0 %v2209
    %2723 = vmatpush1.msra.mxu0 %v2208
    %2724 = vmatprep.subr.mxu0 %v2201
    %2725 = vmatpush1.msra.mxu0 %v2200
    %2726 = vmatprep.subr.mxu0 %v2193
    %2727 = vmatpush1.msra.mxu0 %v2192
    %2728 = vmatprep.subr.mxu0 %v2185
    %2729 = vmatpush1.msra.mxu0 %v2184
    %2730 = vmatprep.subr.mxu0 %v2177
    %2731 = vmatpush1.msra.mxu0 %v2176
    %2732 = vmatprep.subr.mxu0 %v2169
    %2733 = vmatpush1.msra.mxu0 %v2168
    %2734 = vmatprep.subr.mxu0 %v2161
    %2735 = vmatpush1.msra.mxu0 %v2160
    %2736 = vmatprep.subr.mxu0 %v2153
    %2737 = vmatpush1.msra.mxu0 %v2152
    %2738 = vmatprep.subr.mxu0 %v2401
    %2739 = vmatpush2.msra.mxu0 %v2400
    %2740 = vmatprep.subr.mxu0 %v2393
    %2741 = vmatpush2.msra.mxu0 %v2392
    %2742 = vmatprep.subr.mxu0 %v2385
    %2743 = vmatpush2.msra.mxu0 %v2384
    %2744 = vmatprep.subr.mxu0 %v2377
    %2745 = vmatpush2.msra.mxu0 %v2376
    %2746 = vmatprep.subr.mxu0 %v2369
    %2747 = vmatpush2.msra.mxu0 %v2368
    %2748 = vmatprep.subr.mxu0 %v2361
    %2749 = vmatpush2.msra.mxu0 %v2360
    %2750 = vmatprep.subr.mxu0 %v2353
    %2751 = vmatpush2.msra.mxu0 %v2352
    %2752 = vmatprep.subr.mxu0 %v2345
    %2753 = vmatpush2.msra.mxu0 %v2344
    %2754 = vmatprep.subr.mxu0 %v2337
    %2755 = vmatpush2.msra.mxu0 %v2336
    %2756 = vmatprep.subr.mxu0 %v2329
    %2757 = vmatpush2.msra.mxu0 %v2328
    %2758 = vmatprep.subr.mxu0 %v2321
    %2759 = vmatpush2.msra.mxu0 %v2320
    %2760 = vmatprep.subr.mxu0 %v2313
    %2761 = vmatpush2.msra.mxu0 %v2312
    %2762 = vmatprep.subr.mxu0 %v2305
    %2763 = vmatpush2.msra.mxu0 %v2304
    %2764 = vmatprep.subr.mxu0 %v2297
    %2765 = vmatpush2.msra.mxu0 %v2296
    %2766 = vmatprep.subr.mxu0 %v2289
    %2767 = vmatpush2.msra.mxu0 %v2288
    %2768 = vmatprep.subr.mxu0 %v2281
    %2769 = vmatpush2.msra.mxu0 %v2280
    %2770 = vmatprep.mubr.f32.mxu0 %v2149
    %2771 = vmatmul.mubr.f32.gmra.mxu0 %v2148
    %v2772 = vpop.f32.mrf.mxu0
    %v2773 = vadd.f32 %v2669, %v2772
    %v2774 = vpop.f32.mrf.mxu0
    %v2775 = vadd.f32 %v2673, %v2774
    %2776 = vdwg.mxu0
    %2777 = vmatprep.subr.mxu0 %v2529
    %2778 = vmatpush1.msra.mxu0 %v2528
    %2779 = vmatprep.subr.mxu0 %v2521
    %2780 = vmatpush1.msra.mxu0 %v2520
    %2781 = vmatprep.subr.mxu0 %v2513
    %2782 = vmatpush1.msra.mxu0 %v2512
    %2783 = vmatprep.subr.mxu0 %v2505
    %2784 = vmatpush1.msra.mxu0 %v2504
    %2785 = vmatprep.subr.mxu0 %v2497
    %2786 = vmatpush1.msra.mxu0 %v2496
    %2787 = vmatprep.subr.mxu0 %v2489
    %2788 = vmatpush1.msra.mxu0 %v2488
    %2789 = vmatprep.subr.mxu0 %v2481
    %2790 = vmatpush1.msra.mxu0 %v2480
    %2791 = vmatprep.subr.mxu0 %v2473
    %2792 = vmatpush1.msra.mxu0 %v2472
    %2793 = vmatprep.subr.mxu0 %v2465
    %2794 = vmatpush1.msra.mxu0 %v2464
    %2795 = vmatprep.subr.mxu0 %v2457
    %2796 = vmatpush1.msra.mxu0 %v2456
    %2797 = vmatprep.subr.mxu0 %v2449
    %2798 = vmatpush1.msra.mxu0 %v2448
    %2799 = vmatprep.subr.mxu0 %v2441
    %2800 = vmatpush1.msra.mxu0 %v2440
    %2801 = vmatprep.subr.mxu0 %v2433
    %2802 = vmatpush1.msra.mxu0 %v2432
    %2803 = vmatprep.subr.mxu0 %v2425
    %2804 = vmatpush1.msra.mxu0 %v2424
    %2805 = vmatprep.subr.mxu0 %v2417
    %2806 = vmatpush1.msra.mxu0 %v2416
    %2807 = vmatprep.subr.mxu0 %v2409
    %2808 = vmatpush1.msra.mxu0 %v2408
    %2809 = vmatprep.subr.mxu0 %v2657
    %2810 = vmatpush2.msra.mxu0 %v2656
    %2811 = vmatprep.subr.mxu0 %v2649
    %2812 = vmatpush2.msra.mxu0 %v2648
    %2813 = vmatprep.subr.mxu0 %v2641
    %2814 = vmatpush2.msra.mxu0 %v2640
    %2815 = vmatprep.subr.mxu0 %v2633
    %2816 = vmatpush2.msra.mxu0 %v2632
    %2817 = vmatprep.subr.mxu0 %v2625
    %2818 = vmatpush2.msra.mxu0 %v2624
    %2819 = vmatprep.subr.mxu0 %v2617
    %2820 = vmatpush2.msra.mxu0 %v2616
    %2821 = vmatprep.subr.mxu0 %v2609
    %2822 = vmatpush2.msra.mxu0 %v2608
    %2823 = vmatprep.subr.mxu0 %v2601
    %2824 = vmatpush2.msra.mxu0 %v2600
    %2825 = vmatprep.subr.mxu0 %v2593
    %2826 = vmatpush2.msra.mxu0 %v2592
    %2827 = vmatprep.subr.mxu0 %v2585
    %2828 = vmatpush2.msra.mxu0 %v2584
    %2829 = vmatprep.subr.mxu0 %v2577
    %2830 = vmatpush2.msra.mxu0 %v2576
    %2831 = vmatprep.subr.mxu0 %v2569
    %2832 = vmatpush2.msra.mxu0 %v2568
    %2833 = vmatprep.subr.mxu0 %v2561
    %2834 = vmatpush2.msra.mxu0 %v2560
    %2835 = vmatprep.subr.mxu0 %v2553
    %2836 = vmatpush2.msra.mxu0 %v2552
    %2837 = vmatprep.subr.mxu0 %v2545
    %2838 = vmatpush2.msra.mxu0 %v2544
    %2839 = vmatprep.subr.mxu0 %v2537
    %2840 = vmatpush2.msra.mxu0 %v2536
    %2841 = vmatprep.mubr.f32.mxu0 %v2151
    %2842 = vmatmul.mubr.f32.gmra.mxu0 %v2150
    %v2843 = vpop.f32.mrf.mxu0
    %v2844 = vadd.f32 %v2773, %v2843
    %v2845 = vpop.f32.mrf.mxu0
    %v2846 = vadd.f32 %v2775, %v2845
    %2847 = vdwg.mxu0
    %2848 = vmatprep.subr.mxu0 %v2275
    %2849 = vmatpush1.msra.mxu0 %v2274
    %2850 = vmatprep.subr.mxu0 %v2267
    %2851 = vmatpush1.msra.mxu0 %v2266
    %2852 = vmatprep.subr.mxu0 %v2259
    %2853 = vmatpush1.msra.mxu0 %v2258
    %2854 = vmatprep.subr.mxu0 %v2251
    %2855 = vmatpush1.msra.mxu0 %v2250
    %2856 = vmatprep.subr.mxu0 %v2243
    %2857 = vmatpush1.msra.mxu0 %v2242
    %2858 = vmatprep.subr.mxu0 %v2235
    %2859 = vmatpush1.msra.mxu0 %v2234
    %2860 = vmatprep.subr.mxu0 %v2227
    %2861 = vmatpush1.msra.mxu0 %v2226
    %2862 = vmatprep.subr.mxu0 %v2219
    %2863 = vmatpush1.msra.mxu0 %v2218
    %2864 = vmatprep.subr.mxu0 %v2211
    %2865 = vmatpush1.msra.mxu0 %v2210
    %2866 = vmatprep.subr.mxu0 %v2203
    %2867 = vmatpush1.msra.mxu0 %v2202
    %2868 = vmatprep.subr.mxu0 %v2195
    %2869 = vmatpush1.msra.mxu0 %v2194
    %2870 = vmatprep.subr.mxu0 %v2187
    %2871 = vmatpush1.msra.mxu0 %v2186
    %2872 = vmatprep.subr.mxu0 %v2179
    %2873 = vmatpush1.msra.mxu0 %v2178
    %2874 = vmatprep.subr.mxu0 %v2171
    %2875 = vmatpush1.msra.mxu0 %v2170
    %2876 = vmatprep.subr.mxu0 %v2163
    %2877 = vmatpush1.msra.mxu0 %v2162
    %2878 = vmatprep.subr.mxu0 %v2155
    %2879 = vmatpush1.msra.mxu0 %v2154
    %2880 = vmatprep.subr.mxu0 %v2403
    %2881 = vmatpush2.msra.mxu0 %v2402
    %2882 = vmatprep.subr.mxu0 %v2395
    %2883 = vmatpush2.msra.mxu0 %v2394
    %2884 = vmatprep.subr.mxu0 %v2387
    %2885 = vmatpush2.msra.mxu0 %v2386
    %2886 = vmatprep.subr.mxu0 %v2379
    %2887 = vmatpush2.msra.mxu0 %v2378
    %2888 = vmatprep.subr.mxu0 %v2371
    %2889 = vmatpush2.msra.mxu0 %v2370
    %2890 = vmatprep.subr.mxu0 %v2363
    %2891 = vmatpush2.msra.mxu0 %v2362
    %2892 = vmatprep.subr.mxu0 %v2355
    %2893 = vmatpush2.msra.mxu0 %v2354
    %2894 = vmatprep.subr.mxu0 %v2347
    %2895 = vmatpush2.msra.mxu0 %v2346
    %2896 = vmatprep.subr.mxu0 %v2339
    %2897 = vmatpush2.msra.mxu0 %v2338
    %2898 = vmatprep.subr.mxu0 %v2331
    %2899 = vmatpush2.msra.mxu0 %v2330
    %2900 = vmatprep.subr.mxu0 %v2323
    %2901 = vmatpush2.msra.mxu0 %v2322
    %2902 = vmatprep.subr.mxu0 %v2315
    %2903 = vmatpush2.msra.mxu0 %v2314
    %2904 = vmatprep.subr.mxu0 %v2307
    %2905 = vmatpush2.msra.mxu0 %v2306
    %2906 = vmatprep.subr.mxu0 %v2299
    %2907 = vmatpush2.msra.mxu0 %v2298
    %2908 = vmatprep.subr.mxu0 %v2291
    %2909 = vmatpush2.msra.mxu0 %v2290
    %2910 = vmatprep.subr.mxu0 %v2283
    %2911 = vmatpush2.msra.mxu0 %v2282
    %2912 = vmatprep.mubr.f32.mxu0 %v2149
    %2913 = vmatmul.mubr.f32.gmra.mxu0 %v2148
    %v2914 = vpop.f32.mrf.mxu0
    %v2915 = vadd.f32 %v2677, %v2914
    %v2916 = vpop.f32.mrf.mxu0
    %v2917 = vadd.f32 %v2681, %v2916
    %2918 = vdwg.mxu0
    %2919 = vmatprep.subr.mxu0 %v2531
    %2920 = vmatpush1.msra.mxu0 %v2530
    %2921 = vmatprep.subr.mxu0 %v2523
    %2922 = vmatpush1.msra.mxu0 %v2522
    %2923 = vmatprep.subr.mxu0 %v2515
    %2924 = vmatpush1.msra.mxu0 %v2514
    %2925 = vmatprep.subr.mxu0 %v2507
    %2926 = vmatpush1.msra.mxu0 %v2506
    %2927 = vmatprep.subr.mxu0 %v2499
    %2928 = vmatpush1.msra.mxu0 %v2498
    %2929 = vmatprep.subr.mxu0 %v2491
    %2930 = vmatpush1.msra.mxu0 %v2490
    %2931 = vmatprep.subr.mxu0 %v2483
    %2932 = vmatpush1.msra.mxu0 %v2482
    %2933 = vmatprep.subr.mxu0 %v2475
    %2934 = vmatpush1.msra.mxu0 %v2474
    %2935 = vmatprep.subr.mxu0 %v2467
    %2936 = vmatpush1.msra.mxu0 %v2466
    %2937 = vmatprep.subr.mxu0 %v2459
    %2938 = vmatpush1.msra.mxu0 %v2458
    %2939 = vmatprep.subr.mxu0 %v2451
    %2940 = vmatpush1.msra.mxu0 %v2450
    %2941 = vmatprep.subr.mxu0 %v2443
    %2942 = vmatpush1.msra.mxu0 %v2442
    %2943 = vmatprep.subr.mxu0 %v2435
    %2944 = vmatpush1.msra.mxu0 %v2434
    %2945 = vmatprep.subr.mxu0 %v2427
    %2946 = vmatpush1.msra.mxu0 %v2426
    %2947 = vmatprep.subr.mxu0 %v2419
    %2948 = vmatpush1.msra.mxu0 %v2418
    %2949 = vmatprep.subr.mxu0 %v2411
    %2950 = vmatpush1.msra.mxu0 %v2410
    %2951 = vmatprep.subr.mxu0 %v2659
    %2952 = vmatpush2.msra.mxu0 %v2658
    %2953 = vmatprep.subr.mxu0 %v2651
    %2954 = vmatpush2.msra.mxu0 %v2650
    %2955 = vmatprep.subr.mxu0 %v2643
    %2956 = vmatpush2.msra.mxu0 %v2642
    %2957 = vmatprep.subr.mxu0 %v2635
    %2958 = vmatpush2.msra.mxu0 %v2634
    %2959 = vmatprep.subr.mxu0 %v2627
    %2960 = vmatpush2.msra.mxu0 %v2626
    %2961 = vmatprep.subr.mxu0 %v2619
    %2962 = vmatpush2.msra.mxu0 %v2618
    %2963 = vmatprep.subr.mxu0 %v2611
    %2964 = vmatpush2.msra.mxu0 %v2610
    %2965 = vmatprep.subr.mxu0 %v2603
    %2966 = vmatpush2.msra.mxu0 %v2602
    %2967 = vmatprep.subr.mxu0 %v2595
    %2968 = vmatpush2.msra.mxu0 %v2594
    %2969 = vmatprep.subr.mxu0 %v2587
    %2970 = vmatpush2.msra.mxu0 %v2586
    %2971 = vmatprep.subr.mxu0 %v2579
    %2972 = vmatpush2.msra.mxu0 %v2578
    %2973 = vmatprep.subr.mxu0 %v2571
    %2974 = vmatpush2.msra.mxu0 %v2570
    %2975 = vmatprep.subr.mxu0 %v2563
    %2976 = vmatpush2.msra.mxu0 %v2562
    %2977 = vmatprep.subr.mxu0 %v2555
    %2978 = vmatpush2.msra.mxu0 %v2554
    %2979 = vmatprep.subr.mxu0 %v2547
    %2980 = vmatpush2.msra.mxu0 %v2546
    %2981 = vmatprep.subr.mxu0 %v2539
    %2982 = vmatpush2.msra.mxu0 %v2538
    %2983 = vmatprep.mubr.f32.mxu0 %v2151
    %2984 = vmatmul.mubr.f32.gmra.mxu0 %v2150
    %v2985 = vpop.f32.mrf.mxu0
    %v2986 = vadd.f32 %v2915, %v2985
    %v2987 = vpop.f32.mrf.mxu0
    %v2988 = vadd.f32 %v2917, %v2987
    %2989 = vdwg.mxu0
    %2990 = vmatprep.subr.mxu0 %v2277
    %2991 = vmatpush1.msra.mxu0 %v2276
    %2992 = vmatprep.subr.mxu0 %v2269
    %2993 = vmatpush1.msra.mxu0 %v2268
    %2994 = vmatprep.subr.mxu0 %v2261
    %2995 = vmatpush1.msra.mxu0 %v2260
    %2996 = vmatprep.subr.mxu0 %v2253
    %2997 = vmatpush1.msra.mxu0 %v2252
    %2998 = vmatprep.subr.mxu0 %v2245
    %2999 = vmatpush1.msra.mxu0 %v2244
    %3000 = vmatprep.subr.mxu0 %v2237
    %3001 = vmatpush1.msra.mxu0 %v2236
    %3002 = vmatprep.subr.mxu0 %v2229
    %3003 = vmatpush1.msra.mxu0 %v2228
    %3004 = vmatprep.subr.mxu0 %v2221
    %3005 = vmatpush1.msra.mxu0 %v2220
    %3006 = vmatprep.subr.mxu0 %v2213
    %3007 = vmatpush1.msra.mxu0 %v2212
    %3008 = vmatprep.subr.mxu0 %v2205
    %3009 = vmatpush1.msra.mxu0 %v2204
    %3010 = vmatprep.subr.mxu0 %v2197
    %3011 = vmatpush1.msra.mxu0 %v2196
    %3012 = vmatprep.subr.mxu0 %v2189
    %3013 = vmatpush1.msra.mxu0 %v2188
    %3014 = vmatprep.subr.mxu0 %v2181
    %3015 = vmatpush1.msra.mxu0 %v2180
    %3016 = vmatprep.subr.mxu0 %v2173
    %3017 = vmatpush1.msra.mxu0 %v2172
    %3018 = vmatprep.subr.mxu0 %v2165
    %3019 = vmatpush1.msra.mxu0 %v2164
    %3020 = vmatprep.subr.mxu0 %v2157
    %3021 = vmatpush1.msra.mxu0 %v2156
    %3022 = vmatprep.subr.mxu0 %v2405
    %3023 = vmatpush2.msra.mxu0 %v2404
    %3024 = vmatprep.subr.mxu0 %v2397
    %3025 = vmatpush2.msra.mxu0 %v2396
    %3026 = vmatprep.subr.mxu0 %v2389
    %3027 = vmatpush2.msra.mxu0 %v2388
    %3028 = vmatprep.subr.mxu0 %v2381
    %3029 = vmatpush2.msra.mxu0 %v2380
    %3030 = vmatprep.subr.mxu0 %v2373
    %3031 = vmatpush2.msra.mxu0 %v2372
    %3032 = vmatprep.subr.mxu0 %v2365
    %3033 = vmatpush2.msra.mxu0 %v2364
    %3034 = vmatprep.subr.mxu0 %v2357
    %3035 = vmatpush2.msra.mxu0 %v2356
    %3036 = vmatprep.subr.mxu0 %v2349
    %3037 = vmatpush2.msra.mxu0 %v2348
    %3038 = vmatprep.subr.mxu0 %v2341
    %3039 = vmatpush2.msra.mxu0 %v2340
    %3040 = vmatprep.subr.mxu0 %v2333
    %3041 = vmatpush2.msra.mxu0 %v2332
    %3042 = vmatprep.subr.mxu0 %v2325
    %3043 = vmatpush2.msra.mxu0 %v2324
    %3044 = vmatprep.subr.mxu0 %v2317
    %3045 = vmatpush2.msra.mxu0 %v2316
    %3046 = vmatprep.subr.mxu0 %v2309
    %3047 = vmatpush2.msra.mxu0 %v2308
    %3048 = vmatprep.subr.mxu0 %v2301
    %3049 = vmatpush2.msra.mxu0 %v2300
    %3050 = vmatprep.subr.mxu0 %v2293
    %3051 = vmatpush2.msra.mxu0 %v2292
    %3052 = vmatprep.subr.mxu0 %v2285
    %3053 = vmatpush2.msra.mxu0 %v2284
    %3054 = vmatprep.mubr.f32.mxu0 %v2149
    %3055 = vmatmul.mubr.f32.gmra.mxu0 %v2148
    %v3056 = vpop.f32.mrf.mxu0
    %v3057 = vadd.f32 %v2685, %v3056
    %v3058 = vpop.f32.mrf.mxu0
    %v3059 = vadd.f32 %v2689, %v3058
    %3060 = vdwg.mxu0
    %3061 = vmatprep.subr.mxu0 %v2533
    %3062 = vmatpush1.msra.mxu0 %v2532
    %3063 = vmatprep.subr.mxu0 %v2525
    %3064 = vmatpush1.msra.mxu0 %v2524
    %3065 = vmatprep.subr.mxu0 %v2517
    %3066 = vmatpush1.msra.mxu0 %v2516
    %3067 = vmatprep.subr.mxu0 %v2509
    %3068 = vmatpush1.msra.mxu0 %v2508
    %3069 = vmatprep.subr.mxu0 %v2501
    %3070 = vmatpush1.msra.mxu0 %v2500
    %3071 = vmatprep.subr.mxu0 %v2493
    %3072 = vmatpush1.msra.mxu0 %v2492
    %3073 = vmatprep.subr.mxu0 %v2485
    %3074 = vmatpush1.msra.mxu0 %v2484
    %3075 = vmatprep.subr.mxu0 %v2477
    %3076 = vmatpush1.msra.mxu0 %v2476
    %3077 = vmatprep.subr.mxu0 %v2469
    %3078 = vmatpush1.msra.mxu0 %v2468
    %3079 = vmatprep.subr.mxu0 %v2461
    %3080 = vmatpush1.msra.mxu0 %v2460
    %3081 = vmatprep.subr.mxu0 %v2453
    %3082 = vmatpush1.msra.mxu0 %v2452
    %3083 = vmatprep.subr.mxu0 %v2445
    %3084 = vmatpush1.msra.mxu0 %v2444
    %3085 = vmatprep.subr.mxu0 %v2437
    %3086 = vmatpush1.msra.mxu0 %v2436
    %3087 = vmatprep.subr.mxu0 %v2429
    %3088 = vmatpush1.msra.mxu0 %v2428
    %3089 = vmatprep.subr.mxu0 %v2421
    %3090 = vmatpush1.msra.mxu0 %v2420
    %3091 = vmatprep.subr.mxu0 %v2413
    %3092 = vmatpush1.msra.mxu0 %v2412
    %3093 = vmatprep.subr.mxu0 %v2661
    %3094 = vmatpush2.msra.mxu0 %v2660
    %3095 = vmatprep.subr.mxu0 %v2653
    %3096 = vmatpush2.msra.mxu0 %v2652
    %3097 = vmatprep.subr.mxu0 %v2645
    %3098 = vmatpush2.msra.mxu0 %v2644
    %3099 = vmatprep.subr.mxu0 %v2637
    %3100 = vmatpush2.msra.mxu0 %v2636
    %3101 = vmatprep.subr.mxu0 %v2629
    %3102 = vmatpush2.msra.mxu0 %v2628
    %3103 = vmatprep.subr.mxu0 %v2621
    %3104 = vmatpush2.msra.mxu0 %v2620
    %3105 = vmatprep.subr.mxu0 %v2613
    %3106 = vmatpush2.msra.mxu0 %v2612
    %3107 = vmatprep.subr.mxu0 %v2605
    %3108 = vmatpush2.msra.mxu0 %v2604
    %3109 = vmatprep.subr.mxu0 %v2597
    %3110 = vmatpush2.msra.mxu0 %v2596
    %3111 = vmatprep.subr.mxu0 %v2589
    %3112 = vmatpush2.msra.mxu0 %v2588
    %3113 = vmatprep.subr.mxu0 %v2581
    %3114 = vmatpush2.msra.mxu0 %v2580
    %3115 = vmatprep.subr.mxu0 %v2573
    %3116 = vmatpush2.msra.mxu0 %v2572
    %3117 = vmatprep.subr.mxu0 %v2565
    %3118 = vmatpush2.msra.mxu0 %v2564
    %3119 = vmatprep.subr.mxu0 %v2557
    %3120 = vmatpush2.msra.mxu0 %v2556
    %3121 = vmatprep.subr.mxu0 %v2549
    %3122 = vmatpush2.msra.mxu0 %v2548
    %3123 = vmatprep.subr.mxu0 %v2541
    %3124 = vmatpush2.msra.mxu0 %v2540
    %3125 = vmatprep.mubr.f32.mxu0 %v2151
    %3126 = vmatmul.mubr.f32.gmra.mxu0 %v2150
    %v3127 = vpop.f32.mrf.mxu0
    %v3128 = vadd.f32 %v3057, %v3127
    %v3129 = vpop.f32.mrf.mxu0
    %v3130 = vadd.f32 %v3059, %v3129
    %3131 = vdwg.mxu0
    %3132 = vmatprep.subr.mxu0 %v2279
    %3133 = vmatpush1.msra.mxu0 %v2278
    %3134 = vmatprep.subr.mxu0 %v2271
    %3135 = vmatpush1.msra.mxu0 %v2270
    %3136 = vmatprep.subr.mxu0 %v2263
    %3137 = vmatpush1.msra.mxu0 %v2262
    %3138 = vmatprep.subr.mxu0 %v2255
    %3139 = vmatpush1.msra.mxu0 %v2254
    %3140 = vmatprep.subr.mxu0 %v2247
    %3141 = vmatpush1.msra.mxu0 %v2246
    %3142 = vmatprep.subr.mxu0 %v2239
    %3143 = vmatpush1.msra.mxu0 %v2238
    %3144 = vmatprep.subr.mxu0 %v2231
    %3145 = vmatpush1.msra.mxu0 %v2230
    %3146 = vmatprep.subr.mxu0 %v2223
    %3147 = vmatpush1.msra.mxu0 %v2222
    %3148 = vmatprep.subr.mxu0 %v2215
    %3149 = vmatpush1.msra.mxu0 %v2214
    %3150 = vmatprep.subr.mxu0 %v2207
    %3151 = vmatpush1.msra.mxu0 %v2206
    %3152 = vmatprep.subr.mxu0 %v2199
    %3153 = vmatpush1.msra.mxu0 %v2198
    %3154 = vmatprep.subr.mxu0 %v2191
    %3155 = vmatpush1.msra.mxu0 %v2190
    %3156 = vmatprep.subr.mxu0 %v2183
    %3157 = vmatpush1.msra.mxu0 %v2182
    %3158 = vmatprep.subr.mxu0 %v2175
    %3159 = vmatpush1.msra.mxu0 %v2174
    %3160 = vmatprep.subr.mxu0 %v2167
    %3161 = vmatpush1.msra.mxu0 %v2166
    %3162 = vmatprep.subr.mxu0 %v2159
    %3163 = vmatpush1.msra.mxu0 %v2158
    %3164 = vmatprep.subr.mxu0 %v2407
    %3165 = vmatpush2.msra.mxu0 %v2406
    %3166 = vmatprep.subr.mxu0 %v2399
    %3167 = vmatpush2.msra.mxu0 %v2398
    %3168 = vmatprep.subr.mxu0 %v2391
    %3169 = vmatpush2.msra.mxu0 %v2390
    %3170 = vmatprep.subr.mxu0 %v2383
    %3171 = vmatpush2.msra.mxu0 %v2382
    %3172 = vmatprep.subr.mxu0 %v2375
    %3173 = vmatpush2.msra.mxu0 %v2374
    %3174 = vmatprep.subr.mxu0 %v2367
    %3175 = vmatpush2.msra.mxu0 %v2366
    %3176 = vmatprep.subr.mxu0 %v2359
    %3177 = vmatpush2.msra.mxu0 %v2358
    %3178 = vmatprep.subr.mxu0 %v2351
    %3179 = vmatpush2.msra.mxu0 %v2350
    %3180 = vmatprep.subr.mxu0 %v2343
    %3181 = vmatpush2.msra.mxu0 %v2342
    %3182 = vmatprep.subr.mxu0 %v2335
    %3183 = vmatpush2.msra.mxu0 %v2334
    %3184 = vmatprep.subr.mxu0 %v2327
    %3185 = vmatpush2.msra.mxu0 %v2326
    %3186 = vmatprep.subr.mxu0 %v2319
    %3187 = vmatpush2.msra.mxu0 %v2318
    %3188 = vmatprep.subr.mxu0 %v2311
    %3189 = vmatpush2.msra.mxu0 %v2310
    %3190 = vmatprep.subr.mxu0 %v2303
    %3191 = vmatpush2.msra.mxu0 %v2302
    %3192 = vmatprep.subr.mxu0 %v2295
    %3193 = vmatpush2.msra.mxu0 %v2294
    %3194 = vmatprep.subr.mxu0 %v2287
    %3195 = vmatpush2.msra.mxu0 %v2286
    %3196 = vmatprep.mubr.f32.mxu0 %v2149
    %3197 = vmatmul.mubr.f32.gmra.mxu0 %v2148
    %v3198 = vpop.f32.mrf.mxu0
    %v3199 = vadd.f32 %v2693, %v3198
    %v3200 = vpop.f32.mrf.mxu0
    %v3201 = vadd.f32 %v2697, %v3200
    %3202 = vdwg.mxu0
    %3203 = vmatprep.subr.mxu0 %v2535
    %3204 = vmatpush1.msra.mxu0 %v2534
    %3205 = vmatprep.subr.mxu0 %v2527
    %3206 = vmatpush1.msra.mxu0 %v2526
    %3207 = vmatprep.subr.mxu0 %v2519
    %3208 = vmatpush1.msra.mxu0 %v2518
    %3209 = vmatprep.subr.mxu0 %v2511
    %3210 = vmatpush1.msra.mxu0 %v2510
    %3211 = vmatprep.subr.mxu0 %v2503
    %3212 = vmatpush1.msra.mxu0 %v2502
    %3213 = vmatprep.subr.mxu0 %v2495
    %3214 = vmatpush1.msra.mxu0 %v2494
    %3215 = vmatprep.subr.mxu0 %v2487
    %3216 = vmatpush1.msra.mxu0 %v2486
    %3217 = vmatprep.subr.mxu0 %v2479
    %3218 = vmatpush1.msra.mxu0 %v2478
    %3219 = vmatprep.subr.mxu0 %v2471
    %3220 = vmatpush1.msra.mxu0 %v2470
    %3221 = vmatprep.subr.mxu0 %v2463
    %3222 = vmatpush1.msra.mxu0 %v2462
    %3223 = vmatprep.subr.mxu0 %v2455
    %3224 = vmatpush1.msra.mxu0 %v2454
    %3225 = vmatprep.subr.mxu0 %v2447
    %3226 = vmatpush1.msra.mxu0 %v2446
    %3227 = vmatprep.subr.mxu0 %v2439
    %3228 = vmatpush1.msra.mxu0 %v2438
    %3229 = vmatprep.subr.mxu0 %v2431
    %3230 = vmatpush1.msra.mxu0 %v2430
    %3231 = vmatprep.subr.mxu0 %v2423
    %3232 = vmatpush1.msra.mxu0 %v2422
    %3233 = vmatprep.subr.mxu0 %v2415
    %3234 = vmatpush1.msra.mxu0 %v2414
    %3235 = vmatprep.subr.mxu0 %v2663
    %3236 = vmatpush2.msra.mxu0 %v2662
    %3237 = vmatprep.subr.mxu0 %v2655
    %3238 = vmatpush2.msra.mxu0 %v2654
    %3239 = vmatprep.subr.mxu0 %v2647
    %3240 = vmatpush2.msra.mxu0 %v2646
    %3241 = vmatprep.subr.mxu0 %v2639
    %3242 = vmatpush2.msra.mxu0 %v2638
    %3243 = vmatprep.subr.mxu0 %v2631
    %3244 = vmatpush2.msra.mxu0 %v2630
    %3245 = vmatprep.subr.mxu0 %v2623
    %3246 = vmatpush2.msra.mxu0 %v2622
    %3247 = vmatprep.subr.mxu0 %v2615
    %3248 = vmatpush2.msra.mxu0 %v2614
    %3249 = vmatprep.subr.mxu0 %v2607
    %3250 = vmatpush2.msra.mxu0 %v2606
    %3251 = vmatprep.subr.mxu0 %v2599
    %3252 = vmatpush2.msra.mxu0 %v2598
    %3253 = vmatprep.subr.mxu0 %v2591
    %3254 = vmatpush2.msra.mxu0 %v2590
    %3255 = vmatprep.subr.mxu0 %v2583
    %3256 = vmatpush2.msra.mxu0 %v2582
    %3257 = vmatprep.subr.mxu0 %v2575
    %3258 = vmatpush2.msra.mxu0 %v2574
    %3259 = vmatprep.subr.mxu0 %v2567
    %3260 = vmatpush2.msra.mxu0 %v2566
    %3261 = vmatprep.subr.mxu0 %v2559
    %3262 = vmatpush2.msra.mxu0 %v2558
    %3263 = vmatprep.subr.mxu0 %v2551
    %3264 = vmatpush2.msra.mxu0 %v2550
    %3265 = vmatprep.subr.mxu0 %v2543
    %3266 = vmatpush2.msra.mxu0 %v2542
    %3267 = vmatprep.mubr.f32.mxu0 %v2151
    %3268 = vmatmul.mubr.f32.gmra.mxu0 %v2150
    %v3269 = vpop.f32.mrf.mxu0
    %v3270 = vadd.f32 %v3199, %v3269
    %v3271 = vpop.f32.mrf.mxu0
    %v3272 = vadd.f32 %v3201, %v3271
    %3273 = vdwg.mxu0
    %v3274 = vxor.u32 %v2844, 2147483648
    %v3275 = vxor.u32 %v2846, 2147483648
    %v3276 = vxor.u32 %v2986, 2147483648
    %v3277 = vxor.u32 %v2988, 2147483648
    %v3278 = vxor.u32 %v3128, 2147483648
    %v3279 = vxor.u32 %v3130, 2147483648
    %v3280 = vxor.u32 %v3270, 2147483648
    %v3281 = vxor.u32 %v3272, 2147483648
    %v3282 = vmul.f32 %v3274, 1.442695
    %v3283 = vpow.pop %v3282
    %v3284 = vmul.f32 %v3275, 1.442695
    %v3285 = vpow.pop %v3284
    %v3286 = vmul.f32 %v3276, 1.442695
    %v3287 = vpow.pop %v3286
    %v3288 = vmul.f32 %v3277, 1.442695
    %v3289 = vpow.pop %v3288
    %v3290 = vmul.f32 %v3278, 1.442695
    %v3291 = vpow.pop %v3290
    %v3292 = vmul.f32 %v3279, 1.442695
    %v3293 = vpow.pop %v3292
    %v3294 = vmul.f32 %v3280, 1.442695
    %v3295 = vpow.pop %v3294
    %v3296 = vmul.f32 %v3281, 1.442695
    %v3297 = vpow.pop %v3296
    %v3298 = vadd.f32 %v3283, 1.0
    %v3299 = vadd.f32 %v3285, 1.0
    %v3300 = vadd.f32 %v3287, 1.0
    %v3301 = vadd.f32 %v3289, 1.0
    %v3302 = vadd.f32 %v3291, 1.0
    %v3303 = vadd.f32 %v3293, 1.0
    %v3304 = vadd.f32 %v3295, 1.0
    %v3305 = vadd.f32 %v3297, 1.0
    %v3306 = vrcp.pop %v3298
    %v3307 = vmul.f32 1.0, %v3306
    %v3308 = vrcp.pop %v3299
    %v3309 = vmul.f32 1.0, %v3308
    %v3310 = vrcp.pop %v3300
    %v3311 = vmul.f32 1.0, %v3310
    %v3312 = vrcp.pop %v3301
    %v3313 = vmul.f32 1.0, %v3312
    %v3314 = vrcp.pop %v3302
    %v3315 = vmul.f32 1.0, %v3314
    %v3316 = vrcp.pop %v3303
    %v3317 = vmul.f32 1.0, %v3316
    %v3318 = vrcp.pop %v3304
    %v3319 = vmul.f32 1.0, %v3318
    %v3320 = vrcp.pop %v3305
    %v3321 = vmul.f32 1.0, %v3320
    %v3330 = vcombine.low %v3307, %v3309
    %v3331 = vcombine.low %v3311, %v3313
    %v3333 = vunpack.c.l.s4 1983009808
    %v3334 = vunpack.c.0.s8 %v3333
    %v3335 = vlaneseq
    %v3336 = vshrl.u32 %v3335, 7
    %v3337 = vsub.s32 %v3334, %v3336
    %v3338 = vrot.slane %v3330, %v3337
    %v3340 = vunpack.c.l.s4 1983009808
    %v3341 = vunpack.c.0.s8 %v3340
    %v3342 = vlaneseq
    %v3343 = vshrl.u32 %v3342, 7
    %v3344 = vsub.s32 %v3341, %v3343
    %v3345 = vrot.slane %v3331, %v3344
    %v3346 = vcombine.low %v3338, %v3345
    %v3347 = vcombine.low %v3315, %v3317
    %v3348 = vcombine.low %v3319, %v3321
    %v3350 = vunpack.c.l.s4 1983009808
    %v3351 = vunpack.c.0.s8 %v3350
    %v3352 = vlaneseq
    %v3353 = vshrl.u32 %v3352, 7
    %v3354 = vsub.s32 %v3351, %v3353
    %v3355 = vrot.slane %v3347, %v3354
    %v3357 = vunpack.c.l.s4 1983009808
    %v3358 = vunpack.c.0.s8 %v3357
    %v3359 = vlaneseq
    %v3360 = vshrl.u32 %v3359, 7
    %v3361 = vsub.s32 %v3358, %v3360
    %v3362 = vrot.slane %v3348, %v3361
    %v3363 = vcombine.low %v3355, %v3362
    %3366 = vst [vmem:[#allocation7] sm:$0xff] %v3346
    %3367 = vst [vmem:[#allocation7 + $0x8] sm:$0xff] %v3363
    // Predicated region
    $region46: #{bae_cnn_forward.3} parent=1 // pred_check
      _
    $region47: #{bae_cnn_forward.3} parent=1 // pred_check_branch
      %3369 = sbr.rel (0) target = $region49
    $region48: #{bae_cnn_forward.3} parent=1 // pred_region
      _
    $region49: #{bae_cnn_forward.3} parent=1 // pred_fallthru
      _
    // Predicated region
    $region50: #{bae_cnn_forward.3} parent=1 // pred_check
      _
    $region51: #{bae_cnn_forward.3} parent=1 // pred_check_branch
      %3371 = sbr.rel (0) target = $region53
    $region52: #{bae_cnn_forward.3} parent=1 // pred_region
      %s3373 = ssub.s32 256, 256
      %3374 = vsyncadd [#allocation4], %s3373
      %s3376 = sshll.u32 [#allocation7], 4
      %s3377 = int_to_ptr.vmem [resolvable:$true] %s3376
      %3379 = dma.vmem_to_hbm [thread:$0]  %s3377, 256, %s10, [#allocation4]
    $region53: #{bae_cnn_forward.3} parent=1 // pred_fallthru
      _
    // Predicated region
    $region54: #{bae_cnn_forward.3} parent=1 // pred_check
      _
    $region55: #{bae_cnn_forward.3} parent=1 // pred_check_branch
      %3381 = sbr.rel (0) target = $region57
    $region56: #{bae_cnn_forward.3} parent=1 // pred_region
      _
    $region57: #{bae_cnn_forward.3} parent=1 // pred_fallthru
      _
    // Predicated region
    $region58: #{bae_cnn_forward.3} parent=1 // pred_check
      _
    $region59: #{bae_cnn_forward.3} parent=1 // pred_check_branch
      %3383 = sbr.rel (0) target = $region61
    $region60: #{bae_cnn_forward.3} parent=1 // pred_region
      %3384 = dma.done [#allocation4], 256
    $region61: #{bae_cnn_forward.3} parent=1 // pred_fallthru
      _
    %3385 = vsyncpa [#allocation3], 1
    %3386 = vsyncpa [#allocation6], 1
    %3387 = vsyncpa [#allocation4], 1

// kernel: bae_cnn_forward.2
$region0: #{bae_cnn_forward.2}
  #allocation0 [shape = 'u32[]', space=smem, size = 0x4, offset = 0x4, fixed_abs, tag = 'smem constant byte address 0x4 - core index']
  #allocation1 [shape = 'u32[144,128]{1,0:T(1,128)}', space=vmem, size = 0x12000, scoped, tag = 'internal scratch']
  #allocation2 [shape = 'f32[64,512]{1,0:T(8,128)}', space=vmem, size = 0x20000, scoped, tag = 'scratch operand']
  #allocation3 [shape = 'f32[32,128]{1,0:T(8,128)}', space=vmem, size = 0x4000, scoped, tag = 'scratch operand']
  %s0 = inlined_call_operand.vmem [shape: f32[9,1,512], index: 0, kind: input, shape index: {}]
  %s1 = inlined_call_operand.hbm [shape: f32[9,64,1], index: 1, kind: input, shape index: {}]
  %s2 = inlined_call_operand.hbm [shape: f32[64,1], index: 2, kind: input, shape index: {}]
  %s3 = inlined_call_operand.hbm [shape: f32[512,1152], index: 3, kind: input, shape index: {}]
  %s4 = inlined_call_operand.hbm [shape: f32[9,32,64], index: 4, kind: input, shape index: {}]
  %s5 = inlined_call_operand.hbm [shape: f32[32,1], index: 5, kind: input, shape index: {}]
  %s6 = inlined_call_operand.hbm [shape: f32[128,1152], index: 6, kind: input, shape index: {}]
  %s7 = inlined_call_operand.hbm [shape: f32[9,32,32], index: 7, kind: input, shape index: {}]
  %s8 = inlined_call_operand.hbm [shape: f32[32,1], index: 8, kind: input, shape index: {}]
  %s9 = inlined_call_operand.vmem [shape: f32[32,128], index: 9, kind: output, shape index: {}]
  %s10 = sld [smem:[#allocation0]]
  $region78: #{bae_cnn_forward.2} parent=0
    _
  %s12 = ssub.s32 1, %s10
  %s13 = scalar_select 0, %s12, %s10
  $region1: #{bae_cnn_forward.2} parent=0
    #allocation4 [shape = 'u8[294912]{0}', space=vmem, size = 0x48000, scoped, tag = 'input window, operand 1, single buffered']
    #allocation5 [shape = 's32[1]{0}', space=sflag, size = 0x4, scoped, tag = 'scoped memory for bae_cnn_forward.2']
    #allocation6 [shape = 'u8[32768]{0}', space=vmem, size = 0x8000, scoped, tag = 'input window, operand 2, single buffered']
    #allocation7 [shape = 's32[1]{0}', space=sflag, size = 0x4, scoped, tag = 'scoped memory for bae_cnn_forward.2']
    #allocation8 [shape = 'u8[2359296]{0}', space=vmem, size = 0x240000, scoped, tag = 'input window, operand 3, single buffered']
    #allocation9 [shape = 'u8[147456]{0}', space=vmem, size = 0x24000, scoped, tag = 'input window, operand 4, single buffered']
    #allocation10 [shape = 's32[1]{0}', space=sflag, size = 0x4, scoped, tag = 'scoped memory for bae_cnn_forward.2']
    #allocation11 [shape = 'u8[16384]{0}', space=vmem, size = 0x4000, scoped, tag = 'input window, operand 5, single buffered']
    #allocation12 [shape = 'u8[589824]{0}', space=vmem, size = 0x90000, scoped, tag = 'input window, operand 6, single buffered']
    #allocation13 [shape = 's32[1]{0}', space=sflag, size = 0x4, scoped, tag = 'scoped memory for bae_cnn_forward.2']
    #allocation14 [shape = 'u8[147456]{0}', space=vmem, size = 0x24000, scoped, tag = 'input window, operand 7, single buffered']
    #allocation15 [shape = 'u8[16384]{0}', space=vmem, size = 0x4000, scoped, tag = 'input window, operand 8, single buffered']
    #allocation16 [shape = 's32[1]{0}', space=sflag, size = 0x4, scoped, tag = 'scoped memory for bae_cnn_forward.2']
    %14 = vsyncpa [#allocation5], 0
    %15 = vsyncpa [#allocation7], 0
    %16 = vsyncpa [#allocation10], 0
    %17 = vsyncpa [#allocation13], 0
    %18 = vsyncpa [#allocation16], 0
    // Predicated region
    $region2: #{bae_cnn_forward.2} parent=1 // pred_check
      _
    $region3: #{bae_cnn_forward.2} parent=1 // pred_check_branch
      %20 = sbr.rel (0) target = $region5
    $region4: #{bae_cnn_forward.2} parent=1 // pred_region
      _
    $region5: #{bae_cnn_forward.2} parent=1 // pred_fallthru
      _
    // Predicated region
    $region6: #{bae_cnn_forward.2} parent=1 // pred_check
      _
    $region7: #{bae_cnn_forward.2} parent=1 // pred_check_branch
      %22 = sbr.rel (0) target = $region9
    $region8: #{bae_cnn_forward.2} parent=1 // pred_region
      %s24 = ssub.s32 9216, 9216
      %25 = vsyncadd [#allocation5], %s24
      %s26 = sshll.u32 [#allocation4], 4
      %s27 = int_to_ptr.vmem [resolvable:$true] %s26
      %32 = dma.hbm_to_vmem [thread:$0]  %s1, 9216, %s27, [#allocation5], 128, 128, 8
    $region9: #{bae_cnn_forward.2} parent=1 // pred_fallthru
      _
    // Predicated region
    $region10: #{bae_cnn_forward.2} parent=1 // pred_check
      _
    $region11: #{bae_cnn_forward.2} parent=1 // pred_check_branch
      %34 = sbr.rel (0) target = $region13
    $region12: #{bae_cnn_forward.2} parent=1 // pred_region
      %s36 = ssub.s32 1024, 1024
      %37 = vsyncadd [#allocation7], %s36
      %s38 = sshll.u32 [#allocation6], 4
      %s39 = int_to_ptr.vmem [resolvable:$true] %s38
      %44 = dma.hbm_to_vmem [thread:$0]  %s2, 1024, %s39, [#allocation7], 128, 128, 8
    $region13: #{bae_cnn_forward.2} parent=1 // pred_fallthru
      _
    // Predicated region
    $region14: #{bae_cnn_forward.2} parent=1 // pred_check
      _
    $region15: #{bae_cnn_forward.2} parent=1 // pred_check_branch
      %46 = sbr.rel (0) target = $region17
    $region16: #{bae_cnn_forward.2} parent=1 // pred_region
      %s48 = ssub.s32 73728, 73728
      %49 = vsyncadd [#allocation7], %s48
      %s50 = sshll.u32 [#allocation8], 4
      %s51 = int_to_ptr.vmem [resolvable:$true] %s50
      %56 = dma.hbm_to_vmem [thread:$0]  %s3, 73728, %s51, [#allocation7], 1152, 1152, 72
    $region17: #{bae_cnn_forward.2} parent=1 // pred_fallthru
      _
    // Predicated region
    $region18: #{bae_cnn_forward.2} parent=1 // pred_check
      _
    $region19: #{bae_cnn_forward.2} parent=1 // pred_check_branch
      %58 = sbr.rel (0) target = $region21
    $region20: #{bae_cnn_forward.2} parent=1 // pred_region
      %s60 = ssub.s32 4608, 4608
      %61 = vsyncadd [#allocation10], %s60
      %s62 = sshll.u32 [#allocation9], 4
      %s63 = int_to_ptr.vmem [resolvable:$true] %s62
      %68 = dma.hbm_to_vmem [thread:$0]  %s4, 4608, %s63, [#allocation10], 128, 128, 8
    $region21: #{bae_cnn_forward.2} parent=1 // pred_fallthru
      _
    // Predicated region
    $region22: #{bae_cnn_forward.2} parent=1 // pred_check
      _
    $region23: #{bae_cnn_forward.2} parent=1 // pred_check_branch
      %70 = sbr.rel (0) target = $region25
    $region24: #{bae_cnn_forward.2} parent=1 // pred_region
      %s72 = ssub.s32 512, 512
      %73 = vsyncadd [#allocation10], %s72
      %s74 = sshll.u32 [#allocation11], 4
      %s75 = int_to_ptr.vmem [resolvable:$true] %s74
      %80 = dma.hbm_to_vmem [thread:$0]  %s5, 512, %s75, [#allocation10], 128, 128, 8
    $region25: #{bae_cnn_forward.2} parent=1 // pred_fallthru
      _
    // Predicated region
    $region26: #{bae_cnn_forward.2} parent=1 // pred_check
      _
    $region27: #{bae_cnn_forward.2} parent=1 // pred_check_branch
      %82 = sbr.rel (0) target = $region29
    $region28: #{bae_cnn_forward.2} parent=1 // pred_region
      %s84 = ssub.s32 18432, 18432
      %85 = vsyncadd [#allocation13], %s84
      %s86 = sshll.u32 [#allocation12], 4
      %s87 = int_to_ptr.vmem [resolvable:$true] %s86
      %92 = dma.hbm_to_vmem [thread:$0]  %s6, 18432, %s87, [#allocation13], 1152, 1152, 72
    $region29: #{bae_cnn_forward.2} parent=1 // pred_fallthru
      _
    // Predicated region
    $region30: #{bae_cnn_forward.2} parent=1 // pred_check
      _
    $region31: #{bae_cnn_forward.2} parent=1 // pred_check_branch
      %94 = sbr.rel (0) target = $region33
    $region32: #{bae_cnn_forward.2} parent=1 // pred_region
      %s96 = ssub.s32 4608, 4608
      %97 = vsyncadd [#allocation13], %s96
      %s98 = sshll.u32 [#allocation14], 4
      %s99 = int_to_ptr.vmem [resolvable:$true] %s98
      %104 = dma.hbm_to_vmem [thread:$0]  %s7, 4608, %s99, [#allocation13], 128, 128, 8
    $region33: #{bae_cnn_forward.2} parent=1 // pred_fallthru
      _
    // Predicated region
    $region34: #{bae_cnn_forward.2} parent=1 // pred_check
      _
    $region35: #{bae_cnn_forward.2} parent=1 // pred_check_branch
      %106 = sbr.rel (0) target = $region37
    $region36: #{bae_cnn_forward.2} parent=1 // pred_region
      %s108 = ssub.s32 512, 512
      %109 = vsyncadd [#allocation16], %s108
      %s110 = sshll.u32 [#allocation15], 4
      %s111 = int_to_ptr.vmem [resolvable:$true] %s110
      %116 = dma.hbm_to_vmem [thread:$0]  %s8, 512, %s111, [#allocation16], 128, 128, 8
    $region37: #{bae_cnn_forward.2} parent=1 // pred_fallthru
      _
    // Predicated region
    $region38: #{bae_cnn_forward.2} parent=1 // pred_check
      _
    $region39: #{bae_cnn_forward.2} parent=1 // pred_check_branch
      %118 = sbr.rel (0) target = $region41
    $region40: #{bae_cnn_forward.2} parent=1 // pred_region
      %119 = dma.done [#allocation5], 9216
    $region41: #{bae_cnn_forward.2} parent=1 // pred_fallthru
      _
    // Predicated region
    $region42: #{bae_cnn_forward.2} parent=1 // pred_check
      _
    $region43: #{bae_cnn_forward.2} parent=1 // pred_check_branch
      %121 = sbr.rel (0) target = $region45
    $region44: #{bae_cnn_forward.2} parent=1 // pred_region
      %122 = dma.done [#allocation7], 1024
    $region45: #{bae_cnn_forward.2} parent=1 // pred_fallthru
      _
    // Predicated region
    $region46: #{bae_cnn_forward.2} parent=1 // pred_check
      _
    $region47: #{bae_cnn_forward.2} parent=1 // pred_check_branch
      %124 = sbr.rel (0) target = $region49
    $region48: #{bae_cnn_forward.2} parent=1 // pred_region
      %125 = dma.done [#allocation7], 73728
    $region49: #{bae_cnn_forward.2} parent=1 // pred_fallthru
      _
    // Predicated region
    $region50: #{bae_cnn_forward.2} parent=1 // pred_check
      _
    $region51: #{bae_cnn_forward.2} parent=1 // pred_check_branch
      %127 = sbr.rel (0) target = $region53
    $region52: #{bae_cnn_forward.2} parent=1 // pred_region
      %128 = dma.done [#allocation10], 4608
    $region53: #{bae_cnn_forward.2} parent=1 // pred_fallthru
      _
    // Predicated region
    $region54: #{bae_cnn_forward.2} parent=1 // pred_check
      _
    $region55: #{bae_cnn_forward.2} parent=1 // pred_check_branch
      %130 = sbr.rel (0) target = $region57
    $region56: #{bae_cnn_forward.2} parent=1 // pred_region
      %131 = dma.done [#allocation10], 512
    $region57: #{bae_cnn_forward.2} parent=1 // pred_fallthru
      _
    // Predicated region
    $region58: #{bae_cnn_forward.2} parent=1 // pred_check
      _
    $region59: #{bae_cnn_forward.2} parent=1 // pred_check_branch
      %133 = sbr.rel (0) target = $region61
    $region60: #{bae_cnn_forward.2} parent=1 // pred_region
      %134 = dma.done [#allocation13], 18432
    $region61: #{bae_cnn_forward.2} parent=1 // pred_fallthru
      _
    // Predicated region
    $region62: #{bae_cnn_forward.2} parent=1 // pred_check
      _
    $region63: #{bae_cnn_forward.2} parent=1 // pred_check_branch
      %136 = sbr.rel (0) target = $region65
    $region64: #{bae_cnn_forward.2} parent=1 // pred_region
      %137 = dma.done [#allocation13], 4608
    $region65: #{bae_cnn_forward.2} parent=1 // pred_fallthru
      _
    // Predicated region
    $region66: #{bae_cnn_forward.2} parent=1 // pred_check
      _
    $region67: #{bae_cnn_forward.2} parent=1 // pred_check_branch
      %139 = sbr.rel (0) target = $region69
    $region68: #{bae_cnn_forward.2} parent=1 // pred_region
      %140 = dma.done [#allocation16], 512
    $region69: #{bae_cnn_forward.2} parent=1 // pred_fallthru
      _
    %v141 = vld [vmem:[#allocation4] sm:$0xff]
    %v142 = vld [vmem:[#allocation4 + $0x8] sm:$0xff]
    %v143 = vld [vmem:[#allocation4 + $0x10] sm:$0xff]
    %v144 = vld [vmem:[#allocation4 + $0x18] sm:$0xff]
    %v145 = vld [vmem:[#allocation4 + $0x20] sm:$0xff]
    %v146 = vld [vmem:[#allocation4 + $0x28] sm:$0xff]
    %v147 = vld [vmem:[#allocation4 + $0x30] sm:$0xff]
    %v148 = vld [vmem:[#allocation4 + $0x38] sm:$0xff]
    %v149 = vld [vmem:[%s0] sm:$0xf]
    %151 = vset.pattern.permute.xlu0 0
    %152 = vperm.xlu0 %151, %v141
    %v153 = vpop.permute.xlu0 %152
    %156 = vset.pattern.permute.xlu0 0
    %157 = vperm.xlu0 %156, %v142
    %v158 = vpop.permute.xlu0 %157
    %161 = vset.pattern.permute.xlu0 0
    %162 = vperm.xlu0 %161, %v143
    %v163 = vpop.permute.xlu0 %162
    %166 = vset.pattern.permute.xlu0 0
    %167 = vperm.xlu0 %166, %v144
    %v168 = vpop.permute.xlu0 %167
    %171 = vset.pattern.permute.xlu0 0
    %172 = vperm.xlu0 %171, %v145
    %v173 = vpop.permute.xlu0 %172
    %176 = vset.pattern.permute.xlu0 0
    %177 = vperm.xlu0 %176, %v146
    %v178 = vpop.permute.xlu0 %177
    %181 = vset.pattern.permute.xlu0 0
    %182 = vperm.xlu0 %181, %v147
    %v183 = vpop.permute.xlu0 %182
    %186 = vset.pattern.permute.xlu0 0
    %187 = vperm.xlu0 %186, %v148
    %v188 = vpop.permute.xlu0 %187
    %v191 = vlaneseq
    %v192 = vshrl.u32 %v191, 7
    %v193 = vsub.s32 0, %v192
    %v194 = vrot.slane %v149, %v193
    %v195 = vlaneseq
    %v196 = vshrl.u32 %v195, 7
    %v197 = vsub.s32 1, %v196
    %v198 = vrot.slane %v149, %v197
    %v199 = vlaneseq
    %v200 = vshrl.u32 %v199, 7
    %v201 = vsub.s32 2, %v200
    %v202 = vrot.slane %v149, %v201
    %v203 = vlaneseq
    %v204 = vshrl.u32 %v203, 7
    %v205 = vsub.s32 3, %v204
    %v206 = vrot.slane %v149, %v205
    %v211 = vmul.f32 %v153, %v194
    %v212 = vmul.f32 %v153, %v198
    %v213 = vmul.f32 %v153, %v202
    %v214 = vmul.f32 %v153, %v206
    %v215 = vmul.f32 %v158, %v194
    %v216 = vmul.f32 %v158, %v198
    %v217 = vmul.f32 %v158, %v202
    %v218 = vmul.f32 %v158, %v206
    %v219 = vmul.f32 %v163, %v194
    %v220 = vmul.f32 %v163, %v198
    %v221 = vmul.f32 %v163, %v202
    %v222 = vmul.f32 %v163, %v206
    %v223 = vmul.f32 %v168, %v194
    %v224 = vmul.f32 %v168, %v198
    %v225 = vmul.f32 %v168, %v202
    %v226 = vmul.f32 %v168, %v206
    %v227 = vmul.f32 %v173, %v194
    %v228 = vmul.f32 %v173, %v198
    %v229 = vmul.f32 %v173, %v202
    %v230 = vmul.f32 %v173, %v206
    %v231 = vmul.f32 %v178, %v194
    %v232 = vmul.f32 %v178, %v198
    %v233 = vmul.f32 %v178, %v202
    %v234 = vmul.f32 %v178, %v206
    %v235 = vmul.f32 %v183, %v194
    %v236 = vmul.f32 %v183, %v198
    %v237 = vmul.f32 %v183, %v202
    %v238 = vmul.f32 %v183, %v206
    %v239 = vmul.f32 %v188, %v194
    %v240 = vmul.f32 %v188, %v198
    %v241 = vmul.f32 %v188, %v202
    %v242 = vmul.f32 %v188, %v206
    %v243 = vadd.f32 %v211, 0.0
    %v244 = vadd.f32 %v212, 0.0
    %v245 = vadd.f32 %v213, 0.0
    %v246 = vadd.f32 %v214, 0.0
    %v247 = vadd.f32 %v215, 0.0
    %v248 = vadd.f32 %v216, 0.0
    %v249 = vadd.f32 %v217, 0.0
    %v250 = vadd.f32 %v218, 0.0
    %v251 = vadd.f32 %v219, 0.0
    %v252 = vadd.f32 %v220, 0.0
    %v253 = vadd.f32 %v221, 0.0
    %v254 = vadd.f32 %v222, 0.0
    %v255 = vadd.f32 %v223, 0.0
    %v256 = vadd.f32 %v224, 0.0
    %v257 = vadd.f32 %v225, 0.0
    %v258 = vadd.f32 %v226, 0.0
    %v259 = vadd.f32 %v227, 0.0
    %v260 = vadd.f32 %v228, 0.0
    %v261 = vadd.f32 %v229, 0.0
    %v262 = vadd.f32 %v230, 0.0
    %v263 = vadd.f32 %v231, 0.0
    %v264 = vadd.f32 %v232, 0.0
    %v265 = vadd.f32 %v233, 0.0
    %v266 = vadd.f32 %v234, 0.0
    %v267 = vadd.f32 %v235, 0.0
    %v268 = vadd.f32 %v236, 0.0
    %v269 = vadd.f32 %v237, 0.0
    %v270 = vadd.f32 %v238, 0.0
    %v271 = vadd.f32 %v239, 0.0
    %v272 = vadd.f32 %v240, 0.0
    %v273 = vadd.f32 %v241, 0.0
    %v274 = vadd.f32 %v242, 0.0
    %s275 = scalar_lea.vmem [#allocation4], 64
    %v276 = vld [vmem:[%s275] sm:$0xff]
    %v277 = vld [vmem:[%s275 + $0x8] sm:$0xff]
    %v278 = vld [vmem:[%s275 + $0x10] sm:$0xff]
    %v279 = vld [vmem:[%s275 + $0x18] sm:$0xff]
    %v280 = vld [vmem:[%s275 + $0x20] sm:$0xff]
    %v281 = vld [vmem:[%s275 + $0x28] sm:$0xff]
    %v282 = vld [vmem:[%s275 + $0x30] sm:$0xff]
    %v283 = vld [vmem:[%s275 + $0x38] sm:$0xff]
    %s284 = scalar_lea.vmem %s0, 4
    %v285 = vld [vmem:[%s284] sm:$0xf]
    %287 = vset.pattern.permute.xlu0 0
    %288 = vperm.xlu0 %287, %v276
    %v289 = vpop.permute.xlu0 %288
    %292 = vset.pattern.permute.xlu0 0
    %293 = vperm.xlu0 %292, %v277
    %v294 = vpop.permute.xlu0 %293
    %297 = vset.pattern.permute.xlu0 0
    %298 = vperm.xlu0 %297, %v278
    %v299 = vpop.permute.xlu0 %298
    %302 = vset.pattern.permute.xlu0 0
    %303 = vperm.xlu0 %302, %v279
    %v304 = vpop.permute.xlu0 %303
    %307 = vset.pattern.permute.xlu0 0
    %308 = vperm.xlu0 %307, %v280
    %v309 = vpop.permute.xlu0 %308
    %312 = vset.pattern.permute.xlu0 0
    %313 = vperm.xlu0 %312, %v281
    %v314 = vpop.permute.xlu0 %313
    %317 = vset.pattern.permute.xlu0 0
    %318 = vperm.xlu0 %317, %v282
    %v319 = vpop.permute.xlu0 %318
    %322 = vset.pattern.permute.xlu0 0
    %323 = vperm.xlu0 %322, %v283
    %v324 = vpop.permute.xlu0 %323
    %v327 = vlaneseq
    %v328 = vshrl.u32 %v327, 7
    %v329 = vsub.s32 0, %v328
    %v330 = vrot.slane %v285, %v329
    %v331 = vlaneseq
    %v332 = vshrl.u32 %v331, 7
    %v333 = vsub.s32 1, %v332
    %v334 = vrot.slane %v285, %v333
    %v335 = vlaneseq
    %v336 = vshrl.u32 %v335, 7
    %v337 = vsub.s32 2, %v336
    %v338 = vrot.slane %v285, %v337
    %v339 = vlaneseq
    %v340 = vshrl.u32 %v339, 7
    %v341 = vsub.s32 3, %v340
    %v342 = vrot.slane %v285, %v341
    %v347 = vmul.f32 %v289, %v330
    %v348 = vmul.f32 %v289, %v334
    %v349 = vmul.f32 %v289, %v338
    %v350 = vmul.f32 %v289, %v342
    %v351 = vmul.f32 %v294, %v330
    %v352 = vmul.f32 %v294, %v334
    %v353 = vmul.f32 %v294, %v338
    %v354 = vmul.f32 %v294, %v342
    %v355 = vmul.f32 %v299, %v330
    %v356 = vmul.f32 %v299, %v334
    %v357 = vmul.f32 %v299, %v338
    %v358 = vmul.f32 %v299, %v342
    %v359 = vmul.f32 %v304, %v330
    %v360 = vmul.f32 %v304, %v334
    %v361 = vmul.f32 %v304, %v338
    %v362 = vmul.f32 %v304, %v342
    %v363 = vmul.f32 %v309, %v330
    %v364 = vmul.f32 %v309, %v334
    %v365 = vmul.f32 %v309, %v338
    %v366 = vmul.f32 %v309, %v342
    %v367 = vmul.f32 %v314, %v330
    %v368 = vmul.f32 %v314, %v334
    %v369 = vmul.f32 %v314, %v338
    %v370 = vmul.f32 %v314, %v342
    %v371 = vmul.f32 %v319, %v330
    %v372 = vmul.f32 %v319, %v334
    %v373 = vmul.f32 %v319, %v338
    %v374 = vmul.f32 %v319, %v342
    %v375 = vmul.f32 %v324, %v330
    %v376 = vmul.f32 %v324, %v334
    %v377 = vmul.f32 %v324, %v338
    %v378 = vmul.f32 %v324, %v342
    %v379 = vadd.f32 %v243, %v347
    %v380 = vadd.f32 %v244, %v348
    %v381 = vadd.f32 %v245, %v349
    %v382 = vadd.f32 %v246, %v350
    %v383 = vadd.f32 %v247, %v351
    %v384 = vadd.f32 %v248, %v352
    %v385 = vadd.f32 %v249, %v353
    %v386 = vadd.f32 %v250, %v354
    %v387 = vadd.f32 %v251, %v355
    %v388 = vadd.f32 %v252, %v356
    %v389 = vadd.f32 %v253, %v357
    %v390 = vadd.f32 %v254, %v358
    %v391 = vadd.f32 %v255, %v359
    %v392 = vadd.f32 %v256, %v360
    %v393 = vadd.f32 %v257, %v361
    %v394 = vadd.f32 %v258, %v362
    %v395 = vadd.f32 %v259, %v363
    %v396 = vadd.f32 %v260, %v364
    %v397 = vadd.f32 %v261, %v365
    %v398 = vadd.f32 %v262, %v366
    %v399 = vadd.f32 %v263, %v367
    %v400 = vadd.f32 %v264, %v368
    %v401 = vadd.f32 %v265, %v369
    %v402 = vadd.f32 %v266, %v370
    %v403 = vadd.f32 %v267, %v371
    %v404 = vadd.f32 %v268, %v372
    %v405 = vadd.f32 %v269, %v373
    %v406 = vadd.f32 %v270, %v374
    %v407 = vadd.f32 %v271, %v375
    %v408 = vadd.f32 %v272, %v376
    %v409 = vadd.f32 %v273, %v377
    %v410 = vadd.f32 %v274, %v378
    %s411 = scalar_lea.vmem [#allocation4], 128
    %v412 = vld [vmem:[%s411] sm:$0xff]
    %v413 = vld [vmem:[%s411 + $0x8] sm:$0xff]
    %v414 = vld [vmem:[%s411 + $0x10] sm:$0xff]
    %v415 = vld [vmem:[%s411 + $0x18] sm:$0xff]
    %v416 = vld [vmem:[%s411 + $0x20] sm:$0xff]
    %v417 = vld [vmem:[%s411 + $0x28] sm:$0xff]
    %v418 = vld [vmem:[%s411 + $0x30] sm:$0xff]
    %v419 = vld [vmem:[%s411 + $0x38] sm:$0xff]
    %s420 = scalar_lea.vmem %s0, 8
    %v421 = vld [vmem:[%s420] sm:$0xf]
    %423 = vset.pattern.permute.xlu0 0
    %424 = vperm.xlu0 %423, %v412
    %v425 = vpop.permute.xlu0 %424
    %428 = vset.pattern.permute.xlu0 0
    %429 = vperm.xlu0 %428, %v413
    %v430 = vpop.permute.xlu0 %429
    %433 = vset.pattern.permute.xlu0 0
    %434 = vperm.xlu0 %433, %v414
    %v435 = vpop.permute.xlu0 %434
    %438 = vset.pattern.permute.xlu0 0
    %439 = vperm.xlu0 %438, %v415
    %v440 = vpop.permute.xlu0 %439
    %443 = vset.pattern.permute.xlu0 0
    %444 = vperm.xlu0 %443, %v416
    %v445 = vpop.permute.xlu0 %444
    %448 = vset.pattern.permute.xlu0 0
    %449 = vperm.xlu0 %448, %v417
    %v450 = vpop.permute.xlu0 %449
    %453 = vset.pattern.permute.xlu0 0
    %454 = vperm.xlu0 %453, %v418
    %v455 = vpop.permute.xlu0 %454
    %458 = vset.pattern.permute.xlu0 0
    %459 = vperm.xlu0 %458, %v419
    %v460 = vpop.permute.xlu0 %459
    %v463 = vlaneseq
    %v464 = vshrl.u32 %v463, 7
    %v465 = vsub.s32 0, %v464
    %v466 = vrot.slane %v421, %v465
    %v467 = vlaneseq
    %v468 = vshrl.u32 %v467, 7
    %v469 = vsub.s32 1, %v468
    %v470 = vrot.slane %v421, %v469
    %v471 = vlaneseq
    %v472 = vshrl.u32 %v471, 7
    %v473 = vsub.s32 2, %v472
    %v474 = vrot.slane %v421, %v473
    %v475 = vlaneseq
    %v476 = vshrl.u32 %v475, 7
    %v477 = vsub.s32 3, %v476
    %v478 = vrot.slane %v421, %v477
    %v483 = vmul.f32 %v425, %v466
    %v484 = vmul.f32 %v425, %v470
    %v485 = vmul.f32 %v425, %v474
    %v486 = vmul.f32 %v425, %v478
    %v487 = vmul.f32 %v430, %v466
    %v488 = vmul.f32 %v430, %v470
    %v489 = vmul.f32 %v430, %v474
    %v490 = vmul.f32 %v430, %v478
    %v491 = vmul.f32 %v435, %v466
    %v492 = vmul.f32 %v435, %v470
    %v493 = vmul.f32 %v435, %v474
    %v494 = vmul.f32 %v435, %v478
    %v495 = vmul.f32 %v440, %v466
    %v496 = vmul.f32 %v440, %v470
    %v497 = vmul.f32 %v440, %v474
    %v498 = vmul.f32 %v440, %v478
    %v499 = vmul.f32 %v445, %v466
    %v500 = vmul.f32 %v445, %v470
    %v501 = vmul.f32 %v445, %v474
    %v502 = vmul.f32 %v445, %v478
    %v503 = vmul.f32 %v450, %v466
    %v504 = vmul.f32 %v450, %v470
    %v505 = vmul.f32 %v450, %v474
    %v506 = vmul.f32 %v450, %v478
    %v507 = vmul.f32 %v455, %v466
    %v508 = vmul.f32 %v455, %v470
    %v509 = vmul.f32 %v455, %v474
    %v510 = vmul.f32 %v455, %v478
    %v511 = vmul.f32 %v460, %v466
    %v512 = vmul.f32 %v460, %v470
    %v513 = vmul.f32 %v460, %v474
    %v514 = vmul.f32 %v460, %v478
    %v515 = vadd.f32 %v379, %v483
    %v516 = vadd.f32 %v380, %v484
    %v517 = vadd.f32 %v381, %v485
    %v518 = vadd.f32 %v382, %v486
    %v519 = vadd.f32 %v383, %v487
    %v520 = vadd.f32 %v384, %v488
    %v521 = vadd.f32 %v385, %v489
    %v522 = vadd.f32 %v386, %v490
    %v523 = vadd.f32 %v387, %v491
    %v524 = vadd.f32 %v388, %v492
    %v525 = vadd.f32 %v389, %v493
    %v526 = vadd.f32 %v390, %v494
    %v527 = vadd.f32 %v391, %v495
    %v528 = vadd.f32 %v392, %v496
    %v529 = vadd.f32 %v393, %v497
    %v530 = vadd.f32 %v394, %v498
    %v531 = vadd.f32 %v395, %v499
    %v532 = vadd.f32 %v396, %v500
    %v533 = vadd.f32 %v397, %v501
    %v534 = vadd.f32 %v398, %v502
    %v535 = vadd.f32 %v399, %v503
    %v536 = vadd.f32 %v400, %v504
    %v537 = vadd.f32 %v401, %v505
    %v538 = vadd.f32 %v402, %v506
    %v539 = vadd.f32 %v403, %v507
    %v540 = vadd.f32 %v404, %v508
    %v541 = vadd.f32 %v405, %v509
    %v542 = vadd.f32 %v406, %v510
    %v543 = vadd.f32 %v407, %v511
    %v544 = vadd.f32 %v408, %v512
    %v545 = vadd.f32 %v409, %v513
    %v546 = vadd.f32 %v410, %v514
    %s547 = scalar_lea.vmem [#allocation4], 192
    %v548 = vld [vmem:[%s547] sm:$0xff]
    %v549 = vld [vmem:[%s547 + $0x8] sm:$0xff]
    %v550 = vld [vmem:[%s547 + $0x10] sm:$0xff]
    %v551 = vld [vmem:[%s547 + $0x18] sm:$0xff]
    %v552 = vld [vmem:[%s547 + $0x20] sm:$0xff]
    %v553 = vld [vmem:[%s547 + $0x28] sm:$0xff]
    %v554 = vld [vmem:[%s547 + $0x30] sm:$0xff]
    %v555 = vld [vmem:[%s547 + $0x38] sm:$0xff]
    %s556 = scalar_lea.vmem %s0, 12
    %v557 = vld [vmem:[%s556] sm:$0xf]
    %559 = vset.pattern.permute.xlu0 0
    %560 = vperm.xlu0 %559, %v548
    %v561 = vpop.permute.xlu0 %560
    %564 = vset.pattern.permute.xlu0 0
    %565 = vperm.xlu0 %564, %v549
    %v566 = vpop.permute.xlu0 %565
    %569 = vset.pattern.permute.xlu0 0
    %570 = vperm.xlu0 %569, %v550
    %v571 = vpop.permute.xlu0 %570
    %574 = vset.pattern.permute.xlu0 0
    %575 = vperm.xlu0 %574, %v551
    %v576 = vpop.permute.xlu0 %575
    %579 = vset.pattern.permute.xlu0 0
    %580 = vperm.xlu0 %579, %v552
    %v581 = vpop.permute.xlu0 %580
    %584 = vset.pattern.permute.xlu0 0
    %585 = vperm.xlu0 %584, %v553
    %v586 = vpop.permute.xlu0 %585
    %589 = vset.pattern.permute.xlu0 0
    %590 = vperm.xlu0 %589, %v554
    %v591 = vpop.permute.xlu0 %590
    %594 = vset.pattern.permute.xlu0 0
    %595 = vperm.xlu0 %594, %v555
    %v596 = vpop.permute.xlu0 %595
    %v599 = vlaneseq
    %v600 = vshrl.u32 %v599, 7
    %v601 = vsub.s32 0, %v600
    %v602 = vrot.slane %v557, %v601
    %v603 = vlaneseq
    %v604 = vshrl.u32 %v603, 7
    %v605 = vsub.s32 1, %v604
    %v606 = vrot.slane %v557, %v605
    %v607 = vlaneseq
    %v608 = vshrl.u32 %v607, 7
    %v609 = vsub.s32 2, %v608
    %v610 = vrot.slane %v557, %v609
    %v611 = vlaneseq
    %v612 = vshrl.u32 %v611, 7
    %v613 = vsub.s32 3, %v612
    %v614 = vrot.slane %v557, %v613
    %v619 = vmul.f32 %v561, %v602
    %v620 = vmul.f32 %v561, %v606
    %v621 = vmul.f32 %v561, %v610
    %v622 = vmul.f32 %v561, %v614
    %v623 = vmul.f32 %v566, %v602
    %v624 = vmul.f32 %v566, %v606
    %v625 = vmul.f32 %v566, %v610
    %v626 = vmul.f32 %v566, %v614
    %v627 = vmul.f32 %v571, %v602
    %v628 = vmul.f32 %v571, %v606
    %v629 = vmul.f32 %v571, %v610
    %v630 = vmul.f32 %v571, %v614
    %v631 = vmul.f32 %v576, %v602
    %v632 = vmul.f32 %v576, %v606
    %v633 = vmul.f32 %v576, %v610
    %v634 = vmul.f32 %v576, %v614
    %v635 = vmul.f32 %v581, %v602
    %v636 = vmul.f32 %v581, %v606
    %v637 = vmul.f32 %v581, %v610
    %v638 = vmul.f32 %v581, %v614
    %v639 = vmul.f32 %v586, %v602
    %v640 = vmul.f32 %v586, %v606
    %v641 = vmul.f32 %v586, %v610
    %v642 = vmul.f32 %v586, %v614
    %v643 = vmul.f32 %v591, %v602
    %v644 = vmul.f32 %v591, %v606
    %v645 = vmul.f32 %v591, %v610
    %v646 = vmul.f32 %v591, %v614
    %v647 = vmul.f32 %v596, %v602
    %v648 = vmul.f32 %v596, %v606
    %v649 = vmul.f32 %v596, %v610
    %v650 = vmul.f32 %v596, %v614
    %v651 = vadd.f32 %v515, %v619
    %v652 = vadd.f32 %v516, %v620
    %v653 = vadd.f32 %v517, %v621
    %v654 = vadd.f32 %v518, %v622
    %v655 = vadd.f32 %v519, %v623
    %v656 = vadd.f32 %v520, %v624
    %v657 = vadd.f32 %v521, %v625
    %v658 = vadd.f32 %v522, %v626
    %v659 = vadd.f32 %v523, %v627
    %v660 = vadd.f32 %v524, %v628
    %v661 = vadd.f32 %v525, %v629
    %v662 = vadd.f32 %v526, %v630
    %v663 = vadd.f32 %v527, %v631
    %v664 = vadd.f32 %v528, %v632
    %v665 = vadd.f32 %v529, %v633
    %v666 = vadd.f32 %v530, %v634
    %v667 = vadd.f32 %v531, %v635
    %v668 = vadd.f32 %v532, %v636
    %v669 = vadd.f32 %v533, %v637
    %v670 = vadd.f32 %v534, %v638
    %v671 = vadd.f32 %v535, %v639
    %v672 = vadd.f32 %v536, %v640
    %v673 = vadd.f32 %v537, %v641
    %v674 = vadd.f32 %v538, %v642
    %v675 = vadd.f32 %v539, %v643
    %v676 = vadd.f32 %v540, %v644
    %v677 = vadd.f32 %v541, %v645
    %v678 = vadd.f32 %v542, %v646
    %v679 = vadd.f32 %v543, %v647
    %v680 = vadd.f32 %v544, %v648
    %v681 = vadd.f32 %v545, %v649
    %v682 = vadd.f32 %v546, %v650
    %s683 = scalar_lea.vmem [#allocation4], 256
    %v684 = vld [vmem:[%s683] sm:$0xff]
    %v685 = vld [vmem:[%s683 + $0x8] sm:$0xff]
    %v686 = vld [vmem:[%s683 + $0x10] sm:$0xff]
    %v687 = vld [vmem:[%s683 + $0x18] sm:$0xff]
    %v688 = vld [vmem:[%s683 + $0x20] sm:$0xff]
    %v689 = vld [vmem:[%s683 + $0x28] sm:$0xff]
    %v690 = vld [vmem:[%s683 + $0x30] sm:$0xff]
    %v691 = vld [vmem:[%s683 + $0x38] sm:$0xff]
    %s692 = scalar_lea.vmem %s0, 16
    %v693 = vld [vmem:[%s692] sm:$0xf]
    %695 = vset.pattern.permute.xlu0 0
    %696 = vperm.xlu0 %695, %v684
    %v697 = vpop.permute.xlu0 %696
    %700 = vset.pattern.permute.xlu0 0
    %701 = vperm.xlu0 %700, %v685
    %v702 = vpop.permute.xlu0 %701
    %705 = vset.pattern.permute.xlu0 0
    %706 = vperm.xlu0 %705, %v686
    %v707 = vpop.permute.xlu0 %706
    %710 = vset.pattern.permute.xlu0 0
    %711 = vperm.xlu0 %710, %v687
    %v712 = vpop.permute.xlu0 %711
    %715 = vset.pattern.permute.xlu0 0
    %716 = vperm.xlu0 %715, %v688
    %v717 = vpop.permute.xlu0 %716
    %720 = vset.pattern.permute.xlu0 0
    %721 = vperm.xlu0 %720, %v689
    %v722 = vpop.permute.xlu0 %721
    %725 = vset.pattern.permute.xlu0 0
    %726 = vperm.xlu0 %725, %v690
    %v727 = vpop.permute.xlu0 %726
    %730 = vset.pattern.permute.xlu0 0
    %731 = vperm.xlu0 %730, %v691
    %v732 = vpop.permute.xlu0 %731
    %v735 = vlaneseq
    %v736 = vshrl.u32 %v735, 7
    %v737 = vsub.s32 0, %v736
    %v738 = vrot.slane %v693, %v737
    %v739 = vlaneseq
    %v740 = vshrl.u32 %v739, 7
    %v741 = vsub.s32 1, %v740
    %v742 = vrot.slane %v693, %v741
    %v743 = vlaneseq
    %v744 = vshrl.u32 %v743, 7
    %v745 = vsub.s32 2, %v744
    %v746 = vrot.slane %v693, %v745
    %v747 = vlaneseq
    %v748 = vshrl.u32 %v747, 7
    %v749 = vsub.s32 3, %v748
    %v750 = vrot.slane %v693, %v749
    %v755 = vmul.f32 %v697, %v738
    %v756 = vmul.f32 %v697, %v742
    %v757 = vmul.f32 %v697, %v746
    %v758 = vmul.f32 %v697, %v750
    %v759 = vmul.f32 %v702, %v738
    %v760 = vmul.f32 %v702, %v742
    %v761 = vmul.f32 %v702, %v746
    %v762 = vmul.f32 %v702, %v750
    %v763 = vmul.f32 %v707, %v738
    %v764 = vmul.f32 %v707, %v742
    %v765 = vmul.f32 %v707, %v746
    %v766 = vmul.f32 %v707, %v750
    %v767 = vmul.f32 %v712, %v738
    %v768 = vmul.f32 %v712, %v742
    %v769 = vmul.f32 %v712, %v746
    %v770 = vmul.f32 %v712, %v750
    %v771 = vmul.f32 %v717, %v738
    %v772 = vmul.f32 %v717, %v742
    %v773 = vmul.f32 %v717, %v746
    %v774 = vmul.f32 %v717, %v750
    %v775 = vmul.f32 %v722, %v738
    %v776 = vmul.f32 %v722, %v742
    %v777 = vmul.f32 %v722, %v746
    %v778 = vmul.f32 %v722, %v750
    %v779 = vmul.f32 %v727, %v738
    %v780 = vmul.f32 %v727, %v742
    %v781 = vmul.f32 %v727, %v746
    %v782 = vmul.f32 %v727, %v750
    %v783 = vmul.f32 %v732, %v738
    %v784 = vmul.f32 %v732, %v742
    %v785 = vmul.f32 %v732, %v746
    %v786 = vmul.f32 %v732, %v750
    %v787 = vadd.f32 %v651, %v755
    %v788 = vadd.f32 %v652, %v756
    %v789 = vadd.f32 %v653, %v757
    %v790 = vadd.f32 %v654, %v758
    %v791 = vadd.f32 %v655, %v759
    %v792 = vadd.f32 %v656, %v760
    %v793 = vadd.f32 %v657, %v761
    %v794 = vadd.f32 %v658, %v762
    %v795 = vadd.f32 %v659, %v763
    %v796 = vadd.f32 %v660, %v764
    %v797 = vadd.f32 %v661, %v765
    %v798 = vadd.f32 %v662, %v766
    %v799 = vadd.f32 %v663, %v767
    %v800 = vadd.f32 %v664, %v768
    %v801 = vadd.f32 %v665, %v769
    %v802 = vadd.f32 %v666, %v770
    %v803 = vadd.f32 %v667, %v771
    %v804 = vadd.f32 %v668, %v772
    %v805 = vadd.f32 %v669, %v773
    %v806 = vadd.f32 %v670, %v774
    %v807 = vadd.f32 %v671, %v775
    %v808 = vadd.f32 %v672, %v776
    %v809 = vadd.f32 %v673, %v777
    %v810 = vadd.f32 %v674, %v778
    %v811 = vadd.f32 %v675, %v779
    %v812 = vadd.f32 %v676, %v780
    %v813 = vadd.f32 %v677, %v781
    %v814 = vadd.f32 %v678, %v782
    %v815 = vadd.f32 %v679, %v783
    %v816 = vadd.f32 %v680, %v784
    %v817 = vadd.f32 %v681, %v785
    %v818 = vadd.f32 %v682, %v786
    %s819 = scalar_lea.vmem [#allocation4], 320
    %v820 = vld [vmem:[%s819] sm:$0xff]
    %v821 = vld [vmem:[%s819 + $0x8] sm:$0xff]
    %v822 = vld [vmem:[%s819 + $0x10] sm:$0xff]
    %v823 = vld [vmem:[%s819 + $0x18] sm:$0xff]
    %v824 = vld [vmem:[%s819 + $0x20] sm:$0xff]
    %v825 = vld [vmem:[%s819 + $0x28] sm:$0xff]
    %v826 = vld [vmem:[%s819 + $0x30] sm:$0xff]
    %v827 = vld [vmem:[%s819 + $0x38] sm:$0xff]
    %s828 = scalar_lea.vmem %s0, 20
    %v829 = vld [vmem:[%s828] sm:$0xf]
    %831 = vset.pattern.permute.xlu0 0
    %832 = vperm.xlu0 %831, %v820
    %v833 = vpop.permute.xlu0 %832
    %836 = vset.pattern.permute.xlu0 0
    %837 = vperm.xlu0 %836, %v821
    %v838 = vpop.permute.xlu0 %837
    %841 = vset.pattern.permute.xlu0 0
    %842 = vperm.xlu0 %841, %v822
    %v843 = vpop.permute.xlu0 %842
    %846 = vset.pattern.permute.xlu0 0
    %847 = vperm.xlu0 %846, %v823
    %v848 = vpop.permute.xlu0 %847
    %851 = vset.pattern.permute.xlu0 0
    %852 = vperm.xlu0 %851, %v824
    %v853 = vpop.permute.xlu0 %852
    %856 = vset.pattern.permute.xlu0 0
    %857 = vperm.xlu0 %856, %v825
    %v858 = vpop.permute.xlu0 %857
    %861 = vset.pattern.permute.xlu0 0
    %862 = vperm.xlu0 %861, %v826
    %v863 = vpop.permute.xlu0 %862
    %866 = vset.pattern.permute.xlu0 0
    %867 = vperm.xlu0 %866, %v827
    %v868 = vpop.permute.xlu0 %867
    %v871 = vlaneseq
    %v872 = vshrl.u32 %v871, 7
    %v873 = vsub.s32 0, %v872
    %v874 = vrot.slane %v829, %v873
    %v875 = vlaneseq
    %v876 = vshrl.u32 %v875, 7
    %v877 = vsub.s32 1, %v876
    %v878 = vrot.slane %v829, %v877
    %v879 = vlaneseq
    %v880 = vshrl.u32 %v879, 7
    %v881 = vsub.s32 2, %v880
    %v882 = vrot.slane %v829, %v881
    %v883 = vlaneseq
    %v884 = vshrl.u32 %v883, 7
    %v885 = vsub.s32 3, %v884
    %v886 = vrot.slane %v829, %v885
    %v891 = vmul.f32 %v833, %v874
    %v892 = vmul.f32 %v833, %v878
    %v893 = vmul.f32 %v833, %v882
    %v894 = vmul.f32 %v833, %v886
    %v895 = vmul.f32 %v838, %v874
    %v896 = vmul.f32 %v838, %v878
    %v897 = vmul.f32 %v838, %v882
    %v898 = vmul.f32 %v838, %v886
    %v899 = vmul.f32 %v843, %v874
    %v900 = vmul.f32 %v843, %v878
    %v901 = vmul.f32 %v843, %v882
    %v902 = vmul.f32 %v843, %v886
    %v903 = vmul.f32 %v848, %v874
    %v904 = vmul.f32 %v848, %v878
    %v905 = vmul.f32 %v848, %v882
    %v906 = vmul.f32 %v848, %v886
    %v907 = vmul.f32 %v853, %v874
    %v908 = vmul.f32 %v853, %v878
    %v909 = vmul.f32 %v853, %v882
    %v910 = vmul.f32 %v853, %v886
    %v911 = vmul.f32 %v858, %v874
    %v912 = vmul.f32 %v858, %v878
    %v913 = vmul.f32 %v858, %v882
    %v914 = vmul.f32 %v858, %v886
    %v915 = vmul.f32 %v863, %v874
    %v916 = vmul.f32 %v863, %v878
    %v917 = vmul.f32 %v863, %v882
    %v918 = vmul.f32 %v863, %v886
    %v919 = vmul.f32 %v868, %v874
    %v920 = vmul.f32 %v868, %v878
    %v921 = vmul.f32 %v868, %v882
    %v922 = vmul.f32 %v868, %v886
    %v923 = vadd.f32 %v787, %v891
    %v924 = vadd.f32 %v788, %v892
    %v925 = vadd.f32 %v789, %v893
    %v926 = vadd.f32 %v790, %v894
    %v927 = vadd.f32 %v791, %v895
    %v928 = vadd.f32 %v792, %v896
    %v929 = vadd.f32 %v793, %v897
    %v930 = vadd.f32 %v794, %v898
    %v931 = vadd.f32 %v795, %v899
    %v932 = vadd.f32 %v796, %v900
    %v933 = vadd.f32 %v797, %v901
    %v934 = vadd.f32 %v798, %v902
    %v935 = vadd.f32 %v799, %v903
    %v936 = vadd.f32 %v800, %v904
    %v937 = vadd.f32 %v801, %v905
    %v938 = vadd.f32 %v802, %v906
    %v939 = vadd.f32 %v803, %v907
    %v940 = vadd.f32 %v804, %v908
    %v941 = vadd.f32 %v805, %v909
    %v942 = vadd.f32 %v806, %v910
    %v943 = vadd.f32 %v807, %v911
    %v944 = vadd.f32 %v808, %v912
    %v945 = vadd.f32 %v809, %v913
    %v946 = vadd.f32 %v810, %v914
    %v947 = vadd.f32 %v811, %v915
    %v948 = vadd.f32 %v812, %v916
    %v949 = vadd.f32 %v813, %v917
    %v950 = vadd.f32 %v814, %v918
    %v951 = vadd.f32 %v815, %v919
    %v952 = vadd.f32 %v816, %v920
    %v953 = vadd.f32 %v817, %v921
    %v954 = vadd.f32 %v818, %v922
    %s955 = scalar_lea.vmem [#allocation4], 384
    %v956 = vld [vmem:[%s955] sm:$0xff]
    %v957 = vld [vmem:[%s955 + $0x8] sm:$0xff]
    %v958 = vld [vmem:[%s955 + $0x10] sm:$0xff]
    %v959 = vld [vmem:[%s955 + $0x18] sm:$0xff]
    %v960 = vld [vmem:[%s955 + $0x20] sm:$0xff]
    %v961 = vld [vmem:[%s955 + $0x28] sm:$0xff]
    %v962 = vld [vmem:[%s955 + $0x30] sm:$0xff]
    %v963 = vld [vmem:[%s955 + $0x38] sm:$0xff]
    %s964 = scalar_lea.vmem %s0, 24
    %v965 = vld [vmem:[%s964] sm:$0xf]
    %967 = vset.pattern.permute.xlu0 0
    %968 = vperm.xlu0 %967, %v956
    %v969 = vpop.permute.xlu0 %968
    %972 = vset.pattern.permute.xlu0 0
    %973 = vperm.xlu0 %972, %v957
    %v974 = vpop.permute.xlu0 %973
    %977 = vset.pattern.permute.xlu0 0
    %978 = vperm.xlu0 %977, %v958
    %v979 = vpop.permute.xlu0 %978
    %982 = vset.pattern.permute.xlu0 0
    %983 = vperm.xlu0 %982, %v959
    %v984 = vpop.permute.xlu0 %983
    %987 = vset.pattern.permute.xlu0 0
    %988 = vperm.xlu0 %987, %v960
    %v989 = vpop.permute.xlu0 %988
    %992 = vset.pattern.permute.xlu0 0
    %993 = vperm.xlu0 %992, %v961
    %v994 = vpop.permute.xlu0 %993
    %997 = vset.pattern.permute.xlu0 0
    %998 = vperm.xlu0 %997, %v962
    %v999 = vpop.permute.xlu0 %998
    %1002 = vset.pattern.permute.xlu0 0
    %1003 = vperm.xlu0 %1002, %v963
    %v1004 = vpop.permute.xlu0 %1003
    %v1007 = vlaneseq
    %v1008 = vshrl.u32 %v1007, 7
    %v1009 = vsub.s32 0, %v1008
    %v1010 = vrot.slane %v965, %v1009
    %v1011 = vlaneseq
    %v1012 = vshrl.u32 %v1011, 7
    %v1013 = vsub.s32 1, %v1012
    %v1014 = vrot.slane %v965, %v1013
    %v1015 = vlaneseq
    %v1016 = vshrl.u32 %v1015, 7
    %v1017 = vsub.s32 2, %v1016
    %v1018 = vrot.slane %v965, %v1017
    %v1019 = vlaneseq
    %v1020 = vshrl.u32 %v1019, 7
    %v1021 = vsub.s32 3, %v1020
    %v1022 = vrot.slane %v965, %v1021
    %v1027 = vmul.f32 %v969, %v1010
    %v1028 = vmul.f32 %v969, %v1014
    %v1029 = vmul.f32 %v969, %v1018
    %v1030 = vmul.f32 %v969, %v1022
    %v1031 = vmul.f32 %v974, %v1010
    %v1032 = vmul.f32 %v974, %v1014
    %v1033 = vmul.f32 %v974, %v1018
    %v1034 = vmul.f32 %v974, %v1022
    %v1035 = vmul.f32 %v979, %v1010
    %v1036 = vmul.f32 %v979, %v1014
    %v1037 = vmul.f32 %v979, %v1018
    %v1038 = vmul.f32 %v979, %v1022
    %v1039 = vmul.f32 %v984, %v1010
    %v1040 = vmul.f32 %v984, %v1014
    %v1041 = vmul.f32 %v984, %v1018
    %v1042 = vmul.f32 %v984, %v1022
    %v1043 = vmul.f32 %v989, %v1010
    %v1044 = vmul.f32 %v989, %v1014
    %v1045 = vmul.f32 %v989, %v1018
    %v1046 = vmul.f32 %v989, %v1022
    %v1047 = vmul.f32 %v994, %v1010
    %v1048 = vmul.f32 %v994, %v1014
    %v1049 = vmul.f32 %v994, %v1018
    %v1050 = vmul.f32 %v994, %v1022
    %v1051 = vmul.f32 %v999, %v1010
    %v1052 = vmul.f32 %v999, %v1014
    %v1053 = vmul.f32 %v999, %v1018
    %v1054 = vmul.f32 %v999, %v1022
    %v1055 = vmul.f32 %v1004, %v1010
    %v1056 = vmul.f32 %v1004, %v1014
    %v1057 = vmul.f32 %v1004, %v1018
    %v1058 = vmul.f32 %v1004, %v1022
    %v1059 = vadd.f32 %v923, %v1027
    %v1060 = vadd.f32 %v924, %v1028
    %v1061 = vadd.f32 %v925, %v1029
    %v1062 = vadd.f32 %v926, %v1030
    %v1063 = vadd.f32 %v927, %v1031
    %v1064 = vadd.f32 %v928, %v1032
    %v1065 = vadd.f32 %v929, %v1033
    %v1066 = vadd.f32 %v930, %v1034
    %v1067 = vadd.f32 %v931, %v1035
    %v1068 = vadd.f32 %v932, %v1036
    %v1069 = vadd.f32 %v933, %v1037
    %v1070 = vadd.f32 %v934, %v1038
    %v1071 = vadd.f32 %v935, %v1039
    %v1072 = vadd.f32 %v936, %v1040
    %v1073 = vadd.f32 %v937, %v1041
    %v1074 = vadd.f32 %v938, %v1042
    %v1075 = vadd.f32 %v939, %v1043
    %v1076 = vadd.f32 %v940, %v1044
    %v1077 = vadd.f32 %v941, %v1045
    %v1078 = vadd.f32 %v942, %v1046
    %v1079 = vadd.f32 %v943, %v1047
    %v1080 = vadd.f32 %v944, %v1048
    %v1081 = vadd.f32 %v945, %v1049
    %v1082 = vadd.f32 %v946, %v1050
    %v1083 = vadd.f32 %v947, %v1051
    %v1084 = vadd.f32 %v948, %v1052
    %v1085 = vadd.f32 %v949, %v1053
    %v1086 = vadd.f32 %v950, %v1054
    %v1087 = vadd.f32 %v951, %v1055
    %v1088 = vadd.f32 %v952, %v1056
    %v1089 = vadd.f32 %v953, %v1057
    %v1090 = vadd.f32 %v954, %v1058
    %s1091 = scalar_lea.vmem [#allocation4], 448
    %v1092 = vld [vmem:[%s1091] sm:$0xff]
    %v1093 = vld [vmem:[%s1091 + $0x8] sm:$0xff]
    %v1094 = vld [vmem:[%s1091 + $0x10] sm:$0xff]
    %v1095 = vld [vmem:[%s1091 + $0x18] sm:$0xff]
    %v1096 = vld [vmem:[%s1091 + $0x20] sm:$0xff]
    %v1097 = vld [vmem:[%s1091 + $0x28] sm:$0xff]
    %v1098 = vld [vmem:[%s1091 + $0x30] sm:$0xff]
    %v1099 = vld [vmem:[%s1091 + $0x38] sm:$0xff]
    %s1100 = scalar_lea.vmem %s0, 28
    %v1101 = vld [vmem:[%s1100] sm:$0xf]
    %1103 = vset.pattern.permute.xlu0 0
    %1104 = vperm.xlu0 %1103, %v1092
    %v1105 = vpop.permute.xlu0 %1104
    %1108 = vset.pattern.permute.xlu0 0
    %1109 = vperm.xlu0 %1108, %v1093
    %v1110 = vpop.permute.xlu0 %1109
    %1113 = vset.pattern.permute.xlu0 0
    %1114 = vperm.xlu0 %1113, %v1094
    %v1115 = vpop.permute.xlu0 %1114
    %1118 = vset.pattern.permute.xlu0 0
    %1119 = vperm.xlu0 %1118, %v1095
    %v1120 = vpop.permute.xlu0 %1119
    %1123 = vset.pattern.permute.xlu0 0
    %1124 = vperm.xlu0 %1123, %v1096
    %v1125 = vpop.permute.xlu0 %1124
    %1128 = vset.pattern.permute.xlu0 0
    %1129 = vperm.xlu0 %1128, %v1097
    %v1130 = vpop.permute.xlu0 %1129
    %1133 = vset.pattern.permute.xlu0 0
    %1134 = vperm.xlu0 %1133, %v1098
    %v1135 = vpop.permute.xlu0 %1134
    %1138 = vset.pattern.permute.xlu0 0
    %1139 = vperm.xlu0 %1138, %v1099
    %v1140 = vpop.permute.xlu0 %1139
    %v1143 = vlaneseq
    %v1144 = vshrl.u32 %v1143, 7
    %v1145 = vsub.s32 0, %v1144
    %v1146 = vrot.slane %v1101, %v1145
    %v1147 = vlaneseq
    %v1148 = vshrl.u32 %v1147, 7
    %v1149 = vsub.s32 1, %v1148
    %v1150 = vrot.slane %v1101, %v1149
    %v1151 = vlaneseq
    %v1152 = vshrl.u32 %v1151, 7
    %v1153 = vsub.s32 2, %v1152
    %v1154 = vrot.slane %v1101, %v1153
    %v1155 = vlaneseq
    %v1156 = vshrl.u32 %v1155, 7
    %v1157 = vsub.s32 3, %v1156
    %v1158 = vrot.slane %v1101, %v1157
    %v1163 = vmul.f32 %v1105, %v1146
    %v1164 = vmul.f32 %v1105, %v1150
    %v1165 = vmul.f32 %v1105, %v1154
    %v1166 = vmul.f32 %v1105, %v1158
    %v1167 = vmul.f32 %v1110, %v1146
    %v1168 = vmul.f32 %v1110, %v1150
    %v1169 = vmul.f32 %v1110, %v1154
    %v1170 = vmul.f32 %v1110, %v1158
    %v1171 = vmul.f32 %v1115, %v1146
    %v1172 = vmul.f32 %v1115, %v1150
    %v1173 = vmul.f32 %v1115, %v1154
    %v1174 = vmul.f32 %v1115, %v1158
    %v1175 = vmul.f32 %v1120, %v1146
    %v1176 = vmul.f32 %v1120, %v1150
    %v1177 = vmul.f32 %v1120, %v1154
    %v1178 = vmul.f32 %v1120, %v1158
    %v1179 = vmul.f32 %v1125, %v1146
    %v1180 = vmul.f32 %v1125, %v1150
    %v1181 = vmul.f32 %v1125, %v1154
    %v1182 = vmul.f32 %v1125, %v1158
    %v1183 = vmul.f32 %v1130, %v1146
    %v1184 = vmul.f32 %v1130, %v1150
    %v1185 = vmul.f32 %v1130, %v1154
    %v1186 = vmul.f32 %v1130, %v1158
    %v1187 = vmul.f32 %v1135, %v1146
    %v1188 = vmul.f32 %v1135, %v1150
    %v1189 = vmul.f32 %v1135, %v1154
    %v1190 = vmul.f32 %v1135, %v1158
    %v1191 = vmul.f32 %v1140, %v1146
    %v1192 = vmul.f32 %v1140, %v1150
    %v1193 = vmul.f32 %v1140, %v1154
    %v1194 = vmul.f32 %v1140, %v1158
    %v1195 = vadd.f32 %v1059, %v1163
    %v1196 = vadd.f32 %v1060, %v1164
    %v1197 = vadd.f32 %v1061, %v1165
    %v1198 = vadd.f32 %v1062, %v1166
    %v1199 = vadd.f32 %v1063, %v1167
    %v1200 = vadd.f32 %v1064, %v1168
    %v1201 = vadd.f32 %v1065, %v1169
    %v1202 = vadd.f32 %v1066, %v1170
    %v1203 = vadd.f32 %v1067, %v1171
    %v1204 = vadd.f32 %v1068, %v1172
    %v1205 = vadd.f32 %v1069, %v1173
    %v1206 = vadd.f32 %v1070, %v1174
    %v1207 = vadd.f32 %v1071, %v1175
    %v1208 = vadd.f32 %v1072, %v1176
    %v1209 = vadd.f32 %v1073, %v1177
    %v1210 = vadd.f32 %v1074, %v1178
    %v1211 = vadd.f32 %v1075, %v1179
    %v1212 = vadd.f32 %v1076, %v1180
    %v1213 = vadd.f32 %v1077, %v1181
    %v1214 = vadd.f32 %v1078, %v1182
    %v1215 = vadd.f32 %v1079, %v1183
    %v1216 = vadd.f32 %v1080, %v1184
    %v1217 = vadd.f32 %v1081, %v1185
    %v1218 = vadd.f32 %v1082, %v1186
    %v1219 = vadd.f32 %v1083, %v1187
    %v1220 = vadd.f32 %v1084, %v1188
    %v1221 = vadd.f32 %v1085, %v1189
    %v1222 = vadd.f32 %v1086, %v1190
    %v1223 = vadd.f32 %v1087, %v1191
    %v1224 = vadd.f32 %v1088, %v1192
    %v1225 = vadd.f32 %v1089, %v1193
    %v1226 = vadd.f32 %v1090, %v1194
    %s1227 = scalar_lea.vmem [#allocation4], 512
    %v1228 = vld [vmem:[%s1227] sm:$0xff]
    %v1229 = vld [vmem:[%s1227 + $0x8] sm:$0xff]
    %v1230 = vld [vmem:[%s1227 + $0x10] sm:$0xff]
    %v1231 = vld [vmem:[%s1227 + $0x18] sm:$0xff]
    %v1232 = vld [vmem:[%s1227 + $0x20] sm:$0xff]
    %v1233 = vld [vmem:[%s1227 + $0x28] sm:$0xff]
    %v1234 = vld [vmem:[%s1227 + $0x30] sm:$0xff]
    %v1235 = vld [vmem:[%s1227 + $0x38] sm:$0xff]
    %s1236 = scalar_lea.vmem %s0, 32
    %v1237 = vld [vmem:[%s1236] sm:$0xf]
    %1239 = vset.pattern.permute.xlu0 0
    %1240 = vperm.xlu0 %1239, %v1228
    %v1241 = vpop.permute.xlu0 %1240
    %1244 = vset.pattern.permute.xlu0 0
    %1245 = vperm.xlu0 %1244, %v1229
    %v1246 = vpop.permute.xlu0 %1245
    %1249 = vset.pattern.permute.xlu0 0
    %1250 = vperm.xlu0 %1249, %v1230
    %v1251 = vpop.permute.xlu0 %1250
    %1254 = vset.pattern.permute.xlu0 0
    %1255 = vperm.xlu0 %1254, %v1231
    %v1256 = vpop.permute.xlu0 %1255
    %1259 = vset.pattern.permute.xlu0 0
    %1260 = vperm.xlu0 %1259, %v1232
    %v1261 = vpop.permute.xlu0 %1260
    %1264 = vset.pattern.permute.xlu0 0
    %1265 = vperm.xlu0 %1264, %v1233
    %v1266 = vpop.permute.xlu0 %1265
    %1269 = vset.pattern.permute.xlu0 0
    %1270 = vperm.xlu0 %1269, %v1234
    %v1271 = vpop.permute.xlu0 %1270
    %1274 = vset.pattern.permute.xlu0 0
    %1275 = vperm.xlu0 %1274, %v1235
    %v1276 = vpop.permute.xlu0 %1275
    %v1279 = vlaneseq
    %v1280 = vshrl.u32 %v1279, 7
    %v1281 = vsub.s32 0, %v1280
    %v1282 = vrot.slane %v1237, %v1281
    %v1283 = vlaneseq
    %v1284 = vshrl.u32 %v1283, 7
    %v1285 = vsub.s32 1, %v1284
    %v1286 = vrot.slane %v1237, %v1285
    %v1287 = vlaneseq
    %v1288 = vshrl.u32 %v1287, 7
    %v1289 = vsub.s32 2, %v1288
    %v1290 = vrot.slane %v1237, %v1289
    %v1291 = vlaneseq
    %v1292 = vshrl.u32 %v1291, 7
    %v1293 = vsub.s32 3, %v1292
    %v1294 = vrot.slane %v1237, %v1293
    %v1299 = vmul.f32 %v1241, %v1282
    %v1300 = vmul.f32 %v1241, %v1286
    %v1301 = vmul.f32 %v1241, %v1290
    %v1302 = vmul.f32 %v1241, %v1294
    %v1303 = vmul.f32 %v1246, %v1282
    %v1304 = vmul.f32 %v1246, %v1286
    %v1305 = vmul.f32 %v1246, %v1290
    %v1306 = vmul.f32 %v1246, %v1294
    %v1307 = vmul.f32 %v1251, %v1282
    %v1308 = vmul.f32 %v1251, %v1286
    %v1309 = vmul.f32 %v1251, %v1290
    %v1310 = vmul.f32 %v1251, %v1294
    %v1311 = vmul.f32 %v1256, %v1282
    %v1312 = vmul.f32 %v1256, %v1286
    %v1313 = vmul.f32 %v1256, %v1290
    %v1314 = vmul.f32 %v1256, %v1294
    %v1315 = vmul.f32 %v1261, %v1282
    %v1316 = vmul.f32 %v1261, %v1286
    %v1317 = vmul.f32 %v1261, %v1290
    %v1318 = vmul.f32 %v1261, %v1294
    %v1319 = vmul.f32 %v1266, %v1282
    %v1320 = vmul.f32 %v1266, %v1286
    %v1321 = vmul.f32 %v1266, %v1290
    %v1322 = vmul.f32 %v1266, %v1294
    %v1323 = vmul.f32 %v1271, %v1282
    %v1324 = vmul.f32 %v1271, %v1286
    %v1325 = vmul.f32 %v1271, %v1290
    %v1326 = vmul.f32 %v1271, %v1294
    %v1327 = vmul.f32 %v1276, %v1282
    %v1328 = vmul.f32 %v1276, %v1286
    %v1329 = vmul.f32 %v1276, %v1290
    %v1330 = vmul.f32 %v1276, %v1294
    %v1331 = vadd.f32 %v1195, %v1299
    %v1332 = vadd.f32 %v1196, %v1300
    %v1333 = vadd.f32 %v1197, %v1301
    %v1334 = vadd.f32 %v1198, %v1302
    %v1335 = vadd.f32 %v1199, %v1303
    %v1336 = vadd.f32 %v1200, %v1304
    %v1337 = vadd.f32 %v1201, %v1305
    %v1338 = vadd.f32 %v1202, %v1306
    %v1339 = vadd.f32 %v1203, %v1307
    %v1340 = vadd.f32 %v1204, %v1308
    %v1341 = vadd.f32 %v1205, %v1309
    %v1342 = vadd.f32 %v1206, %v1310
    %v1343 = vadd.f32 %v1207, %v1311
    %v1344 = vadd.f32 %v1208, %v1312
    %v1345 = vadd.f32 %v1209, %v1313
    %v1346 = vadd.f32 %v1210, %v1314
    %v1347 = vadd.f32 %v1211, %v1315
    %v1348 = vadd.f32 %v1212, %v1316
    %v1349 = vadd.f32 %v1213, %v1317
    %v1350 = vadd.f32 %v1214, %v1318
    %v1351 = vadd.f32 %v1215, %v1319
    %v1352 = vadd.f32 %v1216, %v1320
    %v1353 = vadd.f32 %v1217, %v1321
    %v1354 = vadd.f32 %v1218, %v1322
    %v1355 = vadd.f32 %v1219, %v1323
    %v1356 = vadd.f32 %v1220, %v1324
    %v1357 = vadd.f32 %v1221, %v1325
    %v1358 = vadd.f32 %v1222, %v1326
    %v1359 = vadd.f32 %v1223, %v1327
    %v1360 = vadd.f32 %v1224, %v1328
    %v1361 = vadd.f32 %v1225, %v1329
    %v1362 = vadd.f32 %v1226, %v1330
    %v1363 = vld [vmem:[#allocation6] sm:$0xff]
    %v1364 = vld [vmem:[#allocation6 + $0x8] sm:$0xff]
    %v1365 = vld [vmem:[#allocation6 + $0x10] sm:$0xff]
    %v1366 = vld [vmem:[#allocation6 + $0x18] sm:$0xff]
    %v1367 = vld [vmem:[#allocation6 + $0x20] sm:$0xff]
    %v1368 = vld [vmem:[#allocation6 + $0x28] sm:$0xff]
    %v1369 = vld [vmem:[#allocation6 + $0x30] sm:$0xff]
    %v1370 = vld [vmem:[#allocation6 + $0x38] sm:$0xff]
    %1372 = vset.pattern.permute.xlu0 0
    %1373 = vperm.xlu0 %1372, %v1363
    %v1374 = vpop.permute.xlu0 %1373
    %1377 = vset.pattern.permute.xlu0 0
    %1378 = vperm.xlu0 %1377, %v1364
    %v1379 = vpop.permute.xlu0 %1378
    %1382 = vset.pattern.permute.xlu0 0
    %1383 = vperm.xlu0 %1382, %v1365
    %v1384 = vpop.permute.xlu0 %1383
    %1387 = vset.pattern.permute.xlu0 0
    %1388 = vperm.xlu0 %1387, %v1366
    %v1389 = vpop.permute.xlu0 %1388
    %1392 = vset.pattern.permute.xlu0 0
    %1393 = vperm.xlu0 %1392, %v1367
    %v1394 = vpop.permute.xlu0 %1393
    %1397 = vset.pattern.permute.xlu0 0
    %1398 = vperm.xlu0 %1397, %v1368
    %v1399 = vpop.permute.xlu0 %1398
    %1402 = vset.pattern.permute.xlu0 0
    %1403 = vperm.xlu0 %1402, %v1369
    %v1404 = vpop.permute.xlu0 %1403
    %1407 = vset.pattern.permute.xlu0 0
    %1408 = vperm.xlu0 %1407, %v1370
    %v1409 = vpop.permute.xlu0 %1408
    %v1411 = vadd.f32 %v1331, %v1374
    %v1412 = vadd.f32 %v1332, %v1374
    %v1413 = vadd.f32 %v1333, %v1374
    %v1414 = vadd.f32 %v1334, %v1374
    %v1415 = vadd.f32 %v1335, %v1379
    %v1416 = vadd.f32 %v1336, %v1379
    %v1417 = vadd.f32 %v1337, %v1379
    %v1418 = vadd.f32 %v1338, %v1379
    %v1419 = vadd.f32 %v1339, %v1384
    %v1420 = vadd.f32 %v1340, %v1384
    %v1421 = vadd.f32 %v1341, %v1384
    %v1422 = vadd.f32 %v1342, %v1384
    %v1423 = vadd.f32 %v1343, %v1389
    %v1424 = vadd.f32 %v1344, %v1389
    %v1425 = vadd.f32 %v1345, %v1389
    %v1426 = vadd.f32 %v1346, %v1389
    %v1427 = vadd.f32 %v1347, %v1394
    %v1428 = vadd.f32 %v1348, %v1394
    %v1429 = vadd.f32 %v1349, %v1394
    %v1430 = vadd.f32 %v1350, %v1394
    %v1431 = vadd.f32 %v1351, %v1399
    %v1432 = vadd.f32 %v1352, %v1399
    %v1433 = vadd.f32 %v1353, %v1399
    %v1434 = vadd.f32 %v1354, %v1399
    %v1435 = vadd.f32 %v1355, %v1404
    %v1436 = vadd.f32 %v1356, %v1404
    %v1437 = vadd.f32 %v1357, %v1404
    %v1438 = vadd.f32 %v1358, %v1404
    %v1439 = vadd.f32 %v1359, %v1409
    %v1440 = vadd.f32 %v1360, %v1409
    %v1441 = vadd.f32 %v1361, %v1409
    %v1442 = vadd.f32 %v1362, %v1409
    %v1443 = vmax.f32 %v1411, 0.0
    %v1444 = vmax.f32 %v1412, 0.0
    %v1445 = vmax.f32 %v1413, 0.0
    %v1446 = vmax.f32 %v1414, 0.0
    %v1447 = vmax.f32 %v1415, 0.0
    %v1448 = vmax.f32 %v1416, 0.0
    %v1449 = vmax.f32 %v1417, 0.0
    %v1450 = vmax.f32 %v1418, 0.0
    %v1451 = vmax.f32 %v1419, 0.0
    %v1452 = vmax.f32 %v1420, 0.0
    %v1453 = vmax.f32 %v1421, 0.0
    %v1454 = vmax.f32 %v1422, 0.0
    %v1455 = vmax.f32 %v1423, 0.0
    %v1456 = vmax.f32 %v1424, 0.0
    %v1457 = vmax.f32 %v1425, 0.0
    %v1458 = vmax.f32 %v1426, 0.0
    %v1459 = vmax.f32 %v1427, 0.0
    %v1460 = vmax.f32 %v1428, 0.0
    %v1461 = vmax.f32 %v1429, 0.0
    %v1462 = vmax.f32 %v1430, 0.0
    %v1463 = vmax.f32 %v1431, 0.0
    %v1464 = vmax.f32 %v1432, 0.0
    %v1465 = vmax.f32 %v1433, 0.0
    %v1466 = vmax.f32 %v1434, 0.0
    %v1467 = vmax.f32 %v1435, 0.0
    %v1468 = vmax.f32 %v1436, 0.0
    %v1469 = vmax.f32 %v1437, 0.0
    %v1470 = vmax.f32 %v1438, 0.0
    %v1471 = vmax.f32 %v1439, 0.0
    %v1472 = vmax.f32 %v1440, 0.0
    %v1473 = vmax.f32 %v1441, 0.0
    %v1474 = vmax.f32 %v1442, 0.0
    %1475 = vst [vmem:[#allocation2] sm:$0xff] %v1443
    %1476 = vst [vmem:[#allocation2 + $0x8] sm:$0xff] %v1444
    %1477 = vst [vmem:[#allocation2 + $0x10] sm:$0xff] %v1445
    %1478 = vst [vmem:[#allocation2 + $0x18] sm:$0xff] %v1446
    %1479 = vst [vmem:[#allocation2 + $0x20] sm:$0xff] %v1447
    %1480 = vst [vmem:[#allocation2 + $0x28] sm:$0xff] %v1448
    %1481 = vst [vmem:[#allocation2 + $0x30] sm:$0xff] %v1449
    %1482 = vst [vmem:[#allocation2 + $0x38] sm:$0xff] %v1450
    %1483 = vst [vmem:[#allocation2 + $0x40] sm:$0xff] %v1451
    %1484 = vst [vmem:[#allocation2 + $0x48] sm:$0xff] %v1452
    %1485 = vst [vmem:[#allocation2 + $0x50] sm:$0xff] %v1453
    %1486 = vst [vmem:[#allocation2 + $0x58] sm:$0xff] %v1454
    %1487 = vst [vmem:[#allocation2 + $0x60] sm:$0xff] %v1455
    %1488 = vst [vmem:[#allocation2 + $0x68] sm:$0xff] %v1456
    %1489 = vst [vmem:[#allocation2 + $0x70] sm:$0xff] %v1457
    %1490 = vst [vmem:[#allocation2 + $0x78] sm:$0xff] %v1458
    %1491 = vst [vmem:[#allocation2 + $0x80] sm:$0xff] %v1459
    %1492 = vst [vmem:[#allocation2 + $0x88] sm:$0xff] %v1460
    %1493 = vst [vmem:[#allocation2 + $0x90] sm:$0xff] %v1461
    %1494 = vst [vmem:[#allocation2 + $0x98] sm:$0xff] %v1462
    %1495 = vst [vmem:[#allocation2 + $0xa0] sm:$0xff] %v1463
    %1496 = vst [vmem:[#allocation2 + $0xa8] sm:$0xff] %v1464
    %1497 = vst [vmem:[#allocation2 + $0xb0] sm:$0xff] %v1465
    %1498 = vst [vmem:[#allocation2 + $0xb8] sm:$0xff] %v1466
    %1499 = vst [vmem:[#allocation2 + $0xc0] sm:$0xff] %v1467
    %1500 = vst [vmem:[#allocation2 + $0xc8] sm:$0xff] %v1468
    %1501 = vst [vmem:[#allocation2 + $0xd0] sm:$0xff] %v1469
    %1502 = vst [vmem:[#allocation2 + $0xd8] sm:$0xff] %v1470
    %1503 = vst [vmem:[#allocation2 + $0xe0] sm:$0xff] %v1471
    %1504 = vst [vmem:[#allocation2 + $0xe8] sm:$0xff] %v1472
    %1505 = vst [vmem:[#allocation2 + $0xf0] sm:$0xff] %v1473
    %1506 = vst [vmem:[#allocation2 + $0xf8] sm:$0xff] %v1474
    %v1507 = vld [vmem:[#allocation2] sm:$0xff]
    %v1508 = vld [vmem:[#allocation2 + $0x8] sm:$0xff]
    %v1509 = vld [vmem:[#allocation2 + $0x10] sm:$0xff]
    %v1510 = vld [vmem:[#allocation2 + $0x18] sm:$0xff]
    %v1511 = vld [vmem:[#allocation2 + $0x20] sm:$0xff]
    %v1512 = vld [vmem:[#allocation2 + $0x28] sm:$0xff]
    %v1513 = vld [vmem:[#allocation2 + $0x30] sm:$0xff]
    %v1514 = vld [vmem:[#allocation2 + $0x38] sm:$0xff]
    %v1515 = vld [vmem:[#allocation2 + $0x40] sm:$0xff]
    %v1516 = vld [vmem:[#allocation2 + $0x48] sm:$0xff]
    %v1517 = vld [vmem:[#allocation2 + $0x50] sm:$0xff]
    %v1518 = vld [vmem:[#allocation2 + $0x58] sm:$0xff]
    %v1519 = vld [vmem:[#allocation2 + $0x60] sm:$0xff]
    %v1520 = vld [vmem:[#allocation2 + $0x68] sm:$0xff]
    %v1521 = vld [vmem:[#allocation2 + $0x70] sm:$0xff]
    %v1522 = vld [vmem:[#allocation2 + $0x78] sm:$0xff]
    %v1523 = vld [vmem:[#allocation2 + $0x80] sm:$0xff]
    %v1524 = vld [vmem:[#allocation2 + $0x88] sm:$0xff]
    %v1525 = vld [vmem:[#allocation2 + $0x90] sm:$0xff]
    %v1526 = vld [vmem:[#allocation2 + $0x98] sm:$0xff]
    %v1527 = vld [vmem:[#allocation2 + $0xa0] sm:$0xff]
    %v1528 = vld [vmem:[#allocation2 + $0xa8] sm:$0xff]
    %v1529 = vld [vmem:[#allocation2 + $0xb0] sm:$0xff]
    %v1530 = vld [vmem:[#allocation2 + $0xb8] sm:$0xff]
    %v1531 = vld [vmem:[#allocation2 + $0xc0] sm:$0xff]
    %v1532 = vld [vmem:[#allocation2 + $0xc8] sm:$0xff]
    %v1533 = vld [vmem:[#allocation2 + $0xd0] sm:$0xff]
    %v1534 = vld [vmem:[#allocation2 + $0xd8] sm:$0xff]
    %v1535 = vld [vmem:[#allocation2 + $0xe0] sm:$0xff]
    %v1536 = vld [vmem:[#allocation2 + $0xe8] sm:$0xff]
    %v1537 = vld [vmem:[#allocation2 + $0xf0] sm:$0xff]
    %v1538 = vld [vmem:[#allocation2 + $0xf8] sm:$0xff]
    %v1539 = vld [vmem:[#allocation8] sm:$0xff]
    %v1540 = vld [vmem:[#allocation8 + $0x8] sm:$0xff]
    %v1541 = vld [vmem:[#allocation8 + $0x10] sm:$0xff]
    %v1542 = vld [vmem:[#allocation8 + $0x18] sm:$0xff]
    %v1543 = vld [vmem:[#allocation8 + $0x20] sm:$0xff]
    %v1544 = vld [vmem:[#allocation8 + $0x28] sm:$0xff]
    %v1545 = vld [vmem:[#allocation8 + $0x30] sm:$0xff]
    %v1546 = vld [vmem:[#allocation8 + $0x38] sm:$0xff]
    %v1547 = vld [vmem:[#allocation8 + $0x40] sm:$0xff]
    %v1548 = vld [vmem:[#allocation8 + $0x48] sm:$0xff]
    %v1549 = vld [vmem:[#allocation8 + $0x50] sm:$0xff]
    %v1550 = vld [vmem:[#allocation8 + $0x58] sm:$0xff]
    %v1551 = vld [vmem:[#allocation8 + $0x60] sm:$0xff]
    %v1552 = vld [vmem:[#allocation8 + $0x68] sm:$0xff]
    %v1553 = vld [vmem:[#allocation8 + $0x70] sm:$0xff]
    %v1554 = vld [vmem:[#allocation8 + $0x78] sm:$0xff]
    %v1555 = vld [vmem:[#allocation8 + $0x80] sm:$0xff]
    %v1556 = vld [vmem:[#allocation8 + $0x88] sm:$0xff]
    %v1557 = vld [vmem:[#allocation8 + $0x90] sm:$0xff]
    %v1558 = vld [vmem:[#allocation8 + $0x98] sm:$0xff]
    %v1559 = vld [vmem:[#allocation8 + $0xa0] sm:$0xff]
    %v1560 = vld [vmem:[#allocation8 + $0xa8] sm:$0xff]
    %v1561 = vld [vmem:[#allocation8 + $0xb0] sm:$0xff]
    %v1562 = vld [vmem:[#allocation8 + $0xb8] sm:$0xff]
    %v1563 = vld [vmem:[#allocation8 + $0xc0] sm:$0xff]
    %v1564 = vld [vmem:[#allocation8 + $0xc8] sm:$0xff]
    %v1565 = vld [vmem:[#allocation8 + $0xd0] sm:$0xff]
    %v1566 = vld [vmem:[#allocation8 + $0xd8] sm:$0xff]
    %v1567 = vld [vmem:[#allocation8 + $0xe0] sm:$0xff]
    %v1568 = vld [vmem:[#allocation8 + $0xe8] sm:$0xff]
    %v1569 = vld [vmem:[#allocation8 + $0xf0] sm:$0xff]
    %v1570 = vld [vmem:[#allocation8 + $0xf8] sm:$0xff]
    %v1571 = vld [vmem:[#allocation8 + $0x100] sm:$0xff]
    %v1572 = vld [vmem:[#allocation8 + $0x108] sm:$0xff]
    %v1573 = vld [vmem:[#allocation8 + $0x110] sm:$0xff]
    %v1574 = vld [vmem:[#allocation8 + $0x118] sm:$0xff]
    %v1575 = vld [vmem:[#allocation8 + $0x120] sm:$0xff]
    %v1576 = vld [vmem:[#allocation8 + $0x128] sm:$0xff]
    %v1577 = vld [vmem:[#allocation8 + $0x130] sm:$0xff]
    %v1578 = vld [vmem:[#allocation8 + $0x138] sm:$0xff]
    %v1579 = vld [vmem:[#allocation8 + $0x140] sm:$0xff]
    %v1580 = vld [vmem:[#allocation8 + $0x148] sm:$0xff]
    %v1581 = vld [vmem:[#allocation8 + $0x150] sm:$0xff]
    %v1582 = vld [vmem:[#allocation8 + $0x158] sm:$0xff]
    %v1583 = vld [vmem:[#allocation8 + $0x160] sm:$0xff]
    %v1584 = vld [vmem:[#allocation8 + $0x168] sm:$0xff]
    %v1585 = vld [vmem:[#allocation8 + $0x170] sm:$0xff]
    %v1586 = vld [vmem:[#allocation8 + $0x178] sm:$0xff]
    %v1587 = vld [vmem:[#allocation8 + $0x180] sm:$0xff]
    %v1588 = vld [vmem:[#allocation8 + $0x188] sm:$0xff]
    %v1589 = vld [vmem:[#allocation8 + $0x190] sm:$0xff]
    %v1590 = vld [vmem:[#allocation8 + $0x198] sm:$0xff]
    %v1591 = vld [vmem:[#allocation8 + $0x1a0] sm:$0xff]
    %v1592 = vld [vmem:[#allocation8 + $0x1a8] sm:$0xff]
    %v1593 = vld [vmem:[#allocation8 + $0x1b0] sm:$0xff]
    %v1594 = vld [vmem:[#allocation8 + $0x1b8] sm:$0xff]
    %v1595 = vld [vmem:[#allocation8 + $0x1c0] sm:$0xff]
    %v1596 = vld [vmem:[#allocation8 + $0x1c8] sm:$0xff]
    %v1597 = vld [vmem:[#allocation8 + $0x1d0] sm:$0xff]
    %v1598 = vld [vmem:[#allocation8 + $0x1d8] sm:$0xff]
    %v1599 = vld [vmem:[#allocation8 + $0x1e0] sm:$0xff]
    %v1600 = vld [vmem:[#allocation8 + $0x1e8] sm:$0xff]
    %v1601 = vld [vmem:[#allocation8 + $0x1f0] sm:$0xff]
    %v1602 = vld [vmem:[#allocation8 + $0x1f8] sm:$0xff]
    %v1603 = vld [vmem:[#allocation8 + $0x200] sm:$0xff]
    %v1604 = vld [vmem:[#allocation8 + $0x208] sm:$0xff]
    %v1605 = vld [vmem:[#allocation8 + $0x210] sm:$0xff]
    %v1606 = vld [vmem:[#allocation8 + $0x218] sm:$0xff]
    %v1607 = vld [vmem:[#allocation8 + $0x220] sm:$0xff]
    %v1608 = vld [vmem:[#allocation8 + $0x228] sm:$0xff]
    %v1609 = vld [vmem:[#allocation8 + $0x230] sm:$0xff]
    %v1610 = vld [vmem:[#allocation8 + $0x238] sm:$0xff]
    %v1611 = vld [vmem:[#allocation8 + $0x240] sm:$0xff]
    %v1612 = vld [vmem:[#allocation8 + $0x248] sm:$0xff]
    %v1613 = vld [vmem:[#allocation8 + $0x250] sm:$0xff]
    %v1614 = vld [vmem:[#allocation8 + $0x258] sm:$0xff]
    %v1615 = vld [vmem:[#allocation8 + $0x260] sm:$0xff]
    %v1616 = vld [vmem:[#allocation8 + $0x268] sm:$0xff]
    %v1617 = vld [vmem:[#allocation8 + $0x270] sm:$0xff]
    %v1618 = vld [vmem:[#allocation8 + $0x278] sm:$0xff]
    %v1619 = vld [vmem:[#allocation8 + $0x280] sm:$0xff]
    %v1620 = vld [vmem:[#allocation8 + $0x288] sm:$0xff]
    %v1621 = vld [vmem:[#allocation8 + $0x290] sm:$0xff]
    %v1622 = vld [vmem:[#allocation8 + $0x298] sm:$0xff]
    %v1623 = vld [vmem:[#allocation8 + $0x2a0] sm:$0xff]
    %v1624 = vld [vmem:[#allocation8 + $0x2a8] sm:$0xff]
    %v1625 = vld [vmem:[#allocation8 + $0x2b0] sm:$0xff]
    %v1626 = vld [vmem:[#allocation8 + $0x2b8] sm:$0xff]
    %v1627 = vld [vmem:[#allocation8 + $0x2c0] sm:$0xff]
    %v1628 = vld [vmem:[#allocation8 + $0x2c8] sm:$0xff]
    %v1629 = vld [vmem:[#allocation8 + $0x2d0] sm:$0xff]
    %v1630 = vld [vmem:[#allocation8 + $0x2d8] sm:$0xff]
    %v1631 = vld [vmem:[#allocation8 + $0x2e0] sm:$0xff]
    %v1632 = vld [vmem:[#allocation8 + $0x2e8] sm:$0xff]
    %v1633 = vld [vmem:[#allocation8 + $0x2f0] sm:$0xff]
    %v1634 = vld [vmem:[#allocation8 + $0x2f8] sm:$0xff]
    %v1635 = vld [vmem:[#allocation8 + $0x300] sm:$0xff]
    %v1636 = vld [vmem:[#allocation8 + $0x308] sm:$0xff]
    %v1637 = vld [vmem:[#allocation8 + $0x310] sm:$0xff]
    %v1638 = vld [vmem:[#allocation8 + $0x318] sm:$0xff]
    %v1639 = vld [vmem:[#allocation8 + $0x320] sm:$0xff]
    %v1640 = vld [vmem:[#allocation8 + $0x328] sm:$0xff]
    %v1641 = vld [vmem:[#allocation8 + $0x330] sm:$0xff]
    %v1642 = vld [vmem:[#allocation8 + $0x338] sm:$0xff]
    %v1643 = vld [vmem:[#allocation8 + $0x340] sm:$0xff]
    %v1644 = vld [vmem:[#allocation8 + $0x348] sm:$0xff]
    %v1645 = vld [vmem:[#allocation8 + $0x350] sm:$0xff]
    %v1646 = vld [vmem:[#allocation8 + $0x358] sm:$0xff]
    %v1647 = vld [vmem:[#allocation8 + $0x360] sm:$0xff]
    %v1648 = vld [vmem:[#allocation8 + $0x368] sm:$0xff]
    %v1649 = vld [vmem:[#allocation8 + $0x370] sm:$0xff]
    %v1650 = vld [vmem:[#allocation8 + $0x378] sm:$0xff]
    %v1651 = vld [vmem:[#allocation8 + $0x380] sm:$0xff]
    %v1652 = vld [vmem:[#allocation8 + $0x388] sm:$0xff]
    %v1653 = vld [vmem:[#allocation8 + $0x390] sm:$0xff]
    %v1654 = vld [vmem:[#allocation8 + $0x398] sm:$0xff]
    %v1655 = vld [vmem:[#allocation8 + $0x3a0] sm:$0xff]
    %v1656 = vld [vmem:[#allocation8 + $0x3a8] sm:$0xff]
    %v1657 = vld [vmem:[#allocation8 + $0x3b0] sm:$0xff]
    %v1658 = vld [vmem:[#allocation8 + $0x3b8] sm:$0xff]
    %v1659 = vld [vmem:[#allocation8 + $0x3c0] sm:$0xff]
    %v1660 = vld [vmem:[#allocation8 + $0x3c8] sm:$0xff]
    %v1661 = vld [vmem:[#allocation8 + $0x3d0] sm:$0xff]
    %v1662 = vld [vmem:[#allocation8 + $0x3d8] sm:$0xff]
    %v1663 = vld [vmem:[#allocation8 + $0x3e0] sm:$0xff]
    %v1664 = vld [vmem:[#allocation8 + $0x3e8] sm:$0xff]
    %v1665 = vld [vmem:[#allocation8 + $0x3f0] sm:$0xff]
    %v1666 = vld [vmem:[#allocation8 + $0x3f8] sm:$0xff]
    %v1667 = vld [vmem:[#allocation8 + $0x400] sm:$0xff]
    %v1668 = vld [vmem:[#allocation8 + $0x408] sm:$0xff]
    %v1669 = vld [vmem:[#allocation8 + $0x410] sm:$0xff]
    %v1670 = vld [vmem:[#allocation8 + $0x418] sm:$0xff]
    %v1671 = vld [vmem:[#allocation8 + $0x420] sm:$0xff]
    %v1672 = vld [vmem:[#allocation8 + $0x428] sm:$0xff]
    %v1673 = vld [vmem:[#allocation8 + $0x430] sm:$0xff]
    %v1674 = vld [vmem:[#allocation8 + $0x438] sm:$0xff]
    %v1675 = vld [vmem:[#allocation8 + $0x440] sm:$0xff]
    %v1676 = vld [vmem:[#allocation8 + $0x448] sm:$0xff]
    %v1677 = vld [vmem:[#allocation8 + $0x450] sm:$0xff]
    %v1678 = vld [vmem:[#allocation8 + $0x458] sm:$0xff]
    %v1679 = vld [vmem:[#allocation8 + $0x460] sm:$0xff]
    %v1680 = vld [vmem:[#allocation8 + $0x468] sm:$0xff]
    %v1681 = vld [vmem:[#allocation8 + $0x470] sm:$0xff]
    %v1682 = vld [vmem:[#allocation8 + $0x478] sm:$0xff]
    %v1683 = vld [vmem:[#allocation8 + $0x480] sm:$0xff]
    %v1684 = vld [vmem:[#allocation8 + $0x488] sm:$0xff]
    %v1685 = vld [vmem:[#allocation8 + $0x490] sm:$0xff]
    %v1686 = vld [vmem:[#allocation8 + $0x498] sm:$0xff]
    %v1687 = vld [vmem:[#allocation8 + $0x4a0] sm:$0xff]
    %v1688 = vld [vmem:[#allocation8 + $0x4a8] sm:$0xff]
    %v1689 = vld [vmem:[#allocation8 + $0x4b0] sm:$0xff]
    %v1690 = vld [vmem:[#allocation8 + $0x4b8] sm:$0xff]
    %v1691 = vld [vmem:[#allocation8 + $0x4c0] sm:$0xff]
    %v1692 = vld [vmem:[#allocation8 + $0x4c8] sm:$0xff]
    %v1693 = vld [vmem:[#allocation8 + $0x4d0] sm:$0xff]
    %v1694 = vld [vmem:[#allocation8 + $0x4d8] sm:$0xff]
    %v1695 = vld [vmem:[#allocation8 + $0x4e0] sm:$0xff]
    %v1696 = vld [vmem:[#allocation8 + $0x4e8] sm:$0xff]
    %v1697 = vld [vmem:[#allocation8 + $0x4f0] sm:$0xff]
    %v1698 = vld [vmem:[#allocation8 + $0x4f8] sm:$0xff]
    %v1699 = vld [vmem:[#allocation8 + $0x500] sm:$0xff]
    %v1700 = vld [vmem:[#allocation8 + $0x508] sm:$0xff]
    %v1701 = vld [vmem:[#allocation8 + $0x510] sm:$0xff]
    %v1702 = vld [vmem:[#allocation8 + $0x518] sm:$0xff]
    %v1703 = vld [vmem:[#allocation8 + $0x520] sm:$0xff]
    %v1704 = vld [vmem:[#allocation8 + $0x528] sm:$0xff]
    %v1705 = vld [vmem:[#allocation8 + $0x530] sm:$0xff]
    %v1706 = vld [vmem:[#allocation8 + $0x538] sm:$0xff]
    %v1707 = vld [vmem:[#allocation8 + $0x540] sm:$0xff]
    %v1708 = vld [vmem:[#allocation8 + $0x548] sm:$0xff]
    %v1709 = vld [vmem:[#allocation8 + $0x550] sm:$0xff]
    %v1710 = vld [vmem:[#allocation8 + $0x558] sm:$0xff]
    %v1711 = vld [vmem:[#allocation8 + $0x560] sm:$0xff]
    %v1712 = vld [vmem:[#allocation8 + $0x568] sm:$0xff]
    %v1713 = vld [vmem:[#allocation8 + $0x570] sm:$0xff]
    %v1714 = vld [vmem:[#allocation8 + $0x578] sm:$0xff]
    %v1715 = vld [vmem:[#allocation8 + $0x580] sm:$0xff]
    %v1716 = vld [vmem:[#allocation8 + $0x588] sm:$0xff]
    %v1717 = vld [vmem:[#allocation8 + $0x590] sm:$0xff]
    %v1718 = vld [vmem:[#allocation8 + $0x598] sm:$0xff]
    %v1719 = vld [vmem:[#allocation8 + $0x5a0] sm:$0xff]
    %v1720 = vld [vmem:[#allocation8 + $0x5a8] sm:$0xff]
    %v1721 = vld [vmem:[#allocation8 + $0x5b0] sm:$0xff]
    %v1722 = vld [vmem:[#allocation8 + $0x5b8] sm:$0xff]
    %v1723 = vld [vmem:[#allocation8 + $0x5c0] sm:$0xff]
    %v1724 = vld [vmem:[#allocation8 + $0x5c8] sm:$0xff]
    %v1725 = vld [vmem:[#allocation8 + $0x5d0] sm:$0xff]
    %v1726 = vld [vmem:[#allocation8 + $0x5d8] sm:$0xff]
    %v1727 = vld [vmem:[#allocation8 + $0x5e0] sm:$0xff]
    %v1728 = vld [vmem:[#allocation8 + $0x5e8] sm:$0xff]
    %v1729 = vld [vmem:[#allocation8 + $0x5f0] sm:$0xff]
    %v1730 = vld [vmem:[#allocation8 + $0x5f8] sm:$0xff]
    %v1731 = vld [vmem:[#allocation8 + $0x600] sm:$0xff]
    %v1732 = vld [vmem:[#allocation8 + $0x608] sm:$0xff]
    %v1733 = vld [vmem:[#allocation8 + $0x610] sm:$0xff]
    %v1734 = vld [vmem:[#allocation8 + $0x618] sm:$0xff]
    %v1735 = vld [vmem:[#allocation8 + $0x620] sm:$0xff]
    %v1736 = vld [vmem:[#allocation8 + $0x628] sm:$0xff]
    %v1737 = vld [vmem:[#allocation8 + $0x630] sm:$0xff]
    %v1738 = vld [vmem:[#allocation8 + $0x638] sm:$0xff]
    %v1739 = vld [vmem:[#allocation8 + $0x640] sm:$0xff]
    %v1740 = vld [vmem:[#allocation8 + $0x648] sm:$0xff]
    %v1741 = vld [vmem:[#allocation8 + $0x650] sm:$0xff]
    %v1742 = vld [vmem:[#allocation8 + $0x658] sm:$0xff]
    %v1743 = vld [vmem:[#allocation8 + $0x660] sm:$0xff]
    %v1744 = vld [vmem:[#allocation8 + $0x668] sm:$0xff]
    %v1745 = vld [vmem:[#allocation8 + $0x670] sm:$0xff]
    %v1746 = vld [vmem:[#allocation8 + $0x678] sm:$0xff]
    %v1747 = vld [vmem:[#allocation8 + $0x680] sm:$0xff]
    %v1748 = vld [vmem:[#allocation8 + $0x688] sm:$0xff]
    %v1749 = vld [vmem:[#allocation8 + $0x690] sm:$0xff]
    %v1750 = vld [vmem:[#allocation8 + $0x698] sm:$0xff]
    %v1751 = vld [vmem:[#allocation8 + $0x6a0] sm:$0xff]
    %v1752 = vld [vmem:[#allocation8 + $0x6a8] sm:$0xff]
    %v1753 = vld [vmem:[#allocation8 + $0x6b0] sm:$0xff]
    %v1754 = vld [vmem:[#allocation8 + $0x6b8] sm:$0xff]
    %v1755 = vld [vmem:[#allocation8 + $0x6c0] sm:$0xff]
    %v1756 = vld [vmem:[#allocation8 + $0x6c8] sm:$0xff]
    %v1757 = vld [vmem:[#allocation8 + $0x6d0] sm:$0xff]
    %v1758 = vld [vmem:[#allocation8 + $0x6d8] sm:$0xff]
    %v1759 = vld [vmem:[#allocation8 + $0x6e0] sm:$0xff]
    %v1760 = vld [vmem:[#allocation8 + $0x6e8] sm:$0xff]
    %v1761 = vld [vmem:[#allocation8 + $0x6f0] sm:$0xff]
    %v1762 = vld [vmem:[#allocation8 + $0x6f8] sm:$0xff]
    %v1763 = vld [vmem:[#allocation8 + $0x700] sm:$0xff]
    %v1764 = vld [vmem:[#allocation8 + $0x708] sm:$0xff]
    %v1765 = vld [vmem:[#allocation8 + $0x710] sm:$0xff]
    %v1766 = vld [vmem:[#allocation8 + $0x718] sm:$0xff]
    %v1767 = vld [vmem:[#allocation8 + $0x720] sm:$0xff]
    %v1768 = vld [vmem:[#allocation8 + $0x728] sm:$0xff]
    %v1769 = vld [vmem:[#allocation8 + $0x730] sm:$0xff]
    %v1770 = vld [vmem:[#allocation8 + $0x738] sm:$0xff]
    %v1771 = vld [vmem:[#allocation8 + $0x740] sm:$0xff]
    %v1772 = vld [vmem:[#allocation8 + $0x748] sm:$0xff]
    %v1773 = vld [vmem:[#allocation8 + $0x750] sm:$0xff]
    %v1774 = vld [vmem:[#allocation8 + $0x758] sm:$0xff]
    %v1775 = vld [vmem:[#allocation8 + $0x760] sm:$0xff]
    %v1776 = vld [vmem:[#allocation8 + $0x768] sm:$0xff]
    %v1777 = vld [vmem:[#allocation8 + $0x770] sm:$0xff]
    %v1778 = vld [vmem:[#allocation8 + $0x778] sm:$0xff]
    %v1779 = vld [vmem:[#allocation8 + $0x780] sm:$0xff]
    %v1780 = vld [vmem:[#allocation8 + $0x788] sm:$0xff]
    %v1781 = vld [vmem:[#allocation8 + $0x790] sm:$0xff]
    %v1782 = vld [vmem:[#allocation8 + $0x798] sm:$0xff]
    %v1783 = vld [vmem:[#allocation8 + $0x7a0] sm:$0xff]
    %v1784 = vld [vmem:[#allocation8 + $0x7a8] sm:$0xff]
    %v1785 = vld [vmem:[#allocation8 + $0x7b0] sm:$0xff]
    %v1786 = vld [vmem:[#allocation8 + $0x7b8] sm:$0xff]
    %v1787 = vld [vmem:[#allocation8 + $0x7c0] sm:$0xff]
    %v1788 = vld [vmem:[#allocation8 + $0x7c8] sm:$0xff]
    %v1789 = vld [vmem:[#allocation8 + $0x7d0] sm:$0xff]
    %v1790 = vld [vmem:[#allocation8 + $0x7d8] sm:$0xff]
    %v1791 = vld [vmem:[#allocation8 + $0x7e0] sm:$0xff]
    %v1792 = vld [vmem:[#allocation8 + $0x7e8] sm:$0xff]
    %v1793 = vld [vmem:[#allocation8 + $0x7f0] sm:$0xff]
    %v1794 = vld [vmem:[#allocation8 + $0x7f8] sm:$0xff]
    %v1795 = vld [vmem:[#allocation8 + $0x800] sm:$0xff]
    %v1796 = vld [vmem:[#allocation8 + $0x808] sm:$0xff]
    %v1797 = vld [vmem:[#allocation8 + $0x810] sm:$0xff]
    %v1798 = vld [vmem:[#allocation8 + $0x818] sm:$0xff]
    %v1799 = vld [vmem:[#allocation8 + $0x820] sm:$0xff]
    %v1800 = vld [vmem:[#allocation8 + $0x828] sm:$0xff]
    %v1801 = vld [vmem:[#allocation8 + $0x830] sm:$0xff]
    %v1802 = vld [vmem:[#allocation8 + $0x838] sm:$0xff]
    %v1803 = vld [vmem:[#allocation8 + $0x840] sm:$0xff]
    %v1804 = vld [vmem:[#allocation8 + $0x848] sm:$0xff]
    %v1805 = vld [vmem:[#allocation8 + $0x850] sm:$0xff]
    %v1806 = vld [vmem:[#allocation8 + $0x858] sm:$0xff]
    %v1807 = vld [vmem:[#allocation8 + $0x860] sm:$0xff]
    %v1808 = vld [vmem:[#allocation8 + $0x868] sm:$0xff]
    %v1809 = vld [vmem:[#allocation8 + $0x870] sm:$0xff]
    %v1810 = vld [vmem:[#allocation8 + $0x878] sm:$0xff]
    %v1811 = vld [vmem:[#allocation8 + $0x880] sm:$0xff]
    %v1812 = vld [vmem:[#allocation8 + $0x888] sm:$0xff]
    %v1813 = vld [vmem:[#allocation8 + $0x890] sm:$0xff]
    %v1814 = vld [vmem:[#allocation8 + $0x898] sm:$0xff]
    %v1815 = vld [vmem:[#allocation8 + $0x8a0] sm:$0xff]
    %v1816 = vld [vmem:[#allocation8 + $0x8a8] sm:$0xff]
    %v1817 = vld [vmem:[#allocation8 + $0x8b0] sm:$0xff]
    %v1818 = vld [vmem:[#allocation8 + $0x8b8] sm:$0xff]
    %v1819 = vld [vmem:[#allocation8 + $0x8c0] sm:$0xff]
    %v1820 = vld [vmem:[#allocation8 + $0x8c8] sm:$0xff]
    %v1821 = vld [vmem:[#allocation8 + $0x8d0] sm:$0xff]
    %v1822 = vld [vmem:[#allocation8 + $0x8d8] sm:$0xff]
    %v1823 = vld [vmem:[#allocation8 + $0x8e0] sm:$0xff]
    %v1824 = vld [vmem:[#allocation8 + $0x8e8] sm:$0xff]
    %v1825 = vld [vmem:[#allocation8 + $0x8f0] sm:$0xff]
    %v1826 = vld [vmem:[#allocation8 + $0x8f8] sm:$0xff]
    %v1827 = vld [vmem:[#allocation8 + $0x900] sm:$0xff]
    %v1828 = vld [vmem:[#allocation8 + $0x908] sm:$0xff]
    %v1829 = vld [vmem:[#allocation8 + $0x910] sm:$0xff]
    %v1830 = vld [vmem:[#allocation8 + $0x918] sm:$0xff]
    %v1831 = vld [vmem:[#allocation8 + $0x920] sm:$0xff]
    %v1832 = vld [vmem:[#allocation8 + $0x928] sm:$0xff]
    %v1833 = vld [vmem:[#allocation8 + $0x930] sm:$0xff]
    %v1834 = vld [vmem:[#allocation8 + $0x938] sm:$0xff]
    %v1835 = vld [vmem:[#allocation8 + $0x940] sm:$0xff]
    %v1836 = vld [vmem:[#allocation8 + $0x948] sm:$0xff]
    %v1837 = vld [vmem:[#allocation8 + $0x950] sm:$0xff]
    %v1838 = vld [vmem:[#allocation8 + $0x958] sm:$0xff]
    %v1839 = vld [vmem:[#allocation8 + $0x960] sm:$0xff]
    %v1840 = vld [vmem:[#allocation8 + $0x968] sm:$0xff]
    %v1841 = vld [vmem:[#allocation8 + $0x970] sm:$0xff]
    %v1842 = vld [vmem:[#allocation8 + $0x978] sm:$0xff]
    %v1843 = vld [vmem:[#allocation8 + $0x980] sm:$0xff]
    %v1844 = vld [vmem:[#allocation8 + $0x988] sm:$0xff]
    %v1845 = vld [vmem:[#allocation8 + $0x990] sm:$0xff]
    %v1846 = vld [vmem:[#allocation8 + $0x998] sm:$0xff]
    %v1847 = vld [vmem:[#allocation8 + $0x9a0] sm:$0xff]
    %v1848 = vld [vmem:[#allocation8 + $0x9a8] sm:$0xff]
    %v1849 = vld [vmem:[#allocation8 + $0x9b0] sm:$0xff]
    %v1850 = vld [vmem:[#allocation8 + $0x9b8] sm:$0xff]
    %v1851 = vld [vmem:[#allocation8 + $0x9c0] sm:$0xff]
    %v1852 = vld [vmem:[#allocation8 + $0x9c8] sm:$0xff]
    %v1853 = vld [vmem:[#allocation8 + $0x9d0] sm:$0xff]
    %v1854 = vld [vmem:[#allocation8 + $0x9d8] sm:$0xff]
    %v1855 = vld [vmem:[#allocation8 + $0x9e0] sm:$0xff]
    %v1856 = vld [vmem:[#allocation8 + $0x9e8] sm:$0xff]
    %v1857 = vld [vmem:[#allocation8 + $0x9f0] sm:$0xff]
    %v1858 = vld [vmem:[#allocation8 + $0x9f8] sm:$0xff]
    %v1859 = vld [vmem:[#allocation8 + $0xa00] sm:$0xff]
    %v1860 = vld [vmem:[#allocation8 + $0xa08] sm:$0xff]
    %v1861 = vld [vmem:[#allocation8 + $0xa10] sm:$0xff]
    %v1862 = vld [vmem:[#allocation8 + $0xa18] sm:$0xff]
    %v1863 = vld [vmem:[#allocation8 + $0xa20] sm:$0xff]
    %v1864 = vld [vmem:[#allocation8 + $0xa28] sm:$0xff]
    %v1865 = vld [vmem:[#allocation8 + $0xa30] sm:$0xff]
    %v1866 = vld [vmem:[#allocation8 + $0xa38] sm:$0xff]
    %v1867 = vld [vmem:[#allocation8 + $0xa40] sm:$0xff]
    %v1868 = vld [vmem:[#allocation8 + $0xa48] sm:$0xff]
    %v1869 = vld [vmem:[#allocation8 + $0xa50] sm:$0xff]
    %v1870 = vld [vmem:[#allocation8 + $0xa58] sm:$0xff]
    %v1871 = vld [vmem:[#allocation8 + $0xa60] sm:$0xff]
    %v1872 = vld [vmem:[#allocation8 + $0xa68] sm:$0xff]
    %v1873 = vld [vmem:[#allocation8 + $0xa70] sm:$0xff]
    %v1874 = vld [vmem:[#allocation8 + $0xa78] sm:$0xff]
    %v1875 = vld [vmem:[#allocation8 + $0xa80] sm:$0xff]
    %v1876 = vld [vmem:[#allocation8 + $0xa88] sm:$0xff]
    %v1877 = vld [vmem:[#allocation8 + $0xa90] sm:$0xff]
    %v1878 = vld [vmem:[#allocation8 + $0xa98] sm:$0xff]
    %v1879 = vld [vmem:[#allocation8 + $0xaa0] sm:$0xff]
    %v1880 = vld [vmem:[#allocation8 + $0xaa8] sm:$0xff]
    %v1881 = vld [vmem:[#allocation8 + $0xab0] sm:$0xff]
    %v1882 = vld [vmem:[#allocation8 + $0xab8] sm:$0xff]
    %v1883 = vld [vmem:[#allocation8 + $0xac0] sm:$0xff]
    %v1884 = vld [vmem:[#allocation8 + $0xac8] sm:$0xff]
    %v1885 = vld [vmem:[#allocation8 + $0xad0] sm:$0xff]
    %v1886 = vld [vmem:[#allocation8 + $0xad8] sm:$0xff]
    %v1887 = vld [vmem:[#allocation8 + $0xae0] sm:$0xff]
    %v1888 = vld [vmem:[#allocation8 + $0xae8] sm:$0xff]
    %v1889 = vld [vmem:[#allocation8 + $0xaf0] sm:$0xff]
    %v1890 = vld [vmem:[#allocation8 + $0xaf8] sm:$0xff]
    %v1891 = vld [vmem:[#allocation8 + $0xb00] sm:$0xff]
    %v1892 = vld [vmem:[#allocation8 + $0xb08] sm:$0xff]
    %v1893 = vld [vmem:[#allocation8 + $0xb10] sm:$0xff]
    %v1894 = vld [vmem:[#allocation8 + $0xb18] sm:$0xff]
    %v1895 = vld [vmem:[#allocation8 + $0xb20] sm:$0xff]
    %v1896 = vld [vmem:[#allocation8 + $0xb28] sm:$0xff]
    %v1897 = vld [vmem:[#allocation8 + $0xb30] sm:$0xff]
    %v1898 = vld [vmem:[#allocation8 + $0xb38] sm:$0xff]
    %v1899 = vld [vmem:[#allocation8 + $0xb40] sm:$0xff]
    %v1900 = vld [vmem:[#allocation8 + $0xb48] sm:$0xff]
    %v1901 = vld [vmem:[#allocation8 + $0xb50] sm:$0xff]
    %v1902 = vld [vmem:[#allocation8 + $0xb58] sm:$0xff]
    %v1903 = vld [vmem:[#allocation8 + $0xb60] sm:$0xff]
    %v1904 = vld [vmem:[#allocation8 + $0xb68] sm:$0xff]
    %v1905 = vld [vmem:[#allocation8 + $0xb70] sm:$0xff]
    %v1906 = vld [vmem:[#allocation8 + $0xb78] sm:$0xff]
    %v1907 = vld [vmem:[#allocation8 + $0xb80] sm:$0xff]
    %v1908 = vld [vmem:[#allocation8 + $0xb88] sm:$0xff]
    %v1909 = vld [vmem:[#allocation8 + $0xb90] sm:$0xff]
    %v1910 = vld [vmem:[#allocation8 + $0xb98] sm:$0xff]
    %v1911 = vld [vmem:[#allocation8 + $0xba0] sm:$0xff]
    %v1912 = vld [vmem:[#allocation8 + $0xba8] sm:$0xff]
    %v1913 = vld [vmem:[#allocation8 + $0xbb0] sm:$0xff]
    %v1914 = vld [vmem:[#allocation8 + $0xbb8] sm:$0xff]
    %v1915 = vld [vmem:[#allocation8 + $0xbc0] sm:$0xff]
    %v1916 = vld [vmem:[#allocation8 + $0xbc8] sm:$0xff]
    %v1917 = vld [vmem:[#allocation8 + $0xbd0] sm:$0xff]
    %v1918 = vld [vmem:[#allocation8 + $0xbd8] sm:$0xff]
    %v1919 = vld [vmem:[#allocation8 + $0xbe0] sm:$0xff]
    %v1920 = vld [vmem:[#allocation8 + $0xbe8] sm:$0xff]
    %v1921 = vld [vmem:[#allocation8 + $0xbf0] sm:$0xff]
    %v1922 = vld [vmem:[#allocation8 + $0xbf8] sm:$0xff]
    %v1923 = vld [vmem:[#allocation8 + $0xc00] sm:$0xff]
    %v1924 = vld [vmem:[#allocation8 + $0xc08] sm:$0xff]
    %v1925 = vld [vmem:[#allocation8 + $0xc10] sm:$0xff]
    %v1926 = vld [vmem:[#allocation8 + $0xc18] sm:$0xff]
    %v1927 = vld [vmem:[#allocation8 + $0xc20] sm:$0xff]
    %v1928 = vld [vmem:[#allocation8 + $0xc28] sm:$0xff]
    %v1929 = vld [vmem:[#allocation8 + $0xc30] sm:$0xff]
    %v1930 = vld [vmem:[#allocation8 + $0xc38] sm:$0xff]
    %v1931 = vld [vmem:[#allocation8 + $0xc40] sm:$0xff]
    %v1932 = vld [vmem:[#allocation8 + $0xc48] sm:$0xff]
    %v1933 = vld [vmem:[#allocation8 + $0xc50] sm:$0xff]
    %v1934 = vld [vmem:[#allocation8 + $0xc58] sm:$0xff]
    %v1935 = vld [vmem:[#allocation8 + $0xc60] sm:$0xff]
    %v1936 = vld [vmem:[#allocation8 + $0xc68] sm:$0xff]
    %v1937 = vld [vmem:[#allocation8 + $0xc70] sm:$0xff]
    %v1938 = vld [vmem:[#allocation8 + $0xc78] sm:$0xff]
    %v1939 = vld [vmem:[#allocation8 + $0xc80] sm:$0xff]
    %v1940 = vld [vmem:[#allocation8 + $0xc88] sm:$0xff]
    %v1941 = vld [vmem:[#allocation8 + $0xc90] sm:$0xff]
    %v1942 = vld [vmem:[#allocation8 + $0xc98] sm:$0xff]
    %v1943 = vld [vmem:[#allocation8 + $0xca0] sm:$0xff]
    %v1944 = vld [vmem:[#allocation8 + $0xca8] sm:$0xff]
    %v1945 = vld [vmem:[#allocation8 + $0xcb0] sm:$0xff]
    %v1946 = vld [vmem:[#allocation8 + $0xcb8] sm:$0xff]
    %v1947 = vld [vmem:[#allocation8 + $0xcc0] sm:$0xff]
    %v1948 = vld [vmem:[#allocation8 + $0xcc8] sm:$0xff]
    %v1949 = vld [vmem:[#allocation8 + $0xcd0] sm:$0xff]
    %v1950 = vld [vmem:[#allocation8 + $0xcd8] sm:$0xff]
    %v1951 = vld [vmem:[#allocation8 + $0xce0] sm:$0xff]
    %v1952 = vld [vmem:[#allocation8 + $0xce8] sm:$0xff]
    %v1953 = vld [vmem:[#allocation8 + $0xcf0] sm:$0xff]
    %v1954 = vld [vmem:[#allocation8 + $0xcf8] sm:$0xff]
    %v1955 = vld [vmem:[#allocation8 + $0xd00] sm:$0xff]
    %v1956 = vld [vmem:[#allocation8 + $0xd08] sm:$0xff]
    %v1957 = vld [vmem:[#allocation8 + $0xd10] sm:$0xff]
    %v1958 = vld [vmem:[#allocation8 + $0xd18] sm:$0xff]
    %v1959 = vld [vmem:[#allocation8 + $0xd20] sm:$0xff]
    %v1960 = vld [vmem:[#allocation8 + $0xd28] sm:$0xff]
    %v1961 = vld [vmem:[#allocation8 + $0xd30] sm:$0xff]
    %v1962 = vld [vmem:[#allocation8 + $0xd38] sm:$0xff]
    %v1963 = vld [vmem:[#allocation8 + $0xd40] sm:$0xff]
    %v1964 = vld [vmem:[#allocation8 + $0xd48] sm:$0xff]
    %v1965 = vld [vmem:[#allocation8 + $0xd50] sm:$0xff]
    %v1966 = vld [vmem:[#allocation8 + $0xd58] sm:$0xff]
    %v1967 = vld [vmem:[#allocation8 + $0xd60] sm:$0xff]
    %v1968 = vld [vmem:[#allocation8 + $0xd68] sm:$0xff]
    %v1969 = vld [vmem:[#allocation8 + $0xd70] sm:$0xff]
    %v1970 = vld [vmem:[#allocation8 + $0xd78] sm:$0xff]
    %v1971 = vld [vmem:[#allocation8 + $0xd80] sm:$0xff]
    %v1972 = vld [vmem:[#allocation8 + $0xd88] sm:$0xff]
    %v1973 = vld [vmem:[#allocation8 + $0xd90] sm:$0xff]
    %v1974 = vld [vmem:[#allocation8 + $0xd98] sm:$0xff]
    %v1975 = vld [vmem:[#allocation8 + $0xda0] sm:$0xff]
    %v1976 = vld [vmem:[#allocation8 + $0xda8] sm:$0xff]
    %v1977 = vld [vmem:[#allocation8 + $0xdb0] sm:$0xff]
    %v1978 = vld [vmem:[#allocation8 + $0xdb8] sm:$0xff]
    %v1979 = vld [vmem:[#allocation8 + $0xdc0] sm:$0xff]
    %v1980 = vld [vmem:[#allocation8 + $0xdc8] sm:$0xff]
    %v1981 = vld [vmem:[#allocation8 + $0xdd0] sm:$0xff]
    %v1982 = vld [vmem:[#allocation8 + $0xdd8] sm:$0xff]
    %v1983 = vld [vmem:[#allocation8 + $0xde0] sm:$0xff]
    %v1984 = vld [vmem:[#allocation8 + $0xde8] sm:$0xff]
    %v1985 = vld [vmem:[#allocation8 + $0xdf0] sm:$0xff]
    %v1986 = vld [vmem:[#allocation8 + $0xdf8] sm:$0xff]
    %v1987 = vld [vmem:[#allocation8 + $0xe00] sm:$0xff]
    %v1988 = vld [vmem:[#allocation8 + $0xe08] sm:$0xff]
    %v1989 = vld [vmem:[#allocation8 + $0xe10] sm:$0xff]
    %v1990 = vld [vmem:[#allocation8 + $0xe18] sm:$0xff]
    %v1991 = vld [vmem:[#allocation8 + $0xe20] sm:$0xff]
    %v1992 = vld [vmem:[#allocation8 + $0xe28] sm:$0xff]
    %v1993 = vld [vmem:[#allocation8 + $0xe30] sm:$0xff]
    %v1994 = vld [vmem:[#allocation8 + $0xe38] sm:$0xff]
    %v1995 = vld [vmem:[#allocation8 + $0xe40] sm:$0xff]
    %v1996 = vld [vmem:[#allocation8 + $0xe48] sm:$0xff]
    %v1997 = vld [vmem:[#allocation8 + $0xe50] sm:$0xff]
    %v1998 = vld [vmem:[#allocation8 + $0xe58] sm:$0xff]
    %v1999 = vld [vmem:[#allocation8 + $0xe60] sm:$0xff]
    %v2000 = vld [vmem:[#allocation8 + $0xe68] sm:$0xff]
    %v2001 = vld [vmem:[#allocation8 + $0xe70] sm:$0xff]
    %v2002 = vld [vmem:[#allocation8 + $0xe78] sm:$0xff]
    %v2003 = vld [vmem:[#allocation8 + $0xe80] sm:$0xff]
    %v2004 = vld [vmem:[#allocation8 + $0xe88] sm:$0xff]
    %v2005 = vld [vmem:[#allocation8 + $0xe90] sm:$0xff]
    %v2006 = vld [vmem:[#allocation8 + $0xe98] sm:$0xff]
    %v2007 = vld [vmem:[#allocation8 + $0xea0] sm:$0xff]
    %v2008 = vld [vmem:[#allocation8 + $0xea8] sm:$0xff]
    %v2009 = vld [vmem:[#allocation8 + $0xeb0] sm:$0xff]
    %v2010 = vld [vmem:[#allocation8 + $0xeb8] sm:$0xff]
    %v2011 = vld [vmem:[#allocation8 + $0xec0] sm:$0xff]
    %v2012 = vld [vmem:[#allocation8 + $0xec8] sm:$0xff]
    %v2013 = vld [vmem:[#allocation8 + $0xed0] sm:$0xff]
    %v2014 = vld [vmem:[#allocation8 + $0xed8] sm:$0xff]
    %v2015 = vld [vmem:[#allocation8 + $0xee0] sm:$0xff]
    %v2016 = vld [vmem:[#allocation8 + $0xee8] sm:$0xff]
    %v2017 = vld [vmem:[#allocation8 + $0xef0] sm:$0xff]
    %v2018 = vld [vmem:[#allocation8 + $0xef8] sm:$0xff]
    %v2019 = vld [vmem:[#allocation8 + $0xf00] sm:$0xff]
    %v2020 = vld [vmem:[#allocation8 + $0xf08] sm:$0xff]
    %v2021 = vld [vmem:[#allocation8 + $0xf10] sm:$0xff]
    %v2022 = vld [vmem:[#allocation8 + $0xf18] sm:$0xff]
    %v2023 = vld [vmem:[#allocation8 + $0xf20] sm:$0xff]
    %v2024 = vld [vmem:[#allocation8 + $0xf28] sm:$0xff]
    %v2025 = vld [vmem:[#allocation8 + $0xf30] sm:$0xff]
    %v2026 = vld [vmem:[#allocation8 + $0xf38] sm:$0xff]
    %v2027 = vld [vmem:[#allocation8 + $0xf40] sm:$0xff]
    %v2028 = vld [vmem:[#allocation8 + $0xf48] sm:$0xff]
    %v2029 = vld [vmem:[#allocation8 + $0xf50] sm:$0xff]
    %v2030 = vld [vmem:[#allocation8 + $0xf58] sm:$0xff]
    %v2031 = vld [vmem:[#allocation8 + $0xf60] sm:$0xff]
    %v2032 = vld [vmem:[#allocation8 + $0xf68] sm:$0xff]
    %v2033 = vld [vmem:[#allocation8 + $0xf70] sm:$0xff]
    %v2034 = vld [vmem:[#allocation8 + $0xf78] sm:$0xff]
    %v2035 = vld [vmem:[#allocation8 + $0xf80] sm:$0xff]
    %v2036 = vld [vmem:[#allocation8 + $0xf88] sm:$0xff]
    %v2037 = vld [vmem:[#allocation8 + $0xf90] sm:$0xff]
    %v2038 = vld [vmem:[#allocation8 + $0xf98] sm:$0xff]
    %v2039 = vld [vmem:[#allocation8 + $0xfa0] sm:$0xff]
    %v2040 = vld [vmem:[#allocation8 + $0xfa8] sm:$0xff]
    %v2041 = vld [vmem:[#allocation8 + $0xfb0] sm:$0xff]
    %v2042 = vld [vmem:[#allocation8 + $0xfb8] sm:$0xff]
    %v2043 = vld [vmem:[#allocation8 + $0xfc0] sm:$0xff]
    %v2044 = vld [vmem:[#allocation8 + $0xfc8] sm:$0xff]
    %v2045 = vld [vmem:[#allocation8 + $0xfd0] sm:$0xff]
    %v2046 = vld [vmem:[#allocation8 + $0xfd8] sm:$0xff]
    %v2047 = vld [vmem:[#allocation8 + $0xfe0] sm:$0xff]
    %v2048 = vld [vmem:[#allocation8 + $0xfe8] sm:$0xff]
    %v2049 = vld [vmem:[#allocation8 + $0xff0] sm:$0xff]
    %v2050 = vld [vmem:[#allocation8 + $0xff8] sm:$0xff]
    %v2051 = vld [vmem:[#allocation8 + $0x1000] sm:$0xff]
    %v2052 = vld [vmem:[#allocation8 + $0x1008] sm:$0xff]
    %v2053 = vld [vmem:[#allocation8 + $0x1010] sm:$0xff]
    %v2054 = vld [vmem:[#allocation8 + $0x1018] sm:$0xff]
    %v2055 = vld [vmem:[#allocation8 + $0x1020] sm:$0xff]
    %v2056 = vld [vmem:[#allocation8 + $0x1028] sm:$0xff]
    %v2057 = vld [vmem:[#allocation8 + $0x1030] sm:$0xff]
    %v2058 = vld [vmem:[#allocation8 + $0x1038] sm:$0xff]
    %v2059 = vld [vmem:[#allocation8 + $0x1040] sm:$0xff]
    %v2060 = vld [vmem:[#allocation8 + $0x1048] sm:$0xff]
    %v2061 = vld [vmem:[#allocation8 + $0x1050] sm:$0xff]
    %v2062 = vld [vmem:[#allocation8 + $0x1058] sm:$0xff]
    %v2063 = vld [vmem:[#allocation8 + $0x1060] sm:$0xff]
    %v2064 = vld [vmem:[#allocation8 + $0x1068] sm:$0xff]
    %v2065 = vld [vmem:[#allocation8 + $0x1070] sm:$0xff]
    %v2066 = vld [vmem:[#allocation8 + $0x1078] sm:$0xff]
    %v2067 = vld [vmem:[#allocation8 + $0x1080] sm:$0xff]
    %v2068 = vld [vmem:[#allocation8 + $0x1088] sm:$0xff]
    %v2069 = vld [vmem:[#allocation8 + $0x1090] sm:$0xff]
    %v2070 = vld [vmem:[#allocation8 + $0x1098] sm:$0xff]
    %v2071 = vld [vmem:[#allocation8 + $0x10a0] sm:$0xff]
    %v2072 = vld [vmem:[#allocation8 + $0x10a8] sm:$0xff]
    %v2073 = vld [vmem:[#allocation8 + $0x10b0] sm:$0xff]
    %v2074 = vld [vmem:[#allocation8 + $0x10b8] sm:$0xff]
    %v2075 = vld [vmem:[#allocation8 + $0x10c0] sm:$0xff]
    %v2076 = vld [vmem:[#allocation8 + $0x10c8] sm:$0xff]
    %v2077 = vld [vmem:[#allocation8 + $0x10d0] sm:$0xff]
    %v2078 = vld [vmem:[#allocation8 + $0x10d8] sm:$0xff]
    %v2079 = vld [vmem:[#allocation8 + $0x10e0] sm:$0xff]
    %v2080 = vld [vmem:[#allocation8 + $0x10e8] sm:$0xff]
    %v2081 = vld [vmem:[#allocation8 + $0x10f0] sm:$0xff]
    %v2082 = vld [vmem:[#allocation8 + $0x10f8] sm:$0xff]
    %v2083 = vld [vmem:[#allocation8 + $0x1100] sm:$0xff]
    %v2084 = vld [vmem:[#allocation8 + $0x1108] sm:$0xff]
    %v2085 = vld [vmem:[#allocation8 + $0x1110] sm:$0xff]
    %v2086 = vld [vmem:[#allocation8 + $0x1118] sm:$0xff]
    %v2087 = vld [vmem:[#allocation8 + $0x1120] sm:$0xff]
    %v2088 = vld [vmem:[#allocation8 + $0x1128] sm:$0xff]
    %v2089 = vld [vmem:[#allocation8 + $0x1130] sm:$0xff]
    %v2090 = vld [vmem:[#allocation8 + $0x1138] sm:$0xff]
    %v2091 = vld [vmem:[#allocation8 + $0x1140] sm:$0xff]
    %v2092 = vld [vmem:[#allocation8 + $0x1148] sm:$0xff]
    %v2093 = vld [vmem:[#allocation8 + $0x1150] sm:$0xff]
    %v2094 = vld [vmem:[#allocation8 + $0x1158] sm:$0xff]
    %v2095 = vld [vmem:[#allocation8 + $0x1160] sm:$0xff]
    %v2096 = vld [vmem:[#allocation8 + $0x1168] sm:$0xff]
    %v2097 = vld [vmem:[#allocation8 + $0x1170] sm:$0xff]
    %v2098 = vld [vmem:[#allocation8 + $0x1178] sm:$0xff]
    %v2099 = vld [vmem:[#allocation8 + $0x1180] sm:$0xff]
    %v2100 = vld [vmem:[#allocation8 + $0x1188] sm:$0xff]
    %v2101 = vld [vmem:[#allocation8 + $0x1190] sm:$0xff]
    %v2102 = vld [vmem:[#allocation8 + $0x1198] sm:$0xff]
    %v2103 = vld [vmem:[#allocation8 + $0x11a0] sm:$0xff]
    %v2104 = vld [vmem:[#allocation8 + $0x11a8] sm:$0xff]
    %v2105 = vld [vmem:[#allocation8 + $0x11b0] sm:$0xff]
    %v2106 = vld [vmem:[#allocation8 + $0x11b8] sm:$0xff]
    %v2107 = vld [vmem:[#allocation8 + $0x11c0] sm:$0xff]
    %v2108 = vld [vmem:[#allocation8 + $0x11c8] sm:$0xff]
    %v2109 = vld [vmem:[#allocation8 + $0x11d0] sm:$0xff]
    %v2110 = vld [vmem:[#allocation8 + $0x11d8] sm:$0xff]
    %v2111 = vld [vmem:[#allocation8 + $0x11e0] sm:$0xff]
    %v2112 = vld [vmem:[#allocation8 + $0x11e8] sm:$0xff]
    %v2113 = vld [vmem:[#allocation8 + $0x11f0] sm:$0xff]
    %v2114 = vld [vmem:[#allocation8 + $0x11f8] sm:$0xff]
    %2115 = vmatprep.subr.mxu0 %v1675
    %2116 = vmatpush1.msra.mxu0 %v1674
    %2117 = vmatprep.subr.mxu0 %v1666
    %2118 = vmatpush1.msra.mxu0 %v1665
    %2119 = vmatprep.subr.mxu0 %v1657
    %2120 = vmatpush1.msra.mxu0 %v1656
    %2121 = vmatprep.subr.mxu0 %v1648
    %2122 = vmatpush1.msra.mxu0 %v1647
    %2123 = vmatprep.subr.mxu0 %v1639
    %2124 = vmatpush1.msra.mxu0 %v1638
    %2125 = vmatprep.subr.mxu0 %v1630
    %2126 = vmatpush1.msra.mxu0 %v1629
    %2127 = vmatprep.subr.mxu0 %v1621
    %2128 = vmatpush1.msra.mxu0 %v1620
    %2129 = vmatprep.subr.mxu0 %v1612
    %2130 = vmatpush1.msra.mxu0 %v1611
    %2131 = vmatprep.subr.mxu0 %v1603
    %2132 = vmatpush1.msra.mxu0 %v1602
    %2133 = vmatprep.subr.mxu0 %v1594
    %2134 = vmatpush1.msra.mxu0 %v1593
    %2135 = vmatprep.subr.mxu0 %v1585
    %2136 = vmatpush1.msra.mxu0 %v1584
    %2137 = vmatprep.subr.mxu0 %v1576
    %2138 = vmatpush1.msra.mxu0 %v1575
    %2139 = vmatprep.subr.mxu0 %v1567
    %2140 = vmatpush1.msra.mxu0 %v1566
    %2141 = vmatprep.subr.mxu0 %v1558
    %2142 = vmatpush1.msra.mxu0 %v1557
    %2143 = vmatprep.subr.mxu0 %v1549
    %2144 = vmatpush1.msra.mxu0 %v1548
    %2145 = vmatprep.subr.mxu0 %v1540
    %2146 = vmatpush1.msra.mxu0 %v1539
    %2147 = vmatprep.subr.mxu0 %v1819
    %2148 = vmatpush2.msra.mxu0 %v1818
    %2149 = vmatprep.subr.mxu0 %v1810
    %2150 = vmatpush2.msra.mxu0 %v1809
    %2151 = vmatprep.subr.mxu0 %v1801
    %2152 = vmatpush2.msra.mxu0 %v1800
    %2153 = vmatprep.subr.mxu0 %v1792
    %2154 = vmatpush2.msra.mxu0 %v1791
    %2155 = vmatprep.subr.mxu0 %v1783
    %2156 = vmatpush2.msra.mxu0 %v1782
    %2157 = vmatprep.subr.mxu0 %v1774
    %2158 = vmatpush2.msra.mxu0 %v1773
    %2159 = vmatprep.subr.mxu0 %v1765
    %2160 = vmatpush2.msra.mxu0 %v1764
    %2161 = vmatprep.subr.mxu0 %v1756
    %2162 = vmatpush2.msra.mxu0 %v1755
    %2163 = vmatprep.subr.mxu0 %v1747
    %2164 = vmatpush2.msra.mxu0 %v1746
    %2165 = vmatprep.subr.mxu0 %v1738
    %2166 = vmatpush2.msra.mxu0 %v1737
    %2167 = vmatprep.subr.mxu0 %v1729
    %2168 = vmatpush2.msra.mxu0 %v1728
    %2169 = vmatprep.subr.mxu0 %v1720
    %2170 = vmatpush2.msra.mxu0 %v1719
    %2171 = vmatprep.subr.mxu0 %v1711
    %2172 = vmatpush2.msra.mxu0 %v1710
    %2173 = vmatprep.subr.mxu0 %v1702
    %2174 = vmatpush2.msra.mxu0 %v1701
    %2175 = vmatprep.subr.mxu0 %v1693
    %2176 = vmatpush2.msra.mxu0 %v1692
    %2177 = vmatprep.subr.mxu0 %v1684
    %2178 = vmatpush2.msra.mxu0 %v1683
    %2179 = vmatprep.mubr.f32.mxu0 %v1508
    %2180 = vmatmul.mubr.f32.gmra.mxu0 %v1507
    %v2181 = vpop.f32.mrf.mxu0
    %v2182 = vadd.f32 0.0, %v2181
    %v2183 = vpop.f32.mrf.mxu0
    %v2184 = vadd.f32 0.0, %v2183
    %2185 = vmatprep.mubr.f32.mxu0 %v1512
    %2186 = vmatmul.mubr.f32.gmra.mxu0 %v1511
    %v2187 = vpop.f32.mrf.mxu0
    %v2188 = vadd.f32 0.0, %v2187
    %v2189 = vpop.f32.mrf.mxu0
    %v2190 = vadd.f32 0.0, %v2189
    %2191 = vmatprep.mubr.f32.mxu0 %v1516
    %2192 = vmatmul.mubr.f32.gmra.mxu0 %v1515
    %v2193 = vpop.f32.mrf.mxu0
    %v2194 = vadd.f32 0.0, %v2193
    %v2195 = vpop.f32.mrf.mxu0
    %v2196 = vadd.f32 0.0, %v2195
    %2197 = vmatprep.mubr.f32.mxu0 %v1520
    %2198 = vmatmul.mubr.f32.gmra.mxu0 %v1519
    %v2199 = vpop.f32.mrf.mxu0
    %v2200 = vadd.f32 0.0, %v2199
    %v2201 = vpop.f32.mrf.mxu0
    %v2202 = vadd.f32 0.0, %v2201
    %2203 = vmatprep.mubr.f32.mxu0 %v1524
    %2204 = vmatmul.mubr.f32.gmra.mxu0 %v1523
    %v2205 = vpop.f32.mrf.mxu0
    %v2206 = vadd.f32 0.0, %v2205
    %v2207 = vpop.f32.mrf.mxu0
    %v2208 = vadd.f32 0.0, %v2207
    %2209 = vmatprep.mubr.f32.mxu0 %v1528
    %2210 = vmatmul.mubr.f32.gmra.mxu0 %v1527
    %v2211 = vpop.f32.mrf.mxu0
    %v2212 = vadd.f32 0.0, %v2211
    %v2213 = vpop.f32.mrf.mxu0
    %v2214 = vadd.f32 0.0, %v2213
    %2215 = vmatprep.mubr.f32.mxu0 %v1532
    %2216 = vmatmul.mubr.f32.gmra.mxu0 %v1531
    %v2217 = vpop.f32.mrf.mxu0
    %v2218 = vadd.f32 0.0, %v2217
    %v2219 = vpop.f32.mrf.mxu0
    %v2220 = vadd.f32 0.0, %v2219
    %2221 = vmatprep.mubr.f32.mxu0 %v1536
    %2222 = vmatmul.mubr.f32.gmra.mxu0 %v1535
    %v2223 = vpop.f32.mrf.mxu0
    %v2224 = vadd.f32 0.0, %v2223
    %v2225 = vpop.f32.mrf.mxu0
    %v2226 = vadd.f32 0.0, %v2225
    %2227 = vdwg.mxu0
    %2228 = vmatprep.subr.mxu0 %v1963
    %2229 = vmatpush1.msra.mxu0 %v1962
    %2230 = vmatprep.subr.mxu0 %v1954
    %2231 = vmatpush1.msra.mxu0 %v1953
    %2232 = vmatprep.subr.mxu0 %v1945
    %2233 = vmatpush1.msra.mxu0 %v1944
    %2234 = vmatprep.subr.mxu0 %v1936
    %2235 = vmatpush1.msra.mxu0 %v1935
    %2236 = vmatprep.subr.mxu0 %v1927
    %2237 = vmatpush1.msra.mxu0 %v1926
    %2238 = vmatprep.subr.mxu0 %v1918
    %2239 = vmatpush1.msra.mxu0 %v1917
    %2240 = vmatprep.subr.mxu0 %v1909
    %2241 = vmatpush1.msra.mxu0 %v1908
    %2242 = vmatprep.subr.mxu0 %v1900
    %2243 = vmatpush1.msra.mxu0 %v1899
    %2244 = vmatprep.subr.mxu0 %v1891
    %2245 = vmatpush1.msra.mxu0 %v1890
    %2246 = vmatprep.subr.mxu0 %v1882
    %2247 = vmatpush1.msra.mxu0 %v1881
    %2248 = vmatprep.subr.mxu0 %v1873
    %2249 = vmatpush1.msra.mxu0 %v1872
    %2250 = vmatprep.subr.mxu0 %v1864
    %2251 = vmatpush1.msra.mxu0 %v1863
    %2252 = vmatprep.subr.mxu0 %v1855
    %2253 = vmatpush1.msra.mxu0 %v1854
    %2254 = vmatprep.subr.mxu0 %v1846
    %2255 = vmatpush1.msra.mxu0 %v1845
    %2256 = vmatprep.subr.mxu0 %v1837
    %2257 = vmatpush1.msra.mxu0 %v1836
    %2258 = vmatprep.subr.mxu0 %v1828
    %2259 = vmatpush1.msra.mxu0 %v1827
    %2260 = vmatprep.subr.mxu0 %v2107
    %2261 = vmatpush2.msra.mxu0 %v2106
    %2262 = vmatprep.subr.mxu0 %v2098
    %2263 = vmatpush2.msra.mxu0 %v2097
    %2264 = vmatprep.subr.mxu0 %v2089
    %2265 = vmatpush2.msra.mxu0 %v2088
    %2266 = vmatprep.subr.mxu0 %v2080
    %2267 = vmatpush2.msra.mxu0 %v2079
    %2268 = vmatprep.subr.mxu0 %v2071
    %2269 = vmatpush2.msra.mxu0 %v2070
    %2270 = vmatprep.subr.mxu0 %v2062
    %2271 = vmatpush2.msra.mxu0 %v2061
    %2272 = vmatprep.subr.mxu0 %v2053
    %2273 = vmatpush2.msra.mxu0 %v2052
    %2274 = vmatprep.subr.mxu0 %v2044
    %2275 = vmatpush2.msra.mxu0 %v2043
    %2276 = vmatprep.subr.mxu0 %v2035
    %2277 = vmatpush2.msra.mxu0 %v2034
    %2278 = vmatprep.subr.mxu0 %v2026
    %2279 = vmatpush2.msra.mxu0 %v2025
    %2280 = vmatprep.subr.mxu0 %v2017
    %2281 = vmatpush2.msra.mxu0 %v2016
    %2282 = vmatprep.subr.mxu0 %v2008
    %2283 = vmatpush2.msra.mxu0 %v2007
    %2284 = vmatprep.subr.mxu0 %v1999
    %2285 = vmatpush2.msra.mxu0 %v1998
    %2286 = vmatprep.subr.mxu0 %v1990
    %2287 = vmatpush2.msra.mxu0 %v1989
    %2288 = vmatprep.subr.mxu0 %v1981
    %2289 = vmatpush2.msra.mxu0 %v1980
    %2290 = vmatprep.subr.mxu0 %v1972
    %2291 = vmatpush2.msra.mxu0 %v1971
    %2292 = vmatprep.mubr.f32.mxu0 %v1510
    %2293 = vmatmul.mubr.f32.gmra.mxu0 %v1509
    %v2294 = vpop.f32.mrf.mxu0
    %v2295 = vadd.f32 %v2182, %v2294
    %v2296 = vpop.f32.mrf.mxu0
    %v2297 = vadd.f32 %v2184, %v2296
    %2298 = vmatprep.mubr.f32.mxu0 %v1514
    %2299 = vmatmul.mubr.f32.gmra.mxu0 %v1513
    %v2300 = vpop.f32.mrf.mxu0
    %v2301 = vadd.f32 %v2188, %v2300
    %v2302 = vpop.f32.mrf.mxu0
    %v2303 = vadd.f32 %v2190, %v2302
    %2304 = vmatprep.mubr.f32.mxu0 %v1518
    %2305 = vmatmul.mubr.f32.gmra.mxu0 %v1517
    %v2306 = vpop.f32.mrf.mxu0
    %v2307 = vadd.f32 %v2194, %v2306
    %v2308 = vpop.f32.mrf.mxu0
    %v2309 = vadd.f32 %v2196, %v2308
    %2310 = vmatprep.mubr.f32.mxu0 %v1522
    %2311 = vmatmul.mubr.f32.gmra.mxu0 %v1521
    %v2312 = vpop.f32.mrf.mxu0
    %v2313 = vadd.f32 %v2200, %v2312
    %v2314 = vpop.f32.mrf.mxu0
    %v2315 = vadd.f32 %v2202, %v2314
    %2316 = vmatprep.mubr.f32.mxu0 %v1526
    %2317 = vmatmul.mubr.f32.gmra.mxu0 %v1525
    %v2318 = vpop.f32.mrf.mxu0
    %v2319 = vadd.f32 %v2206, %v2318
    %v2320 = vpop.f32.mrf.mxu0
    %v2321 = vadd.f32 %v2208, %v2320
    %2322 = vmatprep.mubr.f32.mxu0 %v1530
    %2323 = vmatmul.mubr.f32.gmra.mxu0 %v1529
    %v2324 = vpop.f32.mrf.mxu0
    %v2325 = vadd.f32 %v2212, %v2324
    %v2326 = vpop.f32.mrf.mxu0
    %v2327 = vadd.f32 %v2214, %v2326
    %2328 = vmatprep.mubr.f32.mxu0 %v1534
    %2329 = vmatmul.mubr.f32.gmra.mxu0 %v1533
    %v2330 = vpop.f32.mrf.mxu0
    %v2331 = vadd.f32 %v2218, %v2330
    %v2332 = vpop.f32.mrf.mxu0
    %v2333 = vadd.f32 %v2220, %v2332
    %2334 = vmatprep.mubr.f32.mxu0 %v1538
    %2335 = vmatmul.mubr.f32.gmra.mxu0 %v1537
    %v2336 = vpop.f32.mrf.mxu0
    %v2337 = vadd.f32 %v2224, %v2336
    %v2338 = vpop.f32.mrf.mxu0
    %v2339 = vadd.f32 %v2226, %v2338
    %2340 = vdwg.mxu0
    %2341 = vmatprep.subr.mxu0 %v1677
    %2342 = vmatpush1.msra.mxu0 %v1676
    %2343 = vmatprep.subr.mxu0 %v1668
    %2344 = vmatpush1.msra.mxu0 %v1667
    %2345 = vmatprep.subr.mxu0 %v1659
    %2346 = vmatpush1.msra.mxu0 %v1658
    %2347 = vmatprep.subr.mxu0 %v1650
    %2348 = vmatpush1.msra.mxu0 %v1649
    %2349 = vmatprep.subr.mxu0 %v1641
    %2350 = vmatpush1.msra.mxu0 %v1640
    %2351 = vmatprep.subr.mxu0 %v1632
    %2352 = vmatpush1.msra.mxu0 %v1631
    %2353 = vmatprep.subr.mxu0 %v1623
    %2354 = vmatpush1.msra.mxu0 %v1622
    %2355 = vmatprep.subr.mxu0 %v1614
    %2356 = vmatpush1.msra.mxu0 %v1613
    %2357 = vmatprep.subr.mxu0 %v1605
    %2358 = vmatpush1.msra.mxu0 %v1604
    %2359 = vmatprep.subr.mxu0 %v1596
    %2360 = vmatpush1.msra.mxu0 %v1595
    %2361 = vmatprep.subr.mxu0 %v1587
    %2362 = vmatpush1.msra.mxu0 %v1586
    %2363 = vmatprep.subr.mxu0 %v1578
    %2364 = vmatpush1.msra.mxu0 %v1577
    %2365 = vmatprep.subr.mxu0 %v1569
    %2366 = vmatpush1.msra.mxu0 %v1568
    %2367 = vmatprep.subr.mxu0 %v1560
    %2368 = vmatpush1.msra.mxu0 %v1559
    %2369 = vmatprep.subr.mxu0 %v1551
    %2370 = vmatpush1.msra.mxu0 %v1550
    %2371 = vmatprep.subr.mxu0 %v1542
    %2372 = vmatpush1.msra.mxu0 %v1541
    %2373 = vmatprep.subr.mxu0 %v1821
    %2374 = vmatpush2.msra.mxu0 %v1820
    %2375 = vmatprep.subr.mxu0 %v1812
    %2376 = vmatpush2.msra.mxu0 %v1811
    %2377 = vmatprep.subr.mxu0 %v1803
    %2378 = vmatpush2.msra.mxu0 %v1802
    %2379 = vmatprep.subr.mxu0 %v1794
    %2380 = vmatpush2.msra.mxu0 %v1793
    %2381 = vmatprep.subr.mxu0 %v1785
    %2382 = vmatpush2.msra.mxu0 %v1784
    %2383 = vmatprep.subr.mxu0 %v1776
    %2384 = vmatpush2.msra.mxu0 %v1775
    %2385 = vmatprep.subr.mxu0 %v1767
    %2386 = vmatpush2.msra.mxu0 %v1766
    %2387 = vmatprep.subr.mxu0 %v1758
    %2388 = vmatpush2.msra.mxu0 %v1757
    %2389 = vmatprep.subr.mxu0 %v1749
    %2390 = vmatpush2.msra.mxu0 %v1748
    %2391 = vmatprep.subr.mxu0 %v1740
    %2392 = vmatpush2.msra.mxu0 %v1739
    %2393 = vmatprep.subr.mxu0 %v1731
    %2394 = vmatpush2.msra.mxu0 %v1730
    %2395 = vmatprep.subr.mxu0 %v1722
    %2396 = vmatpush2.msra.mxu0 %v1721
    %2397 = vmatprep.subr.mxu0 %v1713
    %2398 = vmatpush2.msra.mxu0 %v1712
    %2399 = vmatprep.subr.mxu0 %v1704
    %2400 = vmatpush2.msra.mxu0 %v1703
    %2401 = vmatprep.subr.mxu0 %v1695
    %2402 = vmatpush2.msra.mxu0 %v1694
    %2403 = vmatprep.subr.mxu0 %v1686
    %2404 = vmatpush2.msra.mxu0 %v1685
    %2405 = vmatprep.mubr.f32.mxu0 %v1508
    %2406 = vmatmul.mubr.f32.gmra.mxu0 %v1507
    %v2407 = vpop.f32.mrf.mxu0
    %v2408 = vadd.f32 0.0, %v2407
    %v2409 = vpop.f32.mrf.mxu0
    %v2410 = vadd.f32 0.0, %v2409
    %2411 = vmatprep.mubr.f32.mxu0 %v1512
    %2412 = vmatmul.mubr.f32.gmra.mxu0 %v1511
    %v2413 = vpop.f32.mrf.mxu0
    %v2414 = vadd.f32 0.0, %v2413
    %v2415 = vpop.f32.mrf.mxu0
    %v2416 = vadd.f32 0.0, %v2415
    %2417 = vmatprep.mubr.f32.mxu0 %v1516
    %2418 = vmatmul.mubr.f32.gmra.mxu0 %v1515
    %v2419 = vpop.f32.mrf.mxu0
    %v2420 = vadd.f32 0.0, %v2419
    %v2421 = vpop.f32.mrf.mxu0
    %v2422 = vadd.f32 0.0, %v2421
    %2423 = vmatprep.mubr.f32.mxu0 %v1520
    %2424 = vmatmul.mubr.f32.gmra.mxu0 %v1519
    %v2425 = vpop.f32.mrf.mxu0
    %v2426 = vadd.f32 0.0, %v2425
    %v2427 = vpop.f32.mrf.mxu0
    %v2428 = vadd.f32 0.0, %v2427
    %2429 = vmatprep.mubr.f32.mxu0 %v1524
    %2430 = vmatmul.mubr.f32.gmra.mxu0 %v1523
    %v2431 = vpop.f32.mrf.mxu0
    %v2432 = vadd.f32 0.0, %v2431
    %v2433 = vpop.f32.mrf.mxu0
    %v2434 = vadd.f32 0.0, %v2433
    %2435 = vmatprep.mubr.f32.mxu0 %v1528
    %2436 = vmatmul.mubr.f32.gmra.mxu0 %v1527
    %v2437 = vpop.f32.mrf.mxu0
    %v2438 = vadd.f32 0.0, %v2437
    %v2439 = vpop.f32.mrf.mxu0
    %v2440 = vadd.f32 0.0, %v2439
    %2441 = vmatprep.mubr.f32.mxu0 %v1532
    %2442 = vmatmul.mubr.f32.gmra.mxu0 %v1531
    %v2443 = vpop.f32.mrf.mxu0
    %v2444 = vadd.f32 0.0, %v2443
    %v2445 = vpop.f32.mrf.mxu0
    %v2446 = vadd.f32 0.0, %v2445
    %2447 = vmatprep.mubr.f32.mxu0 %v1536
    %2448 = vmatmul.mubr.f32.gmra.mxu0 %v1535
    %v2449 = vpop.f32.mrf.mxu0
    %v2450 = vadd.f32 0.0, %v2449
    %v2451 = vpop.f32.mrf.mxu0
    %v2452 = vadd.f32 0.0, %v2451
    %2453 = vdwg.mxu0
    %2454 = vmatprep.subr.mxu0 %v1965
    %2455 = vmatpush1.msra.mxu0 %v1964
    %2456 = vmatprep.subr.mxu0 %v1956
    %2457 = vmatpush1.msra.mxu0 %v1955
    %2458 = vmatprep.subr.mxu0 %v1947
    %2459 = vmatpush1.msra.mxu0 %v1946
    %2460 = vmatprep.subr.mxu0 %v1938
    %2461 = vmatpush1.msra.mxu0 %v1937
    %2462 = vmatprep.subr.mxu0 %v1929
    %2463 = vmatpush1.msra.mxu0 %v1928
    %2464 = vmatprep.subr.mxu0 %v1920
    %2465 = vmatpush1.msra.mxu0 %v1919
    %2466 = vmatprep.subr.mxu0 %v1911
    %2467 = vmatpush1.msra.mxu0 %v1910
    %2468 = vmatprep.subr.mxu0 %v1902
    %2469 = vmatpush1.msra.mxu0 %v1901
    %2470 = vmatprep.subr.mxu0 %v1893
    %2471 = vmatpush1.msra.mxu0 %v1892
    %2472 = vmatprep.subr.mxu0 %v1884
    %2473 = vmatpush1.msra.mxu0 %v1883
    %2474 = vmatprep.subr.mxu0 %v1875
    %2475 = vmatpush1.msra.mxu0 %v1874
    %2476 = vmatprep.subr.mxu0 %v1866
    %2477 = vmatpush1.msra.mxu0 %v1865
    %2478 = vmatprep.subr.mxu0 %v1857
    %2479 = vmatpush1.msra.mxu0 %v1856
    %2480 = vmatprep.subr.mxu0 %v1848
    %2481 = vmatpush1.msra.mxu0 %v1847
    %2482 = vmatprep.subr.mxu0 %v1839
    %2483 = vmatpush1.msra.mxu0 %v1838
    %2484 = vmatprep.subr.mxu0 %v1830
    %2485 = vmatpush1.msra.mxu0 %v1829
    %2486 = vmatprep.subr.mxu0 %v2109
    %2487 = vmatpush2.msra.mxu0 %v2108
    %2488 = vmatprep.subr.mxu0 %v2100
    %2489 = vmatpush2.msra.mxu0 %v2099
    %2490 = vmatprep.subr.mxu0 %v2091
    %2491 = vmatpush2.msra.mxu0 %v2090
    %2492 = vmatprep.subr.mxu0 %v2082
    %2493 = vmatpush2.msra.mxu0 %v2081
    %2494 = vmatprep.subr.mxu0 %v2073
    %2495 = vmatpush2.msra.mxu0 %v2072
    %2496 = vmatprep.subr.mxu0 %v2064
    %2497 = vmatpush2.msra.mxu0 %v2063
    %2498 = vmatprep.subr.mxu0 %v2055
    %2499 = vmatpush2.msra.mxu0 %v2054
    %2500 = vmatprep.subr.mxu0 %v2046
    %2501 = vmatpush2.msra.mxu0 %v2045
    %2502 = vmatprep.subr.mxu0 %v2037
    %2503 = vmatpush2.msra.mxu0 %v2036
    %2504 = vmatprep.subr.mxu0 %v2028
    %2505 = vmatpush2.msra.mxu0 %v2027
    %2506 = vmatprep.subr.mxu0 %v2019
    %2507 = vmatpush2.msra.mxu0 %v2018
    %2508 = vmatprep.subr.mxu0 %v2010
    %2509 = vmatpush2.msra.mxu0 %v2009
    %2510 = vmatprep.subr.mxu0 %v2001
    %2511 = vmatpush2.msra.mxu0 %v2000
    %2512 = vmatprep.subr.mxu0 %v1992
    %2513 = vmatpush2.msra.mxu0 %v1991
    %2514 = vmatprep.subr.mxu0 %v1983
    %2515 = vmatpush2.msra.mxu0 %v1982
    %2516 = vmatprep.subr.mxu0 %v1974
    %2517 = vmatpush2.msra.mxu0 %v1973
    %2518 = vmatprep.mubr.f32.mxu0 %v1510
    %2519 = vmatmul.mubr.f32.gmra.mxu0 %v1509
    %v2520 = vpop.f32.mrf.mxu0
    %v2521 = vadd.f32 %v2408, %v2520
    %v2522 = vpop.f32.mrf.mxu0
    %v2523 = vadd.f32 %v2410, %v2522
    %2524 = vmatprep.mubr.f32.mxu0 %v1514
    %2525 = vmatmul.mubr.f32.gmra.mxu0 %v1513
    %v2526 = vpop.f32.mrf.mxu0
    %v2527 = vadd.f32 %v2414, %v2526
    %v2528 = vpop.f32.mrf.mxu0
    %v2529 = vadd.f32 %v2416, %v2528
    %2530 = vmatprep.mubr.f32.mxu0 %v1518
    %2531 = vmatmul.mubr.f32.gmra.mxu0 %v1517
    %v2532 = vpop.f32.mrf.mxu0
    %v2533 = vadd.f32 %v2420, %v2532
    %v2534 = vpop.f32.mrf.mxu0
    %v2535 = vadd.f32 %v2422, %v2534
    %2536 = vmatprep.mubr.f32.mxu0 %v1522
    %2537 = vmatmul.mubr.f32.gmra.mxu0 %v1521
    %v2538 = vpop.f32.mrf.mxu0
    %v2539 = vadd.f32 %v2426, %v2538
    %v2540 = vpop.f32.mrf.mxu0
    %v2541 = vadd.f32 %v2428, %v2540
    %2542 = vmatprep.mubr.f32.mxu0 %v1526
    %2543 = vmatmul.mubr.f32.gmra.mxu0 %v1525
    %v2544 = vpop.f32.mrf.mxu0
    %v2545 = vadd.f32 %v2432, %v2544
    %v2546 = vpop.f32.mrf.mxu0
    %v2547 = vadd.f32 %v2434, %v2546
    %2548 = vmatprep.mubr.f32.mxu0 %v1530
    %2549 = vmatmul.mubr.f32.gmra.mxu0 %v1529
    %v2550 = vpop.f32.mrf.mxu0
    %v2551 = vadd.f32 %v2438, %v2550
    %v2552 = vpop.f32.mrf.mxu0
    %v2553 = vadd.f32 %v2440, %v2552
    %2554 = vmatprep.mubr.f32.mxu0 %v1534
    %2555 = vmatmul.mubr.f32.gmra.mxu0 %v1533
    %v2556 = vpop.f32.mrf.mxu0
    %v2557 = vadd.f32 %v2444, %v2556
    %v2558 = vpop.f32.mrf.mxu0
    %v2559 = vadd.f32 %v2446, %v2558
    %2560 = vmatprep.mubr.f32.mxu0 %v1538
    %2561 = vmatmul.mubr.f32.gmra.mxu0 %v1537
    %v2562 = vpop.f32.mrf.mxu0
    %v2563 = vadd.f32 %v2450, %v2562
    %v2564 = vpop.f32.mrf.mxu0
    %v2565 = vadd.f32 %v2452, %v2564
    %2566 = vdwg.mxu0
    %2567 = vmatprep.subr.mxu0 %v1679
    %2568 = vmatpush1.msra.mxu0 %v1678
    %2569 = vmatprep.subr.mxu0 %v1670
    %2570 = vmatpush1.msra.mxu0 %v1669
    %2571 = vmatprep.subr.mxu0 %v1661
    %2572 = vmatpush1.msra.mxu0 %v1660
    %2573 = vmatprep.subr.mxu0 %v1652
    %2574 = vmatpush1.msra.mxu0 %v1651
    %2575 = vmatprep.subr.mxu0 %v1643
    %2576 = vmatpush1.msra.mxu0 %v1642
    %2577 = vmatprep.subr.mxu0 %v1634
    %2578 = vmatpush1.msra.mxu0 %v1633
    %2579 = vmatprep.subr.mxu0 %v1625
    %2580 = vmatpush1.msra.mxu0 %v1624
    %2581 = vmatprep.subr.mxu0 %v1616
    %2582 = vmatpush1.msra.mxu0 %v1615
    %2583 = vmatprep.subr.mxu0 %v1607
    %2584 = vmatpush1.msra.mxu0 %v1606
    %2585 = vmatprep.subr.mxu0 %v1598
    %2586 = vmatpush1.msra.mxu0 %v1597
    %2587 = vmatprep.subr.mxu0 %v1589
    %2588 = vmatpush1.msra.mxu0 %v1588
    %2589 = vmatprep.subr.mxu0 %v1580
    %2590 = vmatpush1.msra.mxu0 %v1579
    %2591 = vmatprep.subr.mxu0 %v1571
    %2592 = vmatpush1.msra.mxu0 %v1570
    %2593 = vmatprep.subr.mxu0 %v1562
    %2594 = vmatpush1.msra.mxu0 %v1561
    %2595 = vmatprep.subr.mxu0 %v1553
    %2596 = vmatpush1.msra.mxu0 %v1552
    %2597 = vmatprep.subr.mxu0 %v1544
    %2598 = vmatpush1.msra.mxu0 %v1543
    %2599 = vmatprep.subr.mxu0 %v1823
    %2600 = vmatpush2.msra.mxu0 %v1822
    %2601 = vmatprep.subr.mxu0 %v1814
    %2602 = vmatpush2.msra.mxu0 %v1813
    %2603 = vmatprep.subr.mxu0 %v1805
    %2604 = vmatpush2.msra.mxu0 %v1804
    %2605 = vmatprep.subr.mxu0 %v1796
    %2606 = vmatpush2.msra.mxu0 %v1795
    %2607 = vmatprep.subr.mxu0 %v1787
    %2608 = vmatpush2.msra.mxu0 %v1786
    %2609 = vmatprep.subr.mxu0 %v1778
    %2610 = vmatpush2.msra.mxu0 %v1777
    %2611 = vmatprep.subr.mxu0 %v1769
    %2612 = vmatpush2.msra.mxu0 %v1768
    %2613 = vmatprep.subr.mxu0 %v1760
    %2614 = vmatpush2.msra.mxu0 %v1759
    %2615 = vmatprep.subr.mxu0 %v1751
    %2616 = vmatpush2.msra.mxu0 %v1750
    %2617 = vmatprep.subr.mxu0 %v1742
    %2618 = vmatpush2.msra.mxu0 %v1741
    %2619 = vmatprep.subr.mxu0 %v1733
    %2620 = vmatpush2.msra.mxu0 %v1732
    %2621 = vmatprep.subr.mxu0 %v1724
    %2622 = vmatpush2.msra.mxu0 %v1723
    %2623 = vmatprep.subr.mxu0 %v1715
    %2624 = vmatpush2.msra.mxu0 %v1714
    %2625 = vmatprep.subr.mxu0 %v1706
    %2626 = vmatpush2.msra.mxu0 %v1705
    %2627 = vmatprep.subr.mxu0 %v1697
    %2628 = vmatpush2.msra.mxu0 %v1696
    %2629 = vmatprep.subr.mxu0 %v1688
    %2630 = vmatpush2.msra.mxu0 %v1687
    %2631 = vmatprep.mubr.f32.mxu0 %v1508
    %2632 = vmatmul.mubr.f32.gmra.mxu0 %v1507
    %v2633 = vpop.f32.mrf.mxu0
    %v2634 = vadd.f32 0.0, %v2633
    %v2635 = vpop.f32.mrf.mxu0
    %v2636 = vadd.f32 0.0, %v2635
    %2637 = vmatprep.mubr.f32.mxu0 %v1512
    %2638 = vmatmul.mubr.f32.gmra.mxu0 %v1511
    %v2639 = vpop.f32.mrf.mxu0
    %v2640 = vadd.f32 0.0, %v2639
    %v2641 = vpop.f32.mrf.mxu0
    %v2642 = vadd.f32 0.0, %v2641
    %2643 = vmatprep.mubr.f32.mxu0 %v1516
    %2644 = vmatmul.mubr.f32.gmra.mxu0 %v1515
    %v2645 = vpop.f32.mrf.mxu0
    %v2646 = vadd.f32 0.0, %v2645
    %v2647 = vpop.f32.mrf.mxu0
    %v2648 = vadd.f32 0.0, %v2647
    %2649 = vmatprep.mubr.f32.mxu0 %v1520
    %2650 = vmatmul.mubr.f32.gmra.mxu0 %v1519
    %v2651 = vpop.f32.mrf.mxu0
    %v2652 = vadd.f32 0.0, %v2651
    %v2653 = vpop.f32.mrf.mxu0
    %v2654 = vadd.f32 0.0, %v2653
    %2655 = vmatprep.mubr.f32.mxu0 %v1524
    %2656 = vmatmul.mubr.f32.gmra.mxu0 %v1523
    %v2657 = vpop.f32.mrf.mxu0
    %v2658 = vadd.f32 0.0, %v2657
    %v2659 = vpop.f32.mrf.mxu0
    %v2660 = vadd.f32 0.0, %v2659
    %2661 = vmatprep.mubr.f32.mxu0 %v1528
    %2662 = vmatmul.mubr.f32.gmra.mxu0 %v1527
    %v2663 = vpop.f32.mrf.mxu0
    %v2664 = vadd.f32 0.0, %v2663
    %v2665 = vpop.f32.mrf.mxu0
    %v2666 = vadd.f32 0.0, %v2665
    %2667 = vmatprep.mubr.f32.mxu0 %v1532
    %2668 = vmatmul.mubr.f32.gmra.mxu0 %v1531
    %v2669 = vpop.f32.mrf.mxu0
    %v2670 = vadd.f32 0.0, %v2669
    %v2671 = vpop.f32.mrf.mxu0
    %v2672 = vadd.f32 0.0, %v2671
    %2673 = vmatprep.mubr.f32.mxu0 %v1536
    %2674 = vmatmul.mubr.f32.gmra.mxu0 %v1535
    %v2675 = vpop.f32.mrf.mxu0
    %v2676 = vadd.f32 0.0, %v2675
    %v2677 = vpop.f32.mrf.mxu0
    %v2678 = vadd.f32 0.0, %v2677
    %2679 = vdwg.mxu0
    %2680 = vmatprep.subr.mxu0 %v1967
    %2681 = vmatpush1.msra.mxu0 %v1966
    %2682 = vmatprep.subr.mxu0 %v1958
    %2683 = vmatpush1.msra.mxu0 %v1957
    %2684 = vmatprep.subr.mxu0 %v1949
    %2685 = vmatpush1.msra.mxu0 %v1948
    %2686 = vmatprep.subr.mxu0 %v1940
    %2687 = vmatpush1.msra.mxu0 %v1939
    %2688 = vmatprep.subr.mxu0 %v1931
    %2689 = vmatpush1.msra.mxu0 %v1930
    %2690 = vmatprep.subr.mxu0 %v1922
    %2691 = vmatpush1.msra.mxu0 %v1921
    %2692 = vmatprep.subr.mxu0 %v1913
    %2693 = vmatpush1.msra.mxu0 %v1912
    %2694 = vmatprep.subr.mxu0 %v1904
    %2695 = vmatpush1.msra.mxu0 %v1903
    %2696 = vmatprep.subr.mxu0 %v1895
    %2697 = vmatpush1.msra.mxu0 %v1894
    %2698 = vmatprep.subr.mxu0 %v1886
    %2699 = vmatpush1.msra.mxu0 %v1885
    %2700 = vmatprep.subr.mxu0 %v1877
    %2701 = vmatpush1.msra.mxu0 %v1876
    %2702 = vmatprep.subr.mxu0 %v1868
    %2703 = vmatpush1.msra.mxu0 %v1867
    %2704 = vmatprep.subr.mxu0 %v1859
    %2705 = vmatpush1.msra.mxu0 %v1858
    %2706 = vmatprep.subr.mxu0 %v1850
    %2707 = vmatpush1.msra.mxu0 %v1849
    %2708 = vmatprep.subr.mxu0 %v1841
    %2709 = vmatpush1.msra.mxu0 %v1840
    %2710 = vmatprep.subr.mxu0 %v1832
    %2711 = vmatpush1.msra.mxu0 %v1831
    %2712 = vmatprep.subr.mxu0 %v2111
    %2713 = vmatpush2.msra.mxu0 %v2110
    %2714 = vmatprep.subr.mxu0 %v2102
    %2715 = vmatpush2.msra.mxu0 %v2101
    %2716 = vmatprep.subr.mxu0 %v2093
    %2717 = vmatpush2.msra.mxu0 %v2092
    %2718 = vmatprep.subr.mxu0 %v2084
    %2719 = vmatpush2.msra.mxu0 %v2083
    %2720 = vmatprep.subr.mxu0 %v2075
    %2721 = vmatpush2.msra.mxu0 %v2074
    %2722 = vmatprep.subr.mxu0 %v2066
    %2723 = vmatpush2.msra.mxu0 %v2065
    %2724 = vmatprep.subr.mxu0 %v2057
    %2725 = vmatpush2.msra.mxu0 %v2056
    %2726 = vmatprep.subr.mxu0 %v2048
    %2727 = vmatpush2.msra.mxu0 %v2047
    %2728 = vmatprep.subr.mxu0 %v2039
    %2729 = vmatpush2.msra.mxu0 %v2038
    %2730 = vmatprep.subr.mxu0 %v2030
    %2731 = vmatpush2.msra.mxu0 %v2029
    %2732 = vmatprep.subr.mxu0 %v2021
    %2733 = vmatpush2.msra.mxu0 %v2020
    %2734 = vmatprep.subr.mxu0 %v2012
    %2735 = vmatpush2.msra.mxu0 %v2011
    %2736 = vmatprep.subr.mxu0 %v2003
    %2737 = vmatpush2.msra.mxu0 %v2002
    %2738 = vmatprep.subr.mxu0 %v1994
    %2739 = vmatpush2.msra.mxu0 %v1993
    %2740 = vmatprep.subr.mxu0 %v1985
    %2741 = vmatpush2.msra.mxu0 %v1984
    %2742 = vmatprep.subr.mxu0 %v1976
    %2743 = vmatpush2.msra.mxu0 %v1975
    %2744 = vmatprep.mubr.f32.mxu0 %v1510
    %2745 = vmatmul.mubr.f32.gmra.mxu0 %v1509
    %v2746 = vpop.f32.mrf.mxu0
    %v2747 = vadd.f32 %v2634, %v2746
    %v2748 = vpop.f32.mrf.mxu0
    %v2749 = vadd.f32 %v2636, %v2748
    %2750 = vmatprep.mubr.f32.mxu0 %v1514
    %2751 = vmatmul.mubr.f32.gmra.mxu0 %v1513
    %v2752 = vpop.f32.mrf.mxu0
    %v2753 = vadd.f32 %v2640, %v2752
    %v2754 = vpop.f32.mrf.mxu0
    %v2755 = vadd.f32 %v2642, %v2754
    %2756 = vmatprep.mubr.f32.mxu0 %v1518
    %2757 = vmatmul.mubr.f32.gmra.mxu0 %v1517
    %v2758 = vpop.f32.mrf.mxu0
    %v2759 = vadd.f32 %v2646, %v2758
    %v2760 = vpop.f32.mrf.mxu0
    %v2761 = vadd.f32 %v2648, %v2760
    %2762 = vmatprep.mubr.f32.mxu0 %v1522
    %2763 = vmatmul.mubr.f32.gmra.mxu0 %v1521
    %v2764 = vpop.f32.mrf.mxu0
    %v2765 = vadd.f32 %v2652, %v2764
    %v2766 = vpop.f32.mrf.mxu0
    %v2767 = vadd.f32 %v2654, %v2766
    %2768 = vmatprep.mubr.f32.mxu0 %v1526
    %2769 = vmatmul.mubr.f32.gmra.mxu0 %v1525
    %v2770 = vpop.f32.mrf.mxu0
    %v2771 = vadd.f32 %v2658, %v2770
    %v2772 = vpop.f32.mrf.mxu0
    %v2773 = vadd.f32 %v2660, %v2772
    %2774 = vmatprep.mubr.f32.mxu0 %v1530
    %2775 = vmatmul.mubr.f32.gmra.mxu0 %v1529
    %v2776 = vpop.f32.mrf.mxu0
    %v2777 = vadd.f32 %v2664, %v2776
    %v2778 = vpop.f32.mrf.mxu0
    %v2779 = vadd.f32 %v2666, %v2778
    %2780 = vmatprep.mubr.f32.mxu0 %v1534
    %2781 = vmatmul.mubr.f32.gmra.mxu0 %v1533
    %v2782 = vpop.f32.mrf.mxu0
    %v2783 = vadd.f32 %v2670, %v2782
    %v2784 = vpop.f32.mrf.mxu0
    %v2785 = vadd.f32 %v2672, %v2784
    %2786 = vmatprep.mubr.f32.mxu0 %v1538
    %2787 = vmatmul.mubr.f32.gmra.mxu0 %v1537
    %v2788 = vpop.f32.mrf.mxu0
    %v2789 = vadd.f32 %v2676, %v2788
    %v2790 = vpop.f32.mrf.mxu0
    %v2791 = vadd.f32 %v2678, %v2790
    %2792 = vdwg.mxu0
    %2793 = vmatprep.subr.mxu0 %v1681
    %2794 = vmatpush1.msra.mxu0 %v1680
    %2795 = vmatprep.subr.mxu0 %v1672
    %2796 = vmatpush1.msra.mxu0 %v1671
    %2797 = vmatprep.subr.mxu0 %v1663
    %2798 = vmatpush1.msra.mxu0 %v1662
    %2799 = vmatprep.subr.mxu0 %v1654
    %2800 = vmatpush1.msra.mxu0 %v1653
    %2801 = vmatprep.subr.mxu0 %v1645
    %2802 = vmatpush1.msra.mxu0 %v1644
    %2803 = vmatprep.subr.mxu0 %v1636
    %2804 = vmatpush1.msra.mxu0 %v1635
    %2805 = vmatprep.subr.mxu0 %v1627
    %2806 = vmatpush1.msra.mxu0 %v1626
    %2807 = vmatprep.subr.mxu0 %v1618
    %2808 = vmatpush1.msra.mxu0 %v1617
    %2809 = vmatprep.subr.mxu0 %v1609
    %2810 = vmatpush1.msra.mxu0 %v1608
    %2811 = vmatprep.subr.mxu0 %v1600
    %2812 = vmatpush1.msra.mxu0 %v1599
    %2813 = vmatprep.subr.mxu0 %v1591
    %2814 = vmatpush1.msra.mxu0 %v1590
    %2815 = vmatprep.subr.mxu0 %v1582
    %2816 = vmatpush1.msra.mxu0 %v1581
    %2817 = vmatprep.subr.mxu0 %v1573
    %2818 = vmatpush1.msra.mxu0 %v1572
    %2819 = vmatprep.subr.mxu0 %v1564
    %2820 = vmatpush1.msra.mxu0 %v1563
    %2821 = vmatprep.subr.mxu0 %v1555
    %2822 = vmatpush1.msra.mxu0 %v1554
    %2823 = vmatprep.subr.mxu0 %v1546
    %2824 = vmatpush1.msra.mxu0 %v1545
    %2825 = vmatprep.subr.mxu0 %v1825
    %2826 = vmatpush2.msra.mxu0 %v1824
    %2827 = vmatprep.subr.mxu0 %v1816
    %2828 = vmatpush2.msra.mxu0 %v1815
    %2829 = vmatprep.subr.mxu0 %v1807
    %2830 = vmatpush2.msra.mxu0 %v1806
    %2831 = vmatprep.subr.mxu0 %v1798
    %2832 = vmatpush2.msra.mxu0 %v1797
    %2833 = vmatprep.subr.mxu0 %v1789
    %2834 = vmatpush2.msra.mxu0 %v1788
    %2835 = vmatprep.subr.mxu0 %v1780
    %2836 = vmatpush2.msra.mxu0 %v1779
    %2837 = vmatprep.subr.mxu0 %v1771
    %2838 = vmatpush2.msra.mxu0 %v1770
    %2839 = vmatprep.subr.mxu0 %v1762
    %2840 = vmatpush2.msra.mxu0 %v1761
    %2841 = vmatprep.subr.mxu0 %v1753
    %2842 = vmatpush2.msra.mxu0 %v1752
    %2843 = vmatprep.subr.mxu0 %v1744
    %2844 = vmatpush2.msra.mxu0 %v1743
    %2845 = vmatprep.subr.mxu0 %v1735
    %2846 = vmatpush2.msra.mxu0 %v1734
    %2847 = vmatprep.subr.mxu0 %v1726
    %2848 = vmatpush2.msra.mxu0 %v1725
    %2849 = vmatprep.subr.mxu0 %v1717
    %2850 = vmatpush2.msra.mxu0 %v1716
    %2851 = vmatprep.subr.mxu0 %v1708
    %2852 = vmatpush2.msra.mxu0 %v1707
    %2853 = vmatprep.subr.mxu0 %v1699
    %2854 = vmatpush2.msra.mxu0 %v1698
    %2855 = vmatprep.subr.mxu0 %v1690
    %2856 = vmatpush2.msra.mxu0 %v1689
    %2857 = vmatprep.mubr.f32.mxu0 %v1508
    %2858 = vmatmul.mubr.f32.gmra.mxu0 %v1507
    %v2859 = vpop.f32.mrf.mxu0
    %v2860 = vadd.f32 0.0, %v2859
    %v2861 = vpop.f32.mrf.mxu0
    %v2862 = vadd.f32 0.0, %v2861
    %2863 = vmatprep.mubr.f32.mxu0 %v1512
    %2864 = vmatmul.mubr.f32.gmra.mxu0 %v1511
    %v2865 = vpop.f32.mrf.mxu0
    %v2866 = vadd.f32 0.0, %v2865
    %v2867 = vpop.f32.mrf.mxu0
    %v2868 = vadd.f32 0.0, %v2867
    %2869 = vmatprep.mubr.f32.mxu0 %v1516
    %2870 = vmatmul.mubr.f32.gmra.mxu0 %v1515
    %v2871 = vpop.f32.mrf.mxu0
    %v2872 = vadd.f32 0.0, %v2871
    %v2873 = vpop.f32.mrf.mxu0
    %v2874 = vadd.f32 0.0, %v2873
    %2875 = vmatprep.mubr.f32.mxu0 %v1520
    %2876 = vmatmul.mubr.f32.gmra.mxu0 %v1519
    %v2877 = vpop.f32.mrf.mxu0
    %v2878 = vadd.f32 0.0, %v2877
    %v2879 = vpop.f32.mrf.mxu0
    %v2880 = vadd.f32 0.0, %v2879
    %2881 = vmatprep.mubr.f32.mxu0 %v1524
    %2882 = vmatmul.mubr.f32.gmra.mxu0 %v1523
    %v2883 = vpop.f32.mrf.mxu0
    %v2884 = vadd.f32 0.0, %v2883
    %v2885 = vpop.f32.mrf.mxu0
    %v2886 = vadd.f32 0.0, %v2885
    %2887 = vmatprep.mubr.f32.mxu0 %v1528
    %2888 = vmatmul.mubr.f32.gmra.mxu0 %v1527
    %v2889 = vpop.f32.mrf.mxu0
    %v2890 = vadd.f32 0.0, %v2889
    %v2891 = vpop.f32.mrf.mxu0
    %v2892 = vadd.f32 0.0, %v2891
    %2893 = vmatprep.mubr.f32.mxu0 %v1532
    %2894 = vmatmul.mubr.f32.gmra.mxu0 %v1531
    %v2895 = vpop.f32.mrf.mxu0
    %v2896 = vadd.f32 0.0, %v2895
    %v2897 = vpop.f32.mrf.mxu0
    %v2898 = vadd.f32 0.0, %v2897
    %2899 = vmatprep.mubr.f32.mxu0 %v1536
    %2900 = vmatmul.mubr.f32.gmra.mxu0 %v1535
    %v2901 = vpop.f32.mrf.mxu0
    %v2902 = vadd.f32 0.0, %v2901
    %v2903 = vpop.f32.mrf.mxu0
    %v2904 = vadd.f32 0.0, %v2903
    %2905 = vdwg.mxu0
    %2906 = vmatprep.subr.mxu0 %v1969
    %2907 = vmatpush1.msra.mxu0 %v1968
    %2908 = vmatprep.subr.mxu0 %v1960
    %2909 = vmatpush1.msra.mxu0 %v1959
    %2910 = vmatprep.subr.mxu0 %v1951
    %2911 = vmatpush1.msra.mxu0 %v1950
    %2912 = vmatprep.subr.mxu0 %v1942
    %2913 = vmatpush1.msra.mxu0 %v1941
    %2914 = vmatprep.subr.mxu0 %v1933
    %2915 = vmatpush1.msra.mxu0 %v1932
    %2916 = vmatprep.subr.mxu0 %v1924
    %2917 = vmatpush1.msra.mxu0 %v1923
    %2918 = vmatprep.subr.mxu0 %v1915
    %2919 = vmatpush1.msra.mxu0 %v1914
    %2920 = vmatprep.subr.mxu0 %v1906
    %2921 = vmatpush1.msra.mxu0 %v1905
    %2922 = vmatprep.subr.mxu0 %v1897
    %2923 = vmatpush1.msra.mxu0 %v1896
    %2924 = vmatprep.subr.mxu0 %v1888
    %2925 = vmatpush1.msra.mxu0 %v1887
    %2926 = vmatprep.subr.mxu0 %v1879
    %2927 = vmatpush1.msra.mxu0 %v1878
    %2928 = vmatprep.subr.mxu0 %v1870
    %2929 = vmatpush1.msra.mxu0 %v1869
    %2930 = vmatprep.subr.mxu0 %v1861
    %2931 = vmatpush1.msra.mxu0 %v1860
    %2932 = vmatprep.subr.mxu0 %v1852
    %2933 = vmatpush1.msra.mxu0 %v1851
    %2934 = vmatprep.subr.mxu0 %v1843
    %2935 = vmatpush1.msra.mxu0 %v1842
    %2936 = vmatprep.subr.mxu0 %v1834
    %2937 = vmatpush1.msra.mxu0 %v1833
    %2938 = vmatprep.subr.mxu0 %v2113
    %2939 = vmatpush2.msra.mxu0 %v2112
    %2940 = vmatprep.subr.mxu0 %v2104
    %2941 = vmatpush2.msra.mxu0 %v2103
    %2942 = vmatprep.subr.mxu0 %v2095
    %2943 = vmatpush2.msra.mxu0 %v2094
    %2944 = vmatprep.subr.mxu0 %v2086
    %2945 = vmatpush2.msra.mxu0 %v2085
    %2946 = vmatprep.subr.mxu0 %v2077
    %2947 = vmatpush2.msra.mxu0 %v2076
    %2948 = vmatprep.subr.mxu0 %v2068
    %2949 = vmatpush2.msra.mxu0 %v2067
    %2950 = vmatprep.subr.mxu0 %v2059
    %2951 = vmatpush2.msra.mxu0 %v2058
    %2952 = vmatprep.subr.mxu0 %v2050
    %2953 = vmatpush2.msra.mxu0 %v2049
    %2954 = vmatprep.subr.mxu0 %v2041
    %2955 = vmatpush2.msra.mxu0 %v2040
    %2956 = vmatprep.subr.mxu0 %v2032
    %2957 = vmatpush2.msra.mxu0 %v2031
    %2958 = vmatprep.subr.mxu0 %v2023
    %2959 = vmatpush2.msra.mxu0 %v2022
    %2960 = vmatprep.subr.mxu0 %v2014
    %2961 = vmatpush2.msra.mxu0 %v2013
    %2962 = vmatprep.subr.mxu0 %v2005
    %2963 = vmatpush2.msra.mxu0 %v2004
    %2964 = vmatprep.subr.mxu0 %v1996
    %2965 = vmatpush2.msra.mxu0 %v1995
    %2966 = vmatprep.subr.mxu0 %v1987
    %2967 = vmatpush2.msra.mxu0 %v1986
    %2968 = vmatprep.subr.mxu0 %v1978
    %2969 = vmatpush2.msra.mxu0 %v1977
    %2970 = vmatprep.mubr.f32.mxu0 %v1510
    %2971 = vmatmul.mubr.f32.gmra.mxu0 %v1509
    %v2972 = vpop.f32.mrf.mxu0
    %v2973 = vadd.f32 %v2860, %v2972
    %v2974 = vpop.f32.mrf.mxu0
    %v2975 = vadd.f32 %v2862, %v2974
    %2976 = vmatprep.mubr.f32.mxu0 %v1514
    %2977 = vmatmul.mubr.f32.gmra.mxu0 %v1513
    %v2978 = vpop.f32.mrf.mxu0
    %v2979 = vadd.f32 %v2866, %v2978
    %v2980 = vpop.f32.mrf.mxu0
    %v2981 = vadd.f32 %v2868, %v2980
    %2982 = vmatprep.mubr.f32.mxu0 %v1518
    %2983 = vmatmul.mubr.f32.gmra.mxu0 %v1517
    %v2984 = vpop.f32.mrf.mxu0
    %v2985 = vadd.f32 %v2872, %v2984
    %v2986 = vpop.f32.mrf.mxu0
    %v2987 = vadd.f32 %v2874, %v2986
    %2988 = vmatprep.mubr.f32.mxu0 %v1522
    %2989 = vmatmul.mubr.f32.gmra.mxu0 %v1521
    %v2990 = vpop.f32.mrf.mxu0
    %v2991 = vadd.f32 %v2878, %v2990
    %v2992 = vpop.f32.mrf.mxu0
    %v2993 = vadd.f32 %v2880, %v2992
    %2994 = vmatprep.mubr.f32.mxu0 %v1526
    %2995 = vmatmul.mubr.f32.gmra.mxu0 %v1525
    %v2996 = vpop.f32.mrf.mxu0
    %v2997 = vadd.f32 %v2884, %v2996
    %v2998 = vpop.f32.mrf.mxu0
    %v2999 = vadd.f32 %v2886, %v2998
    %3000 = vmatprep.mubr.f32.mxu0 %v1530
    %3001 = vmatmul.mubr.f32.gmra.mxu0 %v1529
    %v3002 = vpop.f32.mrf.mxu0
    %v3003 = vadd.f32 %v2890, %v3002
    %v3004 = vpop.f32.mrf.mxu0
    %v3005 = vadd.f32 %v2892, %v3004
    %3006 = vmatprep.mubr.f32.mxu0 %v1534
    %3007 = vmatmul.mubr.f32.gmra.mxu0 %v1533
    %v3008 = vpop.f32.mrf.mxu0
    %v3009 = vadd.f32 %v2896, %v3008
    %v3010 = vpop.f32.mrf.mxu0
    %v3011 = vadd.f32 %v2898, %v3010
    %3012 = vmatprep.mubr.f32.mxu0 %v1538
    %3013 = vmatmul.mubr.f32.gmra.mxu0 %v1537
    %v3014 = vpop.f32.mrf.mxu0
    %v3015 = vadd.f32 %v2902, %v3014
    %v3016 = vpop.f32.mrf.mxu0
    %v3017 = vadd.f32 %v2904, %v3016
    %3018 = vdwg.mxu0
    %3019 = vmatprep.subr.mxu0 0.0
    %3020 = vmatpush1.msra.mxu0 %v1682
    %3021 = vmatprep.subr.mxu0 0.0
    %3022 = vmatpush1.msra.mxu0 %v1673
    %3023 = vmatprep.subr.mxu0 0.0
    %3024 = vmatpush1.msra.mxu0 %v1664
    %3025 = vmatprep.subr.mxu0 0.0
    %3026 = vmatpush1.msra.mxu0 %v1655
    %3027 = vmatprep.subr.mxu0 0.0
    %3028 = vmatpush1.msra.mxu0 %v1646
    %3029 = vmatprep.subr.mxu0 0.0
    %3030 = vmatpush1.msra.mxu0 %v1637
    %3031 = vmatprep.subr.mxu0 0.0
    %3032 = vmatpush1.msra.mxu0 %v1628
    %3033 = vmatprep.subr.mxu0 0.0
    %3034 = vmatpush1.msra.mxu0 %v1619
    %3035 = vmatprep.subr.mxu0 0.0
    %3036 = vmatpush1.msra.mxu0 %v1610
    %3037 = vmatprep.subr.mxu0 0.0
    %3038 = vmatpush1.msra.mxu0 %v1601
    %3039 = vmatprep.subr.mxu0 0.0
    %3040 = vmatpush1.msra.mxu0 %v1592
    %3041 = vmatprep.subr.mxu0 0.0
    %3042 = vmatpush1.msra.mxu0 %v1583
    %3043 = vmatprep.subr.mxu0 0.0
    %3044 = vmatpush1.msra.mxu0 %v1574
    %3045 = vmatprep.subr.mxu0 0.0
    %3046 = vmatpush1.msra.mxu0 %v1565
    %3047 = vmatprep.subr.mxu0 0.0
    %3048 = vmatpush1.msra.mxu0 %v1556
    %3049 = vmatprep.subr.mxu0 0.0
    %3050 = vmatpush1.msra.mxu0 %v1547
    %3051 = vmatprep.subr.mxu0 0.0
    %3052 = vmatpush2.msra.mxu0 %v1826
    %3053 = vmatprep.subr.mxu0 0.0
    %3054 = vmatpush2.msra.mxu0 %v1817
    %3055 = vmatprep.subr.mxu0 0.0
    %3056 = vmatpush2.msra.mxu0 %v1808
    %3057 = vmatprep.subr.mxu0 0.0
    %3058 = vmatpush2.msra.mxu0 %v1799
    %3059 = vmatprep.subr.mxu0 0.0
    %3060 = vmatpush2.msra.mxu0 %v1790
    %3061 = vmatprep.subr.mxu0 0.0
    %3062 = vmatpush2.msra.mxu0 %v1781
    %3063 = vmatprep.subr.mxu0 0.0
    %3064 = vmatpush2.msra.mxu0 %v1772
    %3065 = vmatprep.subr.mxu0 0.0
    %3066 = vmatpush2.msra.mxu0 %v1763
    %3067 = vmatprep.subr.mxu0 0.0
    %3068 = vmatpush2.msra.mxu0 %v1754
    %3069 = vmatprep.subr.mxu0 0.0
    %3070 = vmatpush2.msra.mxu0 %v1745
    %3071 = vmatprep.subr.mxu0 0.0
    %3072 = vmatpush2.msra.mxu0 %v1736
    %3073 = vmatprep.subr.mxu0 0.0
    %3074 = vmatpush2.msra.mxu0 %v1727
    %3075 = vmatprep.subr.mxu0 0.0
    %3076 = vmatpush2.msra.mxu0 %v1718
    %3077 = vmatprep.subr.mxu0 0.0
    %3078 = vmatpush2.msra.mxu0 %v1709
    %3079 = vmatprep.subr.mxu0 0.0
    %3080 = vmatpush2.msra.mxu0 %v1700
    %3081 = vmatprep.subr.mxu0 0.0
    %3082 = vmatpush2.msra.mxu0 %v1691
    %3083 = vmatprep.mubr.f32.mxu0 %v1508
    %3084 = vmatmul.mubr.f32.gmra.mxu0 %v1507
    %v3085 = vpop.f32.mrf.mxu0
    %v3086 = vadd.f32 0.0, %v3085
    %v3087 = vpop.f32.mrf.mxu0
    %3088 = vmatprep.mubr.f32.mxu0 %v1512
    %3089 = vmatmul.mubr.f32.gmra.mxu0 %v1511
    %v3090 = vpop.f32.mrf.mxu0
    %v3091 = vadd.f32 0.0, %v3090
    %v3092 = vpop.f32.mrf.mxu0
    %3093 = vmatprep.mubr.f32.mxu0 %v1516
    %3094 = vmatmul.mubr.f32.gmra.mxu0 %v1515
    %v3095 = vpop.f32.mrf.mxu0
    %v3096 = vadd.f32 0.0, %v3095
    %v3097 = vpop.f32.mrf.mxu0
    %3098 = vmatprep.mubr.f32.mxu0 %v1520
    %3099 = vmatmul.mubr.f32.gmra.mxu0 %v1519
    %v3100 = vpop.f32.mrf.mxu0
    %v3101 = vadd.f32 0.0, %v3100
    %v3102 = vpop.f32.mrf.mxu0
    %3103 = vmatprep.mubr.f32.mxu0 %v1524
    %3104 = vmatmul.mubr.f32.gmra.mxu0 %v1523
    %v3105 = vpop.f32.mrf.mxu0
    %v3106 = vadd.f32 0.0, %v3105
    %v3107 = vpop.f32.mrf.mxu0
    %3108 = vmatprep.mubr.f32.mxu0 %v1528
    %3109 = vmatmul.mubr.f32.gmra.mxu0 %v1527
    %v3110 = vpop.f32.mrf.mxu0
    %v3111 = vadd.f32 0.0, %v3110
    %v3112 = vpop.f32.mrf.mxu0
    %3113 = vmatprep.mubr.f32.mxu0 %v1532
    %3114 = vmatmul.mubr.f32.gmra.mxu0 %v1531
    %v3115 = vpop.f32.mrf.mxu0
    %v3116 = vadd.f32 0.0, %v3115
    %v3117 = vpop.f32.mrf.mxu0
    %3118 = vmatprep.mubr.f32.mxu0 %v1536
    %3119 = vmatmul.mubr.f32.gmra.mxu0 %v1535
    %v3120 = vpop.f32.mrf.mxu0
    %v3121 = vadd.f32 0.0, %v3120
    %v3122 = vpop.f32.mrf.mxu0
    %3123 = vdwg.mxu0
    %3124 = vmatprep.subr.mxu0 0.0
    %3125 = vmatpush1.msra.mxu0 %v1970
    %3126 = vmatprep.subr.mxu0 0.0
    %3127 = vmatpush1.msra.mxu0 %v1961
    %3128 = vmatprep.subr.mxu0 0.0
    %3129 = vmatpush1.msra.mxu0 %v1952
    %3130 = vmatprep.subr.mxu0 0.0
    %3131 = vmatpush1.msra.mxu0 %v1943
    %3132 = vmatprep.subr.mxu0 0.0
    %3133 = vmatpush1.msra.mxu0 %v1934
    %3134 = vmatprep.subr.mxu0 0.0
    %3135 = vmatpush1.msra.mxu0 %v1925
    %3136 = vmatprep.subr.mxu0 0.0
    %3137 = vmatpush1.msra.mxu0 %v1916
    %3138 = vmatprep.subr.mxu0 0.0
    %3139 = vmatpush1.msra.mxu0 %v1907
    %3140 = vmatprep.subr.mxu0 0.0
    %3141 = vmatpush1.msra.mxu0 %v1898
    %3142 = vmatprep.subr.mxu0 0.0
    %3143 = vmatpush1.msra.mxu0 %v1889
    %3144 = vmatprep.subr.mxu0 0.0
    %3145 = vmatpush1.msra.mxu0 %v1880
    %3146 = vmatprep.subr.mxu0 0.0
    %3147 = vmatpush1.msra.mxu0 %v1871
    %3148 = vmatprep.subr.mxu0 0.0
    %3149 = vmatpush1.msra.mxu0 %v1862
    %3150 = vmatprep.subr.mxu0 0.0
    %3151 = vmatpush1.msra.mxu0 %v1853
    %3152 = vmatprep.subr.mxu0 0.0
    %3153 = vmatpush1.msra.mxu0 %v1844
    %3154 = vmatprep.subr.mxu0 0.0
    %3155 = vmatpush1.msra.mxu0 %v1835
    %3156 = vmatprep.subr.mxu0 0.0
    %3157 = vmatpush2.msra.mxu0 %v2114
    %3158 = vmatprep.subr.mxu0 0.0
    %3159 = vmatpush2.msra.mxu0 %v2105
    %3160 = vmatprep.subr.mxu0 0.0
    %3161 = vmatpush2.msra.mxu0 %v2096
    %3162 = vmatprep.subr.mxu0 0.0
    %3163 = vmatpush2.msra.mxu0 %v2087
    %3164 = vmatprep.subr.mxu0 0.0
    %3165 = vmatpush2.msra.mxu0 %v2078
    %3166 = vmatprep.subr.mxu0 0.0
    %3167 = vmatpush2.msra.mxu0 %v2069
    %3168 = vmatprep.subr.mxu0 0.0
    %3169 = vmatpush2.msra.mxu0 %v2060
    %3170 = vmatprep.subr.mxu0 0.0
    %3171 = vmatpush2.msra.mxu0 %v2051
    %3172 = vmatprep.subr.mxu0 0.0
    %3173 = vmatpush2.msra.mxu0 %v2042
    %3174 = vmatprep.subr.mxu0 0.0
    %3175 = vmatpush2.msra.mxu0 %v2033
    %3176 = vmatprep.subr.mxu0 0.0
    %3177 = vmatpush2.msra.mxu0 %v2024
    %3178 = vmatprep.subr.mxu0 0.0
    %3179 = vmatpush2.msra.mxu0 %v2015
    %3180 = vmatprep.subr.mxu0 0.0
    %3181 = vmatpush2.msra.mxu0 %v2006
    %3182 = vmatprep.subr.mxu0 0.0
    %3183 = vmatpush2.msra.mxu0 %v1997
    %3184 = vmatprep.subr.mxu0 0.0
    %3185 = vmatpush2.msra.mxu0 %v1988
    %3186 = vmatprep.subr.mxu0 0.0
    %3187 = vmatpush2.msra.mxu0 %v1979
    %3188 = vmatprep.mubr.f32.mxu0 %v1510
    %3189 = vmatmul.mubr.f32.gmra.mxu0 %v1509
    %v3190 = vpop.f32.mrf.mxu0
    %v3191 = vadd.f32 %v3086, %v3190
    %v3192 = vpop.f32.mrf.mxu0
    %3193 = vmatprep.mubr.f32.mxu0 %v1514
    %3194 = vmatmul.mubr.f32.gmra.mxu0 %v1513
    %v3195 = vpop.f32.mrf.mxu0
    %v3196 = vadd.f32 %v3091, %v3195
    %v3197 = vpop.f32.mrf.mxu0
    %3198 = vmatprep.mubr.f32.mxu0 %v1518
    %3199 = vmatmul.mubr.f32.gmra.mxu0 %v1517
    %v3200 = vpop.f32.mrf.mxu0
    %v3201 = vadd.f32 %v3096, %v3200
    %v3202 = vpop.f32.mrf.mxu0
    %3203 = vmatprep.mubr.f32.mxu0 %v1522
    %3204 = vmatmul.mubr.f32.gmra.mxu0 %v1521
    %v3205 = vpop.f32.mrf.mxu0
    %v3206 = vadd.f32 %v3101, %v3205
    %v3207 = vpop.f32.mrf.mxu0
    %3208 = vmatprep.mubr.f32.mxu0 %v1526
    %3209 = vmatmul.mubr.f32.gmra.mxu0 %v1525
    %v3210 = vpop.f32.mrf.mxu0
    %v3211 = vadd.f32 %v3106, %v3210
    %v3212 = vpop.f32.mrf.mxu0
    %3213 = vmatprep.mubr.f32.mxu0 %v1530
    %3214 = vmatmul.mubr.f32.gmra.mxu0 %v1529
    %v3215 = vpop.f32.mrf.mxu0
    %v3216 = vadd.f32 %v3111, %v3215
    %v3217 = vpop.f32.mrf.mxu0
    %3218 = vmatprep.mubr.f32.mxu0 %v1534
    %3219 = vmatmul.mubr.f32.gmra.mxu0 %v1533
    %v3220 = vpop.f32.mrf.mxu0
    %v3221 = vadd.f32 %v3116, %v3220
    %v3222 = vpop.f32.mrf.mxu0
    %3223 = vmatprep.mubr.f32.mxu0 %v1538
    %3224 = vmatmul.mubr.f32.gmra.mxu0 %v1537
    %v3225 = vpop.f32.mrf.mxu0
    %v3226 = vadd.f32 %v3121, %v3225
    %v3227 = vpop.f32.mrf.mxu0
    %3228 = vdwg.mxu0
    %v3229 = vld [vmem:[#allocation9] sm:$0xff]
    %v3230 = vld [vmem:[#allocation9 + $0x8] sm:$0xff]
    %v3231 = vld [vmem:[#allocation9 + $0x10] sm:$0xff]
    %v3232 = vld [vmem:[#allocation9 + $0x18] sm:$0xff]
    %s3233 = scalar_lea.vmem [#allocation9], 32
    %v3234 = vld [vmem:[%s3233] sm:$0xff]
    %v3235 = vld [vmem:[%s3233 + $0x8] sm:$0xff]
    %v3236 = vld [vmem:[%s3233 + $0x10] sm:$0xff]
    %v3237 = vld [vmem:[%s3233 + $0x18] sm:$0xff]
    %vm3238 = vcmask 523264
    %v3240 = vsel %vm3238, %v3234, 0
    %v3243 = vsel %vm3238, %v3235, 0
    %v3246 = vsel %vm3238, %v3236, 0
    %v3249 = vsel %vm3238, %v3237, 0
    %3251 = vmatprep.subr.mxu0 0.0
    %3252 = vmatpush1.msra.mxu0 0.0
    %3253 = vmatprep.subr.mxu0 0.0
    %3254 = vmatpush1.msra.mxu0 0.0
    %3255 = vmatprep.subr.mxu0 0.0
    %3256 = vmatpush1.msra.mxu0 0.0
    %3257 = vmatprep.subr.mxu0 0.0
    %3258 = vmatpush1.msra.mxu0 0.0
    %3259 = vmatprep.subr.mxu0 0.0
    %3260 = vmatpush1.msra.mxu0 0.0
    %3261 = vmatprep.subr.mxu0 0.0
    %3262 = vmatpush1.msra.mxu0 0.0
    %3263 = vmatprep.subr.mxu0 0.0
    %3264 = vmatpush1.msra.mxu0 0.0
    %3265 = vmatprep.subr.mxu0 0.0
    %3266 = vmatpush1.msra.mxu0 0.0
    %3267 = vmatprep.subr.mxu0 0.0
    %3268 = vmatpush1.msra.mxu0 %v2339
    %3269 = vmatprep.subr.mxu0 0.0
    %3270 = vmatpush1.msra.mxu0 %v2333
    %3271 = vmatprep.subr.mxu0 0.0
    %3272 = vmatpush1.msra.mxu0 %v2327
    %3273 = vmatprep.subr.mxu0 0.0
    %3274 = vmatpush1.msra.mxu0 %v2321
    %3275 = vmatprep.subr.mxu0 0.0
    %3276 = vmatpush1.msra.mxu0 %v2315
    %3277 = vmatprep.subr.mxu0 0.0
    %3278 = vmatpush1.msra.mxu0 %v2309
    %3279 = vmatprep.subr.mxu0 0.0
    %3280 = vmatpush1.msra.mxu0 %v2303
    %3281 = vmatprep.subr.mxu0 0.0
    %3282 = vmatpush1.msra.mxu0 %v2297
    %3283 = vmatprep.subr.mxu0 0.0
    %3284 = vmatpush2.msra.mxu0 0.0
    %3285 = vmatprep.subr.mxu0 0.0
    %3286 = vmatpush2.msra.mxu0 0.0
    %3287 = vmatprep.subr.mxu0 0.0
    %3288 = vmatpush2.msra.mxu0 0.0
    %3289 = vmatprep.subr.mxu0 0.0
    %3290 = vmatpush2.msra.mxu0 0.0
    %3291 = vmatprep.subr.mxu0 0.0
    %3292 = vmatpush2.msra.mxu0 0.0
    %3293 = vmatprep.subr.mxu0 0.0
    %3294 = vmatpush2.msra.mxu0 0.0
    %3295 = vmatprep.subr.mxu0 0.0
    %3296 = vmatpush2.msra.mxu0 0.0
    %3297 = vmatprep.subr.mxu0 0.0
    %3298 = vmatpush2.msra.mxu0 0.0
    %3299 = vmatprep.subr.mxu0 0.0
    %3300 = vmatpush2.msra.mxu0 0.0
    %3301 = vmatprep.subr.mxu0 0.0
    %3302 = vmatpush2.msra.mxu0 0.0
    %3303 = vmatprep.subr.mxu0 0.0
    %3304 = vmatpush2.msra.mxu0 0.0
    %3305 = vmatprep.subr.mxu0 0.0
    %3306 = vmatpush2.msra.mxu0 0.0
    %3307 = vmatprep.subr.mxu0 0.0
    %3308 = vmatpush2.msra.mxu0 0.0
    %3309 = vmatprep.subr.mxu0 0.0
    %3310 = vmatpush2.msra.mxu0 0.0
    %3311 = vmatprep.subr.mxu0 0.0
    %3312 = vmatpush2.msra.mxu0 0.0
    %3313 = vmatprep.subr.mxu0 0.0
    %3314 = vmatpush2.msra.mxu0 0.0
    %3315 = vmatprep.mubr.f32.mxu0 0.0
    %3316 = vmatmul.mubr.f32.gmra.mxu0 %v3240
    %v3317 = vpop.f32.mrf.mxu0
    %v3318 = vadd.f32 0.0, %v3317
    %v3319 = vpop.f32.mrf.mxu0
    %3320 = vmatprep.mubr.f32.mxu0 0.0
    %3321 = vmatmul.mubr.f32.gmra.mxu0 %v3243
    %v3322 = vpop.f32.mrf.mxu0
    %v3323 = vadd.f32 0.0, %v3322
    %v3324 = vpop.f32.mrf.mxu0
    %3325 = vmatprep.mubr.f32.mxu0 0.0
    %3326 = vmatmul.mubr.f32.gmra.mxu0 %v3246
    %v3327 = vpop.f32.mrf.mxu0
    %v3328 = vadd.f32 0.0, %v3327
    %v3329 = vpop.f32.mrf.mxu0
    %3330 = vmatprep.mubr.f32.mxu0 0.0
    %3331 = vmatmul.mubr.f32.gmra.mxu0 %v3249
    %v3332 = vpop.f32.mrf.mxu0
    %v3333 = vadd.f32 0.0, %v3332
    %v3334 = vpop.f32.mrf.mxu0
    %3335 = vdwg.mxu0
    %v3337 = vsel %vm3238, %v3229, 0
    %v3340 = vsel %vm3238, %v3230, 0
    %v3343 = vsel %vm3238, %v3231, 0
    %v3346 = vsel %vm3238, %v3232, 0
    %3348 = vmatprep.subr.mxu0 0.0
    %3349 = vmatpush1.msra.mxu0 0.0
    %3350 = vmatprep.subr.mxu0 0.0
    %3351 = vmatpush1.msra.mxu0 0.0
    %3352 = vmatprep.subr.mxu0 0.0
    %3353 = vmatpush1.msra.mxu0 0.0
    %3354 = vmatprep.subr.mxu0 0.0
    %3355 = vmatpush1.msra.mxu0 0.0
    %3356 = vmatprep.subr.mxu0 0.0
    %3357 = vmatpush1.msra.mxu0 0.0
    %3358 = vmatprep.subr.mxu0 0.0
    %3359 = vmatpush1.msra.mxu0 0.0
    %3360 = vmatprep.subr.mxu0 0.0
    %3361 = vmatpush1.msra.mxu0 0.0
    %3362 = vmatprep.subr.mxu0 0.0
    %3363 = vmatpush1.msra.mxu0 0.0
    %3364 = vmatprep.subr.mxu0 0.0
    %3365 = vmatpush1.msra.mxu0 %v2337
    %3366 = vmatprep.subr.mxu0 0.0
    %3367 = vmatpush1.msra.mxu0 %v2331
    %3368 = vmatprep.subr.mxu0 0.0
    %3369 = vmatpush1.msra.mxu0 %v2325
    %3370 = vmatprep.subr.mxu0 0.0
    %3371 = vmatpush1.msra.mxu0 %v2319
    %3372 = vmatprep.subr.mxu0 0.0
    %3373 = vmatpush1.msra.mxu0 %v2313
    %3374 = vmatprep.subr.mxu0 0.0
    %3375 = vmatpush1.msra.mxu0 %v2307
    %3376 = vmatprep.subr.mxu0 0.0
    %3377 = vmatpush1.msra.mxu0 %v2301
    %3378 = vmatprep.subr.mxu0 0.0
    %3379 = vmatpush1.msra.mxu0 %v2295
    %3380 = vmatprep.subr.mxu0 0.0
    %3381 = vmatpush2.msra.mxu0 0.0
    %3382 = vmatprep.subr.mxu0 0.0
    %3383 = vmatpush2.msra.mxu0 0.0
    %3384 = vmatprep.subr.mxu0 0.0
    %3385 = vmatpush2.msra.mxu0 0.0
    %3386 = vmatprep.subr.mxu0 0.0
    %3387 = vmatpush2.msra.mxu0 0.0
    %3388 = vmatprep.subr.mxu0 0.0
    %3389 = vmatpush2.msra.mxu0 0.0
    %3390 = vmatprep.subr.mxu0 0.0
    %3391 = vmatpush2.msra.mxu0 0.0
    %3392 = vmatprep.subr.mxu0 0.0
    %3393 = vmatpush2.msra.mxu0 0.0
    %3394 = vmatprep.subr.mxu0 0.0
    %3395 = vmatpush2.msra.mxu0 0.0
    %3396 = vmatprep.subr.mxu0 0.0
    %3397 = vmatpush2.msra.mxu0 0.0
    %3398 = vmatprep.subr.mxu0 0.0
    %3399 = vmatpush2.msra.mxu0 0.0
    %3400 = vmatprep.subr.mxu0 0.0
    %3401 = vmatpush2.msra.mxu0 0.0
    %3402 = vmatprep.subr.mxu0 0.0
    %3403 = vmatpush2.msra.mxu0 0.0
    %3404 = vmatprep.subr.mxu0 0.0
    %3405 = vmatpush2.msra.mxu0 0.0
    %3406 = vmatprep.subr.mxu0 0.0
    %3407 = vmatpush2.msra.mxu0 0.0
    %3408 = vmatprep.subr.mxu0 0.0
    %3409 = vmatpush2.msra.mxu0 0.0
    %3410 = vmatprep.subr.mxu0 0.0
    %3411 = vmatpush2.msra.mxu0 0.0
    %3412 = vmatprep.mubr.f32.mxu0 0.0
    %3413 = vmatmul.mubr.f32.gmra.mxu0 %v3337
    %v3414 = vpop.f32.mrf.mxu0
    %v3415 = vadd.f32 %v3318, %v3414
    %v3416 = vpop.f32.mrf.mxu0
    %3417 = vmatprep.mubr.f32.mxu0 0.0
    %3418 = vmatmul.mubr.f32.gmra.mxu0 %v3340
    %v3419 = vpop.f32.mrf.mxu0
    %v3420 = vadd.f32 %v3323, %v3419
    %v3421 = vpop.f32.mrf.mxu0
    %3422 = vmatprep.mubr.f32.mxu0 0.0
    %3423 = vmatmul.mubr.f32.gmra.mxu0 %v3343
    %v3424 = vpop.f32.mrf.mxu0
    %v3425 = vadd.f32 %v3328, %v3424
    %v3426 = vpop.f32.mrf.mxu0
    %3427 = vmatprep.mubr.f32.mxu0 0.0
    %3428 = vmatmul.mubr.f32.gmra.mxu0 %v3346
    %v3429 = vpop.f32.mrf.mxu0
    %v3430 = vadd.f32 %v3333, %v3429
    %v3431 = vpop.f32.mrf.mxu0
    %3432 = vdwg.mxu0
    %s3433 = scalar_lea.vmem [#allocation9], 64
    %v3434 = vld [vmem:[%s3433] sm:$0xff]
    %v3435 = vld [vmem:[%s3433 + $0x8] sm:$0xff]
    %v3436 = vld [vmem:[%s3433 + $0x10] sm:$0xff]
    %v3437 = vld [vmem:[%s3433 + $0x18] sm:$0xff]
    %v3439 = vsel %vm3238, %v3434, 0
    %v3442 = vsel %vm3238, %v3435, 0
    %v3445 = vsel %vm3238, %v3436, 0
    %v3448 = vsel %vm3238, %v3437, 0
    %3450 = vmatprep.subr.mxu0 0.0
    %3451 = vmatpush1.msra.mxu0 0.0
    %3452 = vmatprep.subr.mxu0 0.0
    %3453 = vmatpush1.msra.mxu0 0.0
    %3454 = vmatprep.subr.mxu0 0.0
    %3455 = vmatpush1.msra.mxu0 0.0
    %3456 = vmatprep.subr.mxu0 0.0
    %3457 = vmatpush1.msra.mxu0 0.0
    %3458 = vmatprep.subr.mxu0 0.0
    %3459 = vmatpush1.msra.mxu0 0.0
    %3460 = vmatprep.subr.mxu0 0.0
    %3461 = vmatpush1.msra.mxu0 0.0
    %3462 = vmatprep.subr.mxu0 0.0
    %3463 = vmatpush1.msra.mxu0 0.0
    %3464 = vmatprep.subr.mxu0 0.0
    %3465 = vmatpush1.msra.mxu0 0.0
    %3466 = vmatprep.subr.mxu0 0.0
    %3467 = vmatpush1.msra.mxu0 %v2563
    %3468 = vmatprep.subr.mxu0 0.0
    %3469 = vmatpush1.msra.mxu0 %v2557
    %3470 = vmatprep.subr.mxu0 0.0
    %3471 = vmatpush1.msra.mxu0 %v2551
    %3472 = vmatprep.subr.mxu0 0.0
    %3473 = vmatpush1.msra.mxu0 %v2545
    %3474 = vmatprep.subr.mxu0 0.0
    %3475 = vmatpush1.msra.mxu0 %v2539
    %3476 = vmatprep.subr.mxu0 0.0
    %3477 = vmatpush1.msra.mxu0 %v2533
    %3478 = vmatprep.subr.mxu0 0.0
    %3479 = vmatpush1.msra.mxu0 %v2527
    %3480 = vmatprep.subr.mxu0 0.0
    %3481 = vmatpush1.msra.mxu0 %v2521
    %3482 = vmatprep.subr.mxu0 0.0
    %3483 = vmatpush2.msra.mxu0 0.0
    %3484 = vmatprep.subr.mxu0 0.0
    %3485 = vmatpush2.msra.mxu0 0.0
    %3486 = vmatprep.subr.mxu0 0.0
    %3487 = vmatpush2.msra.mxu0 0.0
    %3488 = vmatprep.subr.mxu0 0.0
    %3489 = vmatpush2.msra.mxu0 0.0
    %3490 = vmatprep.subr.mxu0 0.0
    %3491 = vmatpush2.msra.mxu0 0.0
    %3492 = vmatprep.subr.mxu0 0.0
    %3493 = vmatpush2.msra.mxu0 0.0
    %3494 = vmatprep.subr.mxu0 0.0
    %3495 = vmatpush2.msra.mxu0 0.0
    %3496 = vmatprep.subr.mxu0 0.0
    %3497 = vmatpush2.msra.mxu0 0.0
    %3498 = vmatprep.subr.mxu0 0.0
    %3499 = vmatpush2.msra.mxu0 0.0
    %3500 = vmatprep.subr.mxu0 0.0
    %3501 = vmatpush2.msra.mxu0 0.0
    %3502 = vmatprep.subr.mxu0 0.0
    %3503 = vmatpush2.msra.mxu0 0.0
    %3504 = vmatprep.subr.mxu0 0.0
    %3505 = vmatpush2.msra.mxu0 0.0
    %3506 = vmatprep.subr.mxu0 0.0
    %3507 = vmatpush2.msra.mxu0 0.0
    %3508 = vmatprep.subr.mxu0 0.0
    %3509 = vmatpush2.msra.mxu0 0.0
    %3510 = vmatprep.subr.mxu0 0.0
    %3511 = vmatpush2.msra.mxu0 0.0
    %3512 = vmatprep.subr.mxu0 0.0
    %3513 = vmatpush2.msra.mxu0 0.0
    %3514 = vmatprep.mubr.f32.mxu0 0.0
    %3515 = vmatmul.mubr.f32.gmra.mxu0 %v3439
    %v3516 = vpop.f32.mrf.mxu0
    %v3517 = vadd.f32 0.0, %v3516
    %v3518 = vpop.f32.mrf.mxu0
    %3519 = vmatprep.mubr.f32.mxu0 0.0
    %3520 = vmatmul.mubr.f32.gmra.mxu0 %v3442
    %v3521 = vpop.f32.mrf.mxu0
    %v3522 = vadd.f32 0.0, %v3521
    %v3523 = vpop.f32.mrf.mxu0
    %3524 = vmatprep.mubr.f32.mxu0 0.0
    %3525 = vmatmul.mubr.f32.gmra.mxu0 %v3445
    %v3526 = vpop.f32.mrf.mxu0
    %v3527 = vadd.f32 0.0, %v3526
    %v3528 = vpop.f32.mrf.mxu0
    %3529 = vmatprep.mubr.f32.mxu0 0.0
    %3530 = vmatmul.mubr.f32.gmra.mxu0 %v3448
    %v3531 = vpop.f32.mrf.mxu0
    %v3532 = vadd.f32 0.0, %v3531
    %v3533 = vpop.f32.mrf.mxu0
    %3534 = vdwg.mxu0
    %v3535 = vadd.f32 %v3415, %v3517
    %v3536 = vadd.f32 %v3420, %v3522
    %v3537 = vadd.f32 %v3425, %v3527
    %v3538 = vadd.f32 %v3430, %v3532
    %s3539 = scalar_lea.vmem [#allocation9], 96
    %v3540 = vld [vmem:[%s3539] sm:$0xff]
    %v3541 = vld [vmem:[%s3539 + $0x8] sm:$0xff]
    %v3542 = vld [vmem:[%s3539 + $0x10] sm:$0xff]
    %v3543 = vld [vmem:[%s3539 + $0x18] sm:$0xff]
    %v3545 = vsel %vm3238, %v3540, 0
    %v3548 = vsel %vm3238, %v3541, 0
    %v3551 = vsel %vm3238, %v3542, 0
    %v3554 = vsel %vm3238, %v3543, 0
    %3556 = vmatprep.subr.mxu0 0.0
    %3557 = vmatpush1.msra.mxu0 0.0
    %3558 = vmatprep.subr.mxu0 0.0
    %3559 = vmatpush1.msra.mxu0 0.0
    %3560 = vmatprep.subr.mxu0 0.0
    %3561 = vmatpush1.msra.mxu0 0.0
    %3562 = vmatprep.subr.mxu0 0.0
    %3563 = vmatpush1.msra.mxu0 0.0
    %3564 = vmatprep.subr.mxu0 0.0
    %3565 = vmatpush1.msra.mxu0 0.0
    %3566 = vmatprep.subr.mxu0 0.0
    %3567 = vmatpush1.msra.mxu0 0.0
    %3568 = vmatprep.subr.mxu0 0.0
    %3569 = vmatpush1.msra.mxu0 0.0
    %3570 = vmatprep.subr.mxu0 0.0
    %3571 = vmatpush1.msra.mxu0 0.0
    %3572 = vmatprep.subr.mxu0 0.0
    %3573 = vmatpush1.msra.mxu0 %v2565
    %3574 = vmatprep.subr.mxu0 0.0
    %3575 = vmatpush1.msra.mxu0 %v2559
    %3576 = vmatprep.subr.mxu0 0.0
    %3577 = vmatpush1.msra.mxu0 %v2553
    %3578 = vmatprep.subr.mxu0 0.0
    %3579 = vmatpush1.msra.mxu0 %v2547
    %3580 = vmatprep.subr.mxu0 0.0
    %3581 = vmatpush1.msra.mxu0 %v2541
    %3582 = vmatprep.subr.mxu0 0.0
    %3583 = vmatpush1.msra.mxu0 %v2535
    %3584 = vmatprep.subr.mxu0 0.0
    %3585 = vmatpush1.msra.mxu0 %v2529
    %3586 = vmatprep.subr.mxu0 0.0
    %3587 = vmatpush1.msra.mxu0 %v2523
    %3588 = vmatprep.subr.mxu0 0.0
    %3589 = vmatpush2.msra.mxu0 0.0
    %3590 = vmatprep.subr.mxu0 0.0
    %3591 = vmatpush2.msra.mxu0 0.0
    %3592 = vmatprep.subr.mxu0 0.0
    %3593 = vmatpush2.msra.mxu0 0.0
    %3594 = vmatprep.subr.mxu0 0.0
    %3595 = vmatpush2.msra.mxu0 0.0
    %3596 = vmatprep.subr.mxu0 0.0
    %3597 = vmatpush2.msra.mxu0 0.0
    %3598 = vmatprep.subr.mxu0 0.0
    %3599 = vmatpush2.msra.mxu0 0.0
    %3600 = vmatprep.subr.mxu0 0.0
    %3601 = vmatpush2.msra.mxu0 0.0
    %3602 = vmatprep.subr.mxu0 0.0
    %3603 = vmatpush2.msra.mxu0 0.0
    %3604 = vmatprep.subr.mxu0 0.0
    %3605 = vmatpush2.msra.mxu0 0.0
    %3606 = vmatprep.subr.mxu0 0.0
    %3607 = vmatpush2.msra.mxu0 0.0
    %3608 = vmatprep.subr.mxu0 0.0
    %3609 = vmatpush2.msra.mxu0 0.0
    %3610 = vmatprep.subr.mxu0 0.0
    %3611 = vmatpush2.msra.mxu0 0.0
    %3612 = vmatprep.subr.mxu0 0.0
    %3613 = vmatpush2.msra.mxu0 0.0
    %3614 = vmatprep.subr.mxu0 0.0
    %3615 = vmatpush2.msra.mxu0 0.0
    %3616 = vmatprep.subr.mxu0 0.0
    %3617 = vmatpush2.msra.mxu0 0.0
    %3618 = vmatprep.subr.mxu0 0.0
    %3619 = vmatpush2.msra.mxu0 0.0
    %3620 = vmatprep.mubr.f32.mxu0 0.0
    %3621 = vmatmul.mubr.f32.gmra.mxu0 %v3545
    %v3622 = vpop.f32.mrf.mxu0
    %v3623 = vadd.f32 0.0, %v3622
    %v3624 = vpop.f32.mrf.mxu0
    %3625 = vmatprep.mubr.f32.mxu0 0.0
    %3626 = vmatmul.mubr.f32.gmra.mxu0 %v3548
    %v3627 = vpop.f32.mrf.mxu0
    %v3628 = vadd.f32 0.0, %v3627
    %v3629 = vpop.f32.mrf.mxu0
    %3630 = vmatprep.mubr.f32.mxu0 0.0
    %3631 = vmatmul.mubr.f32.gmra.mxu0 %v3551
    %v3632 = vpop.f32.mrf.mxu0
    %v3633 = vadd.f32 0.0, %v3632
    %v3634 = vpop.f32.mrf.mxu0
    %3635 = vmatprep.mubr.f32.mxu0 0.0
    %3636 = vmatmul.mubr.f32.gmra.mxu0 %v3554
    %v3637 = vpop.f32.mrf.mxu0
    %v3638 = vadd.f32 0.0, %v3637
    %v3639 = vpop.f32.mrf.mxu0
    %3640 = vdwg.mxu0
    %v3641 = vadd.f32 %v3535, %v3623
    %v3642 = vadd.f32 %v3536, %v3628
    %v3643 = vadd.f32 %v3537, %v3633
    %v3644 = vadd.f32 %v3538, %v3638
    %s3645 = scalar_lea.vmem [#allocation9], 128
    %v3646 = vld [vmem:[%s3645] sm:$0xff]
    %v3647 = vld [vmem:[%s3645 + $0x8] sm:$0xff]
    %v3648 = vld [vmem:[%s3645 + $0x10] sm:$0xff]
    %v3649 = vld [vmem:[%s3645 + $0x18] sm:$0xff]
    %v3651 = vsel %vm3238, %v3646, 0
    %v3654 = vsel %vm3238, %v3647, 0
    %v3657 = vsel %vm3238, %v3648, 0
    %v3660 = vsel %vm3238, %v3649, 0
    %3662 = vmatprep.subr.mxu0 0.0
    %3663 = vmatpush1.msra.mxu0 0.0
    %3664 = vmatprep.subr.mxu0 0.0
    %3665 = vmatpush1.msra.mxu0 0.0
    %3666 = vmatprep.subr.mxu0 0.0
    %3667 = vmatpush1.msra.mxu0 0.0
    %3668 = vmatprep.subr.mxu0 0.0
    %3669 = vmatpush1.msra.mxu0 0.0
    %3670 = vmatprep.subr.mxu0 0.0
    %3671 = vmatpush1.msra.mxu0 0.0
    %3672 = vmatprep.subr.mxu0 0.0
    %3673 = vmatpush1.msra.mxu0 0.0
    %3674 = vmatprep.subr.mxu0 0.0
    %3675 = vmatpush1.msra.mxu0 0.0
    %3676 = vmatprep.subr.mxu0 0.0
    %3677 = vmatpush1.msra.mxu0 0.0
    %3678 = vmatprep.subr.mxu0 0.0
    %3679 = vmatpush1.msra.mxu0 %v2789
    %3680 = vmatprep.subr.mxu0 0.0
    %3681 = vmatpush1.msra.mxu0 %v2783
    %3682 = vmatprep.subr.mxu0 0.0
    %3683 = vmatpush1.msra.mxu0 %v2777
    %3684 = vmatprep.subr.mxu0 0.0
    %3685 = vmatpush1.msra.mxu0 %v2771
    %3686 = vmatprep.subr.mxu0 0.0
    %3687 = vmatpush1.msra.mxu0 %v2765
    %3688 = vmatprep.subr.mxu0 0.0
    %3689 = vmatpush1.msra.mxu0 %v2759
    %3690 = vmatprep.subr.mxu0 0.0
    %3691 = vmatpush1.msra.mxu0 %v2753
    %3692 = vmatprep.subr.mxu0 0.0
    %3693 = vmatpush1.msra.mxu0 %v2747
    %3694 = vmatprep.subr.mxu0 0.0
    %3695 = vmatpush2.msra.mxu0 0.0
    %3696 = vmatprep.subr.mxu0 0.0
    %3697 = vmatpush2.msra.mxu0 0.0
    %3698 = vmatprep.subr.mxu0 0.0
    %3699 = vmatpush2.msra.mxu0 0.0
    %3700 = vmatprep.subr.mxu0 0.0
    %3701 = vmatpush2.msra.mxu0 0.0
    %3702 = vmatprep.subr.mxu0 0.0
    %3703 = vmatpush2.msra.mxu0 0.0
    %3704 = vmatprep.subr.mxu0 0.0
    %3705 = vmatpush2.msra.mxu0 0.0
    %3706 = vmatprep.subr.mxu0 0.0
    %3707 = vmatpush2.msra.mxu0 0.0
    %3708 = vmatprep.subr.mxu0 0.0
    %3709 = vmatpush2.msra.mxu0 0.0
    %3710 = vmatprep.subr.mxu0 0.0
    %3711 = vmatpush2.msra.mxu0 0.0
    %3712 = vmatprep.subr.mxu0 0.0
    %3713 = vmatpush2.msra.mxu0 0.0
    %3714 = vmatprep.subr.mxu0 0.0
    %3715 = vmatpush2.msra.mxu0 0.0
    %3716 = vmatprep.subr.mxu0 0.0
    %3717 = vmatpush2.msra.mxu0 0.0
    %3718 = vmatprep.subr.mxu0 0.0
    %3719 = vmatpush2.msra.mxu0 0.0
    %3720 = vmatprep.subr.mxu0 0.0
    %3721 = vmatpush2.msra.mxu0 0.0
    %3722 = vmatprep.subr.mxu0 0.0
    %3723 = vmatpush2.msra.mxu0 0.0
    %3724 = vmatprep.subr.mxu0 0.0
    %3725 = vmatpush2.msra.mxu0 0.0
    %3726 = vmatprep.mubr.f32.mxu0 0.0
    %3727 = vmatmul.mubr.f32.gmra.mxu0 %v3651
    %v3728 = vpop.f32.mrf.mxu0
    %v3729 = vadd.f32 0.0, %v3728
    %v3730 = vpop.f32.mrf.mxu0
    %3731 = vmatprep.mubr.f32.mxu0 0.0
    %3732 = vmatmul.mubr.f32.gmra.mxu0 %v3654
    %v3733 = vpop.f32.mrf.mxu0
    %v3734 = vadd.f32 0.0, %v3733
    %v3735 = vpop.f32.mrf.mxu0
    %3736 = vmatprep.mubr.f32.mxu0 0.0
    %3737 = vmatmul.mubr.f32.gmra.mxu0 %v3657
    %v3738 = vpop.f32.mrf.mxu0
    %v3739 = vadd.f32 0.0, %v3738
    %v3740 = vpop.f32.mrf.mxu0
    %3741 = vmatprep.mubr.f32.mxu0 0.0
    %3742 = vmatmul.mubr.f32.gmra.mxu0 %v3660
    %v3743 = vpop.f32.mrf.mxu0
    %v3744 = vadd.f32 0.0, %v3743
    %v3745 = vpop.f32.mrf.mxu0
    %3746 = vdwg.mxu0
    %v3747 = vadd.f32 %v3641, %v3729
    %v3748 = vadd.f32 %v3642, %v3734
    %v3749 = vadd.f32 %v3643, %v3739
    %v3750 = vadd.f32 %v3644, %v3744
    %s3751 = scalar_lea.vmem [#allocation9], 160
    %v3752 = vld [vmem:[%s3751] sm:$0xff]
    %v3753 = vld [vmem:[%s3751 + $0x8] sm:$0xff]
    %v3754 = vld [vmem:[%s3751 + $0x10] sm:$0xff]
    %v3755 = vld [vmem:[%s3751 + $0x18] sm:$0xff]
    %v3757 = vsel %vm3238, %v3752, 0
    %v3760 = vsel %vm3238, %v3753, 0
    %v3763 = vsel %vm3238, %v3754, 0
    %v3766 = vsel %vm3238, %v3755, 0
    %3768 = vmatprep.subr.mxu0 0.0
    %3769 = vmatpush1.msra.mxu0 0.0
    %3770 = vmatprep.subr.mxu0 0.0
    %3771 = vmatpush1.msra.mxu0 0.0
    %3772 = vmatprep.subr.mxu0 0.0
    %3773 = vmatpush1.msra.mxu0 0.0
    %3774 = vmatprep.subr.mxu0 0.0
    %3775 = vmatpush1.msra.mxu0 0.0
    %3776 = vmatprep.subr.mxu0 0.0
    %3777 = vmatpush1.msra.mxu0 0.0
    %3778 = vmatprep.subr.mxu0 0.0
    %3779 = vmatpush1.msra.mxu0 0.0
    %3780 = vmatprep.subr.mxu0 0.0
    %3781 = vmatpush1.msra.mxu0 0.0
    %3782 = vmatprep.subr.mxu0 0.0
    %3783 = vmatpush1.msra.mxu0 0.0
    %3784 = vmatprep.subr.mxu0 0.0
    %3785 = vmatpush1.msra.mxu0 %v2791
    %3786 = vmatprep.subr.mxu0 0.0
    %3787 = vmatpush1.msra.mxu0 %v2785
    %3788 = vmatprep.subr.mxu0 0.0
    %3789 = vmatpush1.msra.mxu0 %v2779
    %3790 = vmatprep.subr.mxu0 0.0
    %3791 = vmatpush1.msra.mxu0 %v2773
    %3792 = vmatprep.subr.mxu0 0.0
    %3793 = vmatpush1.msra.mxu0 %v2767
    %3794 = vmatprep.subr.mxu0 0.0
    %3795 = vmatpush1.msra.mxu0 %v2761
    %3796 = vmatprep.subr.mxu0 0.0
    %3797 = vmatpush1.msra.mxu0 %v2755
    %3798 = vmatprep.subr.mxu0 0.0
    %3799 = vmatpush1.msra.mxu0 %v2749
    %3800 = vmatprep.subr.mxu0 0.0
    %3801 = vmatpush2.msra.mxu0 0.0
    %3802 = vmatprep.subr.mxu0 0.0
    %3803 = vmatpush2.msra.mxu0 0.0
    %3804 = vmatprep.subr.mxu0 0.0
    %3805 = vmatpush2.msra.mxu0 0.0
    %3806 = vmatprep.subr.mxu0 0.0
    %3807 = vmatpush2.msra.mxu0 0.0
    %3808 = vmatprep.subr.mxu0 0.0
    %3809 = vmatpush2.msra.mxu0 0.0
    %3810 = vmatprep.subr.mxu0 0.0
    %3811 = vmatpush2.msra.mxu0 0.0
    %3812 = vmatprep.subr.mxu0 0.0
    %3813 = vmatpush2.msra.mxu0 0.0
    %3814 = vmatprep.subr.mxu0 0.0
    %3815 = vmatpush2.msra.mxu0 0.0
    %3816 = vmatprep.subr.mxu0 0.0
    %3817 = vmatpush2.msra.mxu0 0.0
    %3818 = vmatprep.subr.mxu0 0.0
    %3819 = vmatpush2.msra.mxu0 0.0
    %3820 = vmatprep.subr.mxu0 0.0
    %3821 = vmatpush2.msra.mxu0 0.0
    %3822 = vmatprep.subr.mxu0 0.0
    %3823 = vmatpush2.msra.mxu0 0.0
    %3824 = vmatprep.subr.mxu0 0.0
    %3825 = vmatpush2.msra.mxu0 0.0
    %3826 = vmatprep.subr.mxu0 0.0
    %3827 = vmatpush2.msra.mxu0 0.0
    %3828 = vmatprep.subr.mxu0 0.0
    %3829 = vmatpush2.msra.mxu0 0.0
    %3830 = vmatprep.subr.mxu0 0.0
    %3831 = vmatpush2.msra.mxu0 0.0
    %3832 = vmatprep.mubr.f32.mxu0 0.0
    %3833 = vmatmul.mubr.f32.gmra.mxu0 %v3757
    %v3834 = vpop.f32.mrf.mxu0
    %v3835 = vadd.f32 0.0, %v3834
    %v3836 = vpop.f32.mrf.mxu0
    %3837 = vmatprep.mubr.f32.mxu0 0.0
    %3838 = vmatmul.mubr.f32.gmra.mxu0 %v3760
    %v3839 = vpop.f32.mrf.mxu0
    %v3840 = vadd.f32 0.0, %v3839
    %v3841 = vpop.f32.mrf.mxu0
    %3842 = vmatprep.mubr.f32.mxu0 0.0
    %3843 = vmatmul.mubr.f32.gmra.mxu0 %v3763
    %v3844 = vpop.f32.mrf.mxu0
    %v3845 = vadd.f32 0.0, %v3844
    %v3846 = vpop.f32.mrf.mxu0
    %3847 = vmatprep.mubr.f32.mxu0 0.0
    %3848 = vmatmul.mubr.f32.gmra.mxu0 %v3766
    %v3849 = vpop.f32.mrf.mxu0
    %v3850 = vadd.f32 0.0, %v3849
    %v3851 = vpop.f32.mrf.mxu0
    %3852 = vdwg.mxu0
    %v3853 = vadd.f32 %v3747, %v3835
    %v3854 = vadd.f32 %v3748, %v3840
    %v3855 = vadd.f32 %v3749, %v3845
    %v3856 = vadd.f32 %v3750, %v3850
    %s3857 = scalar_lea.vmem [#allocation9], 192
    %v3858 = vld [vmem:[%s3857] sm:$0xff]
    %v3859 = vld [vmem:[%s3857 + $0x8] sm:$0xff]
    %v3860 = vld [vmem:[%s3857 + $0x10] sm:$0xff]
    %v3861 = vld [vmem:[%s3857 + $0x18] sm:$0xff]
    %v3863 = vsel %vm3238, %v3858, 0
    %v3866 = vsel %vm3238, %v3859, 0
    %v3869 = vsel %vm3238, %v3860, 0
    %v3872 = vsel %vm3238, %v3861, 0
    %3874 = vmatprep.subr.mxu0 0.0
    %3875 = vmatpush1.msra.mxu0 0.0
    %3876 = vmatprep.subr.mxu0 0.0
    %3877 = vmatpush1.msra.mxu0 0.0
    %3878 = vmatprep.subr.mxu0 0.0
    %3879 = vmatpush1.msra.mxu0 0.0
    %3880 = vmatprep.subr.mxu0 0.0
    %3881 = vmatpush1.msra.mxu0 0.0
    %3882 = vmatprep.subr.mxu0 0.0
    %3883 = vmatpush1.msra.mxu0 0.0
    %3884 = vmatprep.subr.mxu0 0.0
    %3885 = vmatpush1.msra.mxu0 0.0
    %3886 = vmatprep.subr.mxu0 0.0
    %3887 = vmatpush1.msra.mxu0 0.0
    %3888 = vmatprep.subr.mxu0 0.0
    %3889 = vmatpush1.msra.mxu0 0.0
    %3890 = vmatprep.subr.mxu0 0.0
    %3891 = vmatpush1.msra.mxu0 %v3015
    %3892 = vmatprep.subr.mxu0 0.0
    %3893 = vmatpush1.msra.mxu0 %v3009
    %3894 = vmatprep.subr.mxu0 0.0
    %3895 = vmatpush1.msra.mxu0 %v3003
    %3896 = vmatprep.subr.mxu0 0.0
    %3897 = vmatpush1.msra.mxu0 %v2997
    %3898 = vmatprep.subr.mxu0 0.0
    %3899 = vmatpush1.msra.mxu0 %v2991
    %3900 = vmatprep.subr.mxu0 0.0
    %3901 = vmatpush1.msra.mxu0 %v2985
    %3902 = vmatprep.subr.mxu0 0.0
    %3903 = vmatpush1.msra.mxu0 %v2979
    %3904 = vmatprep.subr.mxu0 0.0
    %3905 = vmatpush1.msra.mxu0 %v2973
    %3906 = vmatprep.subr.mxu0 0.0
    %3907 = vmatpush2.msra.mxu0 0.0
    %3908 = vmatprep.subr.mxu0 0.0
    %3909 = vmatpush2.msra.mxu0 0.0
    %3910 = vmatprep.subr.mxu0 0.0
    %3911 = vmatpush2.msra.mxu0 0.0
    %3912 = vmatprep.subr.mxu0 0.0
    %3913 = vmatpush2.msra.mxu0 0.0
    %3914 = vmatprep.subr.mxu0 0.0
    %3915 = vmatpush2.msra.mxu0 0.0
    %3916 = vmatprep.subr.mxu0 0.0
    %3917 = vmatpush2.msra.mxu0 0.0
    %3918 = vmatprep.subr.mxu0 0.0
    %3919 = vmatpush2.msra.mxu0 0.0
    %3920 = vmatprep.subr.mxu0 0.0
    %3921 = vmatpush2.msra.mxu0 0.0
    %3922 = vmatprep.subr.mxu0 0.0
    %3923 = vmatpush2.msra.mxu0 0.0
    %3924 = vmatprep.subr.mxu0 0.0
    %3925 = vmatpush2.msra.mxu0 0.0
    %3926 = vmatprep.subr.mxu0 0.0
    %3927 = vmatpush2.msra.mxu0 0.0
    %3928 = vmatprep.subr.mxu0 0.0
    %3929 = vmatpush2.msra.mxu0 0.0
    %3930 = vmatprep.subr.mxu0 0.0
    %3931 = vmatpush2.msra.mxu0 0.0
    %3932 = vmatprep.subr.mxu0 0.0
    %3933 = vmatpush2.msra.mxu0 0.0
    %3934 = vmatprep.subr.mxu0 0.0
    %3935 = vmatpush2.msra.mxu0 0.0
    %3936 = vmatprep.subr.mxu0 0.0
    %3937 = vmatpush2.msra.mxu0 0.0
    %3938 = vmatprep.mubr.f32.mxu0 0.0
    %3939 = vmatmul.mubr.f32.gmra.mxu0 %v3863
    %v3940 = vpop.f32.mrf.mxu0
    %v3941 = vadd.f32 0.0, %v3940
    %v3942 = vpop.f32.mrf.mxu0
    %3943 = vmatprep.mubr.f32.mxu0 0.0
    %3944 = vmatmul.mubr.f32.gmra.mxu0 %v3866
    %v3945 = vpop.f32.mrf.mxu0
    %v3946 = vadd.f32 0.0, %v3945
    %v3947 = vpop.f32.mrf.mxu0
    %3948 = vmatprep.mubr.f32.mxu0 0.0
    %3949 = vmatmul.mubr.f32.gmra.mxu0 %v3869
    %v3950 = vpop.f32.mrf.mxu0
    %v3951 = vadd.f32 0.0, %v3950
    %v3952 = vpop.f32.mrf.mxu0
    %3953 = vmatprep.mubr.f32.mxu0 0.0
    %3954 = vmatmul.mubr.f32.gmra.mxu0 %v3872
    %v3955 = vpop.f32.mrf.mxu0
    %v3956 = vadd.f32 0.0, %v3955
    %v3957 = vpop.f32.mrf.mxu0
    %3958 = vdwg.mxu0
    %v3959 = vadd.f32 %v3853, %v3941
    %v3960 = vadd.f32 %v3854, %v3946
    %v3961 = vadd.f32 %v3855, %v3951
    %v3962 = vadd.f32 %v3856, %v3956
    %s3963 = scalar_lea.vmem [#allocation9], 224
    %v3964 = vld [vmem:[%s3963] sm:$0xff]
    %v3965 = vld [vmem:[%s3963 + $0x8] sm:$0xff]
    %v3966 = vld [vmem:[%s3963 + $0x10] sm:$0xff]
    %v3967 = vld [vmem:[%s3963 + $0x18] sm:$0xff]
    %v3969 = vsel %vm3238, %v3964, 0
    %v3972 = vsel %vm3238, %v3965, 0
    %v3975 = vsel %vm3238, %v3966, 0
    %v3978 = vsel %vm3238, %v3967, 0
    %3980 = vmatprep.subr.mxu0 0.0
    %3981 = vmatpush1.msra.mxu0 0.0
    %3982 = vmatprep.subr.mxu0 0.0
    %3983 = vmatpush1.msra.mxu0 0.0
    %3984 = vmatprep.subr.mxu0 0.0
    %3985 = vmatpush1.msra.mxu0 0.0
    %3986 = vmatprep.subr.mxu0 0.0
    %3987 = vmatpush1.msra.mxu0 0.0
    %3988 = vmatprep.subr.mxu0 0.0
    %3989 = vmatpush1.msra.mxu0 0.0
    %3990 = vmatprep.subr.mxu0 0.0
    %3991 = vmatpush1.msra.mxu0 0.0
    %3992 = vmatprep.subr.mxu0 0.0
    %3993 = vmatpush1.msra.mxu0 0.0
    %3994 = vmatprep.subr.mxu0 0.0
    %3995 = vmatpush1.msra.mxu0 0.0
    %3996 = vmatprep.subr.mxu0 0.0
    %3997 = vmatpush1.msra.mxu0 %v3017
    %3998 = vmatprep.subr.mxu0 0.0
    %3999 = vmatpush1.msra.mxu0 %v3011
    %4000 = vmatprep.subr.mxu0 0.0
    %4001 = vmatpush1.msra.mxu0 %v3005
    %4002 = vmatprep.subr.mxu0 0.0
    %4003 = vmatpush1.msra.mxu0 %v2999
    %4004 = vmatprep.subr.mxu0 0.0
    %4005 = vmatpush1.msra.mxu0 %v2993
    %4006 = vmatprep.subr.mxu0 0.0
    %4007 = vmatpush1.msra.mxu0 %v2987
    %4008 = vmatprep.subr.mxu0 0.0
    %4009 = vmatpush1.msra.mxu0 %v2981
    %4010 = vmatprep.subr.mxu0 0.0
    %4011 = vmatpush1.msra.mxu0 %v2975
    %4012 = vmatprep.subr.mxu0 0.0
    %4013 = vmatpush2.msra.mxu0 0.0
    %4014 = vmatprep.subr.mxu0 0.0
    %4015 = vmatpush2.msra.mxu0 0.0
    %4016 = vmatprep.subr.mxu0 0.0
    %4017 = vmatpush2.msra.mxu0 0.0
    %4018 = vmatprep.subr.mxu0 0.0
    %4019 = vmatpush2.msra.mxu0 0.0
    %4020 = vmatprep.subr.mxu0 0.0
    %4021 = vmatpush2.msra.mxu0 0.0
    %4022 = vmatprep.subr.mxu0 0.0
    %4023 = vmatpush2.msra.mxu0 0.0
    %4024 = vmatprep.subr.mxu0 0.0
    %4025 = vmatpush2.msra.mxu0 0.0
    %4026 = vmatprep.subr.mxu0 0.0
    %4027 = vmatpush2.msra.mxu0 0.0
    %4028 = vmatprep.subr.mxu0 0.0
    %4029 = vmatpush2.msra.mxu0 0.0
    %4030 = vmatprep.subr.mxu0 0.0
    %4031 = vmatpush2.msra.mxu0 0.0
    %4032 = vmatprep.subr.mxu0 0.0
    %4033 = vmatpush2.msra.mxu0 0.0
    %4034 = vmatprep.subr.mxu0 0.0
    %4035 = vmatpush2.msra.mxu0 0.0
    %4036 = vmatprep.subr.mxu0 0.0
    %4037 = vmatpush2.msra.mxu0 0.0
    %4038 = vmatprep.subr.mxu0 0.0
    %4039 = vmatpush2.msra.mxu0 0.0
    %4040 = vmatprep.subr.mxu0 0.0
    %4041 = vmatpush2.msra.mxu0 0.0
    %4042 = vmatprep.subr.mxu0 0.0
    %4043 = vmatpush2.msra.mxu0 0.0
    %4044 = vmatprep.mubr.f32.mxu0 0.0
    %4045 = vmatmul.mubr.f32.gmra.mxu0 %v3969
    %v4046 = vpop.f32.mrf.mxu0
    %v4047 = vadd.f32 0.0, %v4046
    %v4048 = vpop.f32.mrf.mxu0
    %4049 = vmatprep.mubr.f32.mxu0 0.0
    %4050 = vmatmul.mubr.f32.gmra.mxu0 %v3972
    %v4051 = vpop.f32.mrf.mxu0
    %v4052 = vadd.f32 0.0, %v4051
    %v4053 = vpop.f32.mrf.mxu0
    %4054 = vmatprep.mubr.f32.mxu0 0.0
    %4055 = vmatmul.mubr.f32.gmra.mxu0 %v3975
    %v4056 = vpop.f32.mrf.mxu0
    %v4057 = vadd.f32 0.0, %v4056
    %v4058 = vpop.f32.mrf.mxu0
    %4059 = vmatprep.mubr.f32.mxu0 0.0
    %4060 = vmatmul.mubr.f32.gmra.mxu0 %v3978
    %v4061 = vpop.f32.mrf.mxu0
    %v4062 = vadd.f32 0.0, %v4061
    %v4063 = vpop.f32.mrf.mxu0
    %4064 = vdwg.mxu0
    %v4065 = vadd.f32 %v3959, %v4047
    %v4066 = vadd.f32 %v3960, %v4052
    %v4067 = vadd.f32 %v3961, %v4057
    %v4068 = vadd.f32 %v3962, %v4062
    %s4069 = scalar_lea.vmem [#allocation9], 256
    %v4070 = vld [vmem:[%s4069] sm:$0xff]
    %v4071 = vld [vmem:[%s4069 + $0x8] sm:$0xff]
    %v4072 = vld [vmem:[%s4069 + $0x10] sm:$0xff]
    %v4073 = vld [vmem:[%s4069 + $0x18] sm:$0xff]
    %v4075 = vsel %vm3238, %v4070, 0
    %v4078 = vsel %vm3238, %v4071, 0
    %v4081 = vsel %vm3238, %v4072, 0
    %v4084 = vsel %vm3238, %v4073, 0
    %4086 = vmatprep.subr.mxu0 0.0
    %4087 = vmatpush1.msra.mxu0 0.0
    %4088 = vmatprep.subr.mxu0 0.0
    %4089 = vmatpush1.msra.mxu0 0.0
    %4090 = vmatprep.subr.mxu0 0.0
    %4091 = vmatpush1.msra.mxu0 0.0
    %4092 = vmatprep.subr.mxu0 0.0
    %4093 = vmatpush1.msra.mxu0 0.0
    %4094 = vmatprep.subr.mxu0 0.0
    %4095 = vmatpush1.msra.mxu0 0.0
    %4096 = vmatprep.subr.mxu0 0.0
    %4097 = vmatpush1.msra.mxu0 0.0
    %4098 = vmatprep.subr.mxu0 0.0
    %4099 = vmatpush1.msra.mxu0 0.0
    %4100 = vmatprep.subr.mxu0 0.0
    %4101 = vmatpush1.msra.mxu0 0.0
    %4102 = vmatprep.subr.mxu0 0.0
    %4103 = vmatpush1.msra.mxu0 %v3226
    %4104 = vmatprep.subr.mxu0 0.0
    %4105 = vmatpush1.msra.mxu0 %v3221
    %4106 = vmatprep.subr.mxu0 0.0
    %4107 = vmatpush1.msra.mxu0 %v3216
    %4108 = vmatprep.subr.mxu0 0.0
    %4109 = vmatpush1.msra.mxu0 %v3211
    %4110 = vmatprep.subr.mxu0 0.0
    %4111 = vmatpush1.msra.mxu0 %v3206
    %4112 = vmatprep.subr.mxu0 0.0
    %4113 = vmatpush1.msra.mxu0 %v3201
    %4114 = vmatprep.subr.mxu0 0.0
    %4115 = vmatpush1.msra.mxu0 %v3196
    %4116 = vmatprep.subr.mxu0 0.0
    %4117 = vmatpush1.msra.mxu0 %v3191
    %4118 = vmatprep.subr.mxu0 0.0
    %4119 = vmatpush2.msra.mxu0 0.0
    %4120 = vmatprep.subr.mxu0 0.0
    %4121 = vmatpush2.msra.mxu0 0.0
    %4122 = vmatprep.subr.mxu0 0.0
    %4123 = vmatpush2.msra.mxu0 0.0
    %4124 = vmatprep.subr.mxu0 0.0
    %4125 = vmatpush2.msra.mxu0 0.0
    %4126 = vmatprep.subr.mxu0 0.0
    %4127 = vmatpush2.msra.mxu0 0.0
    %4128 = vmatprep.subr.mxu0 0.0
    %4129 = vmatpush2.msra.mxu0 0.0
    %4130 = vmatprep.subr.mxu0 0.0
    %4131 = vmatpush2.msra.mxu0 0.0
    %4132 = vmatprep.subr.mxu0 0.0
    %4133 = vmatpush2.msra.mxu0 0.0
    %4134 = vmatprep.subr.mxu0 0.0
    %4135 = vmatpush2.msra.mxu0 0.0
    %4136 = vmatprep.subr.mxu0 0.0
    %4137 = vmatpush2.msra.mxu0 0.0
    %4138 = vmatprep.subr.mxu0 0.0
    %4139 = vmatpush2.msra.mxu0 0.0
    %4140 = vmatprep.subr.mxu0 0.0
    %4141 = vmatpush2.msra.mxu0 0.0
    %4142 = vmatprep.subr.mxu0 0.0
    %4143 = vmatpush2.msra.mxu0 0.0
    %4144 = vmatprep.subr.mxu0 0.0
    %4145 = vmatpush2.msra.mxu0 0.0
    %4146 = vmatprep.subr.mxu0 0.0
    %4147 = vmatpush2.msra.mxu0 0.0
    %4148 = vmatprep.subr.mxu0 0.0
    %4149 = vmatpush2.msra.mxu0 0.0
    %4150 = vmatprep.mubr.f32.mxu0 0.0
    %4151 = vmatmul.mubr.f32.gmra.mxu0 %v4075
    %v4152 = vpop.f32.mrf.mxu0
    %v4153 = vadd.f32 0.0, %v4152
    %v4154 = vpop.f32.mrf.mxu0
    %4155 = vmatprep.mubr.f32.mxu0 0.0
    %4156 = vmatmul.mubr.f32.gmra.mxu0 %v4078
    %v4157 = vpop.f32.mrf.mxu0
    %v4158 = vadd.f32 0.0, %v4157
    %v4159 = vpop.f32.mrf.mxu0
    %4160 = vmatprep.mubr.f32.mxu0 0.0
    %4161 = vmatmul.mubr.f32.gmra.mxu0 %v4081
    %v4162 = vpop.f32.mrf.mxu0
    %v4163 = vadd.f32 0.0, %v4162
    %v4164 = vpop.f32.mrf.mxu0
    %4165 = vmatprep.mubr.f32.mxu0 0.0
    %4166 = vmatmul.mubr.f32.gmra.mxu0 %v4084
    %v4167 = vpop.f32.mrf.mxu0
    %v4168 = vadd.f32 0.0, %v4167
    %v4169 = vpop.f32.mrf.mxu0
    %4170 = vdwg.mxu0
    %v4171 = vadd.f32 %v4065, %v4153
    %v4172 = vadd.f32 %v4066, %v4158
    %v4173 = vadd.f32 %v4067, %v4163
    %v4174 = vadd.f32 %v4068, %v4168
    %v4175 = vld [vmem:[#allocation11] sm:$0xff]
    %v4176 = vld [vmem:[#allocation11 + $0x8] sm:$0xff]
    %v4177 = vld [vmem:[#allocation11 + $0x10] sm:$0xff]
    %v4178 = vld [vmem:[#allocation11 + $0x18] sm:$0xff]
    %4180 = vset.pattern.permute.xlu0 0
    %4181 = vperm.xlu0 %4180, %v4175
    %v4182 = vpop.permute.xlu0 %4181
    %4185 = vset.pattern.permute.xlu0 0
    %4186 = vperm.xlu0 %4185, %v4176
    %v4187 = vpop.permute.xlu0 %4186
    %4190 = vset.pattern.permute.xlu0 0
    %4191 = vperm.xlu0 %4190, %v4177
    %v4192 = vpop.permute.xlu0 %4191
    %4195 = vset.pattern.permute.xlu0 0
    %4196 = vperm.xlu0 %4195, %v4178
    %v4197 = vpop.permute.xlu0 %4196
    %v4199 = vadd.f32 %v4171, %v4182
    %v4200 = vadd.f32 %v4172, %v4187
    %v4201 = vadd.f32 %v4173, %v4192
    %v4202 = vadd.f32 %v4174, %v4197
    %v4203 = vmax.f32 %v4199, 0.0
    %v4204 = vmax.f32 %v4200, 0.0
    %v4205 = vmax.f32 %v4201, 0.0
    %v4206 = vmax.f32 %v4202, 0.0
    %4207 = vst [vmem:[#allocation3] sm:$0xff] %v4203
    %4208 = vst [vmem:[#allocation3 + $0x8] sm:$0xff] %v4204
    %4209 = vst [vmem:[#allocation3 + $0x10] sm:$0xff] %v4205
    %4210 = vst [vmem:[#allocation3 + $0x18] sm:$0xff] %v4206
    %v4211 = vld [vmem:[#allocation3] sm:$0xff]
    %v4212 = vld [vmem:[#allocation3 + $0x8] sm:$0xff]
    %v4213 = vld [vmem:[#allocation3 + $0x10] sm:$0xff]
    %v4214 = vld [vmem:[#allocation3 + $0x18] sm:$0xff]
    %v4215 = vld [vmem:[#allocation12] sm:$0xff]
    %v4216 = vld [vmem:[#allocation12 + $0x8] sm:$0xff]
    %v4217 = vld [vmem:[#allocation12 + $0x10] sm:$0xff]
    %v4218 = vld [vmem:[#allocation12 + $0x18] sm:$0xff]
    %v4219 = vld [vmem:[#allocation12 + $0x20] sm:$0xff]
    %v4220 = vld [vmem:[#allocation12 + $0x28] sm:$0xff]
    %v4221 = vld [vmem:[#allocation12 + $0x30] sm:$0xff]
    %v4222 = vld [vmem:[#allocation12 + $0x38] sm:$0xff]
    %v4223 = vld [vmem:[#allocation12 + $0x40] sm:$0xff]
    %v4224 = vld [vmem:[#allocation12 + $0x48] sm:$0xff]
    %v4225 = vld [vmem:[#allocation12 + $0x50] sm:$0xff]
    %v4226 = vld [vmem:[#allocation12 + $0x58] sm:$0xff]
    %v4227 = vld [vmem:[#allocation12 + $0x60] sm:$0xff]
    %v4228 = vld [vmem:[#allocation12 + $0x68] sm:$0xff]
    %v4229 = vld [vmem:[#allocation12 + $0x70] sm:$0xff]
    %v4230 = vld [vmem:[#allocation12 + $0x78] sm:$0xff]
    %v4231 = vld [vmem:[#allocation12 + $0x80] sm:$0xff]
    %v4232 = vld [vmem:[#allocation12 + $0x88] sm:$0xff]
    %v4233 = vld [vmem:[#allocation12 + $0x90] sm:$0xff]
    %v4234 = vld [vmem:[#allocation12 + $0x98] sm:$0xff]
    %v4235 = vld [vmem:[#allocation12 + $0xa0] sm:$0xff]
    %v4236 = vld [vmem:[#allocation12 + $0xa8] sm:$0xff]
    %v4237 = vld [vmem:[#allocation12 + $0xb0] sm:$0xff]
    %v4238 = vld [vmem:[#allocation12 + $0xb8] sm:$0xff]
    %v4239 = vld [vmem:[#allocation12 + $0xc0] sm:$0xff]
    %v4240 = vld [vmem:[#allocation12 + $0xc8] sm:$0xff]
    %v4241 = vld [vmem:[#allocation12 + $0xd0] sm:$0xff]
    %v4242 = vld [vmem:[#allocation12 + $0xd8] sm:$0xff]
    %v4243 = vld [vmem:[#allocation12 + $0xe0] sm:$0xff]
    %v4244 = vld [vmem:[#allocation12 + $0xe8] sm:$0xff]
    %v4245 = vld [vmem:[#allocation12 + $0xf0] sm:$0xff]
    %v4246 = vld [vmem:[#allocation12 + $0xf8] sm:$0xff]
    %v4247 = vld [vmem:[#allocation12 + $0x100] sm:$0xff]
    %v4248 = vld [vmem:[#allocation12 + $0x108] sm:$0xff]
    %v4249 = vld [vmem:[#allocation12 + $0x110] sm:$0xff]
    %v4250 = vld [vmem:[#allocation12 + $0x118] sm:$0xff]
    %v4251 = vld [vmem:[#allocation12 + $0x120] sm:$0xff]
    %v4252 = vld [vmem:[#allocation12 + $0x128] sm:$0xff]
    %v4253 = vld [vmem:[#allocation12 + $0x130] sm:$0xff]
    %v4254 = vld [vmem:[#allocation12 + $0x138] sm:$0xff]
    %v4255 = vld [vmem:[#allocation12 + $0x140] sm:$0xff]
    %v4256 = vld [vmem:[#allocation12 + $0x148] sm:$0xff]
    %v4257 = vld [vmem:[#allocation12 + $0x150] sm:$0xff]
    %v4258 = vld [vmem:[#allocation12 + $0x158] sm:$0xff]
    %v4259 = vld [vmem:[#allocation12 + $0x160] sm:$0xff]
    %v4260 = vld [vmem:[#allocation12 + $0x168] sm:$0xff]
    %v4261 = vld [vmem:[#allocation12 + $0x170] sm:$0xff]
    %v4262 = vld [vmem:[#allocation12 + $0x178] sm:$0xff]
    %v4263 = vld [vmem:[#allocation12 + $0x180] sm:$0xff]
    %v4264 = vld [vmem:[#allocation12 + $0x188] sm:$0xff]
    %v4265 = vld [vmem:[#allocation12 + $0x190] sm:$0xff]
    %v4266 = vld [vmem:[#allocation12 + $0x198] sm:$0xff]
    %v4267 = vld [vmem:[#allocation12 + $0x1a0] sm:$0xff]
    %v4268 = vld [vmem:[#allocation12 + $0x1a8] sm:$0xff]
    %v4269 = vld [vmem:[#allocation12 + $0x1b0] sm:$0xff]
    %v4270 = vld [vmem:[#allocation12 + $0x1b8] sm:$0xff]
    %v4271 = vld [vmem:[#allocation12 + $0x1c0] sm:$0xff]
    %v4272 = vld [vmem:[#allocation12 + $0x1c8] sm:$0xff]
    %v4273 = vld [vmem:[#allocation12 + $0x1d0] sm:$0xff]
    %v4274 = vld [vmem:[#allocation12 + $0x1d8] sm:$0xff]
    %v4275 = vld [vmem:[#allocation12 + $0x1e0] sm:$0xff]
    %v4276 = vld [vmem:[#allocation12 + $0x1e8] sm:$0xff]
    %v4277 = vld [vmem:[#allocation12 + $0x1f0] sm:$0xff]
    %v4278 = vld [vmem:[#allocation12 + $0x1f8] sm:$0xff]
    %v4279 = vld [vmem:[#allocation12 + $0x200] sm:$0xff]
    %v4280 = vld [vmem:[#allocation12 + $0x208] sm:$0xff]
    %v4281 = vld [vmem:[#allocation12 + $0x210] sm:$0xff]
    %v4282 = vld [vmem:[#allocation12 + $0x218] sm:$0xff]
    %v4283 = vld [vmem:[#allocation12 + $0x220] sm:$0xff]
    %v4284 = vld [vmem:[#allocation12 + $0x228] sm:$0xff]
    %v4285 = vld [vmem:[#allocation12 + $0x230] sm:$0xff]
    %v4286 = vld [vmem:[#allocation12 + $0x238] sm:$0xff]
    %v4287 = vld [vmem:[#allocation12 + $0x240] sm:$0xff]
    %v4288 = vld [vmem:[#allocation12 + $0x248] sm:$0xff]
    %v4289 = vld [vmem:[#allocation12 + $0x250] sm:$0xff]
    %v4290 = vld [vmem:[#allocation12 + $0x258] sm:$0xff]
    %v4291 = vld [vmem:[#allocation12 + $0x260] sm:$0xff]
    %v4292 = vld [vmem:[#allocation12 + $0x268] sm:$0xff]
    %v4293 = vld [vmem:[#allocation12 + $0x270] sm:$0xff]
    %v4294 = vld [vmem:[#allocation12 + $0x278] sm:$0xff]
    %v4295 = vld [vmem:[#allocation12 + $0x280] sm:$0xff]
    %v4296 = vld [vmem:[#allocation12 + $0x288] sm:$0xff]
    %v4297 = vld [vmem:[#allocation12 + $0x290] sm:$0xff]
    %v4298 = vld [vmem:[#allocation12 + $0x298] sm:$0xff]
    %v4299 = vld [vmem:[#allocation12 + $0x2a0] sm:$0xff]
    %v4300 = vld [vmem:[#allocation12 + $0x2a8] sm:$0xff]
    %v4301 = vld [vmem:[#allocation12 + $0x2b0] sm:$0xff]
    %v4302 = vld [vmem:[#allocation12 + $0x2b8] sm:$0xff]
    %v4303 = vld [vmem:[#allocation12 + $0x2c0] sm:$0xff]
    %v4304 = vld [vmem:[#allocation12 + $0x2c8] sm:$0xff]
    %v4305 = vld [vmem:[#allocation12 + $0x2d0] sm:$0xff]
    %v4306 = vld [vmem:[#allocation12 + $0x2d8] sm:$0xff]
    %v4307 = vld [vmem:[#allocation12 + $0x2e0] sm:$0xff]
    %v4308 = vld [vmem:[#allocation12 + $0x2e8] sm:$0xff]
    %v4309 = vld [vmem:[#allocation12 + $0x2f0] sm:$0xff]
    %v4310 = vld [vmem:[#allocation12 + $0x2f8] sm:$0xff]
    %v4311 = vld [vmem:[#allocation12 + $0x300] sm:$0xff]
    %v4312 = vld [vmem:[#allocation12 + $0x308] sm:$0xff]
    %v4313 = vld [vmem:[#allocation12 + $0x310] sm:$0xff]
    %v4314 = vld [vmem:[#allocation12 + $0x318] sm:$0xff]
    %v4315 = vld [vmem:[#allocation12 + $0x320] sm:$0xff]
    %v4316 = vld [vmem:[#allocation12 + $0x328] sm:$0xff]
    %v4317 = vld [vmem:[#allocation12 + $0x330] sm:$0xff]
    %v4318 = vld [vmem:[#allocation12 + $0x338] sm:$0xff]
    %v4319 = vld [vmem:[#allocation12 + $0x340] sm:$0xff]
    %v4320 = vld [vmem:[#allocation12 + $0x348] sm:$0xff]
    %v4321 = vld [vmem:[#allocation12 + $0x350] sm:$0xff]
    %v4322 = vld [vmem:[#allocation12 + $0x358] sm:$0xff]
    %v4323 = vld [vmem:[#allocation12 + $0x360] sm:$0xff]
    %v4324 = vld [vmem:[#allocation12 + $0x368] sm:$0xff]
    %v4325 = vld [vmem:[#allocation12 + $0x370] sm:$0xff]
    %v4326 = vld [vmem:[#allocation12 + $0x378] sm:$0xff]
    %v4327 = vld [vmem:[#allocation12 + $0x380] sm:$0xff]
    %v4328 = vld [vmem:[#allocation12 + $0x388] sm:$0xff]
    %v4329 = vld [vmem:[#allocation12 + $0x390] sm:$0xff]
    %v4330 = vld [vmem:[#allocation12 + $0x398] sm:$0xff]
    %v4331 = vld [vmem:[#allocation12 + $0x3a0] sm:$0xff]
    %v4332 = vld [vmem:[#allocation12 + $0x3a8] sm:$0xff]
    %v4333 = vld [vmem:[#allocation12 + $0x3b0] sm:$0xff]
    %v4334 = vld [vmem:[#allocation12 + $0x3b8] sm:$0xff]
    %v4335 = vld [vmem:[#allocation12 + $0x3c0] sm:$0xff]
    %v4336 = vld [vmem:[#allocation12 + $0x3c8] sm:$0xff]
    %v4337 = vld [vmem:[#allocation12 + $0x3d0] sm:$0xff]
    %v4338 = vld [vmem:[#allocation12 + $0x3d8] sm:$0xff]
    %v4339 = vld [vmem:[#allocation12 + $0x3e0] sm:$0xff]
    %v4340 = vld [vmem:[#allocation12 + $0x3e8] sm:$0xff]
    %v4341 = vld [vmem:[#allocation12 + $0x3f0] sm:$0xff]
    %v4342 = vld [vmem:[#allocation12 + $0x3f8] sm:$0xff]
    %v4343 = vld [vmem:[#allocation12 + $0x400] sm:$0xff]
    %v4344 = vld [vmem:[#allocation12 + $0x408] sm:$0xff]
    %v4345 = vld [vmem:[#allocation12 + $0x410] sm:$0xff]
    %v4346 = vld [vmem:[#allocation12 + $0x418] sm:$0xff]
    %v4347 = vld [vmem:[#allocation12 + $0x420] sm:$0xff]
    %v4348 = vld [vmem:[#allocation12 + $0x428] sm:$0xff]
    %v4349 = vld [vmem:[#allocation12 + $0x430] sm:$0xff]
    %v4350 = vld [vmem:[#allocation12 + $0x438] sm:$0xff]
    %v4351 = vld [vmem:[#allocation12 + $0x440] sm:$0xff]
    %v4352 = vld [vmem:[#allocation12 + $0x448] sm:$0xff]
    %v4353 = vld [vmem:[#allocation12 + $0x450] sm:$0xff]
    %v4354 = vld [vmem:[#allocation12 + $0x458] sm:$0xff]
    %v4355 = vld [vmem:[#allocation12 + $0x460] sm:$0xff]
    %v4356 = vld [vmem:[#allocation12 + $0x468] sm:$0xff]
    %v4357 = vld [vmem:[#allocation12 + $0x470] sm:$0xff]
    %v4358 = vld [vmem:[#allocation12 + $0x478] sm:$0xff]
    %4359 = vmatprep.subr.mxu0 %v4351
    %4360 = vmatpush1.msra.mxu0 %v4350
    %4361 = vmatprep.subr.mxu0 %v4342
    %4362 = vmatpush1.msra.mxu0 %v4341
    %4363 = vmatprep.subr.mxu0 %v4333
    %4364 = vmatpush1.msra.mxu0 %v4332
    %4365 = vmatprep.subr.mxu0 %v4324
    %4366 = vmatpush1.msra.mxu0 %v4323
    %4367 = vmatprep.subr.mxu0 %v4315
    %4368 = vmatpush1.msra.mxu0 %v4314
    %4369 = vmatprep.subr.mxu0 %v4306
    %4370 = vmatpush1.msra.mxu0 %v4305
    %4371 = vmatprep.subr.mxu0 %v4297
    %4372 = vmatpush1.msra.mxu0 %v4296
    %4373 = vmatprep.subr.mxu0 %v4288
    %4374 = vmatpush1.msra.mxu0 %v4287
    %4375 = vmatprep.subr.mxu0 %v4279
    %4376 = vmatpush1.msra.mxu0 %v4278
    %4377 = vmatprep.subr.mxu0 %v4270
    %4378 = vmatpush1.msra.mxu0 %v4269
    %4379 = vmatprep.subr.mxu0 %v4261
    %4380 = vmatpush1.msra.mxu0 %v4260
    %4381 = vmatprep.subr.mxu0 %v4252
    %4382 = vmatpush1.msra.mxu0 %v4251
    %4383 = vmatprep.subr.mxu0 %v4243
    %4384 = vmatpush1.msra.mxu0 %v4242
    %4385 = vmatprep.subr.mxu0 %v4234
    %4386 = vmatpush1.msra.mxu0 %v4233
    %4387 = vmatprep.subr.mxu0 %v4225
    %4388 = vmatpush1.msra.mxu0 %v4224
    %4389 = vmatprep.subr.mxu0 %v4216
    %4390 = vmatpush1.msra.mxu0 %v4215
    %4391 = vmatprep.subr.mxu0 0.0
    %4392 = vmatpush2.msra.mxu0 0.0
    %4393 = vmatprep.subr.mxu0 0.0
    %4394 = vmatpush2.msra.mxu0 0.0
    %4395 = vmatprep.subr.mxu0 0.0
    %4396 = vmatpush2.msra.mxu0 0.0
    %4397 = vmatprep.subr.mxu0 0.0
    %4398 = vmatpush2.msra.mxu0 0.0
    %4399 = vmatprep.subr.mxu0 0.0
    %4400 = vmatpush2.msra.mxu0 0.0
    %4401 = vmatprep.subr.mxu0 0.0
    %4402 = vmatpush2.msra.mxu0 0.0
    %4403 = vmatprep.subr.mxu0 0.0
    %4404 = vmatpush2.msra.mxu0 0.0
    %4405 = vmatprep.subr.mxu0 0.0
    %4406 = vmatpush2.msra.mxu0 0.0
    %4407 = vmatprep.subr.mxu0 0.0
    %4408 = vmatpush2.msra.mxu0 0.0
    %4409 = vmatprep.subr.mxu0 0.0
    %4410 = vmatpush2.msra.mxu0 0.0
    %4411 = vmatprep.subr.mxu0 0.0
    %4412 = vmatpush2.msra.mxu0 0.0
    %4413 = vmatprep.subr.mxu0 0.0
    %4414 = vmatpush2.msra.mxu0 0.0
    %4415 = vmatprep.subr.mxu0 0.0
    %4416 = vmatpush2.msra.mxu0 0.0
    %4417 = vmatprep.subr.mxu0 0.0
    %4418 = vmatpush2.msra.mxu0 0.0
    %4419 = vmatprep.subr.mxu0 0.0
    %4420 = vmatpush2.msra.mxu0 0.0
    %4421 = vmatprep.subr.mxu0 0.0
    %4422 = vmatpush2.msra.mxu0 0.0
    %4423 = vmatprep.mubr.f32.mxu0 0.0
    %4424 = vmatmul.mubr.f32.gmra.mxu0 %v4211
    %v4425 = vpop.f32.mrf.mxu0
    %v4426 = vadd.f32 0.0, %v4425
    %v4427 = vpop.f32.mrf.mxu0
    %v4428 = vadd.f32 0.0, %v4427
    %4429 = vmatprep.mubr.f32.mxu0 0.0
    %4430 = vmatmul.mubr.f32.gmra.mxu0 %v4212
    %v4431 = vpop.f32.mrf.mxu0
    %v4432 = vadd.f32 0.0, %v4431
    %v4433 = vpop.f32.mrf.mxu0
    %v4434 = vadd.f32 0.0, %v4433
    %4435 = vmatprep.mubr.f32.mxu0 0.0
    %4436 = vmatmul.mubr.f32.gmra.mxu0 %v4213
    %v4437 = vpop.f32.mrf.mxu0
    %v4438 = vadd.f32 0.0, %v4437
    %v4439 = vpop.f32.mrf.mxu0
    %v4440 = vadd.f32 0.0, %v4439
    %4441 = vmatprep.mubr.f32.mxu0 0.0
    %4442 = vmatmul.mubr.f32.gmra.mxu0 %v4214
    %v4443 = vpop.f32.mrf.mxu0
    %v4444 = vadd.f32 0.0, %v4443
    %v4445 = vpop.f32.mrf.mxu0
    %v4446 = vadd.f32 0.0, %v4445
    %4447 = vdwg.mxu0
    %4448 = vmatprep.subr.mxu0 %v4353
    %4449 = vmatpush1.msra.mxu0 %v4352
    %4450 = vmatprep.subr.mxu0 %v4344
    %4451 = vmatpush1.msra.mxu0 %v4343
    %4452 = vmatprep.subr.mxu0 %v4335
    %4453 = vmatpush1.msra.mxu0 %v4334
    %4454 = vmatprep.subr.mxu0 %v4326
    %4455 = vmatpush1.msra.mxu0 %v4325
    %4456 = vmatprep.subr.mxu0 %v4317
    %4457 = vmatpush1.msra.mxu0 %v4316
    %4458 = vmatprep.subr.mxu0 %v4308
    %4459 = vmatpush1.msra.mxu0 %v4307
    %4460 = vmatprep.subr.mxu0 %v4299
    %4461 = vmatpush1.msra.mxu0 %v4298
    %4462 = vmatprep.subr.mxu0 %v4290
    %4463 = vmatpush1.msra.mxu0 %v4289
    %4464 = vmatprep.subr.mxu0 %v4281
    %4465 = vmatpush1.msra.mxu0 %v4280
    %4466 = vmatprep.subr.mxu0 %v4272
    %4467 = vmatpush1.msra.mxu0 %v4271
    %4468 = vmatprep.subr.mxu0 %v4263
    %4469 = vmatpush1.msra.mxu0 %v4262
    %4470 = vmatprep.subr.mxu0 %v4254
    %4471 = vmatpush1.msra.mxu0 %v4253
    %4472 = vmatprep.subr.mxu0 %v4245
    %4473 = vmatpush1.msra.mxu0 %v4244
    %4474 = vmatprep.subr.mxu0 %v4236
    %4475 = vmatpush1.msra.mxu0 %v4235
    %4476 = vmatprep.subr.mxu0 %v4227
    %4477 = vmatpush1.msra.mxu0 %v4226
    %4478 = vmatprep.subr.mxu0 %v4218
    %4479 = vmatpush1.msra.mxu0 %v4217
    %4480 = vmatprep.subr.mxu0 0.0
    %4481 = vmatpush2.msra.mxu0 0.0
    %4482 = vmatprep.subr.mxu0 0.0
    %4483 = vmatpush2.msra.mxu0 0.0
    %4484 = vmatprep.subr.mxu0 0.0
    %4485 = vmatpush2.msra.mxu0 0.0
    %4486 = vmatprep.subr.mxu0 0.0
    %4487 = vmatpush2.msra.mxu0 0.0
    %4488 = vmatprep.subr.mxu0 0.0
    %4489 = vmatpush2.msra.mxu0 0.0
    %4490 = vmatprep.subr.mxu0 0.0
    %4491 = vmatpush2.msra.mxu0 0.0
    %4492 = vmatprep.subr.mxu0 0.0
    %4493 = vmatpush2.msra.mxu0 0.0
    %4494 = vmatprep.subr.mxu0 0.0
    %4495 = vmatpush2.msra.mxu0 0.0
    %4496 = vmatprep.subr.mxu0 0.0
    %4497 = vmatpush2.msra.mxu0 0.0
    %4498 = vmatprep.subr.mxu0 0.0
    %4499 = vmatpush2.msra.mxu0 0.0
    %4500 = vmatprep.subr.mxu0 0.0
    %4501 = vmatpush2.msra.mxu0 0.0
    %4502 = vmatprep.subr.mxu0 0.0
    %4503 = vmatpush2.msra.mxu0 0.0
    %4504 = vmatprep.subr.mxu0 0.0
    %4505 = vmatpush2.msra.mxu0 0.0
    %4506 = vmatprep.subr.mxu0 0.0
    %4507 = vmatpush2.msra.mxu0 0.0
    %4508 = vmatprep.subr.mxu0 0.0
    %4509 = vmatpush2.msra.mxu0 0.0
    %4510 = vmatprep.subr.mxu0 0.0
    %4511 = vmatpush2.msra.mxu0 0.0
    %4512 = vmatprep.mubr.f32.mxu0 0.0
    %4513 = vmatmul.mubr.f32.gmra.mxu0 %v4211
    %v4514 = vpop.f32.mrf.mxu0
    %v4515 = vadd.f32 0.0, %v4514
    %v4516 = vpop.f32.mrf.mxu0
    %v4517 = vadd.f32 0.0, %v4516
    %4518 = vmatprep.mubr.f32.mxu0 0.0
    %4519 = vmatmul.mubr.f32.gmra.mxu0 %v4212
    %v4520 = vpop.f32.mrf.mxu0
    %v4521 = vadd.f32 0.0, %v4520
    %v4522 = vpop.f32.mrf.mxu0
    %v4523 = vadd.f32 0.0, %v4522
    %4524 = vmatprep.mubr.f32.mxu0 0.0
    %4525 = vmatmul.mubr.f32.gmra.mxu0 %v4213
    %v4526 = vpop.f32.mrf.mxu0
    %v4527 = vadd.f32 0.0, %v4526
    %v4528 = vpop.f32.mrf.mxu0
    %v4529 = vadd.f32 0.0, %v4528
    %4530 = vmatprep.mubr.f32.mxu0 0.0
    %4531 = vmatmul.mubr.f32.gmra.mxu0 %v4214
    %v4532 = vpop.f32.mrf.mxu0
    %v4533 = vadd.f32 0.0, %v4532
    %v4534 = vpop.f32.mrf.mxu0
    %v4535 = vadd.f32 0.0, %v4534
    %4536 = vdwg.mxu0
    %4537 = vmatprep.subr.mxu0 %v4355
    %4538 = vmatpush1.msra.mxu0 %v4354
    %4539 = vmatprep.subr.mxu0 %v4346
    %4540 = vmatpush1.msra.mxu0 %v4345
    %4541 = vmatprep.subr.mxu0 %v4337
    %4542 = vmatpush1.msra.mxu0 %v4336
    %4543 = vmatprep.subr.mxu0 %v4328
    %4544 = vmatpush1.msra.mxu0 %v4327
    %4545 = vmatprep.subr.mxu0 %v4319
    %4546 = vmatpush1.msra.mxu0 %v4318
    %4547 = vmatprep.subr.mxu0 %v4310
    %4548 = vmatpush1.msra.mxu0 %v4309
    %4549 = vmatprep.subr.mxu0 %v4301
    %4550 = vmatpush1.msra.mxu0 %v4300
    %4551 = vmatprep.subr.mxu0 %v4292
    %4552 = vmatpush1.msra.mxu0 %v4291
    %4553 = vmatprep.subr.mxu0 %v4283
    %4554 = vmatpush1.msra.mxu0 %v4282
    %4555 = vmatprep.subr.mxu0 %v4274
    %4556 = vmatpush1.msra.mxu0 %v4273
    %4557 = vmatprep.subr.mxu0 %v4265
    %4558 = vmatpush1.msra.mxu0 %v4264
    %4559 = vmatprep.subr.mxu0 %v4256
    %4560 = vmatpush1.msra.mxu0 %v4255
    %4561 = vmatprep.subr.mxu0 %v4247
    %4562 = vmatpush1.msra.mxu0 %v4246
    %4563 = vmatprep.subr.mxu0 %v4238
    %4564 = vmatpush1.msra.mxu0 %v4237
    %4565 = vmatprep.subr.mxu0 %v4229
    %4566 = vmatpush1.msra.mxu0 %v4228
    %4567 = vmatprep.subr.mxu0 %v4220
    %4568 = vmatpush1.msra.mxu0 %v4219
    %4569 = vmatprep.subr.mxu0 0.0
    %4570 = vmatpush2.msra.mxu0 0.0
    %4571 = vmatprep.subr.mxu0 0.0
    %4572 = vmatpush2.msra.mxu0 0.0
    %4573 = vmatprep.subr.mxu0 0.0
    %4574 = vmatpush2.msra.mxu0 0.0
    %4575 = vmatprep.subr.mxu0 0.0
    %4576 = vmatpush2.msra.mxu0 0.0
    %4577 = vmatprep.subr.mxu0 0.0
    %4578 = vmatpush2.msra.mxu0 0.0
    %4579 = vmatprep.subr.mxu0 0.0
    %4580 = vmatpush2.msra.mxu0 0.0
    %4581 = vmatprep.subr.mxu0 0.0
    %4582 = vmatpush2.msra.mxu0 0.0
    %4583 = vmatprep.subr.mxu0 0.0
    %4584 = vmatpush2.msra.mxu0 0.0
    %4585 = vmatprep.subr.mxu0 0.0
    %4586 = vmatpush2.msra.mxu0 0.0
    %4587 = vmatprep.subr.mxu0 0.0
    %4588 = vmatpush2.msra.mxu0 0.0
    %4589 = vmatprep.subr.mxu0 0.0
    %4590 = vmatpush2.msra.mxu0 0.0
    %4591 = vmatprep.subr.mxu0 0.0
    %4592 = vmatpush2.msra.mxu0 0.0
    %4593 = vmatprep.subr.mxu0 0.0
    %4594 = vmatpush2.msra.mxu0 0.0
    %4595 = vmatprep.subr.mxu0 0.0
    %4596 = vmatpush2.msra.mxu0 0.0
    %4597 = vmatprep.subr.mxu0 0.0
    %4598 = vmatpush2.msra.mxu0 0.0
    %4599 = vmatprep.subr.mxu0 0.0
    %4600 = vmatpush2.msra.mxu0 0.0
    %4601 = vmatprep.mubr.f32.mxu0 0.0
    %4602 = vmatmul.mubr.f32.gmra.mxu0 %v4211
    %v4603 = vpop.f32.mrf.mxu0
    %v4604 = vadd.f32 0.0, %v4603
    %v4605 = vpop.f32.mrf.mxu0
    %v4606 = vadd.f32 0.0, %v4605
    %4607 = vmatprep.mubr.f32.mxu0 0.0
    %4608 = vmatmul.mubr.f32.gmra.mxu0 %v4212
    %v4609 = vpop.f32.mrf.mxu0
    %v4610 = vadd.f32 0.0, %v4609
    %v4611 = vpop.f32.mrf.mxu0
    %v4612 = vadd.f32 0.0, %v4611
    %4613 = vmatprep.mubr.f32.mxu0 0.0
    %4614 = vmatmul.mubr.f32.gmra.mxu0 %v4213
    %v4615 = vpop.f32.mrf.mxu0
    %v4616 = vadd.f32 0.0, %v4615
    %v4617 = vpop.f32.mrf.mxu0
    %v4618 = vadd.f32 0.0, %v4617
    %4619 = vmatprep.mubr.f32.mxu0 0.0
    %4620 = vmatmul.mubr.f32.gmra.mxu0 %v4214
    %v4621 = vpop.f32.mrf.mxu0
    %v4622 = vadd.f32 0.0, %v4621
    %v4623 = vpop.f32.mrf.mxu0
    %v4624 = vadd.f32 0.0, %v4623
    %4625 = vdwg.mxu0
    %4626 = vmatprep.subr.mxu0 %v4357
    %4627 = vmatpush1.msra.mxu0 %v4356
    %4628 = vmatprep.subr.mxu0 %v4348
    %4629 = vmatpush1.msra.mxu0 %v4347
    %4630 = vmatprep.subr.mxu0 %v4339
    %4631 = vmatpush1.msra.mxu0 %v4338
    %4632 = vmatprep.subr.mxu0 %v4330
    %4633 = vmatpush1.msra.mxu0 %v4329
    %4634 = vmatprep.subr.mxu0 %v4321
    %4635 = vmatpush1.msra.mxu0 %v4320
    %4636 = vmatprep.subr.mxu0 %v4312
    %4637 = vmatpush1.msra.mxu0 %v4311
    %4638 = vmatprep.subr.mxu0 %v4303
    %4639 = vmatpush1.msra.mxu0 %v4302
    %4640 = vmatprep.subr.mxu0 %v4294
    %4641 = vmatpush1.msra.mxu0 %v4293
    %4642 = vmatprep.subr.mxu0 %v4285
    %4643 = vmatpush1.msra.mxu0 %v4284
    %4644 = vmatprep.subr.mxu0 %v4276
    %4645 = vmatpush1.msra.mxu0 %v4275
    %4646 = vmatprep.subr.mxu0 %v4267
    %4647 = vmatpush1.msra.mxu0 %v4266
    %4648 = vmatprep.subr.mxu0 %v4258
    %4649 = vmatpush1.msra.mxu0 %v4257
    %4650 = vmatprep.subr.mxu0 %v4249
    %4651 = vmatpush1.msra.mxu0 %v4248
    %4652 = vmatprep.subr.mxu0 %v4240
    %4653 = vmatpush1.msra.mxu0 %v4239
    %4654 = vmatprep.subr.mxu0 %v4231
    %4655 = vmatpush1.msra.mxu0 %v4230
    %4656 = vmatprep.subr.mxu0 %v4222
    %4657 = vmatpush1.msra.mxu0 %v4221
    %4658 = vmatprep.subr.mxu0 0.0
    %4659 = vmatpush2.msra.mxu0 0.0
    %4660 = vmatprep.subr.mxu0 0.0
    %4661 = vmatpush2.msra.mxu0 0.0
    %4662 = vmatprep.subr.mxu0 0.0
    %4663 = vmatpush2.msra.mxu0 0.0
    %4664 = vmatprep.subr.mxu0 0.0
    %4665 = vmatpush2.msra.mxu0 0.0
    %4666 = vmatprep.subr.mxu0 0.0
    %4667 = vmatpush2.msra.mxu0 0.0
    %4668 = vmatprep.subr.mxu0 0.0
    %4669 = vmatpush2.msra.mxu0 0.0
    %4670 = vmatprep.subr.mxu0 0.0
    %4671 = vmatpush2.msra.mxu0 0.0
    %4672 = vmatprep.subr.mxu0 0.0
    %4673 = vmatpush2.msra.mxu0 0.0
    %4674 = vmatprep.subr.mxu0 0.0
    %4675 = vmatpush2.msra.mxu0 0.0
    %4676 = vmatprep.subr.mxu0 0.0
    %4677 = vmatpush2.msra.mxu0 0.0
    %4678 = vmatprep.subr.mxu0 0.0
    %4679 = vmatpush2.msra.mxu0 0.0
    %4680 = vmatprep.subr.mxu0 0.0
    %4681 = vmatpush2.msra.mxu0 0.0
    %4682 = vmatprep.subr.mxu0 0.0
    %4683 = vmatpush2.msra.mxu0 0.0
    %4684 = vmatprep.subr.mxu0 0.0
    %4685 = vmatpush2.msra.mxu0 0.0
    %4686 = vmatprep.subr.mxu0 0.0
    %4687 = vmatpush2.msra.mxu0 0.0
    %4688 = vmatprep.subr.mxu0 0.0
    %4689 = vmatpush2.msra.mxu0 0.0
    %4690 = vmatprep.mubr.f32.mxu0 0.0
    %4691 = vmatmul.mubr.f32.gmra.mxu0 %v4211
    %v4692 = vpop.f32.mrf.mxu0
    %v4693 = vadd.f32 0.0, %v4692
    %v4694 = vpop.f32.mrf.mxu0
    %v4695 = vadd.f32 0.0, %v4694
    %4696 = vmatprep.mubr.f32.mxu0 0.0
    %4697 = vmatmul.mubr.f32.gmra.mxu0 %v4212
    %v4698 = vpop.f32.mrf.mxu0
    %v4699 = vadd.f32 0.0, %v4698
    %v4700 = vpop.f32.mrf.mxu0
    %v4701 = vadd.f32 0.0, %v4700
    %4702 = vmatprep.mubr.f32.mxu0 0.0
    %4703 = vmatmul.mubr.f32.gmra.mxu0 %v4213
    %v4704 = vpop.f32.mrf.mxu0
    %v4705 = vadd.f32 0.0, %v4704
    %v4706 = vpop.f32.mrf.mxu0
    %v4707 = vadd.f32 0.0, %v4706
    %4708 = vmatprep.mubr.f32.mxu0 0.0
    %4709 = vmatmul.mubr.f32.gmra.mxu0 %v4214
    %v4710 = vpop.f32.mrf.mxu0
    %v4711 = vadd.f32 0.0, %v4710
    %v4712 = vpop.f32.mrf.mxu0
    %v4713 = vadd.f32 0.0, %v4712
    %4714 = vdwg.mxu0
    %4715 = vmatprep.subr.mxu0 0.0
    %4716 = vmatpush1.msra.mxu0 %v4358
    %4717 = vmatprep.subr.mxu0 0.0
    %4718 = vmatpush1.msra.mxu0 %v4349
    %4719 = vmatprep.subr.mxu0 0.0
    %4720 = vmatpush1.msra.mxu0 %v4340
    %4721 = vmatprep.subr.mxu0 0.0
    %4722 = vmatpush1.msra.mxu0 %v4331
    %4723 = vmatprep.subr.mxu0 0.0
    %4724 = vmatpush1.msra.mxu0 %v4322
    %4725 = vmatprep.subr.mxu0 0.0
    %4726 = vmatpush1.msra.mxu0 %v4313
    %4727 = vmatprep.subr.mxu0 0.0
    %4728 = vmatpush1.msra.mxu0 %v4304
    %4729 = vmatprep.subr.mxu0 0.0
    %4730 = vmatpush1.msra.mxu0 %v4295
    %4731 = vmatprep.subr.mxu0 0.0
    %4732 = vmatpush1.msra.mxu0 %v4286
    %4733 = vmatprep.subr.mxu0 0.0
    %4734 = vmatpush1.msra.mxu0 %v4277
    %4735 = vmatprep.subr.mxu0 0.0
    %4736 = vmatpush1.msra.mxu0 %v4268
    %4737 = vmatprep.subr.mxu0 0.0
    %4738 = vmatpush1.msra.mxu0 %v4259
    %4739 = vmatprep.subr.mxu0 0.0
    %4740 = vmatpush1.msra.mxu0 %v4250
    %4741 = vmatprep.subr.mxu0 0.0
    %4742 = vmatpush1.msra.mxu0 %v4241
    %4743 = vmatprep.subr.mxu0 0.0
    %4744 = vmatpush1.msra.mxu0 %v4232
    %4745 = vmatprep.subr.mxu0 0.0
    %4746 = vmatpush1.msra.mxu0 %v4223
    %4747 = vmatprep.subr.mxu0 0.0
    %4748 = vmatpush2.msra.mxu0 0.0
    %4749 = vmatprep.subr.mxu0 0.0
    %4750 = vmatpush2.msra.mxu0 0.0
    %4751 = vmatprep.subr.mxu0 0.0
    %4752 = vmatpush2.msra.mxu0 0.0
    %4753 = vmatprep.subr.mxu0 0.0
    %4754 = vmatpush2.msra.mxu0 0.0
    %4755 = vmatprep.subr.mxu0 0.0
    %4756 = vmatpush2.msra.mxu0 0.0
    %4757 = vmatprep.subr.mxu0 0.0
    %4758 = vmatpush2.msra.mxu0 0.0
    %4759 = vmatprep.subr.mxu0 0.0
    %4760 = vmatpush2.msra.mxu0 0.0
    %4761 = vmatprep.subr.mxu0 0.0
    %4762 = vmatpush2.msra.mxu0 0.0
    %4763 = vmatprep.subr.mxu0 0.0
    %4764 = vmatpush2.msra.mxu0 0.0
    %4765 = vmatprep.subr.mxu0 0.0
    %4766 = vmatpush2.msra.mxu0 0.0
    %4767 = vmatprep.subr.mxu0 0.0
    %4768 = vmatpush2.msra.mxu0 0.0
    %4769 = vmatprep.subr.mxu0 0.0
    %4770 = vmatpush2.msra.mxu0 0.0
    %4771 = vmatprep.subr.mxu0 0.0
    %4772 = vmatpush2.msra.mxu0 0.0
    %4773 = vmatprep.subr.mxu0 0.0
    %4774 = vmatpush2.msra.mxu0 0.0
    %4775 = vmatprep.subr.mxu0 0.0
    %4776 = vmatpush2.msra.mxu0 0.0
    %4777 = vmatprep.subr.mxu0 0.0
    %4778 = vmatpush2.msra.mxu0 0.0
    %4779 = vmatprep.mubr.f32.mxu0 0.0
    %4780 = vmatmul.mubr.f32.gmra.mxu0 %v4211
    %v4781 = vpop.f32.mrf.mxu0
    %v4782 = vadd.f32 0.0, %v4781
    %v4783 = vpop.f32.mrf.mxu0
    %4784 = vmatprep.mubr.f32.mxu0 0.0
    %4785 = vmatmul.mubr.f32.gmra.mxu0 %v4212
    %v4786 = vpop.f32.mrf.mxu0
    %v4787 = vadd.f32 0.0, %v4786
    %v4788 = vpop.f32.mrf.mxu0
    %4789 = vmatprep.mubr.f32.mxu0 0.0
    %4790 = vmatmul.mubr.f32.gmra.mxu0 %v4213
    %v4791 = vpop.f32.mrf.mxu0
    %v4792 = vadd.f32 0.0, %v4791
    %v4793 = vpop.f32.mrf.mxu0
    %4794 = vmatprep.mubr.f32.mxu0 0.0
    %4795 = vmatmul.mubr.f32.gmra.mxu0 %v4214
    %v4796 = vpop.f32.mrf.mxu0
    %v4797 = vadd.f32 0.0, %v4796
    %v4798 = vpop.f32.mrf.mxu0
    %4799 = vdwg.mxu0
    %v4800 = vld [vmem:[#allocation14] sm:$0xff]
    %v4801 = vld [vmem:[#allocation14 + $0x8] sm:$0xff]
    %v4802 = vld [vmem:[#allocation14 + $0x10] sm:$0xff]
    %v4803 = vld [vmem:[#allocation14 + $0x18] sm:$0xff]
    %s4804 = scalar_lea.vmem [#allocation14], 32
    %v4805 = vld [vmem:[%s4804] sm:$0xff]
    %v4806 = vld [vmem:[%s4804 + $0x8] sm:$0xff]
    %v4807 = vld [vmem:[%s4804 + $0x10] sm:$0xff]
    %v4808 = vld [vmem:[%s4804 + $0x18] sm:$0xff]
    %vm4809 = vcmask 261120
    %v4811 = vsel %vm4809, %v4805, 0
    %v4814 = vsel %vm4809, %v4806, 0
    %v4817 = vsel %vm4809, %v4807, 0
    %v4820 = vsel %vm4809, %v4808, 0
    %4822 = vmatprep.subr.mxu0 0.0
    %4823 = vmatpush1.msra.mxu0 0.0
    %4824 = vmatprep.subr.mxu0 0.0
    %4825 = vmatpush1.msra.mxu0 0.0
    %4826 = vmatprep.subr.mxu0 0.0
    %4827 = vmatpush1.msra.mxu0 0.0
    %4828 = vmatprep.subr.mxu0 0.0
    %4829 = vmatpush1.msra.mxu0 0.0
    %4830 = vmatprep.subr.mxu0 0.0
    %4831 = vmatpush1.msra.mxu0 0.0
    %4832 = vmatprep.subr.mxu0 0.0
    %4833 = vmatpush1.msra.mxu0 0.0
    %4834 = vmatprep.subr.mxu0 0.0
    %4835 = vmatpush1.msra.mxu0 0.0
    %4836 = vmatprep.subr.mxu0 0.0
    %4837 = vmatpush1.msra.mxu0 0.0
    %4838 = vmatprep.subr.mxu0 0.0
    %4839 = vmatpush1.msra.mxu0 0.0
    %4840 = vmatprep.subr.mxu0 0.0
    %4841 = vmatpush1.msra.mxu0 0.0
    %4842 = vmatprep.subr.mxu0 0.0
    %4843 = vmatpush1.msra.mxu0 0.0
    %4844 = vmatprep.subr.mxu0 0.0
    %4845 = vmatpush1.msra.mxu0 0.0
    %4846 = vmatprep.subr.mxu0 0.0
    %4847 = vmatpush1.msra.mxu0 %v4446
    %4848 = vmatprep.subr.mxu0 0.0
    %4849 = vmatpush1.msra.mxu0 %v4440
    %4850 = vmatprep.subr.mxu0 0.0
    %4851 = vmatpush1.msra.mxu0 %v4434
    %4852 = vmatprep.subr.mxu0 0.0
    %4853 = vmatpush1.msra.mxu0 %v4428
    %4854 = vmatprep.subr.mxu0 0.0
    %4855 = vmatpush2.msra.mxu0 0.0
    %4856 = vmatprep.subr.mxu0 0.0
    %4857 = vmatpush2.msra.mxu0 0.0
    %4858 = vmatprep.subr.mxu0 0.0
    %4859 = vmatpush2.msra.mxu0 0.0
    %4860 = vmatprep.subr.mxu0 0.0
    %4861 = vmatpush2.msra.mxu0 0.0
    %4862 = vmatprep.subr.mxu0 0.0
    %4863 = vmatpush2.msra.mxu0 0.0
    %4864 = vmatprep.subr.mxu0 0.0
    %4865 = vmatpush2.msra.mxu0 0.0
    %4866 = vmatprep.subr.mxu0 0.0
    %4867 = vmatpush2.msra.mxu0 0.0
    %4868 = vmatprep.subr.mxu0 0.0
    %4869 = vmatpush2.msra.mxu0 0.0
    %4870 = vmatprep.subr.mxu0 0.0
    %4871 = vmatpush2.msra.mxu0 0.0
    %4872 = vmatprep.subr.mxu0 0.0
    %4873 = vmatpush2.msra.mxu0 0.0
    %4874 = vmatprep.subr.mxu0 0.0
    %4875 = vmatpush2.msra.mxu0 0.0
    %4876 = vmatprep.subr.mxu0 0.0
    %4877 = vmatpush2.msra.mxu0 0.0
    %4878 = vmatprep.subr.mxu0 0.0
    %4879 = vmatpush2.msra.mxu0 0.0
    %4880 = vmatprep.subr.mxu0 0.0
    %4881 = vmatpush2.msra.mxu0 0.0
    %4882 = vmatprep.subr.mxu0 0.0
    %4883 = vmatpush2.msra.mxu0 0.0
    %4884 = vmatprep.subr.mxu0 0.0
    %4885 = vmatpush2.msra.mxu0 0.0
    %4886 = vmatprep.mubr.f32.mxu0 0.0
    %4887 = vmatmul.mubr.f32.gmra.mxu0 %v4811
    %v4888 = vpop.f32.mrf.mxu0
    %v4889 = vadd.f32 0.0, %v4888
    %v4890 = vpop.f32.mrf.mxu0
    %4891 = vmatprep.mubr.f32.mxu0 0.0
    %4892 = vmatmul.mubr.f32.gmra.mxu0 %v4814
    %v4893 = vpop.f32.mrf.mxu0
    %v4894 = vadd.f32 0.0, %v4893
    %v4895 = vpop.f32.mrf.mxu0
    %4896 = vmatprep.mubr.f32.mxu0 0.0
    %4897 = vmatmul.mubr.f32.gmra.mxu0 %v4817
    %v4898 = vpop.f32.mrf.mxu0
    %v4899 = vadd.f32 0.0, %v4898
    %v4900 = vpop.f32.mrf.mxu0
    %4901 = vmatprep.mubr.f32.mxu0 0.0
    %4902 = vmatmul.mubr.f32.gmra.mxu0 %v4820
    %v4903 = vpop.f32.mrf.mxu0
    %v4904 = vadd.f32 0.0, %v4903
    %v4905 = vpop.f32.mrf.mxu0
    %4906 = vdwg.mxu0
    %v4908 = vsel %vm4809, %v4800, 0
    %v4911 = vsel %vm4809, %v4801, 0
    %v4914 = vsel %vm4809, %v4802, 0
    %v4917 = vsel %vm4809, %v4803, 0
    %4919 = vmatprep.subr.mxu0 0.0
    %4920 = vmatpush1.msra.mxu0 0.0
    %4921 = vmatprep.subr.mxu0 0.0
    %4922 = vmatpush1.msra.mxu0 0.0
    %4923 = vmatprep.subr.mxu0 0.0
    %4924 = vmatpush1.msra.mxu0 0.0
    %4925 = vmatprep.subr.mxu0 0.0
    %4926 = vmatpush1.msra.mxu0 0.0
    %4927 = vmatprep.subr.mxu0 0.0
    %4928 = vmatpush1.msra.mxu0 0.0
    %4929 = vmatprep.subr.mxu0 0.0
    %4930 = vmatpush1.msra.mxu0 0.0
    %4931 = vmatprep.subr.mxu0 0.0
    %4932 = vmatpush1.msra.mxu0 0.0
    %4933 = vmatprep.subr.mxu0 0.0
    %4934 = vmatpush1.msra.mxu0 0.0
    %4935 = vmatprep.subr.mxu0 0.0
    %4936 = vmatpush1.msra.mxu0 0.0
    %4937 = vmatprep.subr.mxu0 0.0
    %4938 = vmatpush1.msra.mxu0 0.0
    %4939 = vmatprep.subr.mxu0 0.0
    %4940 = vmatpush1.msra.mxu0 0.0
    %4941 = vmatprep.subr.mxu0 0.0
    %4942 = vmatpush1.msra.mxu0 0.0
    %4943 = vmatprep.subr.mxu0 0.0
    %4944 = vmatpush1.msra.mxu0 %v4444
    %4945 = vmatprep.subr.mxu0 0.0
    %4946 = vmatpush1.msra.mxu0 %v4438
    %4947 = vmatprep.subr.mxu0 0.0
    %4948 = vmatpush1.msra.mxu0 %v4432
    %4949 = vmatprep.subr.mxu0 0.0
    %4950 = vmatpush1.msra.mxu0 %v4426
    %4951 = vmatprep.subr.mxu0 0.0
    %4952 = vmatpush2.msra.mxu0 0.0
    %4953 = vmatprep.subr.mxu0 0.0
    %4954 = vmatpush2.msra.mxu0 0.0
    %4955 = vmatprep.subr.mxu0 0.0
    %4956 = vmatpush2.msra.mxu0 0.0
    %4957 = vmatprep.subr.mxu0 0.0
    %4958 = vmatpush2.msra.mxu0 0.0
    %4959 = vmatprep.subr.mxu0 0.0
    %4960 = vmatpush2.msra.mxu0 0.0
    %4961 = vmatprep.subr.mxu0 0.0
    %4962 = vmatpush2.msra.mxu0 0.0
    %4963 = vmatprep.subr.mxu0 0.0
    %4964 = vmatpush2.msra.mxu0 0.0
    %4965 = vmatprep.subr.mxu0 0.0
    %4966 = vmatpush2.msra.mxu0 0.0
    %4967 = vmatprep.subr.mxu0 0.0
    %4968 = vmatpush2.msra.mxu0 0.0
    %4969 = vmatprep.subr.mxu0 0.0
    %4970 = vmatpush2.msra.mxu0 0.0
    %4971 = vmatprep.subr.mxu0 0.0
    %4972 = vmatpush2.msra.mxu0 0.0
    %4973 = vmatprep.subr.mxu0 0.0
    %4974 = vmatpush2.msra.mxu0 0.0
    %4975 = vmatprep.subr.mxu0 0.0
    %4976 = vmatpush2.msra.mxu0 0.0
    %4977 = vmatprep.subr.mxu0 0.0
    %4978 = vmatpush2.msra.mxu0 0.0
    %4979 = vmatprep.subr.mxu0 0.0
    %4980 = vmatpush2.msra.mxu0 0.0
    %4981 = vmatprep.subr.mxu0 0.0
    %4982 = vmatpush2.msra.mxu0 0.0
    %4983 = vmatprep.mubr.f32.mxu0 0.0
    %4984 = vmatmul.mubr.f32.gmra.mxu0 %v4908
    %v4985 = vpop.f32.mrf.mxu0
    %v4986 = vadd.f32 %v4889, %v4985
    %v4987 = vpop.f32.mrf.mxu0
    %4988 = vmatprep.mubr.f32.mxu0 0.0
    %4989 = vmatmul.mubr.f32.gmra.mxu0 %v4911
    %v4990 = vpop.f32.mrf.mxu0
    %v4991 = vadd.f32 %v4894, %v4990
    %v4992 = vpop.f32.mrf.mxu0
    %4993 = vmatprep.mubr.f32.mxu0 0.0
    %4994 = vmatmul.mubr.f32.gmra.mxu0 %v4914
    %v4995 = vpop.f32.mrf.mxu0
    %v4996 = vadd.f32 %v4899, %v4995
    %v4997 = vpop.f32.mrf.mxu0
    %4998 = vmatprep.mubr.f32.mxu0 0.0
    %4999 = vmatmul.mubr.f32.gmra.mxu0 %v4917
    %v5000 = vpop.f32.mrf.mxu0
    %v5001 = vadd.f32 %v4904, %v5000
    %v5002 = vpop.f32.mrf.mxu0
    %5003 = vdwg.mxu0
    %s5004 = scalar_lea.vmem [#allocation14], 64
    %v5005 = vld [vmem:[%s5004] sm:$0xff]
    %v5006 = vld [vmem:[%s5004 + $0x8] sm:$0xff]
    %v5007 = vld [vmem:[%s5004 + $0x10] sm:$0xff]
    %v5008 = vld [vmem:[%s5004 + $0x18] sm:$0xff]
    %v5010 = vsel %vm4809, %v5005, 0
    %v5013 = vsel %vm4809, %v5006, 0
    %v5016 = vsel %vm4809, %v5007, 0
    %v5019 = vsel %vm4809, %v5008, 0
    %5021 = vmatprep.subr.mxu0 0.0
    %5022 = vmatpush1.msra.mxu0 0.0
    %5023 = vmatprep.subr.mxu0 0.0
    %5024 = vmatpush1.msra.mxu0 0.0
    %5025 = vmatprep.subr.mxu0 0.0
    %5026 = vmatpush1.msra.mxu0 0.0
    %5027 = vmatprep.subr.mxu0 0.0
    %5028 = vmatpush1.msra.mxu0 0.0
    %5029 = vmatprep.subr.mxu0 0.0
    %5030 = vmatpush1.msra.mxu0 0.0
    %5031 = vmatprep.subr.mxu0 0.0
    %5032 = vmatpush1.msra.mxu0 0.0
    %5033 = vmatprep.subr.mxu0 0.0
    %5034 = vmatpush1.msra.mxu0 0.0
    %5035 = vmatprep.subr.mxu0 0.0
    %5036 = vmatpush1.msra.mxu0 0.0
    %5037 = vmatprep.subr.mxu0 0.0
    %5038 = vmatpush1.msra.mxu0 0.0
    %5039 = vmatprep.subr.mxu0 0.0
    %5040 = vmatpush1.msra.mxu0 0.0
    %5041 = vmatprep.subr.mxu0 0.0
    %5042 = vmatpush1.msra.mxu0 0.0
    %5043 = vmatprep.subr.mxu0 0.0
    %5044 = vmatpush1.msra.mxu0 0.0
    %5045 = vmatprep.subr.mxu0 0.0
    %5046 = vmatpush1.msra.mxu0 %v4533
    %5047 = vmatprep.subr.mxu0 0.0
    %5048 = vmatpush1.msra.mxu0 %v4527
    %5049 = vmatprep.subr.mxu0 0.0
    %5050 = vmatpush1.msra.mxu0 %v4521
    %5051 = vmatprep.subr.mxu0 0.0
    %5052 = vmatpush1.msra.mxu0 %v4515
    %5053 = vmatprep.subr.mxu0 0.0
    %5054 = vmatpush2.msra.mxu0 0.0
    %5055 = vmatprep.subr.mxu0 0.0
    %5056 = vmatpush2.msra.mxu0 0.0
    %5057 = vmatprep.subr.mxu0 0.0
    %5058 = vmatpush2.msra.mxu0 0.0
    %5059 = vmatprep.subr.mxu0 0.0
    %5060 = vmatpush2.msra.mxu0 0.0
    %5061 = vmatprep.subr.mxu0 0.0
    %5062 = vmatpush2.msra.mxu0 0.0
    %5063 = vmatprep.subr.mxu0 0.0
    %5064 = vmatpush2.msra.mxu0 0.0
    %5065 = vmatprep.subr.mxu0 0.0
    %5066 = vmatpush2.msra.mxu0 0.0
    %5067 = vmatprep.subr.mxu0 0.0
    %5068 = vmatpush2.msra.mxu0 0.0
    %5069 = vmatprep.subr.mxu0 0.0
    %5070 = vmatpush2.msra.mxu0 0.0
    %5071 = vmatprep.subr.mxu0 0.0
    %5072 = vmatpush2.msra.mxu0 0.0
    %5073 = vmatprep.subr.mxu0 0.0
    %5074 = vmatpush2.msra.mxu0 0.0
    %5075 = vmatprep.subr.mxu0 0.0
    %5076 = vmatpush2.msra.mxu0 0.0
    %5077 = vmatprep.subr.mxu0 0.0
    %5078 = vmatpush2.msra.mxu0 0.0
    %5079 = vmatprep.subr.mxu0 0.0
    %5080 = vmatpush2.msra.mxu0 0.0
    %5081 = vmatprep.subr.mxu0 0.0
    %5082 = vmatpush2.msra.mxu0 0.0
    %5083 = vmatprep.subr.mxu0 0.0
    %5084 = vmatpush2.msra.mxu0 0.0
    %5085 = vmatprep.mubr.f32.mxu0 0.0
    %5086 = vmatmul.mubr.f32.gmra.mxu0 %v5010
    %v5087 = vpop.f32.mrf.mxu0
    %v5088 = vadd.f32 0.0, %v5087
    %v5089 = vpop.f32.mrf.mxu0
    %5090 = vmatprep.mubr.f32.mxu0 0.0
    %5091 = vmatmul.mubr.f32.gmra.mxu0 %v5013
    %v5092 = vpop.f32.mrf.mxu0
    %v5093 = vadd.f32 0.0, %v5092
    %v5094 = vpop.f32.mrf.mxu0
    %5095 = vmatprep.mubr.f32.mxu0 0.0
    %5096 = vmatmul.mubr.f32.gmra.mxu0 %v5016
    %v5097 = vpop.f32.mrf.mxu0
    %v5098 = vadd.f32 0.0, %v5097
    %v5099 = vpop.f32.mrf.mxu0
    %5100 = vmatprep.mubr.f32.mxu0 0.0
    %5101 = vmatmul.mubr.f32.gmra.mxu0 %v5019
    %v5102 = vpop.f32.mrf.mxu0
    %v5103 = vadd.f32 0.0, %v5102
    %v5104 = vpop.f32.mrf.mxu0
    %5105 = vdwg.mxu0
    %v5106 = vadd.f32 %v4986, %v5088
    %v5107 = vadd.f32 %v4991, %v5093
    %v5108 = vadd.f32 %v4996, %v5098
    %v5109 = vadd.f32 %v5001, %v5103
    %s5110 = scalar_lea.vmem [#allocation14], 96
    %v5111 = vld [vmem:[%s5110] sm:$0xff]
    %v5112 = vld [vmem:[%s5110 + $0x8] sm:$0xff]
    %v5113 = vld [vmem:[%s5110 + $0x10] sm:$0xff]
    %v5114 = vld [vmem:[%s5110 + $0x18] sm:$0xff]
    %v5116 = vsel %vm4809, %v5111, 0
    %v5119 = vsel %vm4809, %v5112, 0
    %v5122 = vsel %vm4809, %v5113, 0
    %v5125 = vsel %vm4809, %v5114, 0
    %5127 = vmatprep.subr.mxu0 0.0
    %5128 = vmatpush1.msra.mxu0 0.0
    %5129 = vmatprep.subr.mxu0 0.0
    %5130 = vmatpush1.msra.mxu0 0.0
    %5131 = vmatprep.subr.mxu0 0.0
    %5132 = vmatpush1.msra.mxu0 0.0
    %5133 = vmatprep.subr.mxu0 0.0
    %5134 = vmatpush1.msra.mxu0 0.0
    %5135 = vmatprep.subr.mxu0 0.0
    %5136 = vmatpush1.msra.mxu0 0.0
    %5137 = vmatprep.subr.mxu0 0.0
    %5138 = vmatpush1.msra.mxu0 0.0
    %5139 = vmatprep.subr.mxu0 0.0
    %5140 = vmatpush1.msra.mxu0 0.0
    %5141 = vmatprep.subr.mxu0 0.0
    %5142 = vmatpush1.msra.mxu0 0.0
    %5143 = vmatprep.subr.mxu0 0.0
    %5144 = vmatpush1.msra.mxu0 0.0
    %5145 = vmatprep.subr.mxu0 0.0
    %5146 = vmatpush1.msra.mxu0 0.0
    %5147 = vmatprep.subr.mxu0 0.0
    %5148 = vmatpush1.msra.mxu0 0.0
    %5149 = vmatprep.subr.mxu0 0.0
    %5150 = vmatpush1.msra.mxu0 0.0
    %5151 = vmatprep.subr.mxu0 0.0
    %5152 = vmatpush1.msra.mxu0 %v4535
    %5153 = vmatprep.subr.mxu0 0.0
    %5154 = vmatpush1.msra.mxu0 %v4529
    %5155 = vmatprep.subr.mxu0 0.0
    %5156 = vmatpush1.msra.mxu0 %v4523
    %5157 = vmatprep.subr.mxu0 0.0
    %5158 = vmatpush1.msra.mxu0 %v4517
    %5159 = vmatprep.subr.mxu0 0.0
    %5160 = vmatpush2.msra.mxu0 0.0
    %5161 = vmatprep.subr.mxu0 0.0
    %5162 = vmatpush2.msra.mxu0 0.0
    %5163 = vmatprep.subr.mxu0 0.0
    %5164 = vmatpush2.msra.mxu0 0.0
    %5165 = vmatprep.subr.mxu0 0.0
    %5166 = vmatpush2.msra.mxu0 0.0
    %5167 = vmatprep.subr.mxu0 0.0
    %5168 = vmatpush2.msra.mxu0 0.0
    %5169 = vmatprep.subr.mxu0 0.0
    %5170 = vmatpush2.msra.mxu0 0.0
    %5171 = vmatprep.subr.mxu0 0.0
    %5172 = vmatpush2.msra.mxu0 0.0
    %5173 = vmatprep.subr.mxu0 0.0
    %5174 = vmatpush2.msra.mxu0 0.0
    %5175 = vmatprep.subr.mxu0 0.0
    %5176 = vmatpush2.msra.mxu0 0.0
    %5177 = vmatprep.subr.mxu0 0.0
    %5178 = vmatpush2.msra.mxu0 0.0
    %5179 = vmatprep.subr.mxu0 0.0
    %5180 = vmatpush2.msra.mxu0 0.0
    %5181 = vmatprep.subr.mxu0 0.0
    %5182 = vmatpush2.msra.mxu0 0.0
    %5183 = vmatprep.subr.mxu0 0.0
    %5184 = vmatpush2.msra.mxu0 0.0
    %5185 = vmatprep.subr.mxu0 0.0
    %5186 = vmatpush2.msra.mxu0 0.0
    %5187 = vmatprep.subr.mxu0 0.0
    %5188 = vmatpush2.msra.mxu0 0.0
    %5189 = vmatprep.subr.mxu0 0.0
    %5190 = vmatpush2.msra.mxu0 0.0
    %5191 = vmatprep.mubr.f32.mxu0 0.0
    %5192 = vmatmul.mubr.f32.gmra.mxu0 %v5116
    %v5193 = vpop.f32.mrf.mxu0
    %v5194 = vadd.f32 0.0, %v5193
    %v5195 = vpop.f32.mrf.mxu0
    %5196 = vmatprep.mubr.f32.mxu0 0.0
    %5197 = vmatmul.mubr.f32.gmra.mxu0 %v5119
    %v5198 = vpop.f32.mrf.mxu0
    %v5199 = vadd.f32 0.0, %v5198
    %v5200 = vpop.f32.mrf.mxu0
    %5201 = vmatprep.mubr.f32.mxu0 0.0
    %5202 = vmatmul.mubr.f32.gmra.mxu0 %v5122
    %v5203 = vpop.f32.mrf.mxu0
    %v5204 = vadd.f32 0.0, %v5203
    %v5205 = vpop.f32.mrf.mxu0
    %5206 = vmatprep.mubr.f32.mxu0 0.0
    %5207 = vmatmul.mubr.f32.gmra.mxu0 %v5125
    %v5208 = vpop.f32.mrf.mxu0
    %v5209 = vadd.f32 0.0, %v5208
    %v5210 = vpop.f32.mrf.mxu0
    %5211 = vdwg.mxu0
    %v5212 = vadd.f32 %v5106, %v5194
    %v5213 = vadd.f32 %v5107, %v5199
    %v5214 = vadd.f32 %v5108, %v5204
    %v5215 = vadd.f32 %v5109, %v5209
    %s5216 = scalar_lea.vmem [#allocation14], 128
    %v5217 = vld [vmem:[%s5216] sm:$0xff]
    %v5218 = vld [vmem:[%s5216 + $0x8] sm:$0xff]
    %v5219 = vld [vmem:[%s5216 + $0x10] sm:$0xff]
    %v5220 = vld [vmem:[%s5216 + $0x18] sm:$0xff]
    %v5222 = vsel %vm4809, %v5217, 0
    %v5225 = vsel %vm4809, %v5218, 0
    %v5228 = vsel %vm4809, %v5219, 0
    %v5231 = vsel %vm4809, %v5220, 0
    %5233 = vmatprep.subr.mxu0 0.0
    %5234 = vmatpush1.msra.mxu0 0.0
    %5235 = vmatprep.subr.mxu0 0.0
    %5236 = vmatpush1.msra.mxu0 0.0
    %5237 = vmatprep.subr.mxu0 0.0
    %5238 = vmatpush1.msra.mxu0 0.0
    %5239 = vmatprep.subr.mxu0 0.0
    %5240 = vmatpush1.msra.mxu0 0.0
    %5241 = vmatprep.subr.mxu0 0.0
    %5242 = vmatpush1.msra.mxu0 0.0
    %5243 = vmatprep.subr.mxu0 0.0
    %5244 = vmatpush1.msra.mxu0 0.0
    %5245 = vmatprep.subr.mxu0 0.0
    %5246 = vmatpush1.msra.mxu0 0.0
    %5247 = vmatprep.subr.mxu0 0.0
    %5248 = vmatpush1.msra.mxu0 0.0
    %5249 = vmatprep.subr.mxu0 0.0
    %5250 = vmatpush1.msra.mxu0 0.0
    %5251 = vmatprep.subr.mxu0 0.0
    %5252 = vmatpush1.msra.mxu0 0.0
    %5253 = vmatprep.subr.mxu0 0.0
    %5254 = vmatpush1.msra.mxu0 0.0
    %5255 = vmatprep.subr.mxu0 0.0
    %5256 = vmatpush1.msra.mxu0 0.0
    %5257 = vmatprep.subr.mxu0 0.0
    %5258 = vmatpush1.msra.mxu0 %v4622
    %5259 = vmatprep.subr.mxu0 0.0
    %5260 = vmatpush1.msra.mxu0 %v4616
    %5261 = vmatprep.subr.mxu0 0.0
    %5262 = vmatpush1.msra.mxu0 %v4610
    %5263 = vmatprep.subr.mxu0 0.0
    %5264 = vmatpush1.msra.mxu0 %v4604
    %5265 = vmatprep.subr.mxu0 0.0
    %5266 = vmatpush2.msra.mxu0 0.0
    %5267 = vmatprep.subr.mxu0 0.0
    %5268 = vmatpush2.msra.mxu0 0.0
    %5269 = vmatprep.subr.mxu0 0.0
    %5270 = vmatpush2.msra.mxu0 0.0
    %5271 = vmatprep.subr.mxu0 0.0
    %5272 = vmatpush2.msra.mxu0 0.0
    %5273 = vmatprep.subr.mxu0 0.0
    %5274 = vmatpush2.msra.mxu0 0.0
    %5275 = vmatprep.subr.mxu0 0.0
    %5276 = vmatpush2.msra.mxu0 0.0
    %5277 = vmatprep.subr.mxu0 0.0
    %5278 = vmatpush2.msra.mxu0 0.0
    %5279 = vmatprep.subr.mxu0 0.0
    %5280 = vmatpush2.msra.mxu0 0.0
    %5281 = vmatprep.subr.mxu0 0.0
    %5282 = vmatpush2.msra.mxu0 0.0
    %5283 = vmatprep.subr.mxu0 0.0
    %5284 = vmatpush2.msra.mxu0 0.0
    %5285 = vmatprep.subr.mxu0 0.0
    %5286 = vmatpush2.msra.mxu0 0.0
    %5287 = vmatprep.subr.mxu0 0.0
    %5288 = vmatpush2.msra.mxu0 0.0
    %5289 = vmatprep.subr.mxu0 0.0
    %5290 = vmatpush2.msra.mxu0 0.0
    %5291 = vmatprep.subr.mxu0 0.0
    %5292 = vmatpush2.msra.mxu0 0.0
    %5293 = vmatprep.subr.mxu0 0.0
    %5294 = vmatpush2.msra.mxu0 0.0
    %5295 = vmatprep.subr.mxu0 0.0
    %5296 = vmatpush2.msra.mxu0 0.0
    %5297 = vmatprep.mubr.f32.mxu0 0.0
    %5298 = vmatmul.mubr.f32.gmra.mxu0 %v5222
    %v5299 = vpop.f32.mrf.mxu0
    %v5300 = vadd.f32 0.0, %v5299
    %v5301 = vpop.f32.mrf.mxu0
    %5302 = vmatprep.mubr.f32.mxu0 0.0
    %5303 = vmatmul.mubr.f32.gmra.mxu0 %v5225
    %v5304 = vpop.f32.mrf.mxu0
    %v5305 = vadd.f32 0.0, %v5304
    %v5306 = vpop.f32.mrf.mxu0
    %5307 = vmatprep.mubr.f32.mxu0 0.0
    %5308 = vmatmul.mubr.f32.gmra.mxu0 %v5228
    %v5309 = vpop.f32.mrf.mxu0
    %v5310 = vadd.f32 0.0, %v5309
    %v5311 = vpop.f32.mrf.mxu0
    %5312 = vmatprep.mubr.f32.mxu0 0.0
    %5313 = vmatmul.mubr.f32.gmra.mxu0 %v5231
    %v5314 = vpop.f32.mrf.mxu0
    %v5315 = vadd.f32 0.0, %v5314
    %v5316 = vpop.f32.mrf.mxu0
    %5317 = vdwg.mxu0
    %v5318 = vadd.f32 %v5212, %v5300
    %v5319 = vadd.f32 %v5213, %v5305
    %v5320 = vadd.f32 %v5214, %v5310
    %v5321 = vadd.f32 %v5215, %v5315
    %s5322 = scalar_lea.vmem [#allocation14], 160
    %v5323 = vld [vmem:[%s5322] sm:$0xff]
    %v5324 = vld [vmem:[%s5322 + $0x8] sm:$0xff]
    %v5325 = vld [vmem:[%s5322 + $0x10] sm:$0xff]
    %v5326 = vld [vmem:[%s5322 + $0x18] sm:$0xff]
    %v5328 = vsel %vm4809, %v5323, 0
    %v5331 = vsel %vm4809, %v5324, 0
    %v5334 = vsel %vm4809, %v5325, 0
    %v5337 = vsel %vm4809, %v5326, 0
    %5339 = vmatprep.subr.mxu0 0.0
    %5340 = vmatpush1.msra.mxu0 0.0
    %5341 = vmatprep.subr.mxu0 0.0
    %5342 = vmatpush1.msra.mxu0 0.0
    %5343 = vmatprep.subr.mxu0 0.0
    %5344 = vmatpush1.msra.mxu0 0.0
    %5345 = vmatprep.subr.mxu0 0.0
    %5346 = vmatpush1.msra.mxu0 0.0
    %5347 = vmatprep.subr.mxu0 0.0
    %5348 = vmatpush1.msra.mxu0 0.0
    %5349 = vmatprep.subr.mxu0 0.0
    %5350 = vmatpush1.msra.mxu0 0.0
    %5351 = vmatprep.subr.mxu0 0.0
    %5352 = vmatpush1.msra.mxu0 0.0
    %5353 = vmatprep.subr.mxu0 0.0
    %5354 = vmatpush1.msra.mxu0 0.0
    %5355 = vmatprep.subr.mxu0 0.0
    %5356 = vmatpush1.msra.mxu0 0.0
    %5357 = vmatprep.subr.mxu0 0.0
    %5358 = vmatpush1.msra.mxu0 0.0
    %5359 = vmatprep.subr.mxu0 0.0
    %5360 = vmatpush1.msra.mxu0 0.0
    %5361 = vmatprep.subr.mxu0 0.0
    %5362 = vmatpush1.msra.mxu0 0.0
    %5363 = vmatprep.subr.mxu0 0.0
    %5364 = vmatpush1.msra.mxu0 %v4624
    %5365 = vmatprep.subr.mxu0 0.0
    %5366 = vmatpush1.msra.mxu0 %v4618
    %5367 = vmatprep.subr.mxu0 0.0
    %5368 = vmatpush1.msra.mxu0 %v4612
    %5369 = vmatprep.subr.mxu0 0.0
    %5370 = vmatpush1.msra.mxu0 %v4606
    %5371 = vmatprep.subr.mxu0 0.0
    %5372 = vmatpush2.msra.mxu0 0.0
    %5373 = vmatprep.subr.mxu0 0.0
    %5374 = vmatpush2.msra.mxu0 0.0
    %5375 = vmatprep.subr.mxu0 0.0
    %5376 = vmatpush2.msra.mxu0 0.0
    %5377 = vmatprep.subr.mxu0 0.0
    %5378 = vmatpush2.msra.mxu0 0.0
    %5379 = vmatprep.subr.mxu0 0.0
    %5380 = vmatpush2.msra.mxu0 0.0
    %5381 = vmatprep.subr.mxu0 0.0
    %5382 = vmatpush2.msra.mxu0 0.0
    %5383 = vmatprep.subr.mxu0 0.0
    %5384 = vmatpush2.msra.mxu0 0.0
    %5385 = vmatprep.subr.mxu0 0.0
    %5386 = vmatpush2.msra.mxu0 0.0
    %5387 = vmatprep.subr.mxu0 0.0
    %5388 = vmatpush2.msra.mxu0 0.0
    %5389 = vmatprep.subr.mxu0 0.0
    %5390 = vmatpush2.msra.mxu0 0.0
    %5391 = vmatprep.subr.mxu0 0.0
    %5392 = vmatpush2.msra.mxu0 0.0
    %5393 = vmatprep.subr.mxu0 0.0
    %5394 = vmatpush2.msra.mxu0 0.0
    %5395 = vmatprep.subr.mxu0 0.0
    %5396 = vmatpush2.msra.mxu0 0.0
    %5397 = vmatprep.subr.mxu0 0.0
    %5398 = vmatpush2.msra.mxu0 0.0
    %5399 = vmatprep.subr.mxu0 0.0
    %5400 = vmatpush2.msra.mxu0 0.0
    %5401 = vmatprep.subr.mxu0 0.0
    %5402 = vmatpush2.msra.mxu0 0.0
    %5403 = vmatprep.mubr.f32.mxu0 0.0
    %5404 = vmatmul.mubr.f32.gmra.mxu0 %v5328
    %v5405 = vpop.f32.mrf.mxu0
    %v5406 = vadd.f32 0.0, %v5405
    %v5407 = vpop.f32.mrf.mxu0
    %5408 = vmatprep.mubr.f32.mxu0 0.0
    %5409 = vmatmul.mubr.f32.gmra.mxu0 %v5331
    %v5410 = vpop.f32.mrf.mxu0
    %v5411 = vadd.f32 0.0, %v5410
    %v5412 = vpop.f32.mrf.mxu0
    %5413 = vmatprep.mubr.f32.mxu0 0.0
    %5414 = vmatmul.mubr.f32.gmra.mxu0 %v5334
    %v5415 = vpop.f32.mrf.mxu0
    %v5416 = vadd.f32 0.0, %v5415
    %v5417 = vpop.f32.mrf.mxu0
    %5418 = vmatprep.mubr.f32.mxu0 0.0
    %5419 = vmatmul.mubr.f32.gmra.mxu0 %v5337
    %v5420 = vpop.f32.mrf.mxu0
    %v5421 = vadd.f32 0.0, %v5420
    %v5422 = vpop.f32.mrf.mxu0
    %5423 = vdwg.mxu0
    %v5424 = vadd.f32 %v5318, %v5406
    %v5425 = vadd.f32 %v5319, %v5411
    %v5426 = vadd.f32 %v5320, %v5416
    %v5427 = vadd.f32 %v5321, %v5421
    %s5428 = scalar_lea.vmem [#allocation14], 192
    %v5429 = vld [vmem:[%s5428] sm:$0xff]
    %v5430 = vld [vmem:[%s5428 + $0x8] sm:$0xff]
    %v5431 = vld [vmem:[%s5428 + $0x10] sm:$0xff]
    %v5432 = vld [vmem:[%s5428 + $0x18] sm:$0xff]
    %v5434 = vsel %vm4809, %v5429, 0
    %v5437 = vsel %vm4809, %v5430, 0
    %v5440 = vsel %vm4809, %v5431, 0
    %v5443 = vsel %vm4809, %v5432, 0
    %5445 = vmatprep.subr.mxu0 0.0
    %5446 = vmatpush1.msra.mxu0 0.0
    %5447 = vmatprep.subr.mxu0 0.0
    %5448 = vmatpush1.msra.mxu0 0.0
    %5449 = vmatprep.subr.mxu0 0.0
    %5450 = vmatpush1.msra.mxu0 0.0
    %5451 = vmatprep.subr.mxu0 0.0
    %5452 = vmatpush1.msra.mxu0 0.0
    %5453 = vmatprep.subr.mxu0 0.0
    %5454 = vmatpush1.msra.mxu0 0.0
    %5455 = vmatprep.subr.mxu0 0.0
    %5456 = vmatpush1.msra.mxu0 0.0
    %5457 = vmatprep.subr.mxu0 0.0
    %5458 = vmatpush1.msra.mxu0 0.0
    %5459 = vmatprep.subr.mxu0 0.0
    %5460 = vmatpush1.msra.mxu0 0.0
    %5461 = vmatprep.subr.mxu0 0.0
    %5462 = vmatpush1.msra.mxu0 0.0
    %5463 = vmatprep.subr.mxu0 0.0
    %5464 = vmatpush1.msra.mxu0 0.0
    %5465 = vmatprep.subr.mxu0 0.0
    %5466 = vmatpush1.msra.mxu0 0.0
    %5467 = vmatprep.subr.mxu0 0.0
    %5468 = vmatpush1.msra.mxu0 0.0
    %5469 = vmatprep.subr.mxu0 0.0
    %5470 = vmatpush1.msra.mxu0 %v4711
    %5471 = vmatprep.subr.mxu0 0.0
    %5472 = vmatpush1.msra.mxu0 %v4705
    %5473 = vmatprep.subr.mxu0 0.0
    %5474 = vmatpush1.msra.mxu0 %v4699
    %5475 = vmatprep.subr.mxu0 0.0
    %5476 = vmatpush1.msra.mxu0 %v4693
    %5477 = vmatprep.subr.mxu0 0.0
    %5478 = vmatpush2.msra.mxu0 0.0
    %5479 = vmatprep.subr.mxu0 0.0
    %5480 = vmatpush2.msra.mxu0 0.0
    %5481 = vmatprep.subr.mxu0 0.0
    %5482 = vmatpush2.msra.mxu0 0.0
    %5483 = vmatprep.subr.mxu0 0.0
    %5484 = vmatpush2.msra.mxu0 0.0
    %5485 = vmatprep.subr.mxu0 0.0
    %5486 = vmatpush2.msra.mxu0 0.0
    %5487 = vmatprep.subr.mxu0 0.0
    %5488 = vmatpush2.msra.mxu0 0.0
    %5489 = vmatprep.subr.mxu0 0.0
    %5490 = vmatpush2.msra.mxu0 0.0
    %5491 = vmatprep.subr.mxu0 0.0
    %5492 = vmatpush2.msra.mxu0 0.0
    %5493 = vmatprep.subr.mxu0 0.0
    %5494 = vmatpush2.msra.mxu0 0.0
    %5495 = vmatprep.subr.mxu0 0.0
    %5496 = vmatpush2.msra.mxu0 0.0
    %5497 = vmatprep.subr.mxu0 0.0
    %5498 = vmatpush2.msra.mxu0 0.0
    %5499 = vmatprep.subr.mxu0 0.0
    %5500 = vmatpush2.msra.mxu0 0.0
    %5501 = vmatprep.subr.mxu0 0.0
    %5502 = vmatpush2.msra.mxu0 0.0
    %5503 = vmatprep.subr.mxu0 0.0
    %5504 = vmatpush2.msra.mxu0 0.0
    %5505 = vmatprep.subr.mxu0 0.0
    %5506 = vmatpush2.msra.mxu0 0.0
    %5507 = vmatprep.subr.mxu0 0.0
    %5508 = vmatpush2.msra.mxu0 0.0
    %5509 = vmatprep.mubr.f32.mxu0 0.0
    %5510 = vmatmul.mubr.f32.gmra.mxu0 %v5434
    %v5511 = vpop.f32.mrf.mxu0
    %v5512 = vadd.f32 0.0, %v5511
    %v5513 = vpop.f32.mrf.mxu0
    %5514 = vmatprep.mubr.f32.mxu0 0.0
    %5515 = vmatmul.mubr.f32.gmra.mxu0 %v5437
    %v5516 = vpop.f32.mrf.mxu0
    %v5517 = vadd.f32 0.0, %v5516
    %v5518 = vpop.f32.mrf.mxu0
    %5519 = vmatprep.mubr.f32.mxu0 0.0
    %5520 = vmatmul.mubr.f32.gmra.mxu0 %v5440
    %v5521 = vpop.f32.mrf.mxu0
    %v5522 = vadd.f32 0.0, %v5521
    %v5523 = vpop.f32.mrf.mxu0
    %5524 = vmatprep.mubr.f32.mxu0 0.0
    %5525 = vmatmul.mubr.f32.gmra.mxu0 %v5443
    %v5526 = vpop.f32.mrf.mxu0
    %v5527 = vadd.f32 0.0, %v5526
    %v5528 = vpop.f32.mrf.mxu0
    %5529 = vdwg.mxu0
    %v5530 = vadd.f32 %v5424, %v5512
    %v5531 = vadd.f32 %v5425, %v5517
    %v5532 = vadd.f32 %v5426, %v5522
    %v5533 = vadd.f32 %v5427, %v5527
    %s5534 = scalar_lea.vmem [#allocation14], 224
    %v5535 = vld [vmem:[%s5534] sm:$0xff]
    %v5536 = vld [vmem:[%s5534 + $0x8] sm:$0xff]
    %v5537 = vld [vmem:[%s5534 + $0x10] sm:$0xff]
    %v5538 = vld [vmem:[%s5534 + $0x18] sm:$0xff]
    %v5540 = vsel %vm4809, %v5535, 0
    %v5543 = vsel %vm4809, %v5536, 0
    %v5546 = vsel %vm4809, %v5537, 0
    %v5549 = vsel %vm4809, %v5538, 0
    %5551 = vmatprep.subr.mxu0 0.0
    %5552 = vmatpush1.msra.mxu0 0.0
    %5553 = vmatprep.subr.mxu0 0.0
    %5554 = vmatpush1.msra.mxu0 0.0
    %5555 = vmatprep.subr.mxu0 0.0
    %5556 = vmatpush1.msra.mxu0 0.0
    %5557 = vmatprep.subr.mxu0 0.0
    %5558 = vmatpush1.msra.mxu0 0.0
    %5559 = vmatprep.subr.mxu0 0.0
    %5560 = vmatpush1.msra.mxu0 0.0
    %5561 = vmatprep.subr.mxu0 0.0
    %5562 = vmatpush1.msra.mxu0 0.0
    %5563 = vmatprep.subr.mxu0 0.0
    %5564 = vmatpush1.msra.mxu0 0.0
    %5565 = vmatprep.subr.mxu0 0.0
    %5566 = vmatpush1.msra.mxu0 0.0
    %5567 = vmatprep.subr.mxu0 0.0
    %5568 = vmatpush1.msra.mxu0 0.0
    %5569 = vmatprep.subr.mxu0 0.0
    %5570 = vmatpush1.msra.mxu0 0.0
    %5571 = vmatprep.subr.mxu0 0.0
    %5572 = vmatpush1.msra.mxu0 0.0
    %5573 = vmatprep.subr.mxu0 0.0
    %5574 = vmatpush1.msra.mxu0 0.0
    %5575 = vmatprep.subr.mxu0 0.0
    %5576 = vmatpush1.msra.mxu0 %v4713
    %5577 = vmatprep.subr.mxu0 0.0
    %5578 = vmatpush1.msra.mxu0 %v4707
    %5579 = vmatprep.subr.mxu0 0.0
    %5580 = vmatpush1.msra.mxu0 %v4701
    %5581 = vmatprep.subr.mxu0 0.0
    %5582 = vmatpush1.msra.mxu0 %v4695
    %5583 = vmatprep.subr.mxu0 0.0
    %5584 = vmatpush2.msra.mxu0 0.0
    %5585 = vmatprep.subr.mxu0 0.0
    %5586 = vmatpush2.msra.mxu0 0.0
    %5587 = vmatprep.subr.mxu0 0.0
    %5588 = vmatpush2.msra.mxu0 0.0
    %5589 = vmatprep.subr.mxu0 0.0
    %5590 = vmatpush2.msra.mxu0 0.0
    %5591 = vmatprep.subr.mxu0 0.0
    %5592 = vmatpush2.msra.mxu0 0.0
    %5593 = vmatprep.subr.mxu0 0.0
    %5594 = vmatpush2.msra.mxu0 0.0
    %5595 = vmatprep.subr.mxu0 0.0
    %5596 = vmatpush2.msra.mxu0 0.0
    %5597 = vmatprep.subr.mxu0 0.0
    %5598 = vmatpush2.msra.mxu0 0.0
    %5599 = vmatprep.subr.mxu0 0.0
    %5600 = vmatpush2.msra.mxu0 0.0
    %5601 = vmatprep.subr.mxu0 0.0
    %5602 = vmatpush2.msra.mxu0 0.0
    %5603 = vmatprep.subr.mxu0 0.0
    %5604 = vmatpush2.msra.mxu0 0.0
    %5605 = vmatprep.subr.mxu0 0.0
    %5606 = vmatpush2.msra.mxu0 0.0
    %5607 = vmatprep.subr.mxu0 0.0
    %5608 = vmatpush2.msra.mxu0 0.0
    %5609 = vmatprep.subr.mxu0 0.0
    %5610 = vmatpush2.msra.mxu0 0.0
    %5611 = vmatprep.subr.mxu0 0.0
    %5612 = vmatpush2.msra.mxu0 0.0
    %5613 = vmatprep.subr.mxu0 0.0
    %5614 = vmatpush2.msra.mxu0 0.0
    %5615 = vmatprep.mubr.f32.mxu0 0.0
    %5616 = vmatmul.mubr.f32.gmra.mxu0 %v5540
    %v5617 = vpop.f32.mrf.mxu0
    %v5618 = vadd.f32 0.0, %v5617
    %v5619 = vpop.f32.mrf.mxu0
    %5620 = vmatprep.mubr.f32.mxu0 0.0
    %5621 = vmatmul.mubr.f32.gmra.mxu0 %v5543
    %v5622 = vpop.f32.mrf.mxu0
    %v5623 = vadd.f32 0.0, %v5622
    %v5624 = vpop.f32.mrf.mxu0
    %5625 = vmatprep.mubr.f32.mxu0 0.0
    %5626 = vmatmul.mubr.f32.gmra.mxu0 %v5546
    %v5627 = vpop.f32.mrf.mxu0
    %v5628 = vadd.f32 0.0, %v5627
    %v5629 = vpop.f32.mrf.mxu0
    %5630 = vmatprep.mubr.f32.mxu0 0.0
    %5631 = vmatmul.mubr.f32.gmra.mxu0 %v5549
    %v5632 = vpop.f32.mrf.mxu0
    %v5633 = vadd.f32 0.0, %v5632
    %v5634 = vpop.f32.mrf.mxu0
    %5635 = vdwg.mxu0
    %v5636 = vadd.f32 %v5530, %v5618
    %v5637 = vadd.f32 %v5531, %v5623
    %v5638 = vadd.f32 %v5532, %v5628
    %v5639 = vadd.f32 %v5533, %v5633
    %s5640 = scalar_lea.vmem [#allocation14], 256
    %v5641 = vld [vmem:[%s5640] sm:$0xff]
    %v5642 = vld [vmem:[%s5640 + $0x8] sm:$0xff]
    %v5643 = vld [vmem:[%s5640 + $0x10] sm:$0xff]
    %v5644 = vld [vmem:[%s5640 + $0x18] sm:$0xff]
    %v5646 = vsel %vm4809, %v5641, 0
    %v5649 = vsel %vm4809, %v5642, 0
    %v5652 = vsel %vm4809, %v5643, 0
    %v5655 = vsel %vm4809, %v5644, 0
    %5657 = vmatprep.subr.mxu0 0.0
    %5658 = vmatpush1.msra.mxu0 0.0
    %5659 = vmatprep.subr.mxu0 0.0
    %5660 = vmatpush1.msra.mxu0 0.0
    %5661 = vmatprep.subr.mxu0 0.0
    %5662 = vmatpush1.msra.mxu0 0.0
    %5663 = vmatprep.subr.mxu0 0.0
    %5664 = vmatpush1.msra.mxu0 0.0
    %5665 = vmatprep.subr.mxu0 0.0
    %5666 = vmatpush1.msra.mxu0 0.0
    %5667 = vmatprep.subr.mxu0 0.0
    %5668 = vmatpush1.msra.mxu0 0.0
    %5669 = vmatprep.subr.mxu0 0.0
    %5670 = vmatpush1.msra.mxu0 0.0
    %5671 = vmatprep.subr.mxu0 0.0
    %5672 = vmatpush1.msra.mxu0 0.0
    %5673 = vmatprep.subr.mxu0 0.0
    %5674 = vmatpush1.msra.mxu0 0.0
    %5675 = vmatprep.subr.mxu0 0.0
    %5676 = vmatpush1.msra.mxu0 0.0
    %5677 = vmatprep.subr.mxu0 0.0
    %5678 = vmatpush1.msra.mxu0 0.0
    %5679 = vmatprep.subr.mxu0 0.0
    %5680 = vmatpush1.msra.mxu0 0.0
    %5681 = vmatprep.subr.mxu0 0.0
    %5682 = vmatpush1.msra.mxu0 %v4797
    %5683 = vmatprep.subr.mxu0 0.0
    %5684 = vmatpush1.msra.mxu0 %v4792
    %5685 = vmatprep.subr.mxu0 0.0
    %5686 = vmatpush1.msra.mxu0 %v4787
    %5687 = vmatprep.subr.mxu0 0.0
    %5688 = vmatpush1.msra.mxu0 %v4782
    %5689 = vmatprep.subr.mxu0 0.0
    %5690 = vmatpush2.msra.mxu0 0.0
    %5691 = vmatprep.subr.mxu0 0.0
    %5692 = vmatpush2.msra.mxu0 0.0
    %5693 = vmatprep.subr.mxu0 0.0
    %5694 = vmatpush2.msra.mxu0 0.0
    %5695 = vmatprep.subr.mxu0 0.0
    %5696 = vmatpush2.msra.mxu0 0.0
    %5697 = vmatprep.subr.mxu0 0.0
    %5698 = vmatpush2.msra.mxu0 0.0
    %5699 = vmatprep.subr.mxu0 0.0
    %5700 = vmatpush2.msra.mxu0 0.0
    %5701 = vmatprep.subr.mxu0 0.0
    %5702 = vmatpush2.msra.mxu0 0.0
    %5703 = vmatprep.subr.mxu0 0.0
    %5704 = vmatpush2.msra.mxu0 0.0
    %5705 = vmatprep.subr.mxu0 0.0
    %5706 = vmatpush2.msra.mxu0 0.0
    %5707 = vmatprep.subr.mxu0 0.0
    %5708 = vmatpush2.msra.mxu0 0.0
    %5709 = vmatprep.subr.mxu0 0.0
    %5710 = vmatpush2.msra.mxu0 0.0
    %5711 = vmatprep.subr.mxu0 0.0
    %5712 = vmatpush2.msra.mxu0 0.0
    %5713 = vmatprep.subr.mxu0 0.0
    %5714 = vmatpush2.msra.mxu0 0.0
    %5715 = vmatprep.subr.mxu0 0.0
    %5716 = vmatpush2.msra.mxu0 0.0
    %5717 = vmatprep.subr.mxu0 0.0
    %5718 = vmatpush2.msra.mxu0 0.0
    %5719 = vmatprep.subr.mxu0 0.0
    %5720 = vmatpush2.msra.mxu0 0.0
    %5721 = vmatprep.mubr.f32.mxu0 0.0
    %5722 = vmatmul.mubr.f32.gmra.mxu0 %v5646
    %v5723 = vpop.f32.mrf.mxu0
    %v5724 = vadd.f32 0.0, %v5723
    %v5725 = vpop.f32.mrf.mxu0
    %5726 = vmatprep.mubr.f32.mxu0 0.0
    %5727 = vmatmul.mubr.f32.gmra.mxu0 %v5649
    %v5728 = vpop.f32.mrf.mxu0
    %v5729 = vadd.f32 0.0, %v5728
    %v5730 = vpop.f32.mrf.mxu0
    %5731 = vmatprep.mubr.f32.mxu0 0.0
    %5732 = vmatmul.mubr.f32.gmra.mxu0 %v5652
    %v5733 = vpop.f32.mrf.mxu0
    %v5734 = vadd.f32 0.0, %v5733
    %v5735 = vpop.f32.mrf.mxu0
    %5736 = vmatprep.mubr.f32.mxu0 0.0
    %5737 = vmatmul.mubr.f32.gmra.mxu0 %v5655
    %v5738 = vpop.f32.mrf.mxu0
    %v5739 = vadd.f32 0.0, %v5738
    %v5740 = vpop.f32.mrf.mxu0
    %5741 = vdwg.mxu0
    %v5742 = vadd.f32 %v5636, %v5724
    %v5743 = vadd.f32 %v5637, %v5729
    %v5744 = vadd.f32 %v5638, %v5734
    %v5745 = vadd.f32 %v5639, %v5739
    %v5746 = vld [vmem:[#allocation15] sm:$0xff]
    %v5747 = vld [vmem:[#allocation15 + $0x8] sm:$0xff]
    %v5748 = vld [vmem:[#allocation15 + $0x10] sm:$0xff]
    %v5749 = vld [vmem:[#allocation15 + $0x18] sm:$0xff]
    %5751 = vset.pattern.permute.xlu0 0
    %5752 = vperm.xlu0 %5751, %v5746
    %v5753 = vpop.permute.xlu0 %5752
    %5756 = vset.pattern.permute.xlu0 0
    %5757 = vperm.xlu0 %5756, %v5747
    %v5758 = vpop.permute.xlu0 %5757
    %5761 = vset.pattern.permute.xlu0 0
    %5762 = vperm.xlu0 %5761, %v5748
    %v5763 = vpop.permute.xlu0 %5762
    %5766 = vset.pattern.permute.xlu0 0
    %5767 = vperm.xlu0 %5766, %v5749
    %v5768 = vpop.permute.xlu0 %5767
    %v5770 = vadd.f32 %v5742, %v5753
    %v5771 = vadd.f32 %v5743, %v5758
    %v5772 = vadd.f32 %v5744, %v5763
    %v5773 = vadd.f32 %v5745, %v5768
    %v5774 = vmax.f32 %v5770, 0.0
    %v5775 = vmax.f32 %v5771, 0.0
    %v5776 = vmax.f32 %v5772, 0.0
    %v5777 = vmax.f32 %v5773, 0.0
    %5778 = vst [vmem:[%s9] sm:$0xff] %v5774
    %5779 = vst [vmem:[%s9 + $0x8] sm:$0xff] %v5775
    %5780 = vst [vmem:[%s9 + $0x10] sm:$0xff] %v5776
    %5781 = vst [vmem:[%s9 + $0x18] sm:$0xff] %v5777
    // Predicated region
    $region70: #{bae_cnn_forward.2} parent=1 // pred_check
      _
    $region71: #{bae_cnn_forward.2} parent=1 // pred_check_branch
      %5783 = sbr.rel (0) target = $region73
    $region72: #{bae_cnn_forward.2} parent=1 // pred_region
      _
    $region73: #{bae_cnn_forward.2} parent=1 // pred_fallthru
      _
    // Predicated region
    $region74: #{bae_cnn_forward.2} parent=1 // pred_check
      _
    $region75: #{bae_cnn_forward.2} parent=1 // pred_check_branch
      %5785 = sbr.rel (0) target = $region77
    $region76: #{bae_cnn_forward.2} parent=1 // pred_region
      _
    $region77: #{bae_cnn_forward.2} parent=1 // pred_fallthru
      _
    %5786 = vsyncpa [#allocation5], 1
    %5787 = vsyncpa [#allocation7], 1
    %5788 = vsyncpa [#allocation10], 1
    %5789 = vsyncpa [#allocation13], 1
    %5790 = vsyncpa [#allocation16], 1

</llo_original>
